<compile_context>
chip_gen: v7x
topology: tpu7x:2x2x1
jax: 0.10.0
libtpu: 0.0.40
codegen_flags: <defaults>
</compile_context>

<pallas_src>
import functools

import jax
import jax.numpy as jnp
from jax.experimental import pallas as pl
from jax.experimental.pallas import tpu as pltpu

_LANE = 128                    # channel padding target (TPU lane width)
_TM_TARGET = 256               # output-row tile (raise to 512-1024 for real ResNet
                               # shapes on v5e/v6e; halve the VMEM budget on v7x)
_VMEM_LIMIT = 48 * 1024 * 1024  # above scoped defaults, below every chip's physical


def _round_up(v, m):
    return (v + m - 1) // m * m


def _pick_tm(m, target=_TM_TARGET):
    return min(target, _round_up(m, 8))


# ----------------------------- Pallas kernels ------------------------------

def _acc_taps(x_ref, scale_ref, bias_ref, w_ref, *, tm, wg, wp):
    """Fused BN->ReLU prologue + in-kernel im2col as 9 shifted MXU dots (f32 acc)."""
    i = pl.program_id(0)
    start = pl.multiple_of(i * tm, 8)                 # 8-aligned halo slab start
    halo = tm + 2 * wg
    xa = x_ref[pl.ds(start, halo), :]                 # (halo, Cin_p) f32
    a = jnp.maximum(xa * scale_ref[...] + bias_ref[...], 0.0)   # BN + ReLU in f32
    acc = None
    for dy in range(3):
        for dx in range(3):
            off = dy * wp + dx                        # static shift of the window
            win = a[off:off + tm, :].astype(jnp.bfloat16)        # bf16 MXU operand
            d = jnp.dot(win, w_ref[dy * 3 + dx],
                        preferred_element_type=jnp.float32)
            acc = d if acc is None else acc + d
    return acc


def _conv3x3_kernel(x_ref, s_ref, b_ref, w_ref, o_ref, *, tm, wg, wp):
    o_ref[...] = _acc_taps(x_ref, s_ref, b_ref, w_ref, tm=tm, wg=wg, wp=wp)


def _conv3x3_add_kernel(x_ref, s_ref, b_ref, w_ref, r_ref, o_ref, *, tm, wg, wp):
    acc = _acc_taps(x_ref, s_ref, b_ref, w_ref, tm=tm, wg=wg, wp=wp)
    o_ref[...] = acc + r_ref[...]                     # identity residual, exact f32


def _conv3x3_sc_kernel(x_ref, s_ref, b_ref, w_ref, r_ref, ss_ref, sb_ref, sw_ref,
                       o_ref, *, tm, wg, wp):
    acc = _acc_taps(x_ref, s_ref, b_ref, w_ref, tm=tm, wg=wg, wp=wp)
    sr = r_ref[...] * ss_ref[...] + sb_ref[...]       # shortcut BN (no ReLU), f32
    acc = acc + jnp.dot(sr.astype(jnp.bfloat16), sw_ref[...],
                        preferred_element_type=jnp.float32)      # fused 1x1 conv
    o_ref[...] = acc


def _fused_conv3x3(xprep, scale, bias, w, meta, tm, *, residual=None, shortcut=None):
    """3x3 conv (stride 1 over the padded flat grid) with fused BN/ReLU prologue,
    optional fused residual add and optional fused BN+1x1 shortcut."""
    m_pad, wg, wp = meta["m_pad"], meta["wg"], meta["wp"]
    cop = w.shape[-1]
    grid = (m_pad // tm,)

    def full(shape):                                  # whole-array resident block
        nd = len(shape)
        return pl.BlockSpec(shape, lambda *_: (0,) * nd)

    in_specs = [full(xprep.shape), full(scale.shape), full(bias.shape), full(w.shape)]
    args = [xprep, scale, bias, w]
    if shortcut is not None:
        ss, sb, sw = shortcut
        kern = functools.partial(_conv3x3_sc_kernel, tm=tm, wg=wg, wp=wp)
        in_specs += [pl.BlockSpec((tm, residual.shape[1]), lambda i: (i, 0)),
                     full(ss.shape), full(sb.shape), full(sw.shape)]
        args += [residual, ss, sb, sw]
    elif residual is not None:
        kern = functools.partial(_conv3x3_add_kernel, tm=tm, wg=wg, wp=wp)
        in_specs += [pl.BlockSpec((tm, residual.shape[1]), lambda i: (i, 0))]
        args += [residual]
    else:
        kern = functools.partial(_conv3x3_kernel, tm=tm, wg=wg, wp=wp)

    return pl.pallas_call(
        kern,
        out_shape=jax.ShapeDtypeStruct((m_pad, cop), jnp.float32),
        grid=grid,
        in_specs=in_specs,
        out_specs=pl.BlockSpec((tm, cop), lambda i: (i, 0)),
        compiler_params=pltpu.CompilerParams(
            dimension_semantics=("parallel",),
            vmem_limit_bytes=_VMEM_LIMIT),
    )(*args)


# ------------------------------- JAX glue ----------------------------------
# Only cheap layout plumbing lives here (pad / flatten / slice); all compute
# (BN, ReLU, im2col dots, residual / shortcut) is inside the two kernels.

def _flat_conv_input(x, pad_val, tm):
    """(N,H,W,Cp) -> flattened spatially-padded slab with halo guard rows.

    Spatial padding uses per-channel pad_val = -bias/scale so that the in-kernel
    BN+ReLU prologue maps padded positions to exactly ~0 (no mask needed)."""
    n, h, w, cp = x.shape
    hp, wp = h + 2, w + 2
    wg = wp + 1                                       # halo rows needed in flat space
    f = hp * wp
    m = n * f
    m_pad = _round_up(m, tm)
    base = jnp.zeros((n, hp, wp, cp), x.dtype) + pad_val.reshape(1, 1, 1, cp)
    base = base.at[:, 1:h + 1, 1:w + 1, :].set(x)
    flat = base.reshape(m, cp)
    head = jnp.zeros((wg, cp), x.dtype) + pad_val.reshape(1, cp)
    tail = jnp.zeros((m_pad - m + wg, cp), x.dtype) + pad_val.reshape(1, cp)
    xprep = jnp.concatenate([head, flat, tail], axis=0)          # (m_pad + 2*wg, cp)
    meta = dict(n=n, hp=hp, wp=wp, wg=wg, f=f, m=m, m_pad=m_pad)
    return xprep, meta


def _flat_res_input(r, m_pad):
    """Residual source laid out on the same padded-flat-grid row indexing."""
    n, h, w, c = r.shape
    rp = jnp.pad(r, ((0, 0), (1, 1), (1, 1), (0, 0)))
    flat = rp.reshape(n * (h + 2) * (w + 2), c)
    return jnp.pad(flat, ((0, m_pad - flat.shape[0]), (0, 0)))


def _unflatten(y, meta, stride):
    n, hp, wp, f = meta["n"], meta["hp"], meta["wp"], meta["f"]
    img = y[: n * f].reshape(n, hp, wp, y.shape[-1])
    return img[:, 1:hp - 1:stride, 1:wp - 1:stride, :]


def preact_unit(x, p, stride):
    """One _PreActUnit (expansion=1). x: (N,H,W,Cp) NHWC, channel-padded f32."""
    n, h, w, _ = x.shape
    # conv1: BN1+ReLU fused prologue, 3x3.  Computed at stride 1 over the padded
    # flat grid; the wrapper keeps every `stride`-th valid row/col.
    # TODO(synk): emit only the strided output rows to skip the 4x extra MXU work
    #             (and garbage-row writeback) at down-sampling units.
    tm1 = _pick_tm(n * (h + 2) * (w + 2))
    xprep1, meta1 = _flat_conv_input(x, p["pad1"], tm1)
    y1 = _fused_conv3x3(xprep1, p["bn1_scale_p"], p["bn1_bias_p"], p["w1_p"],
                        meta1, tm1)
    c1 = _unflatten(y1, meta1, stride)                # (N, Ho, Wo, Cop)
    # Dropout(drop_rate=0.0) == identity.
    ho, wo = h // stride, w // stride

    # conv2: BN2+ReLU fused prologue, 3x3 stride 1, residual fused into the same call.
    tm2 = _pick_tm(n * (ho + 2) * (wo + 2))
    xprep2, meta2 = _flat_conv_input(c1, p["pad2"], tm2)
    if "ws_p" in p:
        # i_block shortcut: strided slice FIRST (4x less traffic), then BN (no ReLU)
        # and the 1x1 conv, both fused inside the conv2 kernel.
        rsrc = _flat_res_input(x[:, ::stride, ::stride, :], meta2["m_pad"])
        y2 = _fused_conv3x3(xprep2, p["bn2_scale_p"], p["bn2_bias_p"], p["w2_p"],
                            meta2, tm2, residual=rsrc,
                            shortcut=(p["bns_scale_p"], p["bns_bias_p"], p["ws_p"]))
    else:
        rsrc = _flat_res_input(x, meta2["m_pad"])     # identity shortcut
        y2 = _fused_conv3x3(xprep2, p["bn2_scale_p"], p["bn2_bias_p"], p["w2_p"],
                            meta2, tm2, residual=rsrc)
    return _unflatten(y2, meta2, 1)


def preact_block(x, unit_params, strides):
    out = x
    for p, s in zip(unit_params, strides):
        out = preact_unit(out, p, s)
    return out


# ------------------------- deterministic parameters ------------------------

def _bn_affine(key, c):
    k1, k2, k3, k4 = jax.random.split(key, 4)
    gamma = jax.random.uniform(k1, (c,), minval=0.5, maxval=1.5)
    beta = 0.1 * jax.random.normal(k2, (c,))
    mean = 0.1 * jax.random.normal(k3, (c,))
    var = jax.random.uniform(k4, (c,), minval=0.5, maxval=1.5)
    scale = gamma / jnp.sqrt(var + 1e-5)
    bias = beta - mean * scale
    return scale.astype(jnp.float32), bias.astype(jnp.float32)


def _pad_affine(scale, bias, cp):
    c = scale.shape[0]
    s = jnp.pad(scale, (0, cp - c))
    b = jnp.pad(bias, (0, cp - c))
    denom = jnp.where(s != 0, s, 1.0)
    pad_val = jnp.where(s != 0, -b / denom, 0.0)      # BN maps this value to 0
    return s.reshape(1, cp), b.reshape(1, cp), pad_val.astype(jnp.float32)


def _pack_w3x3(w_oihw, cip, cop):
    co, ci = w_oihw.shape[:2]
    w = jnp.transpose(w_oihw, (2, 3, 1, 0)).reshape(9, ci, co)   # tap t = dy*3+dx
    w = jnp.pad(w, ((0, 0), (0, cip - ci), (0, cop - co)))
    return w.astype(jnp.bfloat16)


def _pack_w1x1(w_oihw, cip, cop):
    co, ci = w_oihw.shape[:2]
    w = jnp.transpose(w_oihw[:, :, 0, 0], (1, 0))
    w = jnp.pad(w, ((0, cip - ci), (0, cop - co)))
    return w.astype(jnp.bfloat16)


def init_unit_params(key, cin, cout, stride, cip, cop, expansion=1):
    ks = jax.random.split(key, 6)
    p = {}
    p["bn1_s"], p["bn1_b"] = _bn_affine(ks[0], cin)
    p["bn1_scale_p"], p["bn1_bias_p"], p["pad1"] = _pad_affine(p["bn1_s"], p["bn1_b"], cip)
    w1 = (jax.random.normal(ks[1], (cout, cin, 3, 3))
          * (2.0 / (cin * 9)) ** 0.5).astype(jnp.float32)
    p["w1_oihw"], p["w1_p"] = w1, _pack_w3x3(w1, cip, cop)

    p["bn2_s"], p["bn2_b"] = _bn_affine(ks[2], cout)
    p["bn2_scale_p"], p["bn2_bias_p"], p["pad2"] = _pad_affine(p["bn2_s"], p["bn2_b"], cop)
    w2 = (jax.random.normal(ks[3], (cout, cout, 3, 3))
          * (2.0 / (cout * 9)) ** 0.5).astype(jnp.float32)
    p["w2_oihw"], p["w2_p"] = w2, _pack_w3x3(w2, cop, cop)

    if stride != 1 or cin != expansion * cout:
        p["bns_s"], p["bns_b"] = _bn_affine(ks[4], cin)
        p["bns_scale_p"], p["bns_bias_p"], _ = _pad_affine(p["bns_s"], p["bns_b"], cip)
        ws = (jax.random.normal(ks[5], (expansion * cout, cin, 1, 1))
              * (2.0 / cin) ** 0.5).astype(jnp.float32)
        p["ws_oihw"], p["ws_p"] = ws, _pack_w1x1(ws, cip, cop)
    return p


# ------------------------- pure-JAX reference (check) ----------------------

def _conv_ref(x, w_oihw, stride, pad):
    return jax.lax.conv_general_dilated(
        x, jnp.transpose(w_oihw, (2, 3, 1, 0)),
        window_strides=(stride, stride), padding=((pad, pad), (pad, pad)),
        dimension_numbers=("NHWC", "HWIO", "NHWC"),
        precision=jax.lax.Precision.HIGHEST)


def _aff(x, s, b):
    return x * s.reshape(1, 1, 1, -1) + b.reshape(1, 1, 1, -1)


def preact_unit_ref(x, p, stride):
    a1 = jnp.maximum(_aff(x, p["bn1_s"], p["bn1_b"]), 0.0)
    c1 = _conv_ref(a1, p["w1_oihw"], stride, 1)
    a2 = jnp.maximum(_aff(c1, p["bn2_s"], p["bn2_b"]), 0.0)
    c2 = _conv_ref(a2, p["w2_oihw"], 1, 1)
    if "ws_oihw" in p:
        s0 = _aff(x, p["bns_s"], p["bns_b"])
        sc = _conv_ref(s0, p["ws_oihw"], stride, 0)
    else:
        sc = x
    return c2 + sc


# ----------------------------------- main -----------------------------------

if __name__ == "__main__":
    key = jax.random.PRNGKey(0)
    kx, kp1, kp2 = jax.random.split(key, 3)

    # Block config: input_channel=4, output_channel=8, expansion=1,
    # block_depth=2, down_sample=True, drop_rate=0.0
    N, Cin, H, W = 2, 4, 16, 16
    Cout, expansion, down_sample = 8, 1, True
    CP = _LANE

    x_nchw = jax.random.normal(kx, (N, Cin, H, W), dtype=jnp.float32)
    x = jnp.transpose(x_nchw, (0, 2, 3, 1))           # NCHW -> NHWC

    strides = [1 + int(down_sample), 1]
    unit_params = [
        init_unit_params(kp1, Cin, Cout, strides[0], CP, CP, expansion),
        init_unit_params(kp2, Cout * expansion, Cout, strides[1], CP, CP, expansion),
    ]

    @jax.jit
    def run(xin):
        xp = jnp.pad(xin, ((0, 0), (0, 0), (0, 0), (0, CP - Cin)))  # lane-pad channels once
        yp = preact_block(xp, unit_params, strides)
        return yp[..., :Cout * expansion]                           # drop channel padding

    out = jax.block_until_ready(run(x))

    ref = x
    for p, s in zip(unit_params, strides):
        ref = preact_unit_ref(ref, p, s)
    ref = jax.block_until_ready(ref)

    err = float(jnp.max(jnp.abs(out - ref)))
    scale = float(jnp.max(jnp.abs(ref))) + 1e-6
    assert out.shape == ref.shape == (N, H // 2, W // 2, Cout * expansion), out.shape
    assert err <= 5e-2 * scale, f"mismatch: max abs err {err} vs ref scale {scale}"
    print("KERNEL_OK")
</pallas_src>

<mosaic_0001>
module attributes {stable_mosaic.version = 11 : i64} {
  func.func @_conv3x3_kernel(%arg0: i32, %arg1: memref<806x128xf32, #tpu.memory_space<vmem>>, %arg2: memref<1x128xf32, #tpu.memory_space<vmem>>, %arg3: memref<1x128xf32, #tpu.memory_space<vmem>>, %arg4: memref<9x128x128xbf16, #tpu.memory_space<vmem>>, %arg5: memref<256x128xf32, #tpu.memory_space<vmem>>) attributes {dimension_semantics = [#tpu.dimension_semantics<parallel>], iteration_bounds = array<i64: 3>, scalar_prefetch = 0 : i64, scratch_operands = 0 : i64, tpu.core_type = #tpu.core_type<tc>, window_params = [{pipeline_mode = #tpu.pipeline_mode<synchronous>, transform_indices = @transform_0, window_bounds = array<i64: 806, 128>}, {pipeline_mode = #tpu.pipeline_mode<synchronous>, transform_indices = @transform_1, window_bounds = array<i64: 1, 128>}, {pipeline_mode = #tpu.pipeline_mode<synchronous>, transform_indices = @transform_2, window_bounds = array<i64: 1, 128>}, {pipeline_mode = #tpu.pipeline_mode<synchronous>, transform_indices = @transform_3, window_bounds = array<i64: 9, 128, 128>}, {transform_indices = @transform_4, window_bounds = array<i64: 256, 128>}]} {
    %c256_i32 = arith.constant 256 : i32
    %0 = arith.muli %arg0, %c256_i32 : i32
    %1 = tpu.assume_multiple %0, 8 : i32
    %2 = arith.index_cast %1 : i32 to index
    %c0 = arith.constant 0 : index
    %3 = vector.load %arg1[%2, %c0] : memref<806x128xf32, #tpu.memory_space<vmem>>, vector<294x128xf32>
    %c0_0 = arith.constant 0 : index
    %c0_1 = arith.constant 0 : index
    %4 = vector.load %arg2[%c0_0, %c0_1] : memref<1x128xf32, #tpu.memory_space<vmem>>, vector<1x128xf32>
    %5 = vector.broadcast %4 : vector<1x128xf32> to vector<294x128xf32>
    %6 = arith.mulf %3, %5 : vector<294x128xf32>
    %c0_2 = arith.constant 0 : index
    %c0_3 = arith.constant 0 : index
    %7 = vector.load %arg3[%c0_2, %c0_3] : memref<1x128xf32, #tpu.memory_space<vmem>>, vector<1x128xf32>
    %8 = vector.broadcast %7 : vector<1x128xf32> to vector<294x128xf32>
    %9 = arith.addf %6, %8 : vector<294x128xf32>
    %cst = arith.constant 0.000000e+00 : f32
    %10 = vector.broadcast %cst : f32 to vector<294x128xf32>
    %11 = arith.maximumf %9, %10 : vector<294x128xf32>
    %12 = vector.extract_strided_slice %11 {offsets = [0, 0], sizes = [256, 128], strides = [1, 1]} : vector<294x128xf32> to vector<256x128xf32>
    %13 = arith.truncf %12 : vector<256x128xf32> to vector<256x128xbf16>
    %c0_4 = arith.constant 0 : index
    %c0_5 = arith.constant 0 : index
    %c0_6 = arith.constant 0 : index
    %14 = vector.load %arg4[%c0_4, %c0_5, %c0_6] : memref<9x128x128xbf16, #tpu.memory_space<vmem>>, vector<1x128x128xbf16>
    %15 = vector.shape_cast %14 : vector<1x128x128xbf16> to vector<128x128xbf16>
    %cst_7 = arith.constant dense<0.000000e+00> : vector<256x128xf32>
    %16 = tpu.matmul %13, %15, %cst_7 {dimension_numbers = #tpu.dot_dimension_numbers<[1], [0], [0], [1], [0, 0, 1, 1], [], []>} : vector<256x128xbf16>, vector<128x128xbf16>, vector<256x128xf32> -> vector<256x128xf32>
    %17 = vector.extract_strided_slice %11 {offsets = [1, 0], sizes = [256, 128], strides = [1, 1]} : vector<294x128xf32> to vector<256x128xf32>
    %18 = arith.truncf %17 : vector<256x128xf32> to vector<256x128xbf16>
    %c1 = arith.constant 1 : index
    %c0_8 = arith.constant 0 : index
    %c0_9 = arith.constant 0 : index
    %19 = vector.load %arg4[%c1, %c0_8, %c0_9] : memref<9x128x128xbf16, #tpu.memory_space<vmem>>, vector<1x128x128xbf16>
    %20 = vector.shape_cast %19 : vector<1x128x128xbf16> to vector<128x128xbf16>
    %cst_10 = arith.constant dense<0.000000e+00> : vector<256x128xf32>
    %21 = tpu.matmul %18, %20, %cst_10 {dimension_numbers = #tpu.dot_dimension_numbers<[1], [0], [0], [1], [0, 0, 1, 1], [], []>} : vector<256x128xbf16>, vector<128x128xbf16>, vector<256x128xf32> -> vector<256x128xf32>
    %22 = arith.addf %16, %21 : vector<256x128xf32>
    %23 = vector.extract_strided_slice %11 {offsets = [2, 0], sizes = [256, 128], strides = [1, 1]} : vector<294x128xf32> to vector<256x128xf32>
    %24 = arith.truncf %23 : vector<256x128xf32> to vector<256x128xbf16>
    %c2 = arith.constant 2 : index
    %c0_11 = arith.constant 0 : index
    %c0_12 = arith.constant 0 : index
    %25 = vector.load %arg4[%c2, %c0_11, %c0_12] : memref<9x128x128xbf16, #tpu.memory_space<vmem>>, vector<1x128x128xbf16>
    %26 = vector.shape_cast %25 : vector<1x128x128xbf16> to vector<128x128xbf16>
    %cst_13 = arith.constant dense<0.000000e+00> : vector<256x128xf32>
    %27 = tpu.matmul %24, %26, %cst_13 {dimension_numbers = #tpu.dot_dimension_numbers<[1], [0], [0], [1], [0, 0, 1, 1], [], []>} : vector<256x128xbf16>, vector<128x128xbf16>, vector<256x128xf32> -> vector<256x128xf32>
    %28 = arith.addf %22, %27 : vector<256x128xf32>
    %29 = vector.extract_strided_slice %11 {offsets = [18, 0], sizes = [256, 128], strides = [1, 1]} : vector<294x128xf32> to vector<256x128xf32>
    %30 = arith.truncf %29 : vector<256x128xf32> to vector<256x128xbf16>
    %c3 = arith.constant 3 : index
    %c0_14 = arith.constant 0 : index
    %c0_15 = arith.constant 0 : index
    %31 = vector.load %arg4[%c3, %c0_14, %c0_15] : memref<9x128x128xbf16, #tpu.memory_space<vmem>>, vector<1x128x128xbf16>
    %32 = vector.shape_cast %31 : vector<1x128x128xbf16> to vector<128x128xbf16>
    %cst_16 = arith.constant dense<0.000000e+00> : vector<256x128xf32>
    %33 = tpu.matmul %30, %32, %cst_16 {dimension_numbers = #tpu.dot_dimension_numbers<[1], [0], [0], [1], [0, 0, 1, 1], [], []>} : vector<256x128xbf16>, vector<128x128xbf16>, vector<256x128xf32> -> vector<256x128xf32>
    %34 = arith.addf %28, %33 : vector<256x128xf32>
    %35 = vector.extract_strided_slice %11 {offsets = [19, 0], sizes = [256, 128], strides = [1, 1]} : vector<294x128xf32> to vector<256x128xf32>
    %36 = arith.truncf %35 : vector<256x128xf32> to vector<256x128xbf16>
    %c4 = arith.constant 4 : index
    %c0_17 = arith.constant 0 : index
    %c0_18 = arith.constant 0 : index
    %37 = vector.load %arg4[%c4, %c0_17, %c0_18] : memref<9x128x128xbf16, #tpu.memory_space<vmem>>, vector<1x128x128xbf16>
    %38 = vector.shape_cast %37 : vector<1x128x128xbf16> to vector<128x128xbf16>
    %cst_19 = arith.constant dense<0.000000e+00> : vector<256x128xf32>
    %39 = tpu.matmul %36, %38, %cst_19 {dimension_numbers = #tpu.dot_dimension_numbers<[1], [0], [0], [1], [0, 0, 1, 1], [], []>} : vector<256x128xbf16>, vector<128x128xbf16>, vector<256x128xf32> -> vector<256x128xf32>
    %40 = arith.addf %34, %39 : vector<256x128xf32>
    %41 = vector.extract_strided_slice %11 {offsets = [20, 0], sizes = [256, 128], strides = [1, 1]} : vector<294x128xf32> to vector<256x128xf32>
    %42 = arith.truncf %41 : vector<256x128xf32> to vector<256x128xbf16>
    %c5 = arith.constant 5 : index
    %c0_20 = arith.constant 0 : index
    %c0_21 = arith.constant 0 : index
    %43 = vector.load %arg4[%c5, %c0_20, %c0_21] : memref<9x128x128xbf16, #tpu.memory_space<vmem>>, vector<1x128x128xbf16>
    %44 = vector.shape_cast %43 : vector<1x128x128xbf16> to vector<128x128xbf16>
    %cst_22 = arith.constant dense<0.000000e+00> : vector<256x128xf32>
    %45 = tpu.matmul %42, %44, %cst_22 {dimension_numbers = #tpu.dot_dimension_numbers<[1], [0], [0], [1], [0, 0, 1, 1], [], []>} : vector<256x128xbf16>, vector<128x128xbf16>, vector<256x128xf32> -> vector<256x128xf32>
    %46 = arith.addf %40, %45 : vector<256x128xf32>
    %47 = vector.extract_strided_slice %11 {offsets = [36, 0], sizes = [256, 128], strides = [1, 1]} : vector<294x128xf32> to vector<256x128xf32>
    %48 = arith.truncf %47 : vector<256x128xf32> to vector<256x128xbf16>
    %c6 = arith.constant 6 : index
    %c0_23 = arith.constant 0 : index
    %c0_24 = arith.constant 0 : index
    %49 = vector.load %arg4[%c6, %c0_23, %c0_24] : memref<9x128x128xbf16, #tpu.memory_space<vmem>>, vector<1x128x128xbf16>
    %50 = vector.shape_cast %49 : vector<1x128x128xbf16> to vector<128x128xbf16>
    %cst_25 = arith.constant dense<0.000000e+00> : vector<256x128xf32>
    %51 = tpu.matmul %48, %50, %cst_25 {dimension_numbers = #tpu.dot_dimension_numbers<[1], [0], [0], [1], [0, 0, 1, 1], [], []>} : vector<256x128xbf16>, vector<128x128xbf16>, vector<256x128xf32> -> vector<256x128xf32>
    %52 = arith.addf %46, %51 : vector<256x128xf32>
    %53 = vector.extract_strided_slice %11 {offsets = [37, 0], sizes = [256, 128], strides = [1, 1]} : vector<294x128xf32> to vector<256x128xf32>
    %54 = arith.truncf %53 : vector<256x128xf32> to vector<256x128xbf16>
    %c7 = arith.constant 7 : index
    %c0_26 = arith.constant 0 : index
    %c0_27 = arith.constant 0 : index
    %55 = vector.load %arg4[%c7, %c0_26, %c0_27] : memref<9x128x128xbf16, #tpu.memory_space<vmem>>, vector<1x128x128xbf16>
    %56 = vector.shape_cast %55 : vector<1x128x128xbf16> to vector<128x128xbf16>
    %cst_28 = arith.constant dense<0.000000e+00> : vector<256x128xf32>
    %57 = tpu.matmul %54, %56, %cst_28 {dimension_numbers = #tpu.dot_dimension_numbers<[1], [0], [0], [1], [0, 0, 1, 1], [], []>} : vector<256x128xbf16>, vector<128x128xbf16>, vector<256x128xf32> -> vector<256x128xf32>
    %58 = arith.addf %52, %57 : vector<256x128xf32>
    %59 = vector.extract_strided_slice %11 {offsets = [38, 0], sizes = [256, 128], strides = [1, 1]} : vector<294x128xf32> to vector<256x128xf32>
    %60 = arith.truncf %59 : vector<256x128xf32> to vector<256x128xbf16>
    %c8 = arith.constant 8 : index
    %c0_29 = arith.constant 0 : index
    %c0_30 = arith.constant 0 : index
    %61 = vector.load %arg4[%c8, %c0_29, %c0_30] : memref<9x128x128xbf16, #tpu.memory_space<vmem>>, vector<1x128x128xbf16>
    %62 = vector.shape_cast %61 : vector<1x128x128xbf16> to vector<128x128xbf16>
    %cst_31 = arith.constant dense<0.000000e+00> : vector<256x128xf32>
    %63 = tpu.matmul %60, %62, %cst_31 {dimension_numbers = #tpu.dot_dimension_numbers<[1], [0], [0], [1], [0, 0, 1, 1], [], []>} : vector<256x128xbf16>, vector<128x128xbf16>, vector<256x128xf32> -> vector<256x128xf32>
    %64 = arith.addf %58, %63 : vector<256x128xf32>
    %c0_32 = arith.constant 0 : index
    %c0_33 = arith.constant 0 : index
    %65 = vector.load %arg5[%c0_32, %c0_33] : memref<256x128xf32, #tpu.memory_space<vmem>>, vector<256x128xf32>
    tpu.vector_store %arg5[%c0_32, %c0_33], %64 {strides = array<i32>} : memref<256x128xf32, #tpu.memory_space<vmem>>, vector<256x128xf32>,
    return
  }
  func.func @transform_0(%arg0: i32) -> (i32, i32) {
    %c0_i32 = arith.constant 0 : i32
    %c0_i32_0 = arith.constant 0 : i32
    %c0_i32_1 = arith.constant 0 : i32
    return %c0_i32, %c0_i32_0 : i32, i32
  }
  func.func @transform_1(%arg0: i32) -> (i32, i32) {
    %c0_i32 = arith.constant 0 : i32
    %c0_i32_0 = arith.constant 0 : i32
    %c0_i32_1 = arith.constant 0 : i32
    return %c0_i32, %c0_i32_0 : i32, i32
  }
  func.func @transform_2(%arg0: i32) -> (i32, i32) {
    %c0_i32 = arith.constant 0 : i32
    %c0_i32_0 = arith.constant 0 : i32
    %c0_i32_1 = arith.constant 0 : i32
    return %c0_i32, %c0_i32_0 : i32, i32
  }
  func.func @transform_3(%arg0: i32) -> (i32, i32, i32) {
    %c0_i32 = arith.constant 0 : i32
    %c0_i32_0 = arith.constant 0 : i32
    %c0_i32_1 = arith.constant 0 : i32
    %c0_i32_2 = arith.constant 0 : i32
    return %c0_i32, %c0_i32_0, %c0_i32_1 : i32, i32, i32
  }
  func.func @transform_4(%arg0: i32) -> (i32, i32) {
    %c0_i32 = arith.constant 0 : i32
    %c0_i32_0 = arith.constant 0 : i32
    return %arg0, %c0_i32 : i32, i32
  }
}

module attributes {stable_mosaic.version = 11 : i64} {
  func.func @_conv3x3_sc_kernel(%arg0: i32, %arg1: memref<222x128xf32, #tpu.memory_space<vmem>>, %arg2: memref<1x128xf32, #tpu.memory_space<vmem>>, %arg3: memref<1x128xf32, #tpu.memory_space<vmem>>, %arg4: memref<9x128x128xbf16, #tpu.memory_space<vmem>>, %arg5: memref<200x128xf32, #tpu.memory_space<vmem>>, %arg6: memref<1x128xf32, #tpu.memory_space<vmem>>, %arg7: memref<1x128xf32, #tpu.memory_space<vmem>>, %arg8: memref<128x128xbf16, #tpu.memory_space<vmem>>, %arg9: memref<200x128xf32, #tpu.memory_space<vmem>>) attributes {dimension_semantics = [#tpu.dimension_semantics<parallel>], iteration_bounds = array<i64: 1>, scalar_prefetch = 0 : i64, scratch_operands = 0 : i64, tpu.core_type = #tpu.core_type<tc>, window_params = [{pipeline_mode = #tpu.pipeline_mode<synchronous>, transform_indices = @transform_0, window_bounds = array<i64: 222, 128>}, {pipeline_mode = #tpu.pipeline_mode<synchronous>, transform_indices = @transform_1, window_bounds = array<i64: 1, 128>}, {pipeline_mode = #tpu.pipeline_mode<synchronous>, transform_indices = @transform_2, window_bounds = array<i64: 1, 128>}, {pipeline_mode = #tpu.pipeline_mode<synchronous>, transform_indices = @transform_3, window_bounds = array<i64: 9, 128, 128>}, {transform_indices = @transform_4, window_bounds = array<i64: 200, 128>}, {pipeline_mode = #tpu.pipeline_mode<synchronous>, transform_indices = @transform_5, window_bounds = array<i64: 1, 128>}, {pipeline_mode = #tpu.pipeline_mode<synchronous>, transform_indices = @transform_6, window_bounds = array<i64: 1, 128>}, {pipeline_mode = #tpu.pipeline_mode<synchronous>, transform_indices = @transform_7, window_bounds = array<i64: 128, 128>}, {transform_indices = @transform_8, window_bounds = array<i64: 200, 128>}]} {
    %c200_i32 = arith.constant 200 : i32
    %0 = arith.muli %arg0, %c200_i32 : i32
    %1 = tpu.assume_multiple %0, 8 : i32
    %2 = arith.index_cast %1 : i32 to index
    %c0 = arith.constant 0 : index
    %3 = vector.load %arg1[%2, %c0] : memref<222x128xf32, #tpu.memory_space<vmem>>, vector<222x128xf32>
    %c0_0 = arith.constant 0 : index
    %c0_1 = arith.constant 0 : index
    %4 = vector.load %arg2[%c0_0, %c0_1] : memref<1x128xf32, #tpu.memory_space<vmem>>, vector<1x128xf32>
    %5 = vector.broadcast %4 : vector<1x128xf32> to vector<222x128xf32>
    %6 = arith.mulf %3, %5 : vector<222x128xf32>
    %c0_2 = arith.constant 0 : index
    %c0_3 = arith.constant 0 : index
    %7 = vector.load %arg3[%c0_2, %c0_3] : memref<1x128xf32, #tpu.memory_space<vmem>>, vector<1x128xf32>
    %8 = vector.broadcast %7 : vector<1x128xf32> to vector<222x128xf32>
    %9 = arith.addf %6, %8 : vector<222x128xf32>
    %cst = arith.constant 0.000000e+00 : f32
    %10 = vector.broadcast %cst : f32 to vector<222x128xf32>
    %11 = arith.maximumf %9, %10 : vector<222x128xf32>
    %12 = vector.extract_strided_slice %11 {offsets = [0, 0], sizes = [200, 128], strides = [1, 1]} : vector<222x128xf32> to vector<200x128xf32>
    %13 = arith.truncf %12 : vector<200x128xf32> to vector<200x128xbf16>
    %c0_4 = arith.constant 0 : index
    %c0_5 = arith.constant 0 : index
    %c0_6 = arith.constant 0 : index
    %14 = vector.load %arg4[%c0_4, %c0_5, %c0_6] : memref<9x128x128xbf16, #tpu.memory_space<vmem>>, vector<1x128x128xbf16>
    %15 = vector.shape_cast %14 : vector<1x128x128xbf16> to vector<128x128xbf16>
    %cst_7 = arith.constant dense<0.000000e+00> : vector<200x128xf32>
    %16 = tpu.matmul %13, %15, %cst_7 {dimension_numbers = #tpu.dot_dimension_numbers<[1], [0], [0], [1], [0, 0, 1, 1], [], []>} : vector<200x128xbf16>, vector<128x128xbf16>, vector<200x128xf32> -> vector<200x128xf32>
    %17 = vector.extract_strided_slice %11 {offsets = [1, 0], sizes = [200, 128], strides = [1, 1]} : vector<222x128xf32> to vector<200x128xf32>
    %18 = arith.truncf %17 : vector<200x128xf32> to vector<200x128xbf16>
    %c1 = arith.constant 1 : index
    %c0_8 = arith.constant 0 : index
    %c0_9 = arith.constant 0 : index
    %19 = vector.load %arg4[%c1, %c0_8, %c0_9] : memref<9x128x128xbf16, #tpu.memory_space<vmem>>, vector<1x128x128xbf16>
    %20 = vector.shape_cast %19 : vector<1x128x128xbf16> to vector<128x128xbf16>
    %cst_10 = arith.constant dense<0.000000e+00> : vector<200x128xf32>
    %21 = tpu.matmul %18, %20, %cst_10 {dimension_numbers = #tpu.dot_dimension_numbers<[1], [0], [0], [1], [0, 0, 1, 1], [], []>} : vector<200x128xbf16>, vector<128x128xbf16>, vector<200x128xf32> -> vector<200x128xf32>
    %22 = arith.addf %16, %21 : vector<200x128xf32>
    %23 = vector.extract_strided_slice %11 {offsets = [2, 0], sizes = [200, 128], strides = [1, 1]} : vector<222x128xf32> to vector<200x128xf32>
    %24 = arith.truncf %23 : vector<200x128xf32> to vector<200x128xbf16>
    %c2 = arith.constant 2 : index
    %c0_11 = arith.constant 0 : index
    %c0_12 = arith.constant 0 : index
    %25 = vector.load %arg4[%c2, %c0_11, %c0_12] : memref<9x128x128xbf16, #tpu.memory_space<vmem>>, vector<1x128x128xbf16>
    %26 = vector.shape_cast %25 : vector<1x128x128xbf16> to vector<128x128xbf16>
    %cst_13 = arith.constant dense<0.000000e+00> : vector<200x128xf32>
    %27 = tpu.matmul %24, %26, %cst_13 {dimension_numbers = #tpu.dot_dimension_numbers<[1], [0], [0], [1], [0, 0, 1, 1], [], []>} : vector<200x128xbf16>, vector<128x128xbf16>, vector<200x128xf32> -> vector<200x128xf32>
    %28 = arith.addf %22, %27 : vector<200x128xf32>
    %29 = vector.extract_strided_slice %11 {offsets = [10, 0], sizes = [200, 128], strides = [1, 1]} : vector<222x128xf32> to vector<200x128xf32>
    %30 = arith.truncf %29 : vector<200x128xf32> to vector<200x128xbf16>
    %c3 = arith.constant 3 : index
    %c0_14 = arith.constant 0 : index
    %c0_15 = arith.constant 0 : index
    %31 = vector.load %arg4[%c3, %c0_14, %c0_15] : memref<9x128x128xbf16, #tpu.memory_space<vmem>>, vector<1x128x128xbf16>
    %32 = vector.shape_cast %31 : vector<1x128x128xbf16> to vector<128x128xbf16>
    %cst_16 = arith.constant dense<0.000000e+00> : vector<200x128xf32>
    %33 = tpu.matmul %30, %32, %cst_16 {dimension_numbers = #tpu.dot_dimension_numbers<[1], [0], [0], [1], [0, 0, 1, 1], [], []>} : vector<200x128xbf16>, vector<128x128xbf16>, vector<200x128xf32> -> vector<200x128xf32>
    %34 = arith.addf %28, %33 : vector<200x128xf32>
    %35 = vector.extract_strided_slice %11 {offsets = [11, 0], sizes = [200, 128], strides = [1, 1]} : vector<222x128xf32> to vector<200x128xf32>
    %36 = arith.truncf %35 : vector<200x128xf32> to vector<200x128xbf16>
    %c4 = arith.constant 4 : index
    %c0_17 = arith.constant 0 : index
    %c0_18 = arith.constant 0 : index
    %37 = vector.load %arg4[%c4, %c0_17, %c0_18] : memref<9x128x128xbf16, #tpu.memory_space<vmem>>, vector<1x128x128xbf16>
    %38 = vector.shape_cast %37 : vector<1x128x128xbf16> to vector<128x128xbf16>
    %cst_19 = arith.constant dense<0.000000e+00> : vector<200x128xf32>
    %39 = tpu.matmul %36, %38, %cst_19 {dimension_numbers = #tpu.dot_dimension_numbers<[1], [0], [0], [1], [0, 0, 1, 1], [], []>} : vector<200x128xbf16>, vector<128x128xbf16>, vector<200x128xf32> -> vector<200x128xf32>
    %40 = arith.addf %34, %39 : vector<200x128xf32>
    %41 = vector.extract_strided_slice %11 {offsets = [12, 0], sizes = [200, 128], strides = [1, 1]} : vector<222x128xf32> to vector<200x128xf32>
    %42 = arith.truncf %41 : vector<200x128xf32> to vector<200x128xbf16>
    %c5 = arith.constant 5 : index
    %c0_20 = arith.constant 0 : index
    %c0_21 = arith.constant 0 : index
    %43 = vector.load %arg4[%c5, %c0_20, %c0_21] : memref<9x128x128xbf16, #tpu.memory_space<vmem>>, vector<1x128x128xbf16>
    %44 = vector.shape_cast %43 : vector<1x128x128xbf16> to vector<128x128xbf16>
    %cst_22 = arith.constant dense<0.000000e+00> : vector<200x128xf32>
    %45 = tpu.matmul %42, %44, %cst_22 {dimension_numbers = #tpu.dot_dimension_numbers<[1], [0], [0], [1], [0, 0, 1, 1], [], []>} : vector<200x128xbf16>, vector<128x128xbf16>, vector<200x128xf32> -> vector<200x128xf32>
    %46 = arith.addf %40, %45 : vector<200x128xf32>
    %47 = vector.extract_strided_slice %11 {offsets = [20, 0], sizes = [200, 128], strides = [1, 1]} : vector<222x128xf32> to vector<200x128xf32>
    %48 = arith.truncf %47 : vector<200x128xf32> to vector<200x128xbf16>
    %c6 = arith.constant 6 : index
    %c0_23 = arith.constant 0 : index
    %c0_24 = arith.constant 0 : index
    %49 = vector.load %arg4[%c6, %c0_23, %c0_24] : memref<9x128x128xbf16, #tpu.memory_space<vmem>>, vector<1x128x128xbf16>
    %50 = vector.shape_cast %49 : vector<1x128x128xbf16> to vector<128x128xbf16>
    %cst_25 = arith.constant dense<0.000000e+00> : vector<200x128xf32>
    %51 = tpu.matmul %48, %50, %cst_25 {dimension_numbers = #tpu.dot_dimension_numbers<[1], [0], [0], [1], [0, 0, 1, 1], [], []>} : vector<200x128xbf16>, vector<128x128xbf16>, vector<200x128xf32> -> vector<200x128xf32>
    %52 = arith.addf %46, %51 : vector<200x128xf32>
    %53 = vector.extract_strided_slice %11 {offsets = [21, 0], sizes = [200, 128], strides = [1, 1]} : vector<222x128xf32> to vector<200x128xf32>
    %54 = arith.truncf %53 : vector<200x128xf32> to vector<200x128xbf16>
    %c7 = arith.constant 7 : index
    %c0_26 = arith.constant 0 : index
    %c0_27 = arith.constant 0 : index
    %55 = vector.load %arg4[%c7, %c0_26, %c0_27] : memref<9x128x128xbf16, #tpu.memory_space<vmem>>, vector<1x128x128xbf16>
    %56 = vector.shape_cast %55 : vector<1x128x128xbf16> to vector<128x128xbf16>
    %cst_28 = arith.constant dense<0.000000e+00> : vector<200x128xf32>
    %57 = tpu.matmul %54, %56, %cst_28 {dimension_numbers = #tpu.dot_dimension_numbers<[1], [0], [0], [1], [0, 0, 1, 1], [], []>} : vector<200x128xbf16>, vector<128x128xbf16>, vector<200x128xf32> -> vector<200x128xf32>
    %58 = arith.addf %52, %57 : vector<200x128xf32>
    %59 = vector.extract_strided_slice %11 {offsets = [22, 0], sizes = [200, 128], strides = [1, 1]} : vector<222x128xf32> to vector<200x128xf32>
    %60 = arith.truncf %59 : vector<200x128xf32> to vector<200x128xbf16>
    %c8 = arith.constant 8 : index
    %c0_29 = arith.constant 0 : index
    %c0_30 = arith.constant 0 : index
    %61 = vector.load %arg4[%c8, %c0_29, %c0_30] : memref<9x128x128xbf16, #tpu.memory_space<vmem>>, vector<1x128x128xbf16>
    %62 = vector.shape_cast %61 : vector<1x128x128xbf16> to vector<128x128xbf16>
    %cst_31 = arith.constant dense<0.000000e+00> : vector<200x128xf32>
    %63 = tpu.matmul %60, %62, %cst_31 {dimension_numbers = #tpu.dot_dimension_numbers<[1], [0], [0], [1], [0, 0, 1, 1], [], []>} : vector<200x128xbf16>, vector<128x128xbf16>, vector<200x128xf32> -> vector<200x128xf32>
    %64 = arith.addf %58, %63 : vector<200x128xf32>
    %c0_32 = arith.constant 0 : index
    %c0_33 = arith.constant 0 : index
    %65 = vector.load %arg5[%c0_32, %c0_33] : memref<200x128xf32, #tpu.memory_space<vmem>>, vector<200x128xf32>
    %c0_34 = arith.constant 0 : index
    %c0_35 = arith.constant 0 : index
    %66 = vector.load %arg6[%c0_34, %c0_35] : memref<1x128xf32, #tpu.memory_space<vmem>>, vector<1x128xf32>
    %67 = vector.broadcast %66 : vector<1x128xf32> to vector<200x128xf32>
    %68 = arith.mulf %65, %67 : vector<200x128xf32>
    %c0_36 = arith.constant 0 : index
    %c0_37 = arith.constant 0 : index
    %69 = vector.load %arg7[%c0_36, %c0_37] : memref<1x128xf32, #tpu.memory_space<vmem>>, vector<1x128xf32>
    %70 = vector.broadcast %69 : vector<1x128xf32> to vector<200x128xf32>
    %71 = arith.addf %68, %70 : vector<200x128xf32>
    %72 = arith.truncf %71 : vector<200x128xf32> to vector<200x128xbf16>
    %c0_38 = arith.constant 0 : index
    %c0_39 = arith.constant 0 : index
    %73 = vector.load %arg8[%c0_38, %c0_39] : memref<128x128xbf16, #tpu.memory_space<vmem>>, vector<128x128xbf16>
    %cst_40 = arith.constant dense<0.000000e+00> : vector<200x128xf32>
    %74 = tpu.matmul %72, %73, %cst_40 {dimension_numbers = #tpu.dot_dimension_numbers<[1], [0], [0], [1], [0, 0, 1, 1], [], []>} : vector<200x128xbf16>, vector<128x128xbf16>, vector<200x128xf32> -> vector<200x128xf32>
    %75 = arith.addf %64, %74 : vector<200x128xf32>
    %c0_41 = arith.constant 0 : index
    %c0_42 = arith.constant 0 : index
    %76 = vector.load %arg9[%c0_41, %c0_42] : memref<200x128xf32, #tpu.memory_space<vmem>>, vector<200x128xf32>
    tpu.vector_store %arg9[%c0_41, %c0_42], %75 {strides = array<i32>} : memref<200x128xf32, #tpu.memory_space<vmem>>, vector<200x128xf32>,
    return
  }
  func.func @transform_0(%arg0: i32) -> (i32, i32) {
    %c0_i32 = arith.constant 0 : i32
    %c0_i32_0 = arith.constant 0 : i32
    %c0_i32_1 = arith.constant 0 : i32
    return %c0_i32, %c0_i32_0 : i32, i32
  }
  func.func @transform_1(%arg0: i32) -> (i32, i32) {
    %c0_i32 = arith.constant 0 : i32
    %c0_i32_0 = arith.constant 0 : i32
    %c0_i32_1 = arith.constant 0 : i32
    return %c0_i32, %c0_i32_0 : i32, i32
  }
  func.func @transform_2(%arg0: i32) -> (i32, i32) {
    %c0_i32 = arith.constant 0 : i32
    %c0_i32_0 = arith.constant 0 : i32
    %c0_i32_1 = arith.constant 0 : i32
    return %c0_i32, %c0_i32_0 : i32, i32
  }
  func.func @transform_3(%arg0: i32) -> (i32, i32, i32) {
    %c0_i32 = arith.constant 0 : i32
    %c0_i32_0 = arith.constant 0 : i32
    %c0_i32_1 = arith.constant 0 : i32
    %c0_i32_2 = arith.constant 0 : i32
    return %c0_i32, %c0_i32_0, %c0_i32_1 : i32, i32, i32
  }
  func.func @transform_4(%arg0: i32) -> (i32, i32) {
    %c0_i32 = arith.constant 0 : i32
    %c0_i32_0 = arith.constant 0 : i32
    return %arg0, %c0_i32 : i32, i32
  }
  func.func @transform_5(%arg0: i32) -> (i32, i32) {
    %c0_i32 = arith.constant 0 : i32
    %c0_i32_0 = arith.constant 0 : i32
    %c0_i32_1 = arith.constant 0 : i32
    return %c0_i32, %c0_i32_0 : i32, i32
  }
  func.func @transform_6(%arg0: i32) -> (i32, i32) {
    %c0_i32 = arith.constant 0 : i32
    %c0_i32_0 = arith.constant 0 : i32
    %c0_i32_1 = arith.constant 0 : i32
    return %c0_i32, %c0_i32_0 : i32, i32
  }
  func.func @transform_7(%arg0: i32) -> (i32, i32) {
    %c0_i32 = arith.constant 0 : i32
    %c0_i32_0 = arith.constant 0 : i32
    %c0_i32_1 = arith.constant 0 : i32
    return %c0_i32, %c0_i32_0 : i32, i32
  }
  func.func @transform_8(%arg0: i32) -> (i32, i32) {
    %c0_i32 = arith.constant 0 : i32
    %c0_i32_0 = arith.constant 0 : i32
    return %arg0, %c0_i32 : i32, i32
  }
}

module attributes {stable_mosaic.version = 11 : i64} {
  func.func @_conv3x3_add_kernel(%arg0: i32, %arg1: memref<222x128xf32, #tpu.memory_space<vmem>>, %arg2: memref<1x128xf32, #tpu.memory_space<vmem>>, %arg3: memref<1x128xf32, #tpu.memory_space<vmem>>, %arg4: memref<9x128x128xbf16, #tpu.memory_space<vmem>>, %arg5: memref<200x128xf32, #tpu.memory_space<vmem>>, %arg6: memref<200x128xf32, #tpu.memory_space<vmem>>) attributes {dimension_semantics = [#tpu.dimension_semantics<parallel>], iteration_bounds = array<i64: 1>, scalar_prefetch = 0 : i64, scratch_operands = 0 : i64, tpu.core_type = #tpu.core_type<tc>, window_params = [{pipeline_mode = #tpu.pipeline_mode<synchronous>, transform_indices = @transform_0, window_bounds = array<i64: 222, 128>}, {pipeline_mode = #tpu.pipeline_mode<synchronous>, transform_indices = @transform_1, window_bounds = array<i64: 1, 128>}, {pipeline_mode = #tpu.pipeline_mode<synchronous>, transform_indices = @transform_2, window_bounds = array<i64: 1, 128>}, {pipeline_mode = #tpu.pipeline_mode<synchronous>, transform_indices = @transform_3, window_bounds = array<i64: 9, 128, 128>}, {transform_indices = @transform_4, window_bounds = array<i64: 200, 128>}, {transform_indices = @transform_5, window_bounds = array<i64: 200, 128>}]} {
    %c200_i32 = arith.constant 200 : i32
    %0 = arith.muli %arg0, %c200_i32 : i32
    %1 = tpu.assume_multiple %0, 8 : i32
    %2 = arith.index_cast %1 : i32 to index
    %c0 = arith.constant 0 : index
    %3 = vector.load %arg1[%2, %c0] : memref<222x128xf32, #tpu.memory_space<vmem>>, vector<222x128xf32>
    %c0_0 = arith.constant 0 : index
    %c0_1 = arith.constant 0 : index
    %4 = vector.load %arg2[%c0_0, %c0_1] : memref<1x128xf32, #tpu.memory_space<vmem>>, vector<1x128xf32>
    %5 = vector.broadcast %4 : vector<1x128xf32> to vector<222x128xf32>
    %6 = arith.mulf %3, %5 : vector<222x128xf32>
    %c0_2 = arith.constant 0 : index
    %c0_3 = arith.constant 0 : index
    %7 = vector.load %arg3[%c0_2, %c0_3] : memref<1x128xf32, #tpu.memory_space<vmem>>, vector<1x128xf32>
    %8 = vector.broadcast %7 : vector<1x128xf32> to vector<222x128xf32>
    %9 = arith.addf %6, %8 : vector<222x128xf32>
    %cst = arith.constant 0.000000e+00 : f32
    %10 = vector.broadcast %cst : f32 to vector<222x128xf32>
    %11 = arith.maximumf %9, %10 : vector<222x128xf32>
    %12 = vector.extract_strided_slice %11 {offsets = [0, 0], sizes = [200, 128], strides = [1, 1]} : vector<222x128xf32> to vector<200x128xf32>
    %13 = arith.truncf %12 : vector<200x128xf32> to vector<200x128xbf16>
    %c0_4 = arith.constant 0 : index
    %c0_5 = arith.constant 0 : index
    %c0_6 = arith.constant 0 : index
    %14 = vector.load %arg4[%c0_4, %c0_5, %c0_6] : memref<9x128x128xbf16, #tpu.memory_space<vmem>>, vector<1x128x128xbf16>
    %15 = vector.shape_cast %14 : vector<1x128x128xbf16> to vector<128x128xbf16>
    %cst_7 = arith.constant dense<0.000000e+00> : vector<200x128xf32>
    %16 = tpu.matmul %13, %15, %cst_7 {dimension_numbers = #tpu.dot_dimension_numbers<[1], [0], [0], [1], [0, 0, 1, 1], [], []>} : vector<200x128xbf16>, vector<128x128xbf16>, vector<200x128xf32> -> vector<200x128xf32>
    %17 = vector.extract_strided_slice %11 {offsets = [1, 0], sizes = [200, 128], strides = [1, 1]} : vector<222x128xf32> to vector<200x128xf32>
    %18 = arith.truncf %17 : vector<200x128xf32> to vector<200x128xbf16>
    %c1 = arith.constant 1 : index
    %c0_8 = arith.constant 0 : index
    %c0_9 = arith.constant 0 : index
    %19 = vector.load %arg4[%c1, %c0_8, %c0_9] : memref<9x128x128xbf16, #tpu.memory_space<vmem>>, vector<1x128x128xbf16>
    %20 = vector.shape_cast %19 : vector<1x128x128xbf16> to vector<128x128xbf16>
    %cst_10 = arith.constant dense<0.000000e+00> : vector<200x128xf32>
    %21 = tpu.matmul %18, %20, %cst_10 {dimension_numbers = #tpu.dot_dimension_numbers<[1], [0], [0], [1], [0, 0, 1, 1], [], []>} : vector<200x128xbf16>, vector<128x128xbf16>, vector<200x128xf32> -> vector<200x128xf32>
    %22 = arith.addf %16, %21 : vector<200x128xf32>
    %23 = vector.extract_strided_slice %11 {offsets = [2, 0], sizes = [200, 128], strides = [1, 1]} : vector<222x128xf32> to vector<200x128xf32>
    %24 = arith.truncf %23 : vector<200x128xf32> to vector<200x128xbf16>
    %c2 = arith.constant 2 : index
    %c0_11 = arith.constant 0 : index
    %c0_12 = arith.constant 0 : index
    %25 = vector.load %arg4[%c2, %c0_11, %c0_12] : memref<9x128x128xbf16, #tpu.memory_space<vmem>>, vector<1x128x128xbf16>
    %26 = vector.shape_cast %25 : vector<1x128x128xbf16> to vector<128x128xbf16>
    %cst_13 = arith.constant dense<0.000000e+00> : vector<200x128xf32>
    %27 = tpu.matmul %24, %26, %cst_13 {dimension_numbers = #tpu.dot_dimension_numbers<[1], [0], [0], [1], [0, 0, 1, 1], [], []>} : vector<200x128xbf16>, vector<128x128xbf16>, vector<200x128xf32> -> vector<200x128xf32>
    %28 = arith.addf %22, %27 : vector<200x128xf32>
    %29 = vector.extract_strided_slice %11 {offsets = [10, 0], sizes = [200, 128], strides = [1, 1]} : vector<222x128xf32> to vector<200x128xf32>
    %30 = arith.truncf %29 : vector<200x128xf32> to vector<200x128xbf16>
    %c3 = arith.constant 3 : index
    %c0_14 = arith.constant 0 : index
    %c0_15 = arith.constant 0 : index
    %31 = vector.load %arg4[%c3, %c0_14, %c0_15] : memref<9x128x128xbf16, #tpu.memory_space<vmem>>, vector<1x128x128xbf16>
    %32 = vector.shape_cast %31 : vector<1x128x128xbf16> to vector<128x128xbf16>
    %cst_16 = arith.constant dense<0.000000e+00> : vector<200x128xf32>
    %33 = tpu.matmul %30, %32, %cst_16 {dimension_numbers = #tpu.dot_dimension_numbers<[1], [0], [0], [1], [0, 0, 1, 1], [], []>} : vector<200x128xbf16>, vector<128x128xbf16>, vector<200x128xf32> -> vector<200x128xf32>
    %34 = arith.addf %28, %33 : vector<200x128xf32>
    %35 = vector.extract_strided_slice %11 {offsets = [11, 0], sizes = [200, 128], strides = [1, 1]} : vector<222x128xf32> to vector<200x128xf32>
    %36 = arith.truncf %35 : vector<200x128xf32> to vector<200x128xbf16>
    %c4 = arith.constant 4 : index
    %c0_17 = arith.constant 0 : index
    %c0_18 = arith.constant 0 : index
    %37 = vector.load %arg4[%c4, %c0_17, %c0_18] : memref<9x128x128xbf16, #tpu.memory_space<vmem>>, vector<1x128x128xbf16>
    %38 = vector.shape_cast %37 : vector<1x128x128xbf16> to vector<128x128xbf16>
    %cst_19 = arith.constant dense<0.000000e+00> : vector<200x128xf32>
    %39 = tpu.matmul %36, %38, %cst_19 {dimension_numbers = #tpu.dot_dimension_numbers<[1], [0], [0], [1], [0, 0, 1, 1], [], []>} : vector<200x128xbf16>, vector<128x128xbf16>, vector<200x128xf32> -> vector<200x128xf32>
    %40 = arith.addf %34, %39 : vector<200x128xf32>
    %41 = vector.extract_strided_slice %11 {offsets = [12, 0], sizes = [200, 128], strides = [1, 1]} : vector<222x128xf32> to vector<200x128xf32>
    %42 = arith.truncf %41 : vector<200x128xf32> to vector<200x128xbf16>
    %c5 = arith.constant 5 : index
    %c0_20 = arith.constant 0 : index
    %c0_21 = arith.constant 0 : index
    %43 = vector.load %arg4[%c5, %c0_20, %c0_21] : memref<9x128x128xbf16, #tpu.memory_space<vmem>>, vector<1x128x128xbf16>
    %44 = vector.shape_cast %43 : vector<1x128x128xbf16> to vector<128x128xbf16>
    %cst_22 = arith.constant dense<0.000000e+00> : vector<200x128xf32>
    %45 = tpu.matmul %42, %44, %cst_22 {dimension_numbers = #tpu.dot_dimension_numbers<[1], [0], [0], [1], [0, 0, 1, 1], [], []>} : vector<200x128xbf16>, vector<128x128xbf16>, vector<200x128xf32> -> vector<200x128xf32>
    %46 = arith.addf %40, %45 : vector<200x128xf32>
    %47 = vector.extract_strided_slice %11 {offsets = [20, 0], sizes = [200, 128], strides = [1, 1]} : vector<222x128xf32> to vector<200x128xf32>
    %48 = arith.truncf %47 : vector<200x128xf32> to vector<200x128xbf16>
    %c6 = arith.constant 6 : index
    %c0_23 = arith.constant 0 : index
    %c0_24 = arith.constant 0 : index
    %49 = vector.load %arg4[%c6, %c0_23, %c0_24] : memref<9x128x128xbf16, #tpu.memory_space<vmem>>, vector<1x128x128xbf16>
    %50 = vector.shape_cast %49 : vector<1x128x128xbf16> to vector<128x128xbf16>
    %cst_25 = arith.constant dense<0.000000e+00> : vector<200x128xf32>
    %51 = tpu.matmul %48, %50, %cst_25 {dimension_numbers = #tpu.dot_dimension_numbers<[1], [0], [0], [1], [0, 0, 1, 1], [], []>} : vector<200x128xbf16>, vector<128x128xbf16>, vector<200x128xf32> -> vector<200x128xf32>
    %52 = arith.addf %46, %51 : vector<200x128xf32>
    %53 = vector.extract_strided_slice %11 {offsets = [21, 0], sizes = [200, 128], strides = [1, 1]} : vector<222x128xf32> to vector<200x128xf32>
    %54 = arith.truncf %53 : vector<200x128xf32> to vector<200x128xbf16>
    %c7 = arith.constant 7 : index
    %c0_26 = arith.constant 0 : index
    %c0_27 = arith.constant 0 : index
    %55 = vector.load %arg4[%c7, %c0_26, %c0_27] : memref<9x128x128xbf16, #tpu.memory_space<vmem>>, vector<1x128x128xbf16>
    %56 = vector.shape_cast %55 : vector<1x128x128xbf16> to vector<128x128xbf16>
    %cst_28 = arith.constant dense<0.000000e+00> : vector<200x128xf32>
    %57 = tpu.matmul %54, %56, %cst_28 {dimension_numbers = #tpu.dot_dimension_numbers<[1], [0], [0], [1], [0, 0, 1, 1], [], []>} : vector<200x128xbf16>, vector<128x128xbf16>, vector<200x128xf32> -> vector<200x128xf32>
    %58 = arith.addf %52, %57 : vector<200x128xf32>
    %59 = vector.extract_strided_slice %11 {offsets = [22, 0], sizes = [200, 128], strides = [1, 1]} : vector<222x128xf32> to vector<200x128xf32>
    %60 = arith.truncf %59 : vector<200x128xf32> to vector<200x128xbf16>
    %c8 = arith.constant 8 : index
    %c0_29 = arith.constant 0 : index
    %c0_30 = arith.constant 0 : index
    %61 = vector.load %arg4[%c8, %c0_29, %c0_30] : memref<9x128x128xbf16, #tpu.memory_space<vmem>>, vector<1x128x128xbf16>
    %62 = vector.shape_cast %61 : vector<1x128x128xbf16> to vector<128x128xbf16>
    %cst_31 = arith.constant dense<0.000000e+00> : vector<200x128xf32>
    %63 = tpu.matmul %60, %62, %cst_31 {dimension_numbers = #tpu.dot_dimension_numbers<[1], [0], [0], [1], [0, 0, 1, 1], [], []>} : vector<200x128xbf16>, vector<128x128xbf16>, vector<200x128xf32> -> vector<200x128xf32>
    %64 = arith.addf %58, %63 : vector<200x128xf32>
    %c0_32 = arith.constant 0 : index
    %c0_33 = arith.constant 0 : index
    %65 = vector.load %arg5[%c0_32, %c0_33] : memref<200x128xf32, #tpu.memory_space<vmem>>, vector<200x128xf32>
    %66 = arith.addf %64, %65 : vector<200x128xf32>
    %c0_34 = arith.constant 0 : index
    %c0_35 = arith.constant 0 : index
    %67 = vector.load %arg6[%c0_34, %c0_35] : memref<200x128xf32, #tpu.memory_space<vmem>>, vector<200x128xf32>
    tpu.vector_store %arg6[%c0_34, %c0_35], %66 {strides = array<i32>} : memref<200x128xf32, #tpu.memory_space<vmem>>, vector<200x128xf32>,
    return
  }
  func.func @transform_0(%arg0: i32) -> (i32, i32) {
    %c0_i32 = arith.constant 0 : i32
    %c0_i32_0 = arith.constant 0 : i32
    %c0_i32_1 = arith.constant 0 : i32
    return %c0_i32, %c0_i32_0 : i32, i32
  }
  func.func @transform_1(%arg0: i32) -> (i32, i32) {
    %c0_i32 = arith.constant 0 : i32
    %c0_i32_0 = arith.constant 0 : i32
    %c0_i32_1 = arith.constant 0 : i32
    return %c0_i32, %c0_i32_0 : i32, i32
  }
  func.func @transform_2(%arg0: i32) -> (i32, i32) {
    %c0_i32 = arith.constant 0 : i32
    %c0_i32_0 = arith.constant 0 : i32
    %c0_i32_1 = arith.constant 0 : i32
    return %c0_i32, %c0_i32_0 : i32, i32
  }
  func.func @transform_3(%arg0: i32) -> (i32, i32, i32) {
    %c0_i32 = arith.constant 0 : i32
    %c0_i32_0 = arith.constant 0 : i32
    %c0_i32_1 = arith.constant 0 : i32
    %c0_i32_2 = arith.constant 0 : i32
    return %c0_i32, %c0_i32_0, %c0_i32_1 : i32, i32, i32
  }
  func.func @transform_4(%arg0: i32) -> (i32, i32) {
    %c0_i32 = arith.constant 0 : i32
    %c0_i32_0 = arith.constant 0 : i32
    return %arg0, %c0_i32 : i32, i32
  }
  func.func @transform_5(%arg0: i32) -> (i32, i32) {
    %c0_i32 = arith.constant 0 : i32
    %c0_i32_0 = arith.constant 0 : i32
    return %arg0, %c0_i32 : i32, i32
  }
}

module attributes {stable_mosaic.version = 11 : i64} {
  func.func @_conv3x3_kernel(%arg0: i32, %arg1: memref<222x128xf32, #tpu.memory_space<vmem>>, %arg2: memref<1x128xf32, #tpu.memory_space<vmem>>, %arg3: memref<1x128xf32, #tpu.memory_space<vmem>>, %arg4: memref<9x128x128xbf16, #tpu.memory_space<vmem>>, %arg5: memref<200x128xf32, #tpu.memory_space<vmem>>) attributes {dimension_semantics = [#tpu.dimension_semantics<parallel>], iteration_bounds = array<i64: 1>, scalar_prefetch = 0 : i64, scratch_operands = 0 : i64, tpu.core_type = #tpu.core_type<tc>, window_params = [{pipeline_mode = #tpu.pipeline_mode<synchronous>, transform_indices = @transform_0, window_bounds = array<i64: 222, 128>}, {pipeline_mode = #tpu.pipeline_mode<synchronous>, transform_indices = @transform_1, window_bounds = array<i64: 1, 128>}, {pipeline_mode = #tpu.pipeline_mode<synchronous>, transform_indices = @transform_2, window_bounds = array<i64: 1, 128>}, {pipeline_mode = #tpu.pipeline_mode<synchronous>, transform_indices = @transform_3, window_bounds = array<i64: 9, 128, 128>}, {transform_indices = @transform_4, window_bounds = array<i64: 200, 128>}]} {
    %c200_i32 = arith.constant 200 : i32
    %0 = arith.muli %arg0, %c200_i32 : i32
    %1 = tpu.assume_multiple %0, 8 : i32
    %2 = arith.index_cast %1 : i32 to index
    %c0 = arith.constant 0 : index
    %3 = vector.load %arg1[%2, %c0] : memref<222x128xf32, #tpu.memory_space<vmem>>, vector<222x128xf32>
    %c0_0 = arith.constant 0 : index
    %c0_1 = arith.constant 0 : index
    %4 = vector.load %arg2[%c0_0, %c0_1] : memref<1x128xf32, #tpu.memory_space<vmem>>, vector<1x128xf32>
    %5 = vector.broadcast %4 : vector<1x128xf32> to vector<222x128xf32>
    %6 = arith.mulf %3, %5 : vector<222x128xf32>
    %c0_2 = arith.constant 0 : index
    %c0_3 = arith.constant 0 : index
    %7 = vector.load %arg3[%c0_2, %c0_3] : memref<1x128xf32, #tpu.memory_space<vmem>>, vector<1x128xf32>
    %8 = vector.broadcast %7 : vector<1x128xf32> to vector<222x128xf32>
    %9 = arith.addf %6, %8 : vector<222x128xf32>
    %cst = arith.constant 0.000000e+00 : f32
    %10 = vector.broadcast %cst : f32 to vector<222x128xf32>
    %11 = arith.maximumf %9, %10 : vector<222x128xf32>
    %12 = vector.extract_strided_slice %11 {offsets = [0, 0], sizes = [200, 128], strides = [1, 1]} : vector<222x128xf32> to vector<200x128xf32>
    %13 = arith.truncf %12 : vector<200x128xf32> to vector<200x128xbf16>
    %c0_4 = arith.constant 0 : index
    %c0_5 = arith.constant 0 : index
    %c0_6 = arith.constant 0 : index
    %14 = vector.load %arg4[%c0_4, %c0_5, %c0_6] : memref<9x128x128xbf16, #tpu.memory_space<vmem>>, vector<1x128x128xbf16>
    %15 = vector.shape_cast %14 : vector<1x128x128xbf16> to vector<128x128xbf16>
    %cst_7 = arith.constant dense<0.000000e+00> : vector<200x128xf32>
    %16 = tpu.matmul %13, %15, %cst_7 {dimension_numbers = #tpu.dot_dimension_numbers<[1], [0], [0], [1], [0, 0, 1, 1], [], []>} : vector<200x128xbf16>, vector<128x128xbf16>, vector<200x128xf32> -> vector<200x128xf32>
    %17 = vector.extract_strided_slice %11 {offsets = [1, 0], sizes = [200, 128], strides = [1, 1]} : vector<222x128xf32> to vector<200x128xf32>
    %18 = arith.truncf %17 : vector<200x128xf32> to vector<200x128xbf16>
    %c1 = arith.constant 1 : index
    %c0_8 = arith.constant 0 : index
    %c0_9 = arith.constant 0 : index
    %19 = vector.load %arg4[%c1, %c0_8, %c0_9] : memref<9x128x128xbf16, #tpu.memory_space<vmem>>, vector<1x128x128xbf16>
    %20 = vector.shape_cast %19 : vector<1x128x128xbf16> to vector<128x128xbf16>
    %cst_10 = arith.constant dense<0.000000e+00> : vector<200x128xf32>
    %21 = tpu.matmul %18, %20, %cst_10 {dimension_numbers = #tpu.dot_dimension_numbers<[1], [0], [0], [1], [0, 0, 1, 1], [], []>} : vector<200x128xbf16>, vector<128x128xbf16>, vector<200x128xf32> -> vector<200x128xf32>
    %22 = arith.addf %16, %21 : vector<200x128xf32>
    %23 = vector.extract_strided_slice %11 {offsets = [2, 0], sizes = [200, 128], strides = [1, 1]} : vector<222x128xf32> to vector<200x128xf32>
    %24 = arith.truncf %23 : vector<200x128xf32> to vector<200x128xbf16>
    %c2 = arith.constant 2 : index
    %c0_11 = arith.constant 0 : index
    %c0_12 = arith.constant 0 : index
    %25 = vector.load %arg4[%c2, %c0_11, %c0_12] : memref<9x128x128xbf16, #tpu.memory_space<vmem>>, vector<1x128x128xbf16>
    %26 = vector.shape_cast %25 : vector<1x128x128xbf16> to vector<128x128xbf16>
    %cst_13 = arith.constant dense<0.000000e+00> : vector<200x128xf32>
    %27 = tpu.matmul %24, %26, %cst_13 {dimension_numbers = #tpu.dot_dimension_numbers<[1], [0], [0], [1], [0, 0, 1, 1], [], []>} : vector<200x128xbf16>, vector<128x128xbf16>, vector<200x128xf32> -> vector<200x128xf32>
    %28 = arith.addf %22, %27 : vector<200x128xf32>
    %29 = vector.extract_strided_slice %11 {offsets = [10, 0], sizes = [200, 128], strides = [1, 1]} : vector<222x128xf32> to vector<200x128xf32>
    %30 = arith.truncf %29 : vector<200x128xf32> to vector<200x128xbf16>
    %c3 = arith.constant 3 : index
    %c0_14 = arith.constant 0 : index
    %c0_15 = arith.constant 0 : index
    %31 = vector.load %arg4[%c3, %c0_14, %c0_15] : memref<9x128x128xbf16, #tpu.memory_space<vmem>>, vector<1x128x128xbf16>
    %32 = vector.shape_cast %31 : vector<1x128x128xbf16> to vector<128x128xbf16>
    %cst_16 = arith.constant dense<0.000000e+00> : vector<200x128xf32>
    %33 = tpu.matmul %30, %32, %cst_16 {dimension_numbers = #tpu.dot_dimension_numbers<[1], [0], [0], [1], [0, 0, 1, 1], [], []>} : vector<200x128xbf16>, vector<128x128xbf16>, vector<200x128xf32> -> vector<200x128xf32>
    %34 = arith.addf %28, %33 : vector<200x128xf32>
    %35 = vector.extract_strided_slice %11 {offsets = [11, 0], sizes = [200, 128], strides = [1, 1]} : vector<222x128xf32> to vector<200x128xf32>
    %36 = arith.truncf %35 : vector<200x128xf32> to vector<200x128xbf16>
    %c4 = arith.constant 4 : index
    %c0_17 = arith.constant 0 : index
    %c0_18 = arith.constant 0 : index
    %37 = vector.load %arg4[%c4, %c0_17, %c0_18] : memref<9x128x128xbf16, #tpu.memory_space<vmem>>, vector<1x128x128xbf16>
    %38 = vector.shape_cast %37 : vector<1x128x128xbf16> to vector<128x128xbf16>
    %cst_19 = arith.constant dense<0.000000e+00> : vector<200x128xf32>
    %39 = tpu.matmul %36, %38, %cst_19 {dimension_numbers = #tpu.dot_dimension_numbers<[1], [0], [0], [1], [0, 0, 1, 1], [], []>} : vector<200x128xbf16>, vector<128x128xbf16>, vector<200x128xf32> -> vector<200x128xf32>
    %40 = arith.addf %34, %39 : vector<200x128xf32>
    %41 = vector.extract_strided_slice %11 {offsets = [12, 0], sizes = [200, 128], strides = [1, 1]} : vector<222x128xf32> to vector<200x128xf32>
    %42 = arith.truncf %41 : vector<200x128xf32> to vector<200x128xbf16>
    %c5 = arith.constant 5 : index
    %c0_20 = arith.constant 0 : index
    %c0_21 = arith.constant 0 : index
    %43 = vector.load %arg4[%c5, %c0_20, %c0_21] : memref<9x128x128xbf16, #tpu.memory_space<vmem>>, vector<1x128x128xbf16>
    %44 = vector.shape_cast %43 : vector<1x128x128xbf16> to vector<128x128xbf16>
    %cst_22 = arith.constant dense<0.000000e+00> : vector<200x128xf32>
    %45 = tpu.matmul %42, %44, %cst_22 {dimension_numbers = #tpu.dot_dimension_numbers<[1], [0], [0], [1], [0, 0, 1, 1], [], []>} : vector<200x128xbf16>, vector<128x128xbf16>, vector<200x128xf32> -> vector<200x128xf32>
    %46 = arith.addf %40, %45 : vector<200x128xf32>
    %47 = vector.extract_strided_slice %11 {offsets = [20, 0], sizes = [200, 128], strides = [1, 1]} : vector<222x128xf32> to vector<200x128xf32>
    %48 = arith.truncf %47 : vector<200x128xf32> to vector<200x128xbf16>
    %c6 = arith.constant 6 : index
    %c0_23 = arith.constant 0 : index
    %c0_24 = arith.constant 0 : index
    %49 = vector.load %arg4[%c6, %c0_23, %c0_24] : memref<9x128x128xbf16, #tpu.memory_space<vmem>>, vector<1x128x128xbf16>
    %50 = vector.shape_cast %49 : vector<1x128x128xbf16> to vector<128x128xbf16>
    %cst_25 = arith.constant dense<0.000000e+00> : vector<200x128xf32>
    %51 = tpu.matmul %48, %50, %cst_25 {dimension_numbers = #tpu.dot_dimension_numbers<[1], [0], [0], [1], [0, 0, 1, 1], [], []>} : vector<200x128xbf16>, vector<128x128xbf16>, vector<200x128xf32> -> vector<200x128xf32>
    %52 = arith.addf %46, %51 : vector<200x128xf32>
    %53 = vector.extract_strided_slice %11 {offsets = [21, 0], sizes = [200, 128], strides = [1, 1]} : vector<222x128xf32> to vector<200x128xf32>
    %54 = arith.truncf %53 : vector<200x128xf32> to vector<200x128xbf16>
    %c7 = arith.constant 7 : index
    %c0_26 = arith.constant 0 : index
    %c0_27 = arith.constant 0 : index
    %55 = vector.load %arg4[%c7, %c0_26, %c0_27] : memref<9x128x128xbf16, #tpu.memory_space<vmem>>, vector<1x128x128xbf16>
    %56 = vector.shape_cast %55 : vector<1x128x128xbf16> to vector<128x128xbf16>
    %cst_28 = arith.constant dense<0.000000e+00> : vector<200x128xf32>
    %57 = tpu.matmul %54, %56, %cst_28 {dimension_numbers = #tpu.dot_dimension_numbers<[1], [0], [0], [1], [0, 0, 1, 1], [], []>} : vector<200x128xbf16>, vector<128x128xbf16>, vector<200x128xf32> -> vector<200x128xf32>
    %58 = arith.addf %52, %57 : vector<200x128xf32>
    %59 = vector.extract_strided_slice %11 {offsets = [22, 0], sizes = [200, 128], strides = [1, 1]} : vector<222x128xf32> to vector<200x128xf32>
    %60 = arith.truncf %59 : vector<200x128xf32> to vector<200x128xbf16>
    %c8 = arith.constant 8 : index
    %c0_29 = arith.constant 0 : index
    %c0_30 = arith.constant 0 : index
    %61 = vector.load %arg4[%c8, %c0_29, %c0_30] : memref<9x128x128xbf16, #tpu.memory_space<vmem>>, vector<1x128x128xbf16>
    %62 = vector.shape_cast %61 : vector<1x128x128xbf16> to vector<128x128xbf16>
    %cst_31 = arith.constant dense<0.000000e+00> : vector<200x128xf32>
    %63 = tpu.matmul %60, %62, %cst_31 {dimension_numbers = #tpu.dot_dimension_numbers<[1], [0], [0], [1], [0, 0, 1, 1], [], []>} : vector<200x128xbf16>, vector<128x128xbf16>, vector<200x128xf32> -> vector<200x128xf32>
    %64 = arith.addf %58, %63 : vector<200x128xf32>
    %c0_32 = arith.constant 0 : index
    %c0_33 = arith.constant 0 : index
    %65 = vector.load %arg5[%c0_32, %c0_33] : memref<200x128xf32, #tpu.memory_space<vmem>>, vector<200x128xf32>
    tpu.vector_store %arg5[%c0_32, %c0_33], %64 {strides = array<i32>} : memref<200x128xf32, #tpu.memory_space<vmem>>, vector<200x128xf32>,
    return
  }
  func.func @transform_0(%arg0: i32) -> (i32, i32) {
    %c0_i32 = arith.constant 0 : i32
    %c0_i32_0 = arith.constant 0 : i32
    %c0_i32_1 = arith.constant 0 : i32
    return %c0_i32, %c0_i32_0 : i32, i32
  }
  func.func @transform_1(%arg0: i32) -> (i32, i32) {
    %c0_i32 = arith.constant 0 : i32
    %c0_i32_0 = arith.constant 0 : i32
    %c0_i32_1 = arith.constant 0 : i32
    return %c0_i32, %c0_i32_0 : i32, i32
  }
  func.func @transform_2(%arg0: i32) -> (i32, i32) {
    %c0_i32 = arith.constant 0 : i32
    %c0_i32_0 = arith.constant 0 : i32
    %c0_i32_1 = arith.constant 0 : i32
    return %c0_i32, %c0_i32_0 : i32, i32
  }
  func.func @transform_3(%arg0: i32) -> (i32, i32, i32) {
    %c0_i32 = arith.constant 0 : i32
    %c0_i32_0 = arith.constant 0 : i32
    %c0_i32_1 = arith.constant 0 : i32
    %c0_i32_2 = arith.constant 0 : i32
    return %c0_i32, %c0_i32_0, %c0_i32_1 : i32, i32, i32
  }
  func.func @transform_4(%arg0: i32) -> (i32, i32) {
    %c0_i32 = arith.constant 0 : i32
    %c0_i32_0 = arith.constant 0 : i32
    return %arg0, %c0_i32 : i32, i32
  }
}

</mosaic_0001>

<llo_original>
// kernel: run.5
$region0: #{run.5}
  #allocation0 [shape = 'u32[]', space=smem, size = 0x4, offset = 0x4, fixed_abs, tag = 'smem constant byte address 0x4 - core index']
  #allocation1 [shape = 'u32[144,128]{1,0:T(1,128)}', space=vmem, size = 0x12000, scoped, tag = 'internal scratch']
  %s0 = inlined_call_operand.vmem [shape: f32[222,128], index: 0, kind: input, shape index: {}]
  %s1 = inlined_call_operand.vmem [shape: f32[1,128], index: 1, kind: input, shape index: {}]
  %s2 = inlined_call_operand.vmem [shape: f32[1,128], index: 2, kind: input, shape index: {}]
  %s3 = inlined_call_operand.vmem [shape: bf16[9,128,128], index: 3, kind: input, shape index: {}]
  %s4 = inlined_call_operand.vmem [shape: f32[200,128], index: 4, kind: input, shape index: {}]
  %s5 = inlined_call_operand.vmem [shape: f32[1,128], index: 5, kind: input, shape index: {}]
  %s6 = inlined_call_operand.vmem [shape: f32[1,128], index: 6, kind: input, shape index: {}]
  %s7 = inlined_call_operand.vmem [shape: bf16[128,128], index: 7, kind: input, shape index: {}]
  %s8 = inlined_call_operand.vmem [shape: f32[200,128], index: 8, kind: output, shape index: {}]
  %s9 = sld [smem:[#allocation0]]
  $region42: #{run.5} parent=0
    _
  %s11 = ssub.s32 1, %s9
  %s12 = scalar_select 0, %s11, %s9
  // Predicated region
  $region2: #{run.5} parent=0 // pred_check
    _
  $region3: #{run.5} parent=0 // pred_check_branch
    %14 = sbr.rel (0) target = $region5
  $region4: #{run.5} parent=0 // pred_region
    _
  $region5: #{run.5} parent=0 // pred_fallthru
    _
  // Predicated region
  $region6: #{run.5} parent=0 // pred_check
    _
  $region7: #{run.5} parent=0 // pred_check_branch
    %16 = sbr.rel (0) target = $region9
  $region8: #{run.5} parent=0 // pred_region
    _
  $region9: #{run.5} parent=0 // pred_fallthru
    _
  // Predicated region
  $region10: #{run.5} parent=0 // pred_check
    _
  $region11: #{run.5} parent=0 // pred_check_branch
    %18 = sbr.rel (0) target = $region13
  $region12: #{run.5} parent=0 // pred_region
    _
  $region13: #{run.5} parent=0 // pred_fallthru
    _
  // Predicated region
  $region14: #{run.5} parent=0 // pred_check
    _
  $region15: #{run.5} parent=0 // pred_check_branch
    %20 = sbr.rel (0) target = $region17
  $region16: #{run.5} parent=0 // pred_region
    _
  $region17: #{run.5} parent=0 // pred_fallthru
    _
  // Predicated region
  $region18: #{run.5} parent=0 // pred_check
    _
  $region19: #{run.5} parent=0 // pred_check_branch
    %22 = sbr.rel (0) target = $region21
  $region20: #{run.5} parent=0 // pred_region
    _
  $region21: #{run.5} parent=0 // pred_fallthru
    _
  // Predicated region
  $region22: #{run.5} parent=0 // pred_check
    _
  $region23: #{run.5} parent=0 // pred_check_branch
    %24 = sbr.rel (0) target = $region25
  $region24: #{run.5} parent=0 // pred_region
    _
  $region25: #{run.5} parent=0 // pred_fallthru
    _
  // Predicated region
  $region26: #{run.5} parent=0 // pred_check
    _
  $region27: #{run.5} parent=0 // pred_check_branch
    %26 = sbr.rel (0) target = $region29
  $region28: #{run.5} parent=0 // pred_region
    _
  $region29: #{run.5} parent=0 // pred_fallthru
    _
  // Predicated region
  $region30: #{run.5} parent=0 // pred_check
    _
  $region31: #{run.5} parent=0 // pred_check_branch
    %28 = sbr.rel (0) target = $region33
  $region32: #{run.5} parent=0 // pred_region
    _
  $region33: #{run.5} parent=0 // pred_fallthru
    _
  %s30 = smul.u32 0, 200
  %s31 = scalar_lea.vmem %s0, %s30
  %v32 = vld [vmem:[%s31] sm:$0xff]
  %v33 = vld [vmem:[%s31 + $0x8] sm:$0xff]
  %v34 = vld [vmem:[%s31 + $0x10] sm:$0xff]
  %v35 = vld [vmem:[%s31 + $0x18] sm:$0xff]
  %v36 = vld [vmem:[%s31 + $0x20] sm:$0xff]
  %v37 = vld [vmem:[%s31 + $0x28] sm:$0xff]
  %v38 = vld [vmem:[%s31 + $0x30] sm:$0xff]
  %v39 = vld [vmem:[%s31 + $0x38] sm:$0xff]
  %v40 = vld [vmem:[%s31 + $0x40] sm:$0xff]
  %v41 = vld [vmem:[%s31 + $0x48] sm:$0xff]
  %v42 = vld [vmem:[%s31 + $0x50] sm:$0xff]
  %v43 = vld [vmem:[%s31 + $0x58] sm:$0xff]
  %v44 = vld [vmem:[%s31 + $0x60] sm:$0xff]
  %v45 = vld [vmem:[%s31 + $0x68] sm:$0xff]
  %v46 = vld [vmem:[%s31 + $0x70] sm:$0xff]
  %v47 = vld [vmem:[%s31 + $0x78] sm:$0xff]
  %v48 = vld [vmem:[%s31 + $0x80] sm:$0xff]
  %v49 = vld [vmem:[%s31 + $0x88] sm:$0xff]
  %v50 = vld [vmem:[%s31 + $0x90] sm:$0xff]
  %v51 = vld [vmem:[%s31 + $0x98] sm:$0xff]
  %v52 = vld [vmem:[%s31 + $0xa0] sm:$0xff]
  %v53 = vld [vmem:[%s31 + $0xa8] sm:$0xff]
  %v54 = vld [vmem:[%s31 + $0xb0] sm:$0xff]
  %v55 = vld [vmem:[%s31 + $0xb8] sm:$0xff]
  %v56 = vld [vmem:[%s31 + $0xc0] sm:$0xff]
  %v57 = vld [vmem:[%s31 + $0xc8] sm:$0xff]
  %v58 = vld [vmem:[%s31 + $0xd0] sm:$0xff]
  %v59 = vld [vmem:[%s31 + $0xd8] sm:$0x3f]
  %v60 = vld [vmem:[%s1] sm:$0x1]
  %v62 = vlaneseq
  %v63 = vshrl.u32 %v62, 7
  %v64 = vsub.s32 0, %v63
  %v65 = vrot.slane %v60, %v64
  %v67 = vmul.f32 %v32, %v65
  %v68 = vmul.f32 %v33, %v65
  %v69 = vmul.f32 %v34, %v65
  %v70 = vmul.f32 %v35, %v65
  %v71 = vmul.f32 %v36, %v65
  %v72 = vmul.f32 %v37, %v65
  %v73 = vmul.f32 %v38, %v65
  %v74 = vmul.f32 %v39, %v65
  %v75 = vmul.f32 %v40, %v65
  %v76 = vmul.f32 %v41, %v65
  %v77 = vmul.f32 %v42, %v65
  %v78 = vmul.f32 %v43, %v65
  %v79 = vmul.f32 %v44, %v65
  %v80 = vmul.f32 %v45, %v65
  %v81 = vmul.f32 %v46, %v65
  %v82 = vmul.f32 %v47, %v65
  %v83 = vmul.f32 %v48, %v65
  %v84 = vmul.f32 %v49, %v65
  %v85 = vmul.f32 %v50, %v65
  %v86 = vmul.f32 %v51, %v65
  %v87 = vmul.f32 %v52, %v65
  %v88 = vmul.f32 %v53, %v65
  %v89 = vmul.f32 %v54, %v65
  %v90 = vmul.f32 %v55, %v65
  %v91 = vmul.f32 %v56, %v65
  %v92 = vmul.f32 %v57, %v65
  %v93 = vmul.f32 %v58, %v65
  %v94 = vmul.f32 %v59, %v65
  %v95 = vld [vmem:[%s2] sm:$0x1]
  %v97 = vlaneseq
  %v98 = vshrl.u32 %v97, 7
  %v99 = vsub.s32 0, %v98
  %v100 = vrot.slane %v95, %v99
  %v102 = vadd.f32 %v67, %v100
  %v103 = vadd.f32 %v68, %v100
  %v104 = vadd.f32 %v69, %v100
  %v105 = vadd.f32 %v70, %v100
  %v106 = vadd.f32 %v71, %v100
  %v107 = vadd.f32 %v72, %v100
  %v108 = vadd.f32 %v73, %v100
  %v109 = vadd.f32 %v74, %v100
  %v110 = vadd.f32 %v75, %v100
  %v111 = vadd.f32 %v76, %v100
  %v112 = vadd.f32 %v77, %v100
  %v113 = vadd.f32 %v78, %v100
  %v114 = vadd.f32 %v79, %v100
  %v115 = vadd.f32 %v80, %v100
  %v116 = vadd.f32 %v81, %v100
  %v117 = vadd.f32 %v82, %v100
  %v118 = vadd.f32 %v83, %v100
  %v119 = vadd.f32 %v84, %v100
  %v120 = vadd.f32 %v85, %v100
  %v121 = vadd.f32 %v86, %v100
  %v122 = vadd.f32 %v87, %v100
  %v123 = vadd.f32 %v88, %v100
  %v124 = vadd.f32 %v89, %v100
  %v125 = vadd.f32 %v90, %v100
  %v126 = vadd.f32 %v91, %v100
  %v127 = vadd.f32 %v92, %v100
  %v128 = vadd.f32 %v93, %v100
  %v129 = vadd.f32 %v94, %v100
  %v130 = vmax.f32 %v102, 0.0
  %v131 = vmax.f32 %v103, 0.0
  %v132 = vmax.f32 %v104, 0.0
  %v133 = vmax.f32 %v105, 0.0
  %v134 = vmax.f32 %v106, 0.0
  %v135 = vmax.f32 %v107, 0.0
  %v136 = vmax.f32 %v108, 0.0
  %v137 = vmax.f32 %v109, 0.0
  %v138 = vmax.f32 %v110, 0.0
  %v139 = vmax.f32 %v111, 0.0
  %v140 = vmax.f32 %v112, 0.0
  %v141 = vmax.f32 %v113, 0.0
  %v142 = vmax.f32 %v114, 0.0
  %v143 = vmax.f32 %v115, 0.0
  %v144 = vmax.f32 %v116, 0.0
  %v145 = vmax.f32 %v117, 0.0
  %v146 = vmax.f32 %v118, 0.0
  %v147 = vmax.f32 %v119, 0.0
  %v148 = vmax.f32 %v120, 0.0
  %v149 = vmax.f32 %v121, 0.0
  %v150 = vmax.f32 %v122, 0.0
  %v151 = vmax.f32 %v123, 0.0
  %v152 = vmax.f32 %v124, 0.0
  %v153 = vmax.f32 %v125, 0.0
  %v154 = vmax.f32 %v126, 0.0
  %v155 = vmax.f32 %v127, 0.0
  %v156 = vmax.f32 %v128, 0.0
  %v157 = vmax.f32 %v129, 0.0
  %v158 = vpack.c.bf16 %v131, %v130
  %v159 = vpack.c.bf16 %v133, %v132
  %v160 = vpack.c.bf16 %v135, %v134
  %v161 = vpack.c.bf16 %v137, %v136
  %v162 = vpack.c.bf16 %v139, %v138
  %v163 = vpack.c.bf16 %v141, %v140
  %v164 = vpack.c.bf16 %v143, %v142
  %v165 = vpack.c.bf16 %v145, %v144
  %v166 = vpack.c.bf16 %v147, %v146
  %v167 = vpack.c.bf16 %v149, %v148
  %v168 = vpack.c.bf16 %v151, %v150
  %v169 = vpack.c.bf16 %v153, %v152
  %v170 = vpack.c.bf16 %v154, %v154
  %v171 = vld [vmem:[%s3] sm:$0xf]
  %v172 = vld [vmem:[%s3 + $0x4] sm:$0xf]
  %v173 = vld [vmem:[%s3 + $0x8] sm:$0xf]
  %v174 = vld [vmem:[%s3 + $0xc] sm:$0xf]
  %v175 = vld [vmem:[%s3 + $0x10] sm:$0xf]
  %v176 = vld [vmem:[%s3 + $0x14] sm:$0xf]
  %v177 = vld [vmem:[%s3 + $0x18] sm:$0xf]
  %v178 = vld [vmem:[%s3 + $0x1c] sm:$0xf]
  %v179 = vld [vmem:[%s3 + $0x20] sm:$0xf]
  %v180 = vld [vmem:[%s3 + $0x24] sm:$0xf]
  %v181 = vld [vmem:[%s3 + $0x28] sm:$0xf]
  %v182 = vld [vmem:[%s3 + $0x2c] sm:$0xf]
  %v183 = vld [vmem:[%s3 + $0x30] sm:$0xf]
  %v184 = vld [vmem:[%s3 + $0x34] sm:$0xf]
  %v185 = vld [vmem:[%s3 + $0x38] sm:$0xf]
  %v186 = vld [vmem:[%s3 + $0x3c] sm:$0xf]
  %v187 = vpack.c.bf16 %v155, %v154
  %s188 = scalar_lea.vmem %s3, 64
  %v189 = vld [vmem:[%s188] sm:$0xf]
  %v190 = vld [vmem:[%s188 + $0x4] sm:$0xf]
  %v191 = vld [vmem:[%s188 + $0x8] sm:$0xf]
  %v192 = vld [vmem:[%s188 + $0xc] sm:$0xf]
  %v193 = vld [vmem:[%s188 + $0x10] sm:$0xf]
  %v194 = vld [vmem:[%s188 + $0x14] sm:$0xf]
  %v195 = vld [vmem:[%s188 + $0x18] sm:$0xf]
  %v196 = vld [vmem:[%s188 + $0x1c] sm:$0xf]
  %v197 = vld [vmem:[%s188 + $0x20] sm:$0xf]
  %v198 = vld [vmem:[%s188 + $0x24] sm:$0xf]
  %v199 = vld [vmem:[%s188 + $0x28] sm:$0xf]
  %v200 = vld [vmem:[%s188 + $0x2c] sm:$0xf]
  %v201 = vld [vmem:[%s188 + $0x30] sm:$0xf]
  %v202 = vld [vmem:[%s188 + $0x34] sm:$0xf]
  %v203 = vld [vmem:[%s188 + $0x38] sm:$0xf]
  %v204 = vld [vmem:[%s188 + $0x3c] sm:$0xf]
  %vm205 = vsmask.f32 7424
  %v207 = vshrl.u32 %v158, 16
  %v209 = vshll.u32 %v158, 16
  %v211 = vrot.slane %v209, 1
  %v212 = vor.u32 %v207, %v211
  %v214 = vshll.u32 %v159, 16
  %v216 = vrot.slane %v214, 1
  %v217 = vsel %vm205, %v212, %v216
  %v218 = vshrl.u32 %v159, 16
  %v220 = vor.u32 %v218, %v216
  %v222 = vshll.u32 %v160, 16
  %v224 = vrot.slane %v222, 1
  %v225 = vsel %vm205, %v220, %v224
  %v226 = vshrl.u32 %v160, 16
  %v228 = vor.u32 %v226, %v224
  %v230 = vshll.u32 %v161, 16
  %v232 = vrot.slane %v230, 1
  %v233 = vsel %vm205, %v228, %v232
  %v234 = vshrl.u32 %v161, 16
  %v236 = vor.u32 %v234, %v232
  %v238 = vshll.u32 %v162, 16
  %v240 = vrot.slane %v238, 1
  %v241 = vsel %vm205, %v236, %v240
  %v242 = vshrl.u32 %v162, 16
  %v244 = vor.u32 %v242, %v240
  %v246 = vshll.u32 %v163, 16
  %v248 = vrot.slane %v246, 1
  %v249 = vsel %vm205, %v244, %v248
  %v250 = vshrl.u32 %v163, 16
  %v252 = vor.u32 %v250, %v248
  %v254 = vshll.u32 %v164, 16
  %v256 = vrot.slane %v254, 1
  %v257 = vsel %vm205, %v252, %v256
  %v258 = vshrl.u32 %v164, 16
  %v260 = vor.u32 %v258, %v256
  %v262 = vshll.u32 %v165, 16
  %v264 = vrot.slane %v262, 1
  %v265 = vsel %vm205, %v260, %v264
  %v266 = vshrl.u32 %v165, 16
  %v268 = vor.u32 %v266, %v264
  %v270 = vshll.u32 %v166, 16
  %v272 = vrot.slane %v270, 1
  %v273 = vsel %vm205, %v268, %v272
  %v274 = vshrl.u32 %v166, 16
  %v276 = vor.u32 %v274, %v272
  %v278 = vshll.u32 %v167, 16
  %v280 = vrot.slane %v278, 1
  %v281 = vsel %vm205, %v276, %v280
  %v282 = vshrl.u32 %v167, 16
  %v284 = vor.u32 %v282, %v280
  %v286 = vshll.u32 %v168, 16
  %v288 = vrot.slane %v286, 1
  %v289 = vsel %vm205, %v284, %v288
  %v290 = vshrl.u32 %v168, 16
  %v292 = vor.u32 %v290, %v288
  %v294 = vshll.u32 %v169, 16
  %v296 = vrot.slane %v294, 1
  %v297 = vsel %vm205, %v292, %v296
  %v298 = vshrl.u32 %v169, 16
  %v300 = vor.u32 %v298, %v296
  %v302 = vshll.u32 %v187, 16
  %v304 = vrot.slane %v302, 1
  %v305 = vsel %vm205, %v300, %v304
  %v306 = vshrl.u32 %v187, 16
  %v308 = vor.u32 %v306, %v304
  %v338 = vunpack.c.l.b16 %v189
  %v339 = vunpack.c.l.b16 %v190
  %v340 = vunpack.c.l.b16 %v191
  %v341 = vunpack.c.l.b16 %v192
  %v342 = vunpack.c.l.b16 %v193
  %v343 = vunpack.c.l.b16 %v194
  %v344 = vunpack.c.l.b16 %v195
  %v345 = vunpack.c.l.b16 %v196
  %v346 = vunpack.c.l.b16 %v197
  %v347 = vunpack.c.l.b16 %v198
  %v348 = vunpack.c.l.b16 %v199
  %v349 = vunpack.c.l.b16 %v200
  %v350 = vunpack.c.l.b16 %v201
  %v351 = vunpack.c.l.b16 %v202
  %v352 = vunpack.c.l.b16 %v203
  %v353 = vunpack.c.l.b16 %v204
  %v354 = vpack.c.b16 %v339, %v338
  %v355 = vpack.c.b16 %v341, %v340
  %v356 = vpack.c.b16 %v343, %v342
  %v357 = vpack.c.b16 %v345, %v344
  %v358 = vpack.c.b16 %v347, %v346
  %v359 = vpack.c.b16 %v349, %v348
  %v360 = vpack.c.b16 %v351, %v350
  %v361 = vpack.c.b16 %v353, %v352
  %370 = vmatprep.subr.bf16.mxu0 0
  %371 = vmatpush1.bf16.msra.mxu0 %v354
  %372 = vmatprep.subr.bf16.mxu0 0
  %373 = vmatpush1.bf16.msra.mxu0 %v355
  %374 = vmatprep.subr.bf16.mxu0 0
  %375 = vmatpush1.bf16.msra.mxu0 %v356
  %376 = vmatprep.subr.bf16.mxu0 0
  %377 = vmatpush1.bf16.msra.mxu0 %v357
  %378 = vmatprep.subr.bf16.mxu0 0
  %379 = vmatpush1.bf16.msra.mxu0 %v358
  %380 = vmatprep.subr.bf16.mxu0 0
  %381 = vmatpush1.bf16.msra.mxu0 %v359
  %382 = vmatprep.subr.bf16.mxu0 0
  %383 = vmatpush1.bf16.msra.mxu0 %v360
  %384 = vmatprep.subr.bf16.mxu0 0
  %385 = vmatpush1.bf16.msra.mxu0 %v361
  %386 = vmatprep.subr.bf16.mxu0 0
  %387 = vmatpush1.bf16.msra.mxu0 0
  %388 = vmatprep.subr.bf16.mxu0 0
  %389 = vmatpush1.bf16.msra.mxu0 0
  %390 = vmatprep.subr.bf16.mxu0 0
  %391 = vmatpush1.bf16.msra.mxu0 0
  %392 = vmatprep.subr.bf16.mxu0 0
  %393 = vmatpush1.bf16.msra.mxu0 0
  %394 = vmatprep.subr.bf16.mxu0 0
  %395 = vmatpush1.bf16.msra.mxu0 0
  %396 = vmatprep.subr.bf16.mxu0 0
  %397 = vmatpush1.bf16.msra.mxu0 0
  %398 = vmatprep.subr.bf16.mxu0 0
  %399 = vmatpush1.bf16.msra.mxu0 0
  %400 = vmatprep.subr.bf16.mxu0 0
  %401 = vmatpush1.bf16.msra.mxu0 0
  %402 = vmatprep.mubr.bf16.mxu0 0
  %403 = vmatmul.mubr.bf16.gmra.mrb[0].mxu0 %v217
  %v404 = vpop.f32.mrb[0].mxu0
  %v405 = vadd.f32 0.0, %v404
  %v406 = vpop.f32.mrb[0].mxu0
  %v407 = vpop.f32.mrb[0].mxu0
  %v408 = vadd.f32 0.0, %v407
  %v409 = vpop.f32.mrb[0].mxu0
  %410 = vmatprep.mubr.bf16.mxu0 0
  %411 = vmatmul.mubr.bf16.gmra.mrb[0].mxu0 %v225
  %v412 = vpop.f32.mrb[0].mxu0
  %v413 = vadd.f32 0.0, %v412
  %v414 = vpop.f32.mrb[0].mxu0
  %v415 = vpop.f32.mrb[0].mxu0
  %v416 = vadd.f32 0.0, %v415
  %v417 = vpop.f32.mrb[0].mxu0
  %418 = vmatprep.mubr.bf16.mxu0 0
  %419 = vmatmul.mubr.bf16.gmra.mrb[0].mxu0 %v233
  %v420 = vpop.f32.mrb[0].mxu0
  %v421 = vadd.f32 0.0, %v420
  %v422 = vpop.f32.mrb[0].mxu0
  %v423 = vpop.f32.mrb[0].mxu0
  %v424 = vadd.f32 0.0, %v423
  %v425 = vpop.f32.mrb[0].mxu0
  %426 = vmatprep.mubr.bf16.mxu0 0
  %427 = vmatmul.mubr.bf16.gmra.mrb[0].mxu0 %v241
  %v428 = vpop.f32.mrb[0].mxu0
  %v429 = vadd.f32 0.0, %v428
  %v430 = vpop.f32.mrb[0].mxu0
  %v431 = vpop.f32.mrb[0].mxu0
  %v432 = vadd.f32 0.0, %v431
  %v433 = vpop.f32.mrb[0].mxu0
  %434 = vmatprep.mubr.bf16.mxu0 0
  %435 = vmatmul.mubr.bf16.gmra.mrb[0].mxu0 %v249
  %v436 = vpop.f32.mrb[0].mxu0
  %v437 = vadd.f32 0.0, %v436
  %v438 = vpop.f32.mrb[0].mxu0
  %v439 = vpop.f32.mrb[0].mxu0
  %v440 = vadd.f32 0.0, %v439
  %v441 = vpop.f32.mrb[0].mxu0
  %442 = vmatprep.mubr.bf16.mxu0 0
  %443 = vmatmul.mubr.bf16.gmra.mrb[0].mxu0 %v257
  %v444 = vpop.f32.mrb[0].mxu0
  %v445 = vadd.f32 0.0, %v444
  %v446 = vpop.f32.mrb[0].mxu0
  %v447 = vpop.f32.mrb[0].mxu0
  %v448 = vadd.f32 0.0, %v447
  %v449 = vpop.f32.mrb[0].mxu0
  %450 = vmatprep.mubr.bf16.mxu0 0
  %451 = vmatmul.mubr.bf16.gmra.mrb[0].mxu0 %v265
  %v452 = vpop.f32.mrb[0].mxu0
  %v453 = vadd.f32 0.0, %v452
  %v454 = vpop.f32.mrb[0].mxu0
  %v455 = vpop.f32.mrb[0].mxu0
  %v456 = vadd.f32 0.0, %v455
  %v457 = vpop.f32.mrb[0].mxu0
  %458 = vmatprep.mubr.bf16.mxu0 0
  %459 = vmatmul.mubr.bf16.gmra.mrb[0].mxu0 %v273
  %v460 = vpop.f32.mrb[0].mxu0
  %v461 = vadd.f32 0.0, %v460
  %v462 = vpop.f32.mrb[0].mxu0
  %v463 = vpop.f32.mrb[0].mxu0
  %v464 = vadd.f32 0.0, %v463
  %v465 = vpop.f32.mrb[0].mxu0
  %466 = vmatprep.mubr.bf16.mxu0 0
  %467 = vmatmul.mubr.bf16.gmra.mrb[0].mxu0 %v281
  %v468 = vpop.f32.mrb[0].mxu0
  %v469 = vadd.f32 0.0, %v468
  %v470 = vpop.f32.mrb[0].mxu0
  %v471 = vpop.f32.mrb[0].mxu0
  %v472 = vadd.f32 0.0, %v471
  %v473 = vpop.f32.mrb[0].mxu0
  %474 = vmatprep.mubr.bf16.mxu0 0
  %475 = vmatmul.mubr.bf16.gmra.mrb[0].mxu0 %v289
  %v476 = vpop.f32.mrb[0].mxu0
  %v477 = vadd.f32 0.0, %v476
  %v478 = vpop.f32.mrb[0].mxu0
  %v479 = vpop.f32.mrb[0].mxu0
  %v480 = vadd.f32 0.0, %v479
  %v481 = vpop.f32.mrb[0].mxu0
  %482 = vmatprep.mubr.bf16.mxu0 0
  %483 = vmatmul.mubr.bf16.gmra.mrb[0].mxu0 %v297
  %v484 = vpop.f32.mrb[0].mxu0
  %v485 = vadd.f32 0.0, %v484
  %v486 = vpop.f32.mrb[0].mxu0
  %v487 = vpop.f32.mrb[0].mxu0
  %v488 = vadd.f32 0.0, %v487
  %v489 = vpop.f32.mrb[0].mxu0
  %490 = vmatprep.mubr.bf16.mxu0 0
  %491 = vmatmul.mubr.bf16.gmra.mrb[0].mxu0 %v305
  %v492 = vpop.f32.mrb[0].mxu0
  %v493 = vadd.f32 0.0, %v492
  %v494 = vpop.f32.mrb[0].mxu0
  %v495 = vpop.f32.mrb[0].mxu0
  %v496 = vadd.f32 0.0, %v495
  %v497 = vpop.f32.mrb[0].mxu0
  %498 = vmatprep.mubr.bf16.mxu0 0
  %499 = vmatmul.mubr.bf16.gmra.mrb[0].mxu0 %v308
  %v500 = vpop.f32.mrb[0].mxu0
  %v501 = vadd.f32 0.0, %v500
  %v502 = vpop.f32.mrb[0].mxu0
  %v503 = vpop.f32.mrb[0].mxu0
  %v504 = vpop.f32.mrb[0].mxu0
  %505 = vdwg.mxu0
  %v522 = vunpack.c.l.b16 %v171
  %v523 = vunpack.c.l.b16 %v172
  %v524 = vunpack.c.l.b16 %v173
  %v525 = vunpack.c.l.b16 %v174
  %v526 = vunpack.c.l.b16 %v175
  %v527 = vunpack.c.l.b16 %v176
  %v528 = vunpack.c.l.b16 %v177
  %v529 = vunpack.c.l.b16 %v178
  %v530 = vunpack.c.l.b16 %v179
  %v531 = vunpack.c.l.b16 %v180
  %v532 = vunpack.c.l.b16 %v181
  %v533 = vunpack.c.l.b16 %v182
  %v534 = vunpack.c.l.b16 %v183
  %v535 = vunpack.c.l.b16 %v184
  %v536 = vunpack.c.l.b16 %v185
  %v537 = vunpack.c.l.b16 %v186
  %v538 = vpack.c.b16 %v523, %v522
  %v539 = vpack.c.b16 %v525, %v524
  %v540 = vpack.c.b16 %v527, %v526
  %v541 = vpack.c.b16 %v529, %v528
  %v542 = vpack.c.b16 %v531, %v530
  %v543 = vpack.c.b16 %v533, %v532
  %v544 = vpack.c.b16 %v535, %v534
  %v545 = vpack.c.b16 %v537, %v536
  %554 = vmatprep.subr.bf16.mxu0 0
  %555 = vmatpush1.bf16.msra.mxu0 %v538
  %556 = vmatprep.subr.bf16.mxu0 0
  %557 = vmatpush1.bf16.msra.mxu0 %v539
  %558 = vmatprep.subr.bf16.mxu0 0
  %559 = vmatpush1.bf16.msra.mxu0 %v540
  %560 = vmatprep.subr.bf16.mxu0 0
  %561 = vmatpush1.bf16.msra.mxu0 %v541
  %562 = vmatprep.subr.bf16.mxu0 0
  %563 = vmatpush1.bf16.msra.mxu0 %v542
  %564 = vmatprep.subr.bf16.mxu0 0
  %565 = vmatpush1.bf16.msra.mxu0 %v543
  %566 = vmatprep.subr.bf16.mxu0 0
  %567 = vmatpush1.bf16.msra.mxu0 %v544
  %568 = vmatprep.subr.bf16.mxu0 0
  %569 = vmatpush1.bf16.msra.mxu0 %v545
  %570 = vmatprep.subr.bf16.mxu0 0
  %571 = vmatpush1.bf16.msra.mxu0 0
  %572 = vmatprep.subr.bf16.mxu0 0
  %573 = vmatpush1.bf16.msra.mxu0 0
  %574 = vmatprep.subr.bf16.mxu0 0
  %575 = vmatpush1.bf16.msra.mxu0 0
  %576 = vmatprep.subr.bf16.mxu0 0
  %577 = vmatpush1.bf16.msra.mxu0 0
  %578 = vmatprep.subr.bf16.mxu0 0
  %579 = vmatpush1.bf16.msra.mxu0 0
  %580 = vmatprep.subr.bf16.mxu0 0
  %581 = vmatpush1.bf16.msra.mxu0 0
  %582 = vmatprep.subr.bf16.mxu0 0
  %583 = vmatpush1.bf16.msra.mxu0 0
  %584 = vmatprep.subr.bf16.mxu0 0
  %585 = vmatpush1.bf16.msra.mxu0 0
  %586 = vmatprep.mubr.bf16.mxu0 0
  %587 = vmatmul.mubr.bf16.gmra.mrb[0].mxu0 %v158
  %v588 = vpop.f32.mrb[0].mxu0
  %v589 = vadd.f32 %v405, %v588
  %v590 = vpop.f32.mrb[0].mxu0
  %v591 = vpop.f32.mrb[0].mxu0
  %v592 = vadd.f32 %v408, %v591
  %v593 = vpop.f32.mrb[0].mxu0
  %594 = vmatprep.mubr.bf16.mxu0 0
  %595 = vmatmul.mubr.bf16.gmra.mrb[0].mxu0 %v159
  %v596 = vpop.f32.mrb[0].mxu0
  %v597 = vadd.f32 %v413, %v596
  %v598 = vpop.f32.mrb[0].mxu0
  %v599 = vpop.f32.mrb[0].mxu0
  %v600 = vadd.f32 %v416, %v599
  %v601 = vpop.f32.mrb[0].mxu0
  %602 = vmatprep.mubr.bf16.mxu0 0
  %603 = vmatmul.mubr.bf16.gmra.mrb[0].mxu0 %v160
  %v604 = vpop.f32.mrb[0].mxu0
  %v605 = vadd.f32 %v421, %v604
  %v606 = vpop.f32.mrb[0].mxu0
  %v607 = vpop.f32.mrb[0].mxu0
  %v608 = vadd.f32 %v424, %v607
  %v609 = vpop.f32.mrb[0].mxu0
  %610 = vmatprep.mubr.bf16.mxu0 0
  %611 = vmatmul.mubr.bf16.gmra.mrb[0].mxu0 %v161
  %v612 = vpop.f32.mrb[0].mxu0
  %v613 = vadd.f32 %v429, %v612
  %v614 = vpop.f32.mrb[0].mxu0
  %v615 = vpop.f32.mrb[0].mxu0
  %v616 = vadd.f32 %v432, %v615
  %v617 = vpop.f32.mrb[0].mxu0
  %618 = vmatprep.mubr.bf16.mxu0 0
  %619 = vmatmul.mubr.bf16.gmra.mrb[0].mxu0 %v162
  %v620 = vpop.f32.mrb[0].mxu0
  %v621 = vadd.f32 %v437, %v620
  %v622 = vpop.f32.mrb[0].mxu0
  %v623 = vpop.f32.mrb[0].mxu0
  %v624 = vadd.f32 %v440, %v623
  %v625 = vpop.f32.mrb[0].mxu0
  %626 = vmatprep.mubr.bf16.mxu0 0
  %627 = vmatmul.mubr.bf16.gmra.mrb[0].mxu0 %v163
  %v628 = vpop.f32.mrb[0].mxu0
  %v629 = vadd.f32 %v445, %v628
  %v630 = vpop.f32.mrb[0].mxu0
  %v631 = vpop.f32.mrb[0].mxu0
  %v632 = vadd.f32 %v448, %v631
  %v633 = vpop.f32.mrb[0].mxu0
  %634 = vmatprep.mubr.bf16.mxu0 0
  %635 = vmatmul.mubr.bf16.gmra.mrb[0].mxu0 %v164
  %v636 = vpop.f32.mrb[0].mxu0
  %v637 = vadd.f32 %v453, %v636
  %v638 = vpop.f32.mrb[0].mxu0
  %v639 = vpop.f32.mrb[0].mxu0
  %v640 = vadd.f32 %v456, %v639
  %v641 = vpop.f32.mrb[0].mxu0
  %642 = vmatprep.mubr.bf16.mxu0 0
  %643 = vmatmul.mubr.bf16.gmra.mrb[0].mxu0 %v165
  %v644 = vpop.f32.mrb[0].mxu0
  %v645 = vadd.f32 %v461, %v644
  %v646 = vpop.f32.mrb[0].mxu0
  %v647 = vpop.f32.mrb[0].mxu0
  %v648 = vadd.f32 %v464, %v647
  %v649 = vpop.f32.mrb[0].mxu0
  %650 = vmatprep.mubr.bf16.mxu0 0
  %651 = vmatmul.mubr.bf16.gmra.mrb[0].mxu0 %v166
  %v652 = vpop.f32.mrb[0].mxu0
  %v653 = vadd.f32 %v469, %v652
  %v654 = vpop.f32.mrb[0].mxu0
  %v655 = vpop.f32.mrb[0].mxu0
  %v656 = vadd.f32 %v472, %v655
  %v657 = vpop.f32.mrb[0].mxu0
  %658 = vmatprep.mubr.bf16.mxu0 0
  %659 = vmatmul.mubr.bf16.gmra.mrb[0].mxu0 %v167
  %v660 = vpop.f32.mrb[0].mxu0
  %v661 = vadd.f32 %v477, %v660
  %v662 = vpop.f32.mrb[0].mxu0
  %v663 = vpop.f32.mrb[0].mxu0
  %v664 = vadd.f32 %v480, %v663
  %v665 = vpop.f32.mrb[0].mxu0
  %666 = vmatprep.mubr.bf16.mxu0 0
  %667 = vmatmul.mubr.bf16.gmra.mrb[0].mxu0 %v168
  %v668 = vpop.f32.mrb[0].mxu0
  %v669 = vadd.f32 %v485, %v668
  %v670 = vpop.f32.mrb[0].mxu0
  %v671 = vpop.f32.mrb[0].mxu0
  %v672 = vadd.f32 %v488, %v671
  %v673 = vpop.f32.mrb[0].mxu0
  %674 = vmatprep.mubr.bf16.mxu0 0
  %675 = vmatmul.mubr.bf16.gmra.mrb[0].mxu0 %v169
  %v676 = vpop.f32.mrb[0].mxu0
  %v677 = vadd.f32 %v493, %v676
  %v678 = vpop.f32.mrb[0].mxu0
  %v679 = vpop.f32.mrb[0].mxu0
  %v680 = vadd.f32 %v496, %v679
  %v681 = vpop.f32.mrb[0].mxu0
  %682 = vmatprep.mubr.bf16.mxu0 0
  %683 = vmatmul.mubr.bf16.gmra.mrb[0].mxu0 %v170
  %v684 = vpop.f32.mrb[0].mxu0
  %v685 = vadd.f32 %v501, %v684
  %v686 = vpop.f32.mrb[0].mxu0
  %v687 = vpop.f32.mrb[0].mxu0
  %v688 = vpop.f32.mrb[0].mxu0
  %689 = vdwg.mxu0
  %s690 = scalar_lea.vmem %s3, 128
  %v691 = vld [vmem:[%s690] sm:$0xf]
  %v692 = vld [vmem:[%s690 + $0x4] sm:$0xf]
  %v693 = vld [vmem:[%s690 + $0x8] sm:$0xf]
  %v694 = vld [vmem:[%s690 + $0xc] sm:$0xf]
  %v695 = vld [vmem:[%s690 + $0x10] sm:$0xf]
  %v696 = vld [vmem:[%s690 + $0x14] sm:$0xf]
  %v697 = vld [vmem:[%s690 + $0x18] sm:$0xf]
  %v698 = vld [vmem:[%s690 + $0x1c] sm:$0xf]
  %v699 = vld [vmem:[%s690 + $0x20] sm:$0xf]
  %v700 = vld [vmem:[%s690 + $0x24] sm:$0xf]
  %v701 = vld [vmem:[%s690 + $0x28] sm:$0xf]
  %v702 = vld [vmem:[%s690 + $0x2c] sm:$0xf]
  %v703 = vld [vmem:[%s690 + $0x30] sm:$0xf]
  %v704 = vld [vmem:[%s690 + $0x34] sm:$0xf]
  %v705 = vld [vmem:[%s690 + $0x38] sm:$0xf]
  %v706 = vld [vmem:[%s690 + $0x3c] sm:$0xf]
  %vm720 = vcmask 1046528
  %v721 = vrot.slane %v158, 1
  %v722 = vrot.slane %v159, 1
  %v723 = vsel %vm720, %v721, %v722
  %v724 = vrot.slane %v160, 1
  %v725 = vsel %vm720, %v722, %v724
  %v726 = vrot.slane %v161, 1
  %v727 = vsel %vm720, %v724, %v726
  %v728 = vrot.slane %v162, 1
  %v729 = vsel %vm720, %v726, %v728
  %v730 = vrot.slane %v163, 1
  %v731 = vsel %vm720, %v728, %v730
  %v732 = vrot.slane %v164, 1
  %v733 = vsel %vm720, %v730, %v732
  %v734 = vrot.slane %v165, 1
  %v735 = vsel %vm720, %v732, %v734
  %v736 = vrot.slane %v166, 1
  %v737 = vsel %vm720, %v734, %v736
  %v738 = vrot.slane %v167, 1
  %v739 = vsel %vm720, %v736, %v738
  %v740 = vrot.slane %v168, 1
  %v741 = vsel %vm720, %v738, %v740
  %v742 = vrot.slane %v169, 1
  %v743 = vsel %vm720, %v740, %v742
  %v744 = vrot.slane %v187, 1
  %v745 = vsel %vm720, %v742, %v744
  %v775 = vunpack.c.l.b16 %v691
  %v776 = vunpack.c.l.b16 %v692
  %v777 = vunpack.c.l.b16 %v693
  %v778 = vunpack.c.l.b16 %v694
  %v779 = vunpack.c.l.b16 %v695
  %v780 = vunpack.c.l.b16 %v696
  %v781 = vunpack.c.l.b16 %v697
  %v782 = vunpack.c.l.b16 %v698
  %v783 = vunpack.c.l.b16 %v699
  %v784 = vunpack.c.l.b16 %v700
  %v785 = vunpack.c.l.b16 %v701
  %v786 = vunpack.c.l.b16 %v702
  %v787 = vunpack.c.l.b16 %v703
  %v788 = vunpack.c.l.b16 %v704
  %v789 = vunpack.c.l.b16 %v705
  %v790 = vunpack.c.l.b16 %v706
  %v791 = vpack.c.b16 %v776, %v775
  %v792 = vpack.c.b16 %v778, %v777
  %v793 = vpack.c.b16 %v780, %v779
  %v794 = vpack.c.b16 %v782, %v781
  %v795 = vpack.c.b16 %v784, %v783
  %v796 = vpack.c.b16 %v786, %v785
  %v797 = vpack.c.b16 %v788, %v787
  %v798 = vpack.c.b16 %v790, %v789
  %807 = vmatprep.subr.bf16.mxu0 0
  %808 = vmatpush1.bf16.msra.mxu0 %v791
  %809 = vmatprep.subr.bf16.mxu0 0
  %810 = vmatpush1.bf16.msra.mxu0 %v792
  %811 = vmatprep.subr.bf16.mxu0 0
  %812 = vmatpush1.bf16.msra.mxu0 %v793
  %813 = vmatprep.subr.bf16.mxu0 0
  %814 = vmatpush1.bf16.msra.mxu0 %v794
  %815 = vmatprep.subr.bf16.mxu0 0
  %816 = vmatpush1.bf16.msra.mxu0 %v795
  %817 = vmatprep.subr.bf16.mxu0 0
  %818 = vmatpush1.bf16.msra.mxu0 %v796
  %819 = vmatprep.subr.bf16.mxu0 0
  %820 = vmatpush1.bf16.msra.mxu0 %v797
  %821 = vmatprep.subr.bf16.mxu0 0
  %822 = vmatpush1.bf16.msra.mxu0 %v798
  %823 = vmatprep.subr.bf16.mxu0 0
  %824 = vmatpush1.bf16.msra.mxu0 0
  %825 = vmatprep.subr.bf16.mxu0 0
  %826 = vmatpush1.bf16.msra.mxu0 0
  %827 = vmatprep.subr.bf16.mxu0 0
  %828 = vmatpush1.bf16.msra.mxu0 0
  %829 = vmatprep.subr.bf16.mxu0 0
  %830 = vmatpush1.bf16.msra.mxu0 0
  %831 = vmatprep.subr.bf16.mxu0 0
  %832 = vmatpush1.bf16.msra.mxu0 0
  %833 = vmatprep.subr.bf16.mxu0 0
  %834 = vmatpush1.bf16.msra.mxu0 0
  %835 = vmatprep.subr.bf16.mxu0 0
  %836 = vmatpush1.bf16.msra.mxu0 0
  %837 = vmatprep.subr.bf16.mxu0 0
  %838 = vmatpush1.bf16.msra.mxu0 0
  %839 = vmatprep.mubr.bf16.mxu0 0
  %840 = vmatmul.mubr.bf16.gmra.mrb[0].mxu0 %v723
  %v841 = vpop.f32.mrb[0].mxu0
  %v842 = vadd.f32 0.0, %v841
  %v843 = vpop.f32.mrb[0].mxu0
  %v844 = vpop.f32.mrb[0].mxu0
  %v845 = vadd.f32 0.0, %v844
  %v846 = vpop.f32.mrb[0].mxu0
  %847 = vmatprep.mubr.bf16.mxu0 0
  %848 = vmatmul.mubr.bf16.gmra.mrb[0].mxu0 %v725
  %v849 = vpop.f32.mrb[0].mxu0
  %v850 = vadd.f32 0.0, %v849
  %v851 = vpop.f32.mrb[0].mxu0
  %v852 = vpop.f32.mrb[0].mxu0
  %v853 = vadd.f32 0.0, %v852
  %v854 = vpop.f32.mrb[0].mxu0
  %855 = vmatprep.mubr.bf16.mxu0 0
  %856 = vmatmul.mubr.bf16.gmra.mrb[0].mxu0 %v727
  %v857 = vpop.f32.mrb[0].mxu0
  %v858 = vadd.f32 0.0, %v857
  %v859 = vpop.f32.mrb[0].mxu0
  %v860 = vpop.f32.mrb[0].mxu0
  %v861 = vadd.f32 0.0, %v860
  %v862 = vpop.f32.mrb[0].mxu0
  %863 = vmatprep.mubr.bf16.mxu0 0
  %864 = vmatmul.mubr.bf16.gmra.mrb[0].mxu0 %v729
  %v865 = vpop.f32.mrb[0].mxu0
  %v866 = vadd.f32 0.0, %v865
  %v867 = vpop.f32.mrb[0].mxu0
  %v868 = vpop.f32.mrb[0].mxu0
  %v869 = vadd.f32 0.0, %v868
  %v870 = vpop.f32.mrb[0].mxu0
  %871 = vmatprep.mubr.bf16.mxu0 0
  %872 = vmatmul.mubr.bf16.gmra.mrb[0].mxu0 %v731
  %v873 = vpop.f32.mrb[0].mxu0
  %v874 = vadd.f32 0.0, %v873
  %v875 = vpop.f32.mrb[0].mxu0
  %v876 = vpop.f32.mrb[0].mxu0
  %v877 = vadd.f32 0.0, %v876
  %v878 = vpop.f32.mrb[0].mxu0
  %879 = vmatprep.mubr.bf16.mxu0 0
  %880 = vmatmul.mubr.bf16.gmra.mrb[0].mxu0 %v733
  %v881 = vpop.f32.mrb[0].mxu0
  %v882 = vadd.f32 0.0, %v881
  %v883 = vpop.f32.mrb[0].mxu0
  %v884 = vpop.f32.mrb[0].mxu0
  %v885 = vadd.f32 0.0, %v884
  %v886 = vpop.f32.mrb[0].mxu0
  %887 = vmatprep.mubr.bf16.mxu0 0
  %888 = vmatmul.mubr.bf16.gmra.mrb[0].mxu0 %v735
  %v889 = vpop.f32.mrb[0].mxu0
  %v890 = vadd.f32 0.0, %v889
  %v891 = vpop.f32.mrb[0].mxu0
  %v892 = vpop.f32.mrb[0].mxu0
  %v893 = vadd.f32 0.0, %v892
  %v894 = vpop.f32.mrb[0].mxu0
  %895 = vmatprep.mubr.bf16.mxu0 0
  %896 = vmatmul.mubr.bf16.gmra.mrb[0].mxu0 %v737
  %v897 = vpop.f32.mrb[0].mxu0
  %v898 = vadd.f32 0.0, %v897
  %v899 = vpop.f32.mrb[0].mxu0
  %v900 = vpop.f32.mrb[0].mxu0
  %v901 = vadd.f32 0.0, %v900
  %v902 = vpop.f32.mrb[0].mxu0
  %903 = vmatprep.mubr.bf16.mxu0 0
  %904 = vmatmul.mubr.bf16.gmra.mrb[0].mxu0 %v739
  %v905 = vpop.f32.mrb[0].mxu0
  %v906 = vadd.f32 0.0, %v905
  %v907 = vpop.f32.mrb[0].mxu0
  %v908 = vpop.f32.mrb[0].mxu0
  %v909 = vadd.f32 0.0, %v908
  %v910 = vpop.f32.mrb[0].mxu0
  %911 = vmatprep.mubr.bf16.mxu0 0
  %912 = vmatmul.mubr.bf16.gmra.mrb[0].mxu0 %v741
  %v913 = vpop.f32.mrb[0].mxu0
  %v914 = vadd.f32 0.0, %v913
  %v915 = vpop.f32.mrb[0].mxu0
  %v916 = vpop.f32.mrb[0].mxu0
  %v917 = vadd.f32 0.0, %v916
  %v918 = vpop.f32.mrb[0].mxu0
  %919 = vmatprep.mubr.bf16.mxu0 0
  %920 = vmatmul.mubr.bf16.gmra.mrb[0].mxu0 %v743
  %v921 = vpop.f32.mrb[0].mxu0
  %v922 = vadd.f32 0.0, %v921
  %v923 = vpop.f32.mrb[0].mxu0
  %v924 = vpop.f32.mrb[0].mxu0
  %v925 = vadd.f32 0.0, %v924
  %v926 = vpop.f32.mrb[0].mxu0
  %927 = vmatprep.mubr.bf16.mxu0 0
  %928 = vmatmul.mubr.bf16.gmra.mrb[0].mxu0 %v745
  %v929 = vpop.f32.mrb[0].mxu0
  %v930 = vadd.f32 0.0, %v929
  %v931 = vpop.f32.mrb[0].mxu0
  %v932 = vpop.f32.mrb[0].mxu0
  %v933 = vadd.f32 0.0, %v932
  %v934 = vpop.f32.mrb[0].mxu0
  %935 = vmatprep.mubr.bf16.mxu0 0
  %936 = vmatmul.mubr.bf16.gmra.mrb[0].mxu0 %v744
  %v937 = vpop.f32.mrb[0].mxu0
  %v938 = vadd.f32 0.0, %v937
  %v939 = vpop.f32.mrb[0].mxu0
  %v940 = vpop.f32.mrb[0].mxu0
  %v941 = vpop.f32.mrb[0].mxu0
  %942 = vdwg.mxu0
  %v943 = vadd.f32 %v589, %v842
  %v944 = vadd.f32 %v592, %v845
  %v945 = vadd.f32 %v597, %v850
  %v946 = vadd.f32 %v600, %v853
  %v947 = vadd.f32 %v605, %v858
  %v948 = vadd.f32 %v608, %v861
  %v949 = vadd.f32 %v613, %v866
  %v950 = vadd.f32 %v616, %v869
  %v951 = vadd.f32 %v621, %v874
  %v952 = vadd.f32 %v624, %v877
  %v953 = vadd.f32 %v629, %v882
  %v954 = vadd.f32 %v632, %v885
  %v955 = vadd.f32 %v637, %v890
  %v956 = vadd.f32 %v640, %v893
  %v957 = vadd.f32 %v645, %v898
  %v958 = vadd.f32 %v648, %v901
  %v959 = vadd.f32 %v653, %v906
  %v960 = vadd.f32 %v656, %v909
  %v961 = vadd.f32 %v661, %v914
  %v962 = vadd.f32 %v664, %v917
  %v963 = vadd.f32 %v669, %v922
  %v964 = vadd.f32 %v672, %v925
  %v965 = vadd.f32 %v677, %v930
  %v966 = vadd.f32 %v680, %v933
  %v967 = vadd.f32 %v685, %v938
  %v968 = vpack.c.bf16 %v132, %v131
  %v969 = vpack.c.bf16 %v134, %v133
  %v970 = vpack.c.bf16 %v136, %v135
  %v971 = vpack.c.bf16 %v138, %v137
  %v972 = vpack.c.bf16 %v140, %v139
  %v973 = vpack.c.bf16 %v142, %v141
  %v974 = vpack.c.bf16 %v144, %v143
  %v975 = vpack.c.bf16 %v146, %v145
  %v976 = vpack.c.bf16 %v148, %v147
  %v977 = vpack.c.bf16 %v150, %v149
  %v978 = vpack.c.bf16 %v152, %v151
  %v979 = vpack.c.bf16 %v154, %v153
  %v980 = vpack.c.bf16 %v156, %v155
  %s981 = scalar_lea.vmem %s3, 192
  %v982 = vld [vmem:[%s981] sm:$0xf]
  %v983 = vld [vmem:[%s981 + $0x4] sm:$0xf]
  %v984 = vld [vmem:[%s981 + $0x8] sm:$0xf]
  %v985 = vld [vmem:[%s981 + $0xc] sm:$0xf]
  %v986 = vld [vmem:[%s981 + $0x10] sm:$0xf]
  %v987 = vld [vmem:[%s981 + $0x14] sm:$0xf]
  %v988 = vld [vmem:[%s981 + $0x18] sm:$0xf]
  %v989 = vld [vmem:[%s981 + $0x1c] sm:$0xf]
  %v990 = vld [vmem:[%s981 + $0x20] sm:$0xf]
  %v991 = vld [vmem:[%s981 + $0x24] sm:$0xf]
  %v992 = vld [vmem:[%s981 + $0x28] sm:$0xf]
  %v993 = vld [vmem:[%s981 + $0x2c] sm:$0xf]
  %v994 = vld [vmem:[%s981 + $0x30] sm:$0xf]
  %v995 = vld [vmem:[%s981 + $0x34] sm:$0xf]
  %v996 = vld [vmem:[%s981 + $0x38] sm:$0xf]
  %v997 = vld [vmem:[%s981 + $0x3c] sm:$0xf]
  %v1011 = vrot.slane %v968, 1
  %v1012 = vrot.slane %v969, 1
  %v1013 = vsel %vm720, %v1011, %v1012
  %v1014 = vrot.slane %v970, 1
  %v1015 = vsel %vm720, %v1012, %v1014
  %v1016 = vrot.slane %v971, 1
  %v1017 = vsel %vm720, %v1014, %v1016
  %v1018 = vrot.slane %v972, 1
  %v1019 = vsel %vm720, %v1016, %v1018
  %v1020 = vrot.slane %v973, 1
  %v1021 = vsel %vm720, %v1018, %v1020
  %v1022 = vrot.slane %v974, 1
  %v1023 = vsel %vm720, %v1020, %v1022
  %v1024 = vrot.slane %v975, 1
  %v1025 = vsel %vm720, %v1022, %v1024
  %v1026 = vrot.slane %v976, 1
  %v1027 = vsel %vm720, %v1024, %v1026
  %v1028 = vrot.slane %v977, 1
  %v1029 = vsel %vm720, %v1026, %v1028
  %v1030 = vrot.slane %v978, 1
  %v1031 = vsel %vm720, %v1028, %v1030
  %v1032 = vrot.slane %v979, 1
  %v1033 = vsel %vm720, %v1030, %v1032
  %v1034 = vrot.slane %v980, 1
  %v1035 = vsel %vm720, %v1032, %v1034
  %v1065 = vunpack.c.l.b16 %v982
  %v1066 = vunpack.c.l.b16 %v983
  %v1067 = vunpack.c.l.b16 %v984
  %v1068 = vunpack.c.l.b16 %v985
  %v1069 = vunpack.c.l.b16 %v986
  %v1070 = vunpack.c.l.b16 %v987
  %v1071 = vunpack.c.l.b16 %v988
  %v1072 = vunpack.c.l.b16 %v989
  %v1073 = vunpack.c.l.b16 %v990
  %v1074 = vunpack.c.l.b16 %v991
  %v1075 = vunpack.c.l.b16 %v992
  %v1076 = vunpack.c.l.b16 %v993
  %v1077 = vunpack.c.l.b16 %v994
  %v1078 = vunpack.c.l.b16 %v995
  %v1079 = vunpack.c.l.b16 %v996
  %v1080 = vunpack.c.l.b16 %v997
  %v1081 = vpack.c.b16 %v1066, %v1065
  %v1082 = vpack.c.b16 %v1068, %v1067
  %v1083 = vpack.c.b16 %v1070, %v1069
  %v1084 = vpack.c.b16 %v1072, %v1071
  %v1085 = vpack.c.b16 %v1074, %v1073
  %v1086 = vpack.c.b16 %v1076, %v1075
  %v1087 = vpack.c.b16 %v1078, %v1077
  %v1088 = vpack.c.b16 %v1080, %v1079
  %1097 = vmatprep.subr.bf16.mxu0 0
  %1098 = vmatpush1.bf16.msra.mxu0 %v1081
  %1099 = vmatprep.subr.bf16.mxu0 0
  %1100 = vmatpush1.bf16.msra.mxu0 %v1082
  %1101 = vmatprep.subr.bf16.mxu0 0
  %1102 = vmatpush1.bf16.msra.mxu0 %v1083
  %1103 = vmatprep.subr.bf16.mxu0 0
  %1104 = vmatpush1.bf16.msra.mxu0 %v1084
  %1105 = vmatprep.subr.bf16.mxu0 0
  %1106 = vmatpush1.bf16.msra.mxu0 %v1085
  %1107 = vmatprep.subr.bf16.mxu0 0
  %1108 = vmatpush1.bf16.msra.mxu0 %v1086
  %1109 = vmatprep.subr.bf16.mxu0 0
  %1110 = vmatpush1.bf16.msra.mxu0 %v1087
  %1111 = vmatprep.subr.bf16.mxu0 0
  %1112 = vmatpush1.bf16.msra.mxu0 %v1088
  %1113 = vmatprep.subr.bf16.mxu0 0
  %1114 = vmatpush1.bf16.msra.mxu0 0
  %1115 = vmatprep.subr.bf16.mxu0 0
  %1116 = vmatpush1.bf16.msra.mxu0 0
  %1117 = vmatprep.subr.bf16.mxu0 0
  %1118 = vmatpush1.bf16.msra.mxu0 0
  %1119 = vmatprep.subr.bf16.mxu0 0
  %1120 = vmatpush1.bf16.msra.mxu0 0
  %1121 = vmatprep.subr.bf16.mxu0 0
  %1122 = vmatpush1.bf16.msra.mxu0 0
  %1123 = vmatprep.subr.bf16.mxu0 0
  %1124 = vmatpush1.bf16.msra.mxu0 0
  %1125 = vmatprep.subr.bf16.mxu0 0
  %1126 = vmatpush1.bf16.msra.mxu0 0
  %1127 = vmatprep.subr.bf16.mxu0 0
  %1128 = vmatpush1.bf16.msra.mxu0 0
  %1129 = vmatprep.mubr.bf16.mxu0 0
  %1130 = vmatmul.mubr.bf16.gmra.mrb[0].mxu0 %v1013
  %v1131 = vpop.f32.mrb[0].mxu0
  %v1132 = vadd.f32 0.0, %v1131
  %v1133 = vpop.f32.mrb[0].mxu0
  %v1134 = vpop.f32.mrb[0].mxu0
  %v1135 = vadd.f32 0.0, %v1134
  %v1136 = vpop.f32.mrb[0].mxu0
  %1137 = vmatprep.mubr.bf16.mxu0 0
  %1138 = vmatmul.mubr.bf16.gmra.mrb[0].mxu0 %v1015
  %v1139 = vpop.f32.mrb[0].mxu0
  %v1140 = vadd.f32 0.0, %v1139
  %v1141 = vpop.f32.mrb[0].mxu0
  %v1142 = vpop.f32.mrb[0].mxu0
  %v1143 = vadd.f32 0.0, %v1142
  %v1144 = vpop.f32.mrb[0].mxu0
  %1145 = vmatprep.mubr.bf16.mxu0 0
  %1146 = vmatmul.mubr.bf16.gmra.mrb[0].mxu0 %v1017
  %v1147 = vpop.f32.mrb[0].mxu0
  %v1148 = vadd.f32 0.0, %v1147
  %v1149 = vpop.f32.mrb[0].mxu0
  %v1150 = vpop.f32.mrb[0].mxu0
  %v1151 = vadd.f32 0.0, %v1150
  %v1152 = vpop.f32.mrb[0].mxu0
  %1153 = vmatprep.mubr.bf16.mxu0 0
  %1154 = vmatmul.mubr.bf16.gmra.mrb[0].mxu0 %v1019
  %v1155 = vpop.f32.mrb[0].mxu0
  %v1156 = vadd.f32 0.0, %v1155
  %v1157 = vpop.f32.mrb[0].mxu0
  %v1158 = vpop.f32.mrb[0].mxu0
  %v1159 = vadd.f32 0.0, %v1158
  %v1160 = vpop.f32.mrb[0].mxu0
  %1161 = vmatprep.mubr.bf16.mxu0 0
  %1162 = vmatmul.mubr.bf16.gmra.mrb[0].mxu0 %v1021
  %v1163 = vpop.f32.mrb[0].mxu0
  %v1164 = vadd.f32 0.0, %v1163
  %v1165 = vpop.f32.mrb[0].mxu0
  %v1166 = vpop.f32.mrb[0].mxu0
  %v1167 = vadd.f32 0.0, %v1166
  %v1168 = vpop.f32.mrb[0].mxu0
  %1169 = vmatprep.mubr.bf16.mxu0 0
  %1170 = vmatmul.mubr.bf16.gmra.mrb[0].mxu0 %v1023
  %v1171 = vpop.f32.mrb[0].mxu0
  %v1172 = vadd.f32 0.0, %v1171
  %v1173 = vpop.f32.mrb[0].mxu0
  %v1174 = vpop.f32.mrb[0].mxu0
  %v1175 = vadd.f32 0.0, %v1174
  %v1176 = vpop.f32.mrb[0].mxu0
  %1177 = vmatprep.mubr.bf16.mxu0 0
  %1178 = vmatmul.mubr.bf16.gmra.mrb[0].mxu0 %v1025
  %v1179 = vpop.f32.mrb[0].mxu0
  %v1180 = vadd.f32 0.0, %v1179
  %v1181 = vpop.f32.mrb[0].mxu0
  %v1182 = vpop.f32.mrb[0].mxu0
  %v1183 = vadd.f32 0.0, %v1182
  %v1184 = vpop.f32.mrb[0].mxu0
  %1185 = vmatprep.mubr.bf16.mxu0 0
  %1186 = vmatmul.mubr.bf16.gmra.mrb[0].mxu0 %v1027
  %v1187 = vpop.f32.mrb[0].mxu0
  %v1188 = vadd.f32 0.0, %v1187
  %v1189 = vpop.f32.mrb[0].mxu0
  %v1190 = vpop.f32.mrb[0].mxu0
  %v1191 = vadd.f32 0.0, %v1190
  %v1192 = vpop.f32.mrb[0].mxu0
  %1193 = vmatprep.mubr.bf16.mxu0 0
  %1194 = vmatmul.mubr.bf16.gmra.mrb[0].mxu0 %v1029
  %v1195 = vpop.f32.mrb[0].mxu0
  %v1196 = vadd.f32 0.0, %v1195
  %v1197 = vpop.f32.mrb[0].mxu0
  %v1198 = vpop.f32.mrb[0].mxu0
  %v1199 = vadd.f32 0.0, %v1198
  %v1200 = vpop.f32.mrb[0].mxu0
  %1201 = vmatprep.mubr.bf16.mxu0 0
  %1202 = vmatmul.mubr.bf16.gmra.mrb[0].mxu0 %v1031
  %v1203 = vpop.f32.mrb[0].mxu0
  %v1204 = vadd.f32 0.0, %v1203
  %v1205 = vpop.f32.mrb[0].mxu0
  %v1206 = vpop.f32.mrb[0].mxu0
  %v1207 = vadd.f32 0.0, %v1206
  %v1208 = vpop.f32.mrb[0].mxu0
  %1209 = vmatprep.mubr.bf16.mxu0 0
  %1210 = vmatmul.mubr.bf16.gmra.mrb[0].mxu0 %v1033
  %v1211 = vpop.f32.mrb[0].mxu0
  %v1212 = vadd.f32 0.0, %v1211
  %v1213 = vpop.f32.mrb[0].mxu0
  %v1214 = vpop.f32.mrb[0].mxu0
  %v1215 = vadd.f32 0.0, %v1214
  %v1216 = vpop.f32.mrb[0].mxu0
  %1217 = vmatprep.mubr.bf16.mxu0 0
  %1218 = vmatmul.mubr.bf16.gmra.mrb[0].mxu0 %v1035
  %v1219 = vpop.f32.mrb[0].mxu0
  %v1220 = vadd.f32 0.0, %v1219
  %v1221 = vpop.f32.mrb[0].mxu0
  %v1222 = vpop.f32.mrb[0].mxu0
  %v1223 = vadd.f32 0.0, %v1222
  %v1224 = vpop.f32.mrb[0].mxu0
  %1225 = vmatprep.mubr.bf16.mxu0 0
  %1226 = vmatmul.mubr.bf16.gmra.mrb[0].mxu0 %v1034
  %v1227 = vpop.f32.mrb[0].mxu0
  %v1228 = vadd.f32 0.0, %v1227
  %v1229 = vpop.f32.mrb[0].mxu0
  %v1230 = vpop.f32.mrb[0].mxu0
  %v1231 = vpop.f32.mrb[0].mxu0
  %1232 = vdwg.mxu0
  %v1233 = vadd.f32 %v943, %v1132
  %v1234 = vadd.f32 %v944, %v1135
  %v1235 = vadd.f32 %v945, %v1140
  %v1236 = vadd.f32 %v946, %v1143
  %v1237 = vadd.f32 %v947, %v1148
  %v1238 = vadd.f32 %v948, %v1151
  %v1239 = vadd.f32 %v949, %v1156
  %v1240 = vadd.f32 %v950, %v1159
  %v1241 = vadd.f32 %v951, %v1164
  %v1242 = vadd.f32 %v952, %v1167
  %v1243 = vadd.f32 %v953, %v1172
  %v1244 = vadd.f32 %v954, %v1175
  %v1245 = vadd.f32 %v955, %v1180
  %v1246 = vadd.f32 %v956, %v1183
  %v1247 = vadd.f32 %v957, %v1188
  %v1248 = vadd.f32 %v958, %v1191
  %v1249 = vadd.f32 %v959, %v1196
  %v1250 = vadd.f32 %v960, %v1199
  %v1251 = vadd.f32 %v961, %v1204
  %v1252 = vadd.f32 %v962, %v1207
  %v1253 = vadd.f32 %v963, %v1212
  %v1254 = vadd.f32 %v964, %v1215
  %v1255 = vadd.f32 %v965, %v1220
  %v1256 = vadd.f32 %v966, %v1223
  %v1257 = vadd.f32 %v967, %v1228
  %s1258 = scalar_lea.vmem %s3, 256
  %v1259 = vld [vmem:[%s1258] sm:$0xf]
  %v1260 = vld [vmem:[%s1258 + $0x4] sm:$0xf]
  %v1261 = vld [vmem:[%s1258 + $0x8] sm:$0xf]
  %v1262 = vld [vmem:[%s1258 + $0xc] sm:$0xf]
  %v1263 = vld [vmem:[%s1258 + $0x10] sm:$0xf]
  %v1264 = vld [vmem:[%s1258 + $0x14] sm:$0xf]
  %v1265 = vld [vmem:[%s1258 + $0x18] sm:$0xf]
  %v1266 = vld [vmem:[%s1258 + $0x1c] sm:$0xf]
  %v1267 = vld [vmem:[%s1258 + $0x20] sm:$0xf]
  %v1268 = vld [vmem:[%s1258 + $0x24] sm:$0xf]
  %v1269 = vld [vmem:[%s1258 + $0x28] sm:$0xf]
  %v1270 = vld [vmem:[%s1258 + $0x2c] sm:$0xf]
  %v1271 = vld [vmem:[%s1258 + $0x30] sm:$0xf]
  %v1272 = vld [vmem:[%s1258 + $0x34] sm:$0xf]
  %v1273 = vld [vmem:[%s1258 + $0x38] sm:$0xf]
  %v1274 = vld [vmem:[%s1258 + $0x3c] sm:$0xf]
  %vm1275 = vsmask.f32 6400
  %v1277 = vshrl.u32 %v968, 16
  %v1279 = vrot.slane %v1277, 1
  %v1280 = vshll.u32 %v968, 16
  %v1282 = vrot.slane %v1280, 2
  %v1283 = vor.u32 %v1279, %v1282
  %v1285 = vshrl.u32 %v969, 16
  %v1287 = vrot.slane %v1285, 1
  %v1288 = vshll.u32 %v969, 16
  %v1290 = vrot.slane %v1288, 2
  %v1291 = vor.u32 %v1287, %v1290
  %v1292 = vsel %vm1275, %v1283, %v1291
  %v1294 = vshrl.u32 %v970, 16
  %v1296 = vrot.slane %v1294, 1
  %v1297 = vshll.u32 %v970, 16
  %v1299 = vrot.slane %v1297, 2
  %v1300 = vor.u32 %v1296, %v1299
  %v1301 = vsel %vm1275, %v1291, %v1300
  %v1303 = vshrl.u32 %v971, 16
  %v1305 = vrot.slane %v1303, 1
  %v1306 = vshll.u32 %v971, 16
  %v1308 = vrot.slane %v1306, 2
  %v1309 = vor.u32 %v1305, %v1308
  %v1310 = vsel %vm1275, %v1300, %v1309
  %v1312 = vshrl.u32 %v972, 16
  %v1314 = vrot.slane %v1312, 1
  %v1315 = vshll.u32 %v972, 16
  %v1317 = vrot.slane %v1315, 2
  %v1318 = vor.u32 %v1314, %v1317
  %v1319 = vsel %vm1275, %v1309, %v1318
  %v1321 = vshrl.u32 %v973, 16
  %v1323 = vrot.slane %v1321, 1
  %v1324 = vshll.u32 %v973, 16
  %v1326 = vrot.slane %v1324, 2
  %v1327 = vor.u32 %v1323, %v1326
  %v1328 = vsel %vm1275, %v1318, %v1327
  %v1330 = vshrl.u32 %v974, 16
  %v1332 = vrot.slane %v1330, 1
  %v1333 = vshll.u32 %v974, 16
  %v1335 = vrot.slane %v1333, 2
  %v1336 = vor.u32 %v1332, %v1335
  %v1337 = vsel %vm1275, %v1327, %v1336
  %v1339 = vshrl.u32 %v975, 16
  %v1341 = vrot.slane %v1339, 1
  %v1342 = vshll.u32 %v975, 16
  %v1344 = vrot.slane %v1342, 2
  %v1345 = vor.u32 %v1341, %v1344
  %v1346 = vsel %vm1275, %v1336, %v1345
  %v1348 = vshrl.u32 %v976, 16
  %v1350 = vrot.slane %v1348, 1
  %v1351 = vshll.u32 %v976, 16
  %v1353 = vrot.slane %v1351, 2
  %v1354 = vor.u32 %v1350, %v1353
  %v1355 = vsel %vm1275, %v1345, %v1354
  %v1357 = vshrl.u32 %v977, 16
  %v1359 = vrot.slane %v1357, 1
  %v1360 = vshll.u32 %v977, 16
  %v1362 = vrot.slane %v1360, 2
  %v1363 = vor.u32 %v1359, %v1362
  %v1364 = vsel %vm1275, %v1354, %v1363
  %v1366 = vshrl.u32 %v978, 16
  %v1368 = vrot.slane %v1366, 1
  %v1369 = vshll.u32 %v978, 16
  %v1371 = vrot.slane %v1369, 2
  %v1372 = vor.u32 %v1368, %v1371
  %v1373 = vsel %vm1275, %v1363, %v1372
  %v1375 = vshrl.u32 %v979, 16
  %v1377 = vrot.slane %v1375, 1
  %v1378 = vshll.u32 %v979, 16
  %v1380 = vrot.slane %v1378, 2
  %v1381 = vor.u32 %v1377, %v1380
  %v1382 = vsel %vm1275, %v1372, %v1381
  %v1384 = vshrl.u32 %v980, 16
  %v1386 = vrot.slane %v1384, 1
  %v1387 = vshll.u32 %v980, 16
  %v1389 = vrot.slane %v1387, 2
  %v1390 = vor.u32 %v1386, %v1389
  %v1391 = vsel %vm1275, %v1381, %v1390
  %v1421 = vunpack.c.l.b16 %v1259
  %v1422 = vunpack.c.l.b16 %v1260
  %v1423 = vunpack.c.l.b16 %v1261
  %v1424 = vunpack.c.l.b16 %v1262
  %v1425 = vunpack.c.l.b16 %v1263
  %v1426 = vunpack.c.l.b16 %v1264
  %v1427 = vunpack.c.l.b16 %v1265
  %v1428 = vunpack.c.l.b16 %v1266
  %v1429 = vunpack.c.l.b16 %v1267
  %v1430 = vunpack.c.l.b16 %v1268
  %v1431 = vunpack.c.l.b16 %v1269
  %v1432 = vunpack.c.l.b16 %v1270
  %v1433 = vunpack.c.l.b16 %v1271
  %v1434 = vunpack.c.l.b16 %v1272
  %v1435 = vunpack.c.l.b16 %v1273
  %v1436 = vunpack.c.l.b16 %v1274
  %v1437 = vpack.c.b16 %v1422, %v1421
  %v1438 = vpack.c.b16 %v1424, %v1423
  %v1439 = vpack.c.b16 %v1426, %v1425
  %v1440 = vpack.c.b16 %v1428, %v1427
  %v1441 = vpack.c.b16 %v1430, %v1429
  %v1442 = vpack.c.b16 %v1432, %v1431
  %v1443 = vpack.c.b16 %v1434, %v1433
  %v1444 = vpack.c.b16 %v1436, %v1435
  %1453 = vmatprep.subr.bf16.mxu0 0
  %1454 = vmatpush1.bf16.msra.mxu0 %v1437
  %1455 = vmatprep.subr.bf16.mxu0 0
  %1456 = vmatpush1.bf16.msra.mxu0 %v1438
  %1457 = vmatprep.subr.bf16.mxu0 0
  %1458 = vmatpush1.bf16.msra.mxu0 %v1439
  %1459 = vmatprep.subr.bf16.mxu0 0
  %1460 = vmatpush1.bf16.msra.mxu0 %v1440
  %1461 = vmatprep.subr.bf16.mxu0 0
  %1462 = vmatpush1.bf16.msra.mxu0 %v1441
  %1463 = vmatprep.subr.bf16.mxu0 0
  %1464 = vmatpush1.bf16.msra.mxu0 %v1442
  %1465 = vmatprep.subr.bf16.mxu0 0
  %1466 = vmatpush1.bf16.msra.mxu0 %v1443
  %1467 = vmatprep.subr.bf16.mxu0 0
  %1468 = vmatpush1.bf16.msra.mxu0 %v1444
  %1469 = vmatprep.subr.bf16.mxu0 0
  %1470 = vmatpush1.bf16.msra.mxu0 0
  %1471 = vmatprep.subr.bf16.mxu0 0
  %1472 = vmatpush1.bf16.msra.mxu0 0
  %1473 = vmatprep.subr.bf16.mxu0 0
  %1474 = vmatpush1.bf16.msra.mxu0 0
  %1475 = vmatprep.subr.bf16.mxu0 0
  %1476 = vmatpush1.bf16.msra.mxu0 0
  %1477 = vmatprep.subr.bf16.mxu0 0
  %1478 = vmatpush1.bf16.msra.mxu0 0
  %1479 = vmatprep.subr.bf16.mxu0 0
  %1480 = vmatpush1.bf16.msra.mxu0 0
  %1481 = vmatprep.subr.bf16.mxu0 0
  %1482 = vmatpush1.bf16.msra.mxu0 0
  %1483 = vmatprep.subr.bf16.mxu0 0
  %1484 = vmatpush1.bf16.msra.mxu0 0
  %1485 = vmatprep.mubr.bf16.mxu0 0
  %1486 = vmatmul.mubr.bf16.gmra.mrb[0].mxu0 %v1292
  %v1487 = vpop.f32.mrb[0].mxu0
  %v1488 = vadd.f32 0.0, %v1487
  %v1489 = vpop.f32.mrb[0].mxu0
  %v1490 = vpop.f32.mrb[0].mxu0
  %v1491 = vadd.f32 0.0, %v1490
  %v1492 = vpop.f32.mrb[0].mxu0
  %1493 = vmatprep.mubr.bf16.mxu0 0
  %1494 = vmatmul.mubr.bf16.gmra.mrb[0].mxu0 %v1301
  %v1495 = vpop.f32.mrb[0].mxu0
  %v1496 = vadd.f32 0.0, %v1495
  %v1497 = vpop.f32.mrb[0].mxu0
  %v1498 = vpop.f32.mrb[0].mxu0
  %v1499 = vadd.f32 0.0, %v1498
  %v1500 = vpop.f32.mrb[0].mxu0
  %1501 = vmatprep.mubr.bf16.mxu0 0
  %1502 = vmatmul.mubr.bf16.gmra.mrb[0].mxu0 %v1310
  %v1503 = vpop.f32.mrb[0].mxu0
  %v1504 = vadd.f32 0.0, %v1503
  %v1505 = vpop.f32.mrb[0].mxu0
  %v1506 = vpop.f32.mrb[0].mxu0
  %v1507 = vadd.f32 0.0, %v1506
  %v1508 = vpop.f32.mrb[0].mxu0
  %1509 = vmatprep.mubr.bf16.mxu0 0
  %1510 = vmatmul.mubr.bf16.gmra.mrb[0].mxu0 %v1319
  %v1511 = vpop.f32.mrb[0].mxu0
  %v1512 = vadd.f32 0.0, %v1511
  %v1513 = vpop.f32.mrb[0].mxu0
  %v1514 = vpop.f32.mrb[0].mxu0
  %v1515 = vadd.f32 0.0, %v1514
  %v1516 = vpop.f32.mrb[0].mxu0
  %1517 = vmatprep.mubr.bf16.mxu0 0
  %1518 = vmatmul.mubr.bf16.gmra.mrb[0].mxu0 %v1328
  %v1519 = vpop.f32.mrb[0].mxu0
  %v1520 = vadd.f32 0.0, %v1519
  %v1521 = vpop.f32.mrb[0].mxu0
  %v1522 = vpop.f32.mrb[0].mxu0
  %v1523 = vadd.f32 0.0, %v1522
  %v1524 = vpop.f32.mrb[0].mxu0
  %1525 = vmatprep.mubr.bf16.mxu0 0
  %1526 = vmatmul.mubr.bf16.gmra.mrb[0].mxu0 %v1337
  %v1527 = vpop.f32.mrb[0].mxu0
  %v1528 = vadd.f32 0.0, %v1527
  %v1529 = vpop.f32.mrb[0].mxu0
  %v1530 = vpop.f32.mrb[0].mxu0
  %v1531 = vadd.f32 0.0, %v1530
  %v1532 = vpop.f32.mrb[0].mxu0
  %1533 = vmatprep.mubr.bf16.mxu0 0
  %1534 = vmatmul.mubr.bf16.gmra.mrb[0].mxu0 %v1346
  %v1535 = vpop.f32.mrb[0].mxu0
  %v1536 = vadd.f32 0.0, %v1535
  %v1537 = vpop.f32.mrb[0].mxu0
  %v1538 = vpop.f32.mrb[0].mxu0
  %v1539 = vadd.f32 0.0, %v1538
  %v1540 = vpop.f32.mrb[0].mxu0
  %1541 = vmatprep.mubr.bf16.mxu0 0
  %1542 = vmatmul.mubr.bf16.gmra.mrb[0].mxu0 %v1355
  %v1543 = vpop.f32.mrb[0].mxu0
  %v1544 = vadd.f32 0.0, %v1543
  %v1545 = vpop.f32.mrb[0].mxu0
  %v1546 = vpop.f32.mrb[0].mxu0
  %v1547 = vadd.f32 0.0, %v1546
  %v1548 = vpop.f32.mrb[0].mxu0
  %1549 = vmatprep.mubr.bf16.mxu0 0
  %1550 = vmatmul.mubr.bf16.gmra.mrb[0].mxu0 %v1364
  %v1551 = vpop.f32.mrb[0].mxu0
  %v1552 = vadd.f32 0.0, %v1551
  %v1553 = vpop.f32.mrb[0].mxu0
  %v1554 = vpop.f32.mrb[0].mxu0
  %v1555 = vadd.f32 0.0, %v1554
  %v1556 = vpop.f32.mrb[0].mxu0
  %1557 = vmatprep.mubr.bf16.mxu0 0
  %1558 = vmatmul.mubr.bf16.gmra.mrb[0].mxu0 %v1373
  %v1559 = vpop.f32.mrb[0].mxu0
  %v1560 = vadd.f32 0.0, %v1559
  %v1561 = vpop.f32.mrb[0].mxu0
  %v1562 = vpop.f32.mrb[0].mxu0
  %v1563 = vadd.f32 0.0, %v1562
  %v1564 = vpop.f32.mrb[0].mxu0
  %1565 = vmatprep.mubr.bf16.mxu0 0
  %1566 = vmatmul.mubr.bf16.gmra.mrb[0].mxu0 %v1382
  %v1567 = vpop.f32.mrb[0].mxu0
  %v1568 = vadd.f32 0.0, %v1567
  %v1569 = vpop.f32.mrb[0].mxu0
  %v1570 = vpop.f32.mrb[0].mxu0
  %v1571 = vadd.f32 0.0, %v1570
  %v1572 = vpop.f32.mrb[0].mxu0
  %1573 = vmatprep.mubr.bf16.mxu0 0
  %1574 = vmatmul.mubr.bf16.gmra.mrb[0].mxu0 %v1391
  %v1575 = vpop.f32.mrb[0].mxu0
  %v1576 = vadd.f32 0.0, %v1575
  %v1577 = vpop.f32.mrb[0].mxu0
  %v1578 = vpop.f32.mrb[0].mxu0
  %v1579 = vadd.f32 0.0, %v1578
  %v1580 = vpop.f32.mrb[0].mxu0
  %1581 = vmatprep.mubr.bf16.mxu0 0
  %1582 = vmatmul.mubr.bf16.gmra.mrb[0].mxu0 %v1390
  %v1583 = vpop.f32.mrb[0].mxu0
  %v1584 = vadd.f32 0.0, %v1583
  %v1585 = vpop.f32.mrb[0].mxu0
  %v1586 = vpop.f32.mrb[0].mxu0
  %v1587 = vpop.f32.mrb[0].mxu0
  %1588 = vdwg.mxu0
  %v1589 = vadd.f32 %v1233, %v1488
  %v1590 = vadd.f32 %v1234, %v1491
  %v1591 = vadd.f32 %v1235, %v1496
  %v1592 = vadd.f32 %v1236, %v1499
  %v1593 = vadd.f32 %v1237, %v1504
  %v1594 = vadd.f32 %v1238, %v1507
  %v1595 = vadd.f32 %v1239, %v1512
  %v1596 = vadd.f32 %v1240, %v1515
  %v1597 = vadd.f32 %v1241, %v1520
  %v1598 = vadd.f32 %v1242, %v1523
  %v1599 = vadd.f32 %v1243, %v1528
  %v1600 = vadd.f32 %v1244, %v1531
  %v1601 = vadd.f32 %v1245, %v1536
  %v1602 = vadd.f32 %v1246, %v1539
  %v1603 = vadd.f32 %v1247, %v1544
  %v1604 = vadd.f32 %v1248, %v1547
  %v1605 = vadd.f32 %v1249, %v1552
  %v1606 = vadd.f32 %v1250, %v1555
  %v1607 = vadd.f32 %v1251, %v1560
  %v1608 = vadd.f32 %v1252, %v1563
  %v1609 = vadd.f32 %v1253, %v1568
  %v1610 = vadd.f32 %v1254, %v1571
  %v1611 = vadd.f32 %v1255, %v1576
  %v1612 = vadd.f32 %v1256, %v1579
  %v1613 = vadd.f32 %v1257, %v1584
  %s1614 = scalar_lea.vmem %s3, 320
  %v1615 = vld [vmem:[%s1614] sm:$0xf]
  %v1616 = vld [vmem:[%s1614 + $0x4] sm:$0xf]
  %v1617 = vld [vmem:[%s1614 + $0x8] sm:$0xf]
  %v1618 = vld [vmem:[%s1614 + $0xc] sm:$0xf]
  %v1619 = vld [vmem:[%s1614 + $0x10] sm:$0xf]
  %v1620 = vld [vmem:[%s1614 + $0x14] sm:$0xf]
  %v1621 = vld [vmem:[%s1614 + $0x18] sm:$0xf]
  %v1622 = vld [vmem:[%s1614 + $0x1c] sm:$0xf]
  %v1623 = vld [vmem:[%s1614 + $0x20] sm:$0xf]
  %v1624 = vld [vmem:[%s1614 + $0x24] sm:$0xf]
  %v1625 = vld [vmem:[%s1614 + $0x28] sm:$0xf]
  %v1626 = vld [vmem:[%s1614 + $0x2c] sm:$0xf]
  %v1627 = vld [vmem:[%s1614 + $0x30] sm:$0xf]
  %v1628 = vld [vmem:[%s1614 + $0x34] sm:$0xf]
  %v1629 = vld [vmem:[%s1614 + $0x38] sm:$0xf]
  %v1630 = vld [vmem:[%s1614 + $0x3c] sm:$0xf]
  %vm1631 = vcmask 1045504
  %v1632 = vrot.slane %v968, 2
  %v1633 = vrot.slane %v969, 2
  %v1634 = vsel %vm1631, %v1632, %v1633
  %v1635 = vrot.slane %v970, 2
  %v1636 = vsel %vm1631, %v1633, %v1635
  %v1637 = vrot.slane %v971, 2
  %v1638 = vsel %vm1631, %v1635, %v1637
  %v1639 = vrot.slane %v972, 2
  %v1640 = vsel %vm1631, %v1637, %v1639
  %v1641 = vrot.slane %v973, 2
  %v1642 = vsel %vm1631, %v1639, %v1641
  %v1643 = vrot.slane %v974, 2
  %v1644 = vsel %vm1631, %v1641, %v1643
  %v1645 = vrot.slane %v975, 2
  %v1646 = vsel %vm1631, %v1643, %v1645
  %v1647 = vrot.slane %v976, 2
  %v1648 = vsel %vm1631, %v1645, %v1647
  %v1649 = vrot.slane %v977, 2
  %v1650 = vsel %vm1631, %v1647, %v1649
  %v1651 = vrot.slane %v978, 2
  %v1652 = vsel %vm1631, %v1649, %v1651
  %v1653 = vrot.slane %v979, 2
  %v1654 = vsel %vm1631, %v1651, %v1653
  %v1655 = vrot.slane %v980, 2
  %v1656 = vsel %vm1631, %v1653, %v1655
  %v1686 = vunpack.c.l.b16 %v1615
  %v1687 = vunpack.c.l.b16 %v1616
  %v1688 = vunpack.c.l.b16 %v1617
  %v1689 = vunpack.c.l.b16 %v1618
  %v1690 = vunpack.c.l.b16 %v1619
  %v1691 = vunpack.c.l.b16 %v1620
  %v1692 = vunpack.c.l.b16 %v1621
  %v1693 = vunpack.c.l.b16 %v1622
  %v1694 = vunpack.c.l.b16 %v1623
  %v1695 = vunpack.c.l.b16 %v1624
  %v1696 = vunpack.c.l.b16 %v1625
  %v1697 = vunpack.c.l.b16 %v1626
  %v1698 = vunpack.c.l.b16 %v1627
  %v1699 = vunpack.c.l.b16 %v1628
  %v1700 = vunpack.c.l.b16 %v1629
  %v1701 = vunpack.c.l.b16 %v1630
  %v1702 = vpack.c.b16 %v1687, %v1686
  %v1703 = vpack.c.b16 %v1689, %v1688
  %v1704 = vpack.c.b16 %v1691, %v1690
  %v1705 = vpack.c.b16 %v1693, %v1692
  %v1706 = vpack.c.b16 %v1695, %v1694
  %v1707 = vpack.c.b16 %v1697, %v1696
  %v1708 = vpack.c.b16 %v1699, %v1698
  %v1709 = vpack.c.b16 %v1701, %v1700
  %1718 = vmatprep.subr.bf16.mxu0 0
  %1719 = vmatpush1.bf16.msra.mxu0 %v1702
  %1720 = vmatprep.subr.bf16.mxu0 0
  %1721 = vmatpush1.bf16.msra.mxu0 %v1703
  %1722 = vmatprep.subr.bf16.mxu0 0
  %1723 = vmatpush1.bf16.msra.mxu0 %v1704
  %1724 = vmatprep.subr.bf16.mxu0 0
  %1725 = vmatpush1.bf16.msra.mxu0 %v1705
  %1726 = vmatprep.subr.bf16.mxu0 0
  %1727 = vmatpush1.bf16.msra.mxu0 %v1706
  %1728 = vmatprep.subr.bf16.mxu0 0
  %1729 = vmatpush1.bf16.msra.mxu0 %v1707
  %1730 = vmatprep.subr.bf16.mxu0 0
  %1731 = vmatpush1.bf16.msra.mxu0 %v1708
  %1732 = vmatprep.subr.bf16.mxu0 0
  %1733 = vmatpush1.bf16.msra.mxu0 %v1709
  %1734 = vmatprep.subr.bf16.mxu0 0
  %1735 = vmatpush1.bf16.msra.mxu0 0
  %1736 = vmatprep.subr.bf16.mxu0 0
  %1737 = vmatpush1.bf16.msra.mxu0 0
  %1738 = vmatprep.subr.bf16.mxu0 0
  %1739 = vmatpush1.bf16.msra.mxu0 0
  %1740 = vmatprep.subr.bf16.mxu0 0
  %1741 = vmatpush1.bf16.msra.mxu0 0
  %1742 = vmatprep.subr.bf16.mxu0 0
  %1743 = vmatpush1.bf16.msra.mxu0 0
  %1744 = vmatprep.subr.bf16.mxu0 0
  %1745 = vmatpush1.bf16.msra.mxu0 0
  %1746 = vmatprep.subr.bf16.mxu0 0
  %1747 = vmatpush1.bf16.msra.mxu0 0
  %1748 = vmatprep.subr.bf16.mxu0 0
  %1749 = vmatpush1.bf16.msra.mxu0 0
  %1750 = vmatprep.mubr.bf16.mxu0 0
  %1751 = vmatmul.mubr.bf16.gmra.mrb[0].mxu0 %v1634
  %v1752 = vpop.f32.mrb[0].mxu0
  %v1753 = vadd.f32 0.0, %v1752
  %v1754 = vpop.f32.mrb[0].mxu0
  %v1755 = vpop.f32.mrb[0].mxu0
  %v1756 = vadd.f32 0.0, %v1755
  %v1757 = vpop.f32.mrb[0].mxu0
  %1758 = vmatprep.mubr.bf16.mxu0 0
  %1759 = vmatmul.mubr.bf16.gmra.mrb[0].mxu0 %v1636
  %v1760 = vpop.f32.mrb[0].mxu0
  %v1761 = vadd.f32 0.0, %v1760
  %v1762 = vpop.f32.mrb[0].mxu0
  %v1763 = vpop.f32.mrb[0].mxu0
  %v1764 = vadd.f32 0.0, %v1763
  %v1765 = vpop.f32.mrb[0].mxu0
  %1766 = vmatprep.mubr.bf16.mxu0 0
  %1767 = vmatmul.mubr.bf16.gmra.mrb[0].mxu0 %v1638
  %v1768 = vpop.f32.mrb[0].mxu0
  %v1769 = vadd.f32 0.0, %v1768
  %v1770 = vpop.f32.mrb[0].mxu0
  %v1771 = vpop.f32.mrb[0].mxu0
  %v1772 = vadd.f32 0.0, %v1771
  %v1773 = vpop.f32.mrb[0].mxu0
  %1774 = vmatprep.mubr.bf16.mxu0 0
  %1775 = vmatmul.mubr.bf16.gmra.mrb[0].mxu0 %v1640
  %v1776 = vpop.f32.mrb[0].mxu0
  %v1777 = vadd.f32 0.0, %v1776
  %v1778 = vpop.f32.mrb[0].mxu0
  %v1779 = vpop.f32.mrb[0].mxu0
  %v1780 = vadd.f32 0.0, %v1779
  %v1781 = vpop.f32.mrb[0].mxu0
  %1782 = vmatprep.mubr.bf16.mxu0 0
  %1783 = vmatmul.mubr.bf16.gmra.mrb[0].mxu0 %v1642
  %v1784 = vpop.f32.mrb[0].mxu0
  %v1785 = vadd.f32 0.0, %v1784
  %v1786 = vpop.f32.mrb[0].mxu0
  %v1787 = vpop.f32.mrb[0].mxu0
  %v1788 = vadd.f32 0.0, %v1787
  %v1789 = vpop.f32.mrb[0].mxu0
  %1790 = vmatprep.mubr.bf16.mxu0 0
  %1791 = vmatmul.mubr.bf16.gmra.mrb[0].mxu0 %v1644
  %v1792 = vpop.f32.mrb[0].mxu0
  %v1793 = vadd.f32 0.0, %v1792
  %v1794 = vpop.f32.mrb[0].mxu0
  %v1795 = vpop.f32.mrb[0].mxu0
  %v1796 = vadd.f32 0.0, %v1795
  %v1797 = vpop.f32.mrb[0].mxu0
  %1798 = vmatprep.mubr.bf16.mxu0 0
  %1799 = vmatmul.mubr.bf16.gmra.mrb[0].mxu0 %v1646
  %v1800 = vpop.f32.mrb[0].mxu0
  %v1801 = vadd.f32 0.0, %v1800
  %v1802 = vpop.f32.mrb[0].mxu0
  %v1803 = vpop.f32.mrb[0].mxu0
  %v1804 = vadd.f32 0.0, %v1803
  %v1805 = vpop.f32.mrb[0].mxu0
  %1806 = vmatprep.mubr.bf16.mxu0 0
  %1807 = vmatmul.mubr.bf16.gmra.mrb[0].mxu0 %v1648
  %v1808 = vpop.f32.mrb[0].mxu0
  %v1809 = vadd.f32 0.0, %v1808
  %v1810 = vpop.f32.mrb[0].mxu0
  %v1811 = vpop.f32.mrb[0].mxu0
  %v1812 = vadd.f32 0.0, %v1811
  %v1813 = vpop.f32.mrb[0].mxu0
  %1814 = vmatprep.mubr.bf16.mxu0 0
  %1815 = vmatmul.mubr.bf16.gmra.mrb[0].mxu0 %v1650
  %v1816 = vpop.f32.mrb[0].mxu0
  %v1817 = vadd.f32 0.0, %v1816
  %v1818 = vpop.f32.mrb[0].mxu0
  %v1819 = vpop.f32.mrb[0].mxu0
  %v1820 = vadd.f32 0.0, %v1819
  %v1821 = vpop.f32.mrb[0].mxu0
  %1822 = vmatprep.mubr.bf16.mxu0 0
  %1823 = vmatmul.mubr.bf16.gmra.mrb[0].mxu0 %v1652
  %v1824 = vpop.f32.mrb[0].mxu0
  %v1825 = vadd.f32 0.0, %v1824
  %v1826 = vpop.f32.mrb[0].mxu0
  %v1827 = vpop.f32.mrb[0].mxu0
  %v1828 = vadd.f32 0.0, %v1827
  %v1829 = vpop.f32.mrb[0].mxu0
  %1830 = vmatprep.mubr.bf16.mxu0 0
  %1831 = vmatmul.mubr.bf16.gmra.mrb[0].mxu0 %v1654
  %v1832 = vpop.f32.mrb[0].mxu0
  %v1833 = vadd.f32 0.0, %v1832
  %v1834 = vpop.f32.mrb[0].mxu0
  %v1835 = vpop.f32.mrb[0].mxu0
  %v1836 = vadd.f32 0.0, %v1835
  %v1837 = vpop.f32.mrb[0].mxu0
  %1838 = vmatprep.mubr.bf16.mxu0 0
  %1839 = vmatmul.mubr.bf16.gmra.mrb[0].mxu0 %v1656
  %v1840 = vpop.f32.mrb[0].mxu0
  %v1841 = vadd.f32 0.0, %v1840
  %v1842 = vpop.f32.mrb[0].mxu0
  %v1843 = vpop.f32.mrb[0].mxu0
  %v1844 = vadd.f32 0.0, %v1843
  %v1845 = vpop.f32.mrb[0].mxu0
  %1846 = vmatprep.mubr.bf16.mxu0 0
  %1847 = vmatmul.mubr.bf16.gmra.mrb[0].mxu0 %v1655
  %v1848 = vpop.f32.mrb[0].mxu0
  %v1849 = vadd.f32 0.0, %v1848
  %v1850 = vpop.f32.mrb[0].mxu0
  %v1851 = vpop.f32.mrb[0].mxu0
  %v1852 = vpop.f32.mrb[0].mxu0
  %1853 = vdwg.mxu0
  %v1854 = vadd.f32 %v1589, %v1753
  %v1855 = vadd.f32 %v1590, %v1756
  %v1856 = vadd.f32 %v1591, %v1761
  %v1857 = vadd.f32 %v1592, %v1764
  %v1858 = vadd.f32 %v1593, %v1769
  %v1859 = vadd.f32 %v1594, %v1772
  %v1860 = vadd.f32 %v1595, %v1777
  %v1861 = vadd.f32 %v1596, %v1780
  %v1862 = vadd.f32 %v1597, %v1785
  %v1863 = vadd.f32 %v1598, %v1788
  %v1864 = vadd.f32 %v1599, %v1793
  %v1865 = vadd.f32 %v1600, %v1796
  %v1866 = vadd.f32 %v1601, %v1801
  %v1867 = vadd.f32 %v1602, %v1804
  %v1868 = vadd.f32 %v1603, %v1809
  %v1869 = vadd.f32 %v1604, %v1812
  %v1870 = vadd.f32 %v1605, %v1817
  %v1871 = vadd.f32 %v1606, %v1820
  %v1872 = vadd.f32 %v1607, %v1825
  %v1873 = vadd.f32 %v1608, %v1828
  %v1874 = vadd.f32 %v1609, %v1833
  %v1875 = vadd.f32 %v1610, %v1836
  %v1876 = vadd.f32 %v1611, %v1841
  %v1877 = vadd.f32 %v1612, %v1844
  %v1878 = vadd.f32 %v1613, %v1849
  %v1879 = vpack.c.bf16 %v157, %v156
  %s1880 = scalar_lea.vmem %s3, 384
  %v1881 = vld [vmem:[%s1880] sm:$0xf]
  %v1882 = vld [vmem:[%s1880 + $0x4] sm:$0xf]
  %v1883 = vld [vmem:[%s1880 + $0x8] sm:$0xf]
  %v1884 = vld [vmem:[%s1880 + $0xc] sm:$0xf]
  %v1885 = vld [vmem:[%s1880 + $0x10] sm:$0xf]
  %v1886 = vld [vmem:[%s1880 + $0x14] sm:$0xf]
  %v1887 = vld [vmem:[%s1880 + $0x18] sm:$0xf]
  %v1888 = vld [vmem:[%s1880 + $0x1c] sm:$0xf]
  %v1889 = vld [vmem:[%s1880 + $0x20] sm:$0xf]
  %v1890 = vld [vmem:[%s1880 + $0x24] sm:$0xf]
  %v1891 = vld [vmem:[%s1880 + $0x28] sm:$0xf]
  %v1892 = vld [vmem:[%s1880 + $0x2c] sm:$0xf]
  %v1893 = vld [vmem:[%s1880 + $0x30] sm:$0xf]
  %v1894 = vld [vmem:[%s1880 + $0x34] sm:$0xf]
  %v1895 = vld [vmem:[%s1880 + $0x38] sm:$0xf]
  %v1896 = vld [vmem:[%s1880 + $0x3c] sm:$0xf]
  %v1898 = vrot.slane %v159, 2
  %v1899 = vrot.slane %v160, 2
  %v1900 = vsel %vm1631, %v1898, %v1899
  %v1901 = vrot.slane %v161, 2
  %v1902 = vsel %vm1631, %v1899, %v1901
  %v1903 = vrot.slane %v162, 2
  %v1904 = vsel %vm1631, %v1901, %v1903
  %v1905 = vrot.slane %v163, 2
  %v1906 = vsel %vm1631, %v1903, %v1905
  %v1907 = vrot.slane %v164, 2
  %v1908 = vsel %vm1631, %v1905, %v1907
  %v1909 = vrot.slane %v165, 2
  %v1910 = vsel %vm1631, %v1907, %v1909
  %v1911 = vrot.slane %v166, 2
  %v1912 = vsel %vm1631, %v1909, %v1911
  %v1913 = vrot.slane %v167, 2
  %v1914 = vsel %vm1631, %v1911, %v1913
  %v1915 = vrot.slane %v168, 2
  %v1916 = vsel %vm1631, %v1913, %v1915
  %v1917 = vrot.slane %v169, 2
  %v1918 = vsel %vm1631, %v1915, %v1917
  %v1919 = vrot.slane %v187, 2
  %v1920 = vsel %vm1631, %v1917, %v1919
  %v1921 = vrot.slane %v1879, 2
  %v1922 = vsel %vm1631, %v1919, %v1921
  %v1952 = vunpack.c.l.b16 %v1881
  %v1953 = vunpack.c.l.b16 %v1882
  %v1954 = vunpack.c.l.b16 %v1883
  %v1955 = vunpack.c.l.b16 %v1884
  %v1956 = vunpack.c.l.b16 %v1885
  %v1957 = vunpack.c.l.b16 %v1886
  %v1958 = vunpack.c.l.b16 %v1887
  %v1959 = vunpack.c.l.b16 %v1888
  %v1960 = vunpack.c.l.b16 %v1889
  %v1961 = vunpack.c.l.b16 %v1890
  %v1962 = vunpack.c.l.b16 %v1891
  %v1963 = vunpack.c.l.b16 %v1892
  %v1964 = vunpack.c.l.b16 %v1893
  %v1965 = vunpack.c.l.b16 %v1894
  %v1966 = vunpack.c.l.b16 %v1895
  %v1967 = vunpack.c.l.b16 %v1896
  %v1968 = vpack.c.b16 %v1953, %v1952
  %v1969 = vpack.c.b16 %v1955, %v1954
  %v1970 = vpack.c.b16 %v1957, %v1956
  %v1971 = vpack.c.b16 %v1959, %v1958
  %v1972 = vpack.c.b16 %v1961, %v1960
  %v1973 = vpack.c.b16 %v1963, %v1962
  %v1974 = vpack.c.b16 %v1965, %v1964
  %v1975 = vpack.c.b16 %v1967, %v1966
  %1984 = vmatprep.subr.bf16.mxu0 0
  %1985 = vmatpush1.bf16.msra.mxu0 %v1968
  %1986 = vmatprep.subr.bf16.mxu0 0
  %1987 = vmatpush1.bf16.msra.mxu0 %v1969
  %1988 = vmatprep.subr.bf16.mxu0 0
  %1989 = vmatpush1.bf16.msra.mxu0 %v1970
  %1990 = vmatprep.subr.bf16.mxu0 0
  %1991 = vmatpush1.bf16.msra.mxu0 %v1971
  %1992 = vmatprep.subr.bf16.mxu0 0
  %1993 = vmatpush1.bf16.msra.mxu0 %v1972
  %1994 = vmatprep.subr.bf16.mxu0 0
  %1995 = vmatpush1.bf16.msra.mxu0 %v1973
  %1996 = vmatprep.subr.bf16.mxu0 0
  %1997 = vmatpush1.bf16.msra.mxu0 %v1974
  %1998 = vmatprep.subr.bf16.mxu0 0
  %1999 = vmatpush1.bf16.msra.mxu0 %v1975
  %2000 = vmatprep.subr.bf16.mxu0 0
  %2001 = vmatpush1.bf16.msra.mxu0 0
  %2002 = vmatprep.subr.bf16.mxu0 0
  %2003 = vmatpush1.bf16.msra.mxu0 0
  %2004 = vmatprep.subr.bf16.mxu0 0
  %2005 = vmatpush1.bf16.msra.mxu0 0
  %2006 = vmatprep.subr.bf16.mxu0 0
  %2007 = vmatpush1.bf16.msra.mxu0 0
  %2008 = vmatprep.subr.bf16.mxu0 0
  %2009 = vmatpush1.bf16.msra.mxu0 0
  %2010 = vmatprep.subr.bf16.mxu0 0
  %2011 = vmatpush1.bf16.msra.mxu0 0
  %2012 = vmatprep.subr.bf16.mxu0 0
  %2013 = vmatpush1.bf16.msra.mxu0 0
  %2014 = vmatprep.subr.bf16.mxu0 0
  %2015 = vmatpush1.bf16.msra.mxu0 0
  %2016 = vmatprep.mubr.bf16.mxu0 0
  %2017 = vmatmul.mubr.bf16.gmra.mrb[0].mxu0 %v1900
  %v2018 = vpop.f32.mrb[0].mxu0
  %v2019 = vadd.f32 0.0, %v2018
  %v2020 = vpop.f32.mrb[0].mxu0
  %v2021 = vpop.f32.mrb[0].mxu0
  %v2022 = vadd.f32 0.0, %v2021
  %v2023 = vpop.f32.mrb[0].mxu0
  %2024 = vmatprep.mubr.bf16.mxu0 0
  %2025 = vmatmul.mubr.bf16.gmra.mrb[0].mxu0 %v1902
  %v2026 = vpop.f32.mrb[0].mxu0
  %v2027 = vadd.f32 0.0, %v2026
  %v2028 = vpop.f32.mrb[0].mxu0
  %v2029 = vpop.f32.mrb[0].mxu0
  %v2030 = vadd.f32 0.0, %v2029
  %v2031 = vpop.f32.mrb[0].mxu0
  %2032 = vmatprep.mubr.bf16.mxu0 0
  %2033 = vmatmul.mubr.bf16.gmra.mrb[0].mxu0 %v1904
  %v2034 = vpop.f32.mrb[0].mxu0
  %v2035 = vadd.f32 0.0, %v2034
  %v2036 = vpop.f32.mrb[0].mxu0
  %v2037 = vpop.f32.mrb[0].mxu0
  %v2038 = vadd.f32 0.0, %v2037
  %v2039 = vpop.f32.mrb[0].mxu0
  %2040 = vmatprep.mubr.bf16.mxu0 0
  %2041 = vmatmul.mubr.bf16.gmra.mrb[0].mxu0 %v1906
  %v2042 = vpop.f32.mrb[0].mxu0
  %v2043 = vadd.f32 0.0, %v2042
  %v2044 = vpop.f32.mrb[0].mxu0
  %v2045 = vpop.f32.mrb[0].mxu0
  %v2046 = vadd.f32 0.0, %v2045
  %v2047 = vpop.f32.mrb[0].mxu0
  %2048 = vmatprep.mubr.bf16.mxu0 0
  %2049 = vmatmul.mubr.bf16.gmra.mrb[0].mxu0 %v1908
  %v2050 = vpop.f32.mrb[0].mxu0
  %v2051 = vadd.f32 0.0, %v2050
  %v2052 = vpop.f32.mrb[0].mxu0
  %v2053 = vpop.f32.mrb[0].mxu0
  %v2054 = vadd.f32 0.0, %v2053
  %v2055 = vpop.f32.mrb[0].mxu0
  %2056 = vmatprep.mubr.bf16.mxu0 0
  %2057 = vmatmul.mubr.bf16.gmra.mrb[0].mxu0 %v1910
  %v2058 = vpop.f32.mrb[0].mxu0
  %v2059 = vadd.f32 0.0, %v2058
  %v2060 = vpop.f32.mrb[0].mxu0
  %v2061 = vpop.f32.mrb[0].mxu0
  %v2062 = vadd.f32 0.0, %v2061
  %v2063 = vpop.f32.mrb[0].mxu0
  %2064 = vmatprep.mubr.bf16.mxu0 0
  %2065 = vmatmul.mubr.bf16.gmra.mrb[0].mxu0 %v1912
  %v2066 = vpop.f32.mrb[0].mxu0
  %v2067 = vadd.f32 0.0, %v2066
  %v2068 = vpop.f32.mrb[0].mxu0
  %v2069 = vpop.f32.mrb[0].mxu0
  %v2070 = vadd.f32 0.0, %v2069
  %v2071 = vpop.f32.mrb[0].mxu0
  %2072 = vmatprep.mubr.bf16.mxu0 0
  %2073 = vmatmul.mubr.bf16.gmra.mrb[0].mxu0 %v1914
  %v2074 = vpop.f32.mrb[0].mxu0
  %v2075 = vadd.f32 0.0, %v2074
  %v2076 = vpop.f32.mrb[0].mxu0
  %v2077 = vpop.f32.mrb[0].mxu0
  %v2078 = vadd.f32 0.0, %v2077
  %v2079 = vpop.f32.mrb[0].mxu0
  %2080 = vmatprep.mubr.bf16.mxu0 0
  %2081 = vmatmul.mubr.bf16.gmra.mrb[0].mxu0 %v1916
  %v2082 = vpop.f32.mrb[0].mxu0
  %v2083 = vadd.f32 0.0, %v2082
  %v2084 = vpop.f32.mrb[0].mxu0
  %v2085 = vpop.f32.mrb[0].mxu0
  %v2086 = vadd.f32 0.0, %v2085
  %v2087 = vpop.f32.mrb[0].mxu0
  %2088 = vmatprep.mubr.bf16.mxu0 0
  %2089 = vmatmul.mubr.bf16.gmra.mrb[0].mxu0 %v1918
  %v2090 = vpop.f32.mrb[0].mxu0
  %v2091 = vadd.f32 0.0, %v2090
  %v2092 = vpop.f32.mrb[0].mxu0
  %v2093 = vpop.f32.mrb[0].mxu0
  %v2094 = vadd.f32 0.0, %v2093
  %v2095 = vpop.f32.mrb[0].mxu0
  %2096 = vmatprep.mubr.bf16.mxu0 0
  %2097 = vmatmul.mubr.bf16.gmra.mrb[0].mxu0 %v1920
  %v2098 = vpop.f32.mrb[0].mxu0
  %v2099 = vadd.f32 0.0, %v2098
  %v2100 = vpop.f32.mrb[0].mxu0
  %v2101 = vpop.f32.mrb[0].mxu0
  %v2102 = vadd.f32 0.0, %v2101
  %v2103 = vpop.f32.mrb[0].mxu0
  %2104 = vmatprep.mubr.bf16.mxu0 0
  %2105 = vmatmul.mubr.bf16.gmra.mrb[0].mxu0 %v1922
  %v2106 = vpop.f32.mrb[0].mxu0
  %v2107 = vadd.f32 0.0, %v2106
  %v2108 = vpop.f32.mrb[0].mxu0
  %v2109 = vpop.f32.mrb[0].mxu0
  %v2110 = vadd.f32 0.0, %v2109
  %v2111 = vpop.f32.mrb[0].mxu0
  %2112 = vmatprep.mubr.bf16.mxu0 0
  %2113 = vmatmul.mubr.bf16.gmra.mrb[0].mxu0 %v1921
  %v2114 = vpop.f32.mrb[0].mxu0
  %v2115 = vadd.f32 0.0, %v2114
  %v2116 = vpop.f32.mrb[0].mxu0
  %v2117 = vpop.f32.mrb[0].mxu0
  %v2118 = vpop.f32.mrb[0].mxu0
  %2119 = vdwg.mxu0
  %v2120 = vadd.f32 %v1854, %v2019
  %v2121 = vadd.f32 %v1855, %v2022
  %v2122 = vadd.f32 %v1856, %v2027
  %v2123 = vadd.f32 %v1857, %v2030
  %v2124 = vadd.f32 %v1858, %v2035
  %v2125 = vadd.f32 %v1859, %v2038
  %v2126 = vadd.f32 %v1860, %v2043
  %v2127 = vadd.f32 %v1861, %v2046
  %v2128 = vadd.f32 %v1862, %v2051
  %v2129 = vadd.f32 %v1863, %v2054
  %v2130 = vadd.f32 %v1864, %v2059
  %v2131 = vadd.f32 %v1865, %v2062
  %v2132 = vadd.f32 %v1866, %v2067
  %v2133 = vadd.f32 %v1867, %v2070
  %v2134 = vadd.f32 %v1868, %v2075
  %v2135 = vadd.f32 %v1869, %v2078
  %v2136 = vadd.f32 %v1870, %v2083
  %v2137 = vadd.f32 %v1871, %v2086
  %v2138 = vadd.f32 %v1872, %v2091
  %v2139 = vadd.f32 %v1873, %v2094
  %v2140 = vadd.f32 %v1874, %v2099
  %v2141 = vadd.f32 %v1875, %v2102
  %v2142 = vadd.f32 %v1876, %v2107
  %v2143 = vadd.f32 %v1877, %v2110
  %v2144 = vadd.f32 %v1878, %v2115
  %s2145 = scalar_lea.vmem %s3, 448
  %v2146 = vld [vmem:[%s2145] sm:$0xf]
  %v2147 = vld [vmem:[%s2145 + $0x4] sm:$0xf]
  %v2148 = vld [vmem:[%s2145 + $0x8] sm:$0xf]
  %v2149 = vld [vmem:[%s2145 + $0xc] sm:$0xf]
  %v2150 = vld [vmem:[%s2145 + $0x10] sm:$0xf]
  %v2151 = vld [vmem:[%s2145 + $0x14] sm:$0xf]
  %v2152 = vld [vmem:[%s2145 + $0x18] sm:$0xf]
  %v2153 = vld [vmem:[%s2145 + $0x1c] sm:$0xf]
  %v2154 = vld [vmem:[%s2145 + $0x20] sm:$0xf]
  %v2155 = vld [vmem:[%s2145 + $0x24] sm:$0xf]
  %v2156 = vld [vmem:[%s2145 + $0x28] sm:$0xf]
  %v2157 = vld [vmem:[%s2145 + $0x2c] sm:$0xf]
  %v2158 = vld [vmem:[%s2145 + $0x30] sm:$0xf]
  %v2159 = vld [vmem:[%s2145 + $0x34] sm:$0xf]
  %v2160 = vld [vmem:[%s2145 + $0x38] sm:$0xf]
  %v2161 = vld [vmem:[%s2145 + $0x3c] sm:$0xf]
  %vm2162 = vsmask.f32 5376
  %v2163 = vrot.slane %v218, 2
  %v2164 = vrot.slane %v214, 3
  %v2165 = vor.u32 %v2163, %v2164
  %v2166 = vrot.slane %v226, 2
  %v2167 = vrot.slane %v222, 3
  %v2168 = vor.u32 %v2166, %v2167
  %v2169 = vsel %vm2162, %v2165, %v2168
  %v2170 = vrot.slane %v234, 2
  %v2171 = vrot.slane %v230, 3
  %v2172 = vor.u32 %v2170, %v2171
  %v2173 = vsel %vm2162, %v2168, %v2172
  %v2174 = vrot.slane %v242, 2
  %v2175 = vrot.slane %v238, 3
  %v2176 = vor.u32 %v2174, %v2175
  %v2177 = vsel %vm2162, %v2172, %v2176
  %v2178 = vrot.slane %v250, 2
  %v2179 = vrot.slane %v246, 3
  %v2180 = vor.u32 %v2178, %v2179
  %v2181 = vsel %vm2162, %v2176, %v2180
  %v2182 = vrot.slane %v258, 2
  %v2183 = vrot.slane %v254, 3
  %v2184 = vor.u32 %v2182, %v2183
  %v2185 = vsel %vm2162, %v2180, %v2184
  %v2186 = vrot.slane %v266, 2
  %v2187 = vrot.slane %v262, 3
  %v2188 = vor.u32 %v2186, %v2187
  %v2189 = vsel %vm2162, %v2184, %v2188
  %v2190 = vrot.slane %v274, 2
  %v2191 = vrot.slane %v270, 3
  %v2192 = vor.u32 %v2190, %v2191
  %v2193 = vsel %vm2162, %v2188, %v2192
  %v2194 = vrot.slane %v282, 2
  %v2195 = vrot.slane %v278, 3
  %v2196 = vor.u32 %v2194, %v2195
  %v2197 = vsel %vm2162, %v2192, %v2196
  %v2198 = vrot.slane %v290, 2
  %v2199 = vrot.slane %v286, 3
  %v2200 = vor.u32 %v2198, %v2199
  %v2201 = vsel %vm2162, %v2196, %v2200
  %v2202 = vrot.slane %v298, 2
  %v2203 = vrot.slane %v294, 3
  %v2204 = vor.u32 %v2202, %v2203
  %v2205 = vsel %vm2162, %v2200, %v2204
  %v2206 = vrot.slane %v306, 2
  %v2207 = vrot.slane %v302, 3
  %v2208 = vor.u32 %v2206, %v2207
  %v2209 = vsel %vm2162, %v2204, %v2208
  %v2211 = vshrl.u32 %v1879, 16
  %v2213 = vrot.slane %v2211, 2
  %v2214 = vshll.u32 %v1879, 16
  %v2216 = vrot.slane %v2214, 3
  %v2217 = vor.u32 %v2213, %v2216
  %v2218 = vsel %vm2162, %v2208, %v2217
  %v2248 = vunpack.c.l.b16 %v2146
  %v2249 = vunpack.c.l.b16 %v2147
  %v2250 = vunpack.c.l.b16 %v2148
  %v2251 = vunpack.c.l.b16 %v2149
  %v2252 = vunpack.c.l.b16 %v2150
  %v2253 = vunpack.c.l.b16 %v2151
  %v2254 = vunpack.c.l.b16 %v2152
  %v2255 = vunpack.c.l.b16 %v2153
  %v2256 = vunpack.c.l.b16 %v2154
  %v2257 = vunpack.c.l.b16 %v2155
  %v2258 = vunpack.c.l.b16 %v2156
  %v2259 = vunpack.c.l.b16 %v2157
  %v2260 = vunpack.c.l.b16 %v2158
  %v2261 = vunpack.c.l.b16 %v2159
  %v2262 = vunpack.c.l.b16 %v2160
  %v2263 = vunpack.c.l.b16 %v2161
  %v2264 = vpack.c.b16 %v2249, %v2248
  %v2265 = vpack.c.b16 %v2251, %v2250
  %v2266 = vpack.c.b16 %v2253, %v2252
  %v2267 = vpack.c.b16 %v2255, %v2254
  %v2268 = vpack.c.b16 %v2257, %v2256
  %v2269 = vpack.c.b16 %v2259, %v2258
  %v2270 = vpack.c.b16 %v2261, %v2260
  %v2271 = vpack.c.b16 %v2263, %v2262
  %2280 = vmatprep.subr.bf16.mxu0 0
  %2281 = vmatpush1.bf16.msra.mxu0 %v2264
  %2282 = vmatprep.subr.bf16.mxu0 0
  %2283 = vmatpush1.bf16.msra.mxu0 %v2265
  %2284 = vmatprep.subr.bf16.mxu0 0
  %2285 = vmatpush1.bf16.msra.mxu0 %v2266
  %2286 = vmatprep.subr.bf16.mxu0 0
  %2287 = vmatpush1.bf16.msra.mxu0 %v2267
  %2288 = vmatprep.subr.bf16.mxu0 0
  %2289 = vmatpush1.bf16.msra.mxu0 %v2268
  %2290 = vmatprep.subr.bf16.mxu0 0
  %2291 = vmatpush1.bf16.msra.mxu0 %v2269
  %2292 = vmatprep.subr.bf16.mxu0 0
  %2293 = vmatpush1.bf16.msra.mxu0 %v2270
  %2294 = vmatprep.subr.bf16.mxu0 0
  %2295 = vmatpush1.bf16.msra.mxu0 %v2271
  %2296 = vmatprep.subr.bf16.mxu0 0
  %2297 = vmatpush1.bf16.msra.mxu0 0
  %2298 = vmatprep.subr.bf16.mxu0 0
  %2299 = vmatpush1.bf16.msra.mxu0 0
  %2300 = vmatprep.subr.bf16.mxu0 0
  %2301 = vmatpush1.bf16.msra.mxu0 0
  %2302 = vmatprep.subr.bf16.mxu0 0
  %2303 = vmatpush1.bf16.msra.mxu0 0
  %2304 = vmatprep.subr.bf16.mxu0 0
  %2305 = vmatpush1.bf16.msra.mxu0 0
  %2306 = vmatprep.subr.bf16.mxu0 0
  %2307 = vmatpush1.bf16.msra.mxu0 0
  %2308 = vmatprep.subr.bf16.mxu0 0
  %2309 = vmatpush1.bf16.msra.mxu0 0
  %2310 = vmatprep.subr.bf16.mxu0 0
  %2311 = vmatpush1.bf16.msra.mxu0 0
  %2312 = vmatprep.mubr.bf16.mxu0 0
  %2313 = vmatmul.mubr.bf16.gmra.mrb[0].mxu0 %v2169
  %v2314 = vpop.f32.mrb[0].mxu0
  %v2315 = vadd.f32 0.0, %v2314
  %v2316 = vpop.f32.mrb[0].mxu0
  %v2317 = vpop.f32.mrb[0].mxu0
  %v2318 = vadd.f32 0.0, %v2317
  %v2319 = vpop.f32.mrb[0].mxu0
  %2320 = vmatprep.mubr.bf16.mxu0 0
  %2321 = vmatmul.mubr.bf16.gmra.mrb[0].mxu0 %v2173
  %v2322 = vpop.f32.mrb[0].mxu0
  %v2323 = vadd.f32 0.0, %v2322
  %v2324 = vpop.f32.mrb[0].mxu0
  %v2325 = vpop.f32.mrb[0].mxu0
  %v2326 = vadd.f32 0.0, %v2325
  %v2327 = vpop.f32.mrb[0].mxu0
  %2328 = vmatprep.mubr.bf16.mxu0 0
  %2329 = vmatmul.mubr.bf16.gmra.mrb[0].mxu0 %v2177
  %v2330 = vpop.f32.mrb[0].mxu0
  %v2331 = vadd.f32 0.0, %v2330
  %v2332 = vpop.f32.mrb[0].mxu0
  %v2333 = vpop.f32.mrb[0].mxu0
  %v2334 = vadd.f32 0.0, %v2333
  %v2335 = vpop.f32.mrb[0].mxu0
  %2336 = vmatprep.mubr.bf16.mxu0 0
  %2337 = vmatmul.mubr.bf16.gmra.mrb[0].mxu0 %v2181
  %v2338 = vpop.f32.mrb[0].mxu0
  %v2339 = vadd.f32 0.0, %v2338
  %v2340 = vpop.f32.mrb[0].mxu0
  %v2341 = vpop.f32.mrb[0].mxu0
  %v2342 = vadd.f32 0.0, %v2341
  %v2343 = vpop.f32.mrb[0].mxu0
  %2344 = vmatprep.mubr.bf16.mxu0 0
  %2345 = vmatmul.mubr.bf16.gmra.mrb[0].mxu0 %v2185
  %v2346 = vpop.f32.mrb[0].mxu0
  %v2347 = vadd.f32 0.0, %v2346
  %v2348 = vpop.f32.mrb[0].mxu0
  %v2349 = vpop.f32.mrb[0].mxu0
  %v2350 = vadd.f32 0.0, %v2349
  %v2351 = vpop.f32.mrb[0].mxu0
  %2352 = vmatprep.mubr.bf16.mxu0 0
  %2353 = vmatmul.mubr.bf16.gmra.mrb[0].mxu0 %v2189
  %v2354 = vpop.f32.mrb[0].mxu0
  %v2355 = vadd.f32 0.0, %v2354
  %v2356 = vpop.f32.mrb[0].mxu0
  %v2357 = vpop.f32.mrb[0].mxu0
  %v2358 = vadd.f32 0.0, %v2357
  %v2359 = vpop.f32.mrb[0].mxu0
  %2360 = vmatprep.mubr.bf16.mxu0 0
  %2361 = vmatmul.mubr.bf16.gmra.mrb[0].mxu0 %v2193
  %v2362 = vpop.f32.mrb[0].mxu0
  %v2363 = vadd.f32 0.0, %v2362
  %v2364 = vpop.f32.mrb[0].mxu0
  %v2365 = vpop.f32.mrb[0].mxu0
  %v2366 = vadd.f32 0.0, %v2365
  %v2367 = vpop.f32.mrb[0].mxu0
  %2368 = vmatprep.mubr.bf16.mxu0 0
  %2369 = vmatmul.mubr.bf16.gmra.mrb[0].mxu0 %v2197
  %v2370 = vpop.f32.mrb[0].mxu0
  %v2371 = vadd.f32 0.0, %v2370
  %v2372 = vpop.f32.mrb[0].mxu0
  %v2373 = vpop.f32.mrb[0].mxu0
  %v2374 = vadd.f32 0.0, %v2373
  %v2375 = vpop.f32.mrb[0].mxu0
  %2376 = vmatprep.mubr.bf16.mxu0 0
  %2377 = vmatmul.mubr.bf16.gmra.mrb[0].mxu0 %v2201
  %v2378 = vpop.f32.mrb[0].mxu0
  %v2379 = vadd.f32 0.0, %v2378
  %v2380 = vpop.f32.mrb[0].mxu0
  %v2381 = vpop.f32.mrb[0].mxu0
  %v2382 = vadd.f32 0.0, %v2381
  %v2383 = vpop.f32.mrb[0].mxu0
  %2384 = vmatprep.mubr.bf16.mxu0 0
  %2385 = vmatmul.mubr.bf16.gmra.mrb[0].mxu0 %v2205
  %v2386 = vpop.f32.mrb[0].mxu0
  %v2387 = vadd.f32 0.0, %v2386
  %v2388 = vpop.f32.mrb[0].mxu0
  %v2389 = vpop.f32.mrb[0].mxu0
  %v2390 = vadd.f32 0.0, %v2389
  %v2391 = vpop.f32.mrb[0].mxu0
  %2392 = vmatprep.mubr.bf16.mxu0 0
  %2393 = vmatmul.mubr.bf16.gmra.mrb[0].mxu0 %v2209
  %v2394 = vpop.f32.mrb[0].mxu0
  %v2395 = vadd.f32 0.0, %v2394
  %v2396 = vpop.f32.mrb[0].mxu0
  %v2397 = vpop.f32.mrb[0].mxu0
  %v2398 = vadd.f32 0.0, %v2397
  %v2399 = vpop.f32.mrb[0].mxu0
  %2400 = vmatprep.mubr.bf16.mxu0 0
  %2401 = vmatmul.mubr.bf16.gmra.mrb[0].mxu0 %v2218
  %v2402 = vpop.f32.mrb[0].mxu0
  %v2403 = vadd.f32 0.0, %v2402
  %v2404 = vpop.f32.mrb[0].mxu0
  %v2405 = vpop.f32.mrb[0].mxu0
  %v2406 = vadd.f32 0.0, %v2405
  %v2407 = vpop.f32.mrb[0].mxu0
  %2408 = vmatprep.mubr.bf16.mxu0 0
  %2409 = vmatmul.mubr.bf16.gmra.mrb[0].mxu0 %v2217
  %v2410 = vpop.f32.mrb[0].mxu0
  %v2411 = vadd.f32 0.0, %v2410
  %v2412 = vpop.f32.mrb[0].mxu0
  %v2413 = vpop.f32.mrb[0].mxu0
  %v2414 = vpop.f32.mrb[0].mxu0
  %2415 = vdwg.mxu0
  %v2416 = vadd.f32 %v2120, %v2315
  %v2417 = vadd.f32 %v2121, %v2318
  %v2418 = vadd.f32 %v2122, %v2323
  %v2419 = vadd.f32 %v2123, %v2326
  %v2420 = vadd.f32 %v2124, %v2331
  %v2421 = vadd.f32 %v2125, %v2334
  %v2422 = vadd.f32 %v2126, %v2339
  %v2423 = vadd.f32 %v2127, %v2342
  %v2424 = vadd.f32 %v2128, %v2347
  %v2425 = vadd.f32 %v2129, %v2350
  %v2426 = vadd.f32 %v2130, %v2355
  %v2427 = vadd.f32 %v2131, %v2358
  %v2428 = vadd.f32 %v2132, %v2363
  %v2429 = vadd.f32 %v2133, %v2366
  %v2430 = vadd.f32 %v2134, %v2371
  %v2431 = vadd.f32 %v2135, %v2374
  %v2432 = vadd.f32 %v2136, %v2379
  %v2433 = vadd.f32 %v2137, %v2382
  %v2434 = vadd.f32 %v2138, %v2387
  %v2435 = vadd.f32 %v2139, %v2390
  %v2436 = vadd.f32 %v2140, %v2395
  %v2437 = vadd.f32 %v2141, %v2398
  %v2438 = vadd.f32 %v2142, %v2403
  %v2439 = vadd.f32 %v2143, %v2406
  %v2440 = vadd.f32 %v2144, %v2411
  %s2441 = scalar_lea.vmem %s3, 512
  %v2442 = vld [vmem:[%s2441] sm:$0xf]
  %v2443 = vld [vmem:[%s2441 + $0x4] sm:$0xf]
  %v2444 = vld [vmem:[%s2441 + $0x8] sm:$0xf]
  %v2445 = vld [vmem:[%s2441 + $0xc] sm:$0xf]
  %v2446 = vld [vmem:[%s2441 + $0x10] sm:$0xf]
  %v2447 = vld [vmem:[%s2441 + $0x14] sm:$0xf]
  %v2448 = vld [vmem:[%s2441 + $0x18] sm:$0xf]
  %v2449 = vld [vmem:[%s2441 + $0x1c] sm:$0xf]
  %v2450 = vld [vmem:[%s2441 + $0x20] sm:$0xf]
  %v2451 = vld [vmem:[%s2441 + $0x24] sm:$0xf]
  %v2452 = vld [vmem:[%s2441 + $0x28] sm:$0xf]
  %v2453 = vld [vmem:[%s2441 + $0x2c] sm:$0xf]
  %v2454 = vld [vmem:[%s2441 + $0x30] sm:$0xf]
  %v2455 = vld [vmem:[%s2441 + $0x34] sm:$0xf]
  %v2456 = vld [vmem:[%s2441 + $0x38] sm:$0xf]
  %v2457 = vld [vmem:[%s2441 + $0x3c] sm:$0xf]
  %vm2458 = vcmask 1044480
  %v2459 = vrot.slane %v159, 3
  %v2460 = vrot.slane %v160, 3
  %v2461 = vsel %vm2458, %v2459, %v2460
  %v2462 = vrot.slane %v161, 3
  %v2463 = vsel %vm2458, %v2460, %v2462
  %v2464 = vrot.slane %v162, 3
  %v2465 = vsel %vm2458, %v2462, %v2464
  %v2466 = vrot.slane %v163, 3
  %v2467 = vsel %vm2458, %v2464, %v2466
  %v2468 = vrot.slane %v164, 3
  %v2469 = vsel %vm2458, %v2466, %v2468
  %v2470 = vrot.slane %v165, 3
  %v2471 = vsel %vm2458, %v2468, %v2470
  %v2472 = vrot.slane %v166, 3
  %v2473 = vsel %vm2458, %v2470, %v2472
  %v2474 = vrot.slane %v167, 3
  %v2475 = vsel %vm2458, %v2472, %v2474
  %v2476 = vrot.slane %v168, 3
  %v2477 = vsel %vm2458, %v2474, %v2476
  %v2478 = vrot.slane %v169, 3
  %v2479 = vsel %vm2458, %v2476, %v2478
  %v2480 = vrot.slane %v187, 3
  %v2481 = vsel %vm2458, %v2478, %v2480
  %v2482 = vrot.slane %v1879, 3
  %v2483 = vsel %vm2458, %v2480, %v2482
  %v2513 = vunpack.c.l.b16 %v2442
  %v2514 = vunpack.c.l.b16 %v2443
  %v2515 = vunpack.c.l.b16 %v2444
  %v2516 = vunpack.c.l.b16 %v2445
  %v2517 = vunpack.c.l.b16 %v2446
  %v2518 = vunpack.c.l.b16 %v2447
  %v2519 = vunpack.c.l.b16 %v2448
  %v2520 = vunpack.c.l.b16 %v2449
  %v2521 = vunpack.c.l.b16 %v2450
  %v2522 = vunpack.c.l.b16 %v2451
  %v2523 = vunpack.c.l.b16 %v2452
  %v2524 = vunpack.c.l.b16 %v2453
  %v2525 = vunpack.c.l.b16 %v2454
  %v2526 = vunpack.c.l.b16 %v2455
  %v2527 = vunpack.c.l.b16 %v2456
  %v2528 = vunpack.c.l.b16 %v2457
  %v2529 = vpack.c.b16 %v2514, %v2513
  %v2530 = vpack.c.b16 %v2516, %v2515
  %v2531 = vpack.c.b16 %v2518, %v2517
  %v2532 = vpack.c.b16 %v2520, %v2519
  %v2533 = vpack.c.b16 %v2522, %v2521
  %v2534 = vpack.c.b16 %v2524, %v2523
  %v2535 = vpack.c.b16 %v2526, %v2525
  %v2536 = vpack.c.b16 %v2528, %v2527
  %2545 = vmatprep.subr.bf16.mxu0 0
  %2546 = vmatpush1.bf16.msra.mxu0 %v2529
  %2547 = vmatprep.subr.bf16.mxu0 0
  %2548 = vmatpush1.bf16.msra.mxu0 %v2530
  %2549 = vmatprep.subr.bf16.mxu0 0
  %2550 = vmatpush1.bf16.msra.mxu0 %v2531
  %2551 = vmatprep.subr.bf16.mxu0 0
  %2552 = vmatpush1.bf16.msra.mxu0 %v2532
  %2553 = vmatprep.subr.bf16.mxu0 0
  %2554 = vmatpush1.bf16.msra.mxu0 %v2533
  %2555 = vmatprep.subr.bf16.mxu0 0
  %2556 = vmatpush1.bf16.msra.mxu0 %v2534
  %2557 = vmatprep.subr.bf16.mxu0 0
  %2558 = vmatpush1.bf16.msra.mxu0 %v2535
  %2559 = vmatprep.subr.bf16.mxu0 0
  %2560 = vmatpush1.bf16.msra.mxu0 %v2536
  %2561 = vmatprep.subr.bf16.mxu0 0
  %2562 = vmatpush1.bf16.msra.mxu0 0
  %2563 = vmatprep.subr.bf16.mxu0 0
  %2564 = vmatpush1.bf16.msra.mxu0 0
  %2565 = vmatprep.subr.bf16.mxu0 0
  %2566 = vmatpush1.bf16.msra.mxu0 0
  %2567 = vmatprep.subr.bf16.mxu0 0
  %2568 = vmatpush1.bf16.msra.mxu0 0
  %2569 = vmatprep.subr.bf16.mxu0 0
  %2570 = vmatpush1.bf16.msra.mxu0 0
  %2571 = vmatprep.subr.bf16.mxu0 0
  %2572 = vmatpush1.bf16.msra.mxu0 0
  %2573 = vmatprep.subr.bf16.mxu0 0
  %2574 = vmatpush1.bf16.msra.mxu0 0
  %2575 = vmatprep.subr.bf16.mxu0 0
  %2576 = vmatpush1.bf16.msra.mxu0 0
  %2577 = vmatprep.mubr.bf16.mxu0 0
  %2578 = vmatmul.mubr.bf16.gmra.mrb[0].mxu0 %v2461
  %v2579 = vpop.f32.mrb[0].mxu0
  %v2580 = vadd.f32 0.0, %v2579
  %v2581 = vpop.f32.mrb[0].mxu0
  %v2582 = vpop.f32.mrb[0].mxu0
  %v2583 = vadd.f32 0.0, %v2582
  %v2584 = vpop.f32.mrb[0].mxu0
  %2585 = vmatprep.mubr.bf16.mxu0 0
  %2586 = vmatmul.mubr.bf16.gmra.mrb[0].mxu0 %v2463
  %v2587 = vpop.f32.mrb[0].mxu0
  %v2588 = vadd.f32 0.0, %v2587
  %v2589 = vpop.f32.mrb[0].mxu0
  %v2590 = vpop.f32.mrb[0].mxu0
  %v2591 = vadd.f32 0.0, %v2590
  %v2592 = vpop.f32.mrb[0].mxu0
  %2593 = vmatprep.mubr.bf16.mxu0 0
  %2594 = vmatmul.mubr.bf16.gmra.mrb[0].mxu0 %v2465
  %v2595 = vpop.f32.mrb[0].mxu0
  %v2596 = vadd.f32 0.0, %v2595
  %v2597 = vpop.f32.mrb[0].mxu0
  %v2598 = vpop.f32.mrb[0].mxu0
  %v2599 = vadd.f32 0.0, %v2598
  %v2600 = vpop.f32.mrb[0].mxu0
  %2601 = vmatprep.mubr.bf16.mxu0 0
  %2602 = vmatmul.mubr.bf16.gmra.mrb[0].mxu0 %v2467
  %v2603 = vpop.f32.mrb[0].mxu0
  %v2604 = vadd.f32 0.0, %v2603
  %v2605 = vpop.f32.mrb[0].mxu0
  %v2606 = vpop.f32.mrb[0].mxu0
  %v2607 = vadd.f32 0.0, %v2606
  %v2608 = vpop.f32.mrb[0].mxu0
  %2609 = vmatprep.mubr.bf16.mxu0 0
  %2610 = vmatmul.mubr.bf16.gmra.mrb[0].mxu0 %v2469
  %v2611 = vpop.f32.mrb[0].mxu0
  %v2612 = vadd.f32 0.0, %v2611
  %v2613 = vpop.f32.mrb[0].mxu0
  %v2614 = vpop.f32.mrb[0].mxu0
  %v2615 = vadd.f32 0.0, %v2614
  %v2616 = vpop.f32.mrb[0].mxu0
  %2617 = vmatprep.mubr.bf16.mxu0 0
  %2618 = vmatmul.mubr.bf16.gmra.mrb[0].mxu0 %v2471
  %v2619 = vpop.f32.mrb[0].mxu0
  %v2620 = vadd.f32 0.0, %v2619
  %v2621 = vpop.f32.mrb[0].mxu0
  %v2622 = vpop.f32.mrb[0].mxu0
  %v2623 = vadd.f32 0.0, %v2622
  %v2624 = vpop.f32.mrb[0].mxu0
  %2625 = vmatprep.mubr.bf16.mxu0 0
  %2626 = vmatmul.mubr.bf16.gmra.mrb[0].mxu0 %v2473
  %v2627 = vpop.f32.mrb[0].mxu0
  %v2628 = vadd.f32 0.0, %v2627
  %v2629 = vpop.f32.mrb[0].mxu0
  %v2630 = vpop.f32.mrb[0].mxu0
  %v2631 = vadd.f32 0.0, %v2630
  %v2632 = vpop.f32.mrb[0].mxu0
  %2633 = vmatprep.mubr.bf16.mxu0 0
  %2634 = vmatmul.mubr.bf16.gmra.mrb[0].mxu0 %v2475
  %v2635 = vpop.f32.mrb[0].mxu0
  %v2636 = vadd.f32 0.0, %v2635
  %v2637 = vpop.f32.mrb[0].mxu0
  %v2638 = vpop.f32.mrb[0].mxu0
  %v2639 = vadd.f32 0.0, %v2638
  %v2640 = vpop.f32.mrb[0].mxu0
  %2641 = vmatprep.mubr.bf16.mxu0 0
  %2642 = vmatmul.mubr.bf16.gmra.mrb[0].mxu0 %v2477
  %v2643 = vpop.f32.mrb[0].mxu0
  %v2644 = vadd.f32 0.0, %v2643
  %v2645 = vpop.f32.mrb[0].mxu0
  %v2646 = vpop.f32.mrb[0].mxu0
  %v2647 = vadd.f32 0.0, %v2646
  %v2648 = vpop.f32.mrb[0].mxu0
  %2649 = vmatprep.mubr.bf16.mxu0 0
  %2650 = vmatmul.mubr.bf16.gmra.mrb[0].mxu0 %v2479
  %v2651 = vpop.f32.mrb[0].mxu0
  %v2652 = vadd.f32 0.0, %v2651
  %v2653 = vpop.f32.mrb[0].mxu0
  %v2654 = vpop.f32.mrb[0].mxu0
  %v2655 = vadd.f32 0.0, %v2654
  %v2656 = vpop.f32.mrb[0].mxu0
  %2657 = vmatprep.mubr.bf16.mxu0 0
  %2658 = vmatmul.mubr.bf16.gmra.mrb[0].mxu0 %v2481
  %v2659 = vpop.f32.mrb[0].mxu0
  %v2660 = vadd.f32 0.0, %v2659
  %v2661 = vpop.f32.mrb[0].mxu0
  %v2662 = vpop.f32.mrb[0].mxu0
  %v2663 = vadd.f32 0.0, %v2662
  %v2664 = vpop.f32.mrb[0].mxu0
  %2665 = vmatprep.mubr.bf16.mxu0 0
  %2666 = vmatmul.mubr.bf16.gmra.mrb[0].mxu0 %v2483
  %v2667 = vpop.f32.mrb[0].mxu0
  %v2668 = vadd.f32 0.0, %v2667
  %v2669 = vpop.f32.mrb[0].mxu0
  %v2670 = vpop.f32.mrb[0].mxu0
  %v2671 = vadd.f32 0.0, %v2670
  %v2672 = vpop.f32.mrb[0].mxu0
  %2673 = vmatprep.mubr.bf16.mxu0 0
  %2674 = vmatmul.mubr.bf16.gmra.mrb[0].mxu0 %v2482
  %v2675 = vpop.f32.mrb[0].mxu0
  %v2676 = vadd.f32 0.0, %v2675
  %v2677 = vpop.f32.mrb[0].mxu0
  %v2678 = vpop.f32.mrb[0].mxu0
  %v2679 = vpop.f32.mrb[0].mxu0
  %2680 = vdwg.mxu0
  %v2681 = vadd.f32 %v2416, %v2580
  %v2682 = vadd.f32 %v2417, %v2583
  %v2683 = vadd.f32 %v2418, %v2588
  %v2684 = vadd.f32 %v2419, %v2591
  %v2685 = vadd.f32 %v2420, %v2596
  %v2686 = vadd.f32 %v2421, %v2599
  %v2687 = vadd.f32 %v2422, %v2604
  %v2688 = vadd.f32 %v2423, %v2607
  %v2689 = vadd.f32 %v2424, %v2612
  %v2690 = vadd.f32 %v2425, %v2615
  %v2691 = vadd.f32 %v2426, %v2620
  %v2692 = vadd.f32 %v2427, %v2623
  %v2693 = vadd.f32 %v2428, %v2628
  %v2694 = vadd.f32 %v2429, %v2631
  %v2695 = vadd.f32 %v2430, %v2636
  %v2696 = vadd.f32 %v2431, %v2639
  %v2697 = vadd.f32 %v2432, %v2644
  %v2698 = vadd.f32 %v2433, %v2647
  %v2699 = vadd.f32 %v2434, %v2652
  %v2700 = vadd.f32 %v2435, %v2655
  %v2701 = vadd.f32 %v2436, %v2660
  %v2702 = vadd.f32 %v2437, %v2663
  %v2703 = vadd.f32 %v2438, %v2668
  %v2704 = vadd.f32 %v2439, %v2671
  %v2705 = vadd.f32 %v2440, %v2676
  %v2706 = vld [vmem:[%s4] sm:$0xff]
  %v2707 = vld [vmem:[%s4 + $0x8] sm:$0xff]
  %v2708 = vld [vmem:[%s4 + $0x10] sm:$0xff]
  %v2709 = vld [vmem:[%s4 + $0x18] sm:$0xff]
  %v2710 = vld [vmem:[%s4 + $0x20] sm:$0xff]
  %v2711 = vld [vmem:[%s4 + $0x28] sm:$0xff]
  %v2712 = vld [vmem:[%s4 + $0x30] sm:$0xff]
  %v2713 = vld [vmem:[%s4 + $0x38] sm:$0xff]
  %v2714 = vld [vmem:[%s4 + $0x40] sm:$0xff]
  %v2715 = vld [vmem:[%s4 + $0x48] sm:$0xff]
  %v2716 = vld [vmem:[%s4 + $0x50] sm:$0xff]
  %v2717 = vld [vmem:[%s4 + $0x58] sm:$0xff]
  %v2718 = vld [vmem:[%s4 + $0x60] sm:$0xff]
  %v2719 = vld [vmem:[%s4 + $0x68] sm:$0xff]
  %v2720 = vld [vmem:[%s4 + $0x70] sm:$0xff]
  %v2721 = vld [vmem:[%s4 + $0x78] sm:$0xff]
  %v2722 = vld [vmem:[%s4 + $0x80] sm:$0xff]
  %v2723 = vld [vmem:[%s4 + $0x88] sm:$0xff]
  %v2724 = vld [vmem:[%s4 + $0x90] sm:$0xff]
  %v2725 = vld [vmem:[%s4 + $0x98] sm:$0xff]
  %v2726 = vld [vmem:[%s4 + $0xa0] sm:$0xff]
  %v2727 = vld [vmem:[%s4 + $0xa8] sm:$0xff]
  %v2728 = vld [vmem:[%s4 + $0xb0] sm:$0xff]
  %v2729 = vld [vmem:[%s4 + $0xb8] sm:$0xff]
  %v2730 = vld [vmem:[%s4 + $0xc0] sm:$0xff]
  %v2731 = vld [vmem:[%s5] sm:$0x1]
  %v2733 = vlaneseq
  %v2734 = vshrl.u32 %v2733, 7
  %v2735 = vsub.s32 0, %v2734
  %v2736 = vrot.slane %v2731, %v2735
  %v2738 = vmul.f32 %v2706, %v2736
  %v2739 = vmul.f32 %v2707, %v2736
  %v2740 = vmul.f32 %v2708, %v2736
  %v2741 = vmul.f32 %v2709, %v2736
  %v2742 = vmul.f32 %v2710, %v2736
  %v2743 = vmul.f32 %v2711, %v2736
  %v2744 = vmul.f32 %v2712, %v2736
  %v2745 = vmul.f32 %v2713, %v2736
  %v2746 = vmul.f32 %v2714, %v2736
  %v2747 = vmul.f32 %v2715, %v2736
  %v2748 = vmul.f32 %v2716, %v2736
  %v2749 = vmul.f32 %v2717, %v2736
  %v2750 = vmul.f32 %v2718, %v2736
  %v2751 = vmul.f32 %v2719, %v2736
  %v2752 = vmul.f32 %v2720, %v2736
  %v2753 = vmul.f32 %v2721, %v2736
  %v2754 = vmul.f32 %v2722, %v2736
  %v2755 = vmul.f32 %v2723, %v2736
  %v2756 = vmul.f32 %v2724, %v2736
  %v2757 = vmul.f32 %v2725, %v2736
  %v2758 = vmul.f32 %v2726, %v2736
  %v2759 = vmul.f32 %v2727, %v2736
  %v2760 = vmul.f32 %v2728, %v2736
  %v2761 = vmul.f32 %v2729, %v2736
  %v2762 = vmul.f32 %v2730, %v2736
  %v2763 = vld [vmem:[%s6] sm:$0x1]
  %v2765 = vlaneseq
  %v2766 = vshrl.u32 %v2765, 7
  %v2767 = vsub.s32 0, %v2766
  %v2768 = vrot.slane %v2763, %v2767
  %v2770 = vadd.f32 %v2738, %v2768
  %v2771 = vadd.f32 %v2739, %v2768
  %v2772 = vadd.f32 %v2740, %v2768
  %v2773 = vadd.f32 %v2741, %v2768
  %v2774 = vadd.f32 %v2742, %v2768
  %v2775 = vadd.f32 %v2743, %v2768
  %v2776 = vadd.f32 %v2744, %v2768
  %v2777 = vadd.f32 %v2745, %v2768
  %v2778 = vadd.f32 %v2746, %v2768
  %v2779 = vadd.f32 %v2747, %v2768
  %v2780 = vadd.f32 %v2748, %v2768
  %v2781 = vadd.f32 %v2749, %v2768
  %v2782 = vadd.f32 %v2750, %v2768
  %v2783 = vadd.f32 %v2751, %v2768
  %v2784 = vadd.f32 %v2752, %v2768
  %v2785 = vadd.f32 %v2753, %v2768
  %v2786 = vadd.f32 %v2754, %v2768
  %v2787 = vadd.f32 %v2755, %v2768
  %v2788 = vadd.f32 %v2756, %v2768
  %v2789 = vadd.f32 %v2757, %v2768
  %v2790 = vadd.f32 %v2758, %v2768
  %v2791 = vadd.f32 %v2759, %v2768
  %v2792 = vadd.f32 %v2760, %v2768
  %v2793 = vadd.f32 %v2761, %v2768
  %v2794 = vadd.f32 %v2762, %v2768
  %v2795 = vpack.c.bf16 %v2771, %v2770
  %v2796 = vpack.c.bf16 %v2773, %v2772
  %v2797 = vpack.c.bf16 %v2775, %v2774
  %v2798 = vpack.c.bf16 %v2777, %v2776
  %v2799 = vpack.c.bf16 %v2779, %v2778
  %v2800 = vpack.c.bf16 %v2781, %v2780
  %v2801 = vpack.c.bf16 %v2783, %v2782
  %v2802 = vpack.c.bf16 %v2785, %v2784
  %v2803 = vpack.c.bf16 %v2787, %v2786
  %v2804 = vpack.c.bf16 %v2789, %v2788
  %v2805 = vpack.c.bf16 %v2791, %v2790
  %v2806 = vpack.c.bf16 %v2793, %v2792
  %v2807 = vpack.c.bf16 %v2794, %v2794
  %v2808 = vld [vmem:[%s7] sm:$0xf]
  %v2809 = vld [vmem:[%s7 + $0x4] sm:$0xf]
  %v2810 = vld [vmem:[%s7 + $0x8] sm:$0xf]
  %v2811 = vld [vmem:[%s7 + $0xc] sm:$0xf]
  %v2812 = vld [vmem:[%s7 + $0x10] sm:$0xf]
  %v2813 = vld [vmem:[%s7 + $0x14] sm:$0xf]
  %v2814 = vld [vmem:[%s7 + $0x18] sm:$0xf]
  %v2815 = vld [vmem:[%s7 + $0x1c] sm:$0xf]
  %v2816 = vld [vmem:[%s7 + $0x20] sm:$0xf]
  %v2817 = vld [vmem:[%s7 + $0x24] sm:$0xf]
  %v2818 = vld [vmem:[%s7 + $0x28] sm:$0xf]
  %v2819 = vld [vmem:[%s7 + $0x2c] sm:$0xf]
  %v2820 = vld [vmem:[%s7 + $0x30] sm:$0xf]
  %v2821 = vld [vmem:[%s7 + $0x34] sm:$0xf]
  %v2822 = vld [vmem:[%s7 + $0x38] sm:$0xf]
  %v2823 = vld [vmem:[%s7 + $0x3c] sm:$0xf]
  %v2840 = vunpack.c.l.b16 %v2808
  %v2841 = vunpack.c.l.b16 %v2809
  %v2842 = vunpack.c.l.b16 %v2810
  %v2843 = vunpack.c.l.b16 %v2811
  %v2844 = vunpack.c.l.b16 %v2812
  %v2845 = vunpack.c.l.b16 %v2813
  %v2846 = vunpack.c.l.b16 %v2814
  %v2847 = vunpack.c.l.b16 %v2815
  %v2848 = vunpack.c.l.b16 %v2816
  %v2849 = vunpack.c.l.b16 %v2817
  %v2850 = vunpack.c.l.b16 %v2818
  %v2851 = vunpack.c.l.b16 %v2819
  %v2852 = vunpack.c.l.b16 %v2820
  %v2853 = vunpack.c.l.b16 %v2821
  %v2854 = vunpack.c.l.b16 %v2822
  %v2855 = vunpack.c.l.b16 %v2823
  %v2856 = vpack.c.b16 %v2841, %v2840
  %v2857 = vpack.c.b16 %v2843, %v2842
  %v2858 = vpack.c.b16 %v2845, %v2844
  %v2859 = vpack.c.b16 %v2847, %v2846
  %v2860 = vpack.c.b16 %v2849, %v2848
  %v2861 = vpack.c.b16 %v2851, %v2850
  %v2862 = vpack.c.b16 %v2853, %v2852
  %v2863 = vpack.c.b16 %v2855, %v2854
  %2872 = vmatprep.subr.bf16.mxu0 0
  %2873 = vmatpush1.bf16.msra.mxu0 %v2856
  %2874 = vmatprep.subr.bf16.mxu0 0
  %2875 = vmatpush1.bf16.msra.mxu0 %v2857
  %2876 = vmatprep.subr.bf16.mxu0 0
  %2877 = vmatpush1.bf16.msra.mxu0 %v2858
  %2878 = vmatprep.subr.bf16.mxu0 0
  %2879 = vmatpush1.bf16.msra.mxu0 %v2859
  %2880 = vmatprep.subr.bf16.mxu0 0
  %2881 = vmatpush1.bf16.msra.mxu0 %v2860
  %2882 = vmatprep.subr.bf16.mxu0 0
  %2883 = vmatpush1.bf16.msra.mxu0 %v2861
  %2884 = vmatprep.subr.bf16.mxu0 0
  %2885 = vmatpush1.bf16.msra.mxu0 %v2862
  %2886 = vmatprep.subr.bf16.mxu0 0
  %2887 = vmatpush1.bf16.msra.mxu0 %v2863
  %2888 = vmatprep.subr.bf16.mxu0 0
  %2889 = vmatpush1.bf16.msra.mxu0 0
  %2890 = vmatprep.subr.bf16.mxu0 0
  %2891 = vmatpush1.bf16.msra.mxu0 0
  %2892 = vmatprep.subr.bf16.mxu0 0
  %2893 = vmatpush1.bf16.msra.mxu0 0
  %2894 = vmatprep.subr.bf16.mxu0 0
  %2895 = vmatpush1.bf16.msra.mxu0 0
  %2896 = vmatprep.subr.bf16.mxu0 0
  %2897 = vmatpush1.bf16.msra.mxu0 0
  %2898 = vmatprep.subr.bf16.mxu0 0
  %2899 = vmatpush1.bf16.msra.mxu0 0
  %2900 = vmatprep.subr.bf16.mxu0 0
  %2901 = vmatpush1.bf16.msra.mxu0 0
  %2902 = vmatprep.subr.bf16.mxu0 0
  %2903 = vmatpush1.bf16.msra.mxu0 0
  %2904 = vmatprep.mubr.bf16.mxu0 0
  %2905 = vmatmul.mubr.bf16.gmra.mrb[0].mxu0 %v2795
  %v2906 = vpop.f32.mrb[0].mxu0
  %v2907 = vadd.f32 0.0, %v2906
  %v2908 = vpop.f32.mrb[0].mxu0
  %v2909 = vpop.f32.mrb[0].mxu0
  %v2910 = vadd.f32 0.0, %v2909
  %v2911 = vpop.f32.mrb[0].mxu0
  %2912 = vmatprep.mubr.bf16.mxu0 0
  %2913 = vmatmul.mubr.bf16.gmra.mrb[0].mxu0 %v2796
  %v2914 = vpop.f32.mrb[0].mxu0
  %v2915 = vadd.f32 0.0, %v2914
  %v2916 = vpop.f32.mrb[0].mxu0
  %v2917 = vpop.f32.mrb[0].mxu0
  %v2918 = vadd.f32 0.0, %v2917
  %v2919 = vpop.f32.mrb[0].mxu0
  %2920 = vmatprep.mubr.bf16.mxu0 0
  %2921 = vmatmul.mubr.bf16.gmra.mrb[0].mxu0 %v2797
  %v2922 = vpop.f32.mrb[0].mxu0
  %v2923 = vadd.f32 0.0, %v2922
  %v2924 = vpop.f32.mrb[0].mxu0
  %v2925 = vpop.f32.mrb[0].mxu0
  %v2926 = vadd.f32 0.0, %v2925
  %v2927 = vpop.f32.mrb[0].mxu0
  %2928 = vmatprep.mubr.bf16.mxu0 0
  %2929 = vmatmul.mubr.bf16.gmra.mrb[0].mxu0 %v2798
  %v2930 = vpop.f32.mrb[0].mxu0
  %v2931 = vadd.f32 0.0, %v2930
  %v2932 = vpop.f32.mrb[0].mxu0
  %v2933 = vpop.f32.mrb[0].mxu0
  %v2934 = vadd.f32 0.0, %v2933
  %v2935 = vpop.f32.mrb[0].mxu0
  %2936 = vmatprep.mubr.bf16.mxu0 0
  %2937 = vmatmul.mubr.bf16.gmra.mrb[0].mxu0 %v2799
  %v2938 = vpop.f32.mrb[0].mxu0
  %v2939 = vadd.f32 0.0, %v2938
  %v2940 = vpop.f32.mrb[0].mxu0
  %v2941 = vpop.f32.mrb[0].mxu0
  %v2942 = vadd.f32 0.0, %v2941
  %v2943 = vpop.f32.mrb[0].mxu0
  %2944 = vmatprep.mubr.bf16.mxu0 0
  %2945 = vmatmul.mubr.bf16.gmra.mrb[0].mxu0 %v2800
  %v2946 = vpop.f32.mrb[0].mxu0
  %v2947 = vadd.f32 0.0, %v2946
  %v2948 = vpop.f32.mrb[0].mxu0
  %v2949 = vpop.f32.mrb[0].mxu0
  %v2950 = vadd.f32 0.0, %v2949
  %v2951 = vpop.f32.mrb[0].mxu0
  %2952 = vmatprep.mubr.bf16.mxu0 0
  %2953 = vmatmul.mubr.bf16.gmra.mrb[0].mxu0 %v2801
  %v2954 = vpop.f32.mrb[0].mxu0
  %v2955 = vadd.f32 0.0, %v2954
  %v2956 = vpop.f32.mrb[0].mxu0
  %v2957 = vpop.f32.mrb[0].mxu0
  %v2958 = vadd.f32 0.0, %v2957
  %v2959 = vpop.f32.mrb[0].mxu0
  %2960 = vmatprep.mubr.bf16.mxu0 0
  %2961 = vmatmul.mubr.bf16.gmra.mrb[0].mxu0 %v2802
  %v2962 = vpop.f32.mrb[0].mxu0
  %v2963 = vadd.f32 0.0, %v2962
  %v2964 = vpop.f32.mrb[0].mxu0
  %v2965 = vpop.f32.mrb[0].mxu0
  %v2966 = vadd.f32 0.0, %v2965
  %v2967 = vpop.f32.mrb[0].mxu0
  %2968 = vmatprep.mubr.bf16.mxu0 0
  %2969 = vmatmul.mubr.bf16.gmra.mrb[0].mxu0 %v2803
  %v2970 = vpop.f32.mrb[0].mxu0
  %v2971 = vadd.f32 0.0, %v2970
  %v2972 = vpop.f32.mrb[0].mxu0
  %v2973 = vpop.f32.mrb[0].mxu0
  %v2974 = vadd.f32 0.0, %v2973
  %v2975 = vpop.f32.mrb[0].mxu0
  %2976 = vmatprep.mubr.bf16.mxu0 0
  %2977 = vmatmul.mubr.bf16.gmra.mrb[0].mxu0 %v2804
  %v2978 = vpop.f32.mrb[0].mxu0
  %v2979 = vadd.f32 0.0, %v2978
  %v2980 = vpop.f32.mrb[0].mxu0
  %v2981 = vpop.f32.mrb[0].mxu0
  %v2982 = vadd.f32 0.0, %v2981
  %v2983 = vpop.f32.mrb[0].mxu0
  %2984 = vmatprep.mubr.bf16.mxu0 0
  %2985 = vmatmul.mubr.bf16.gmra.mrb[0].mxu0 %v2805
  %v2986 = vpop.f32.mrb[0].mxu0
  %v2987 = vadd.f32 0.0, %v2986
  %v2988 = vpop.f32.mrb[0].mxu0
  %v2989 = vpop.f32.mrb[0].mxu0
  %v2990 = vadd.f32 0.0, %v2989
  %v2991 = vpop.f32.mrb[0].mxu0
  %2992 = vmatprep.mubr.bf16.mxu0 0
  %2993 = vmatmul.mubr.bf16.gmra.mrb[0].mxu0 %v2806
  %v2994 = vpop.f32.mrb[0].mxu0
  %v2995 = vadd.f32 0.0, %v2994
  %v2996 = vpop.f32.mrb[0].mxu0
  %v2997 = vpop.f32.mrb[0].mxu0
  %v2998 = vadd.f32 0.0, %v2997
  %v2999 = vpop.f32.mrb[0].mxu0
  %3000 = vmatprep.mubr.bf16.mxu0 0
  %3001 = vmatmul.mubr.bf16.gmra.mrb[0].mxu0 %v2807
  %v3002 = vpop.f32.mrb[0].mxu0
  %v3003 = vadd.f32 0.0, %v3002
  %v3004 = vpop.f32.mrb[0].mxu0
  %v3005 = vpop.f32.mrb[0].mxu0
  %v3006 = vpop.f32.mrb[0].mxu0
  %3007 = vdwg.mxu0
  %v3008 = vadd.f32 %v2681, %v2907
  %v3009 = vadd.f32 %v2682, %v2910
  %v3010 = vadd.f32 %v2683, %v2915
  %v3011 = vadd.f32 %v2684, %v2918
  %v3012 = vadd.f32 %v2685, %v2923
  %v3013 = vadd.f32 %v2686, %v2926
  %v3014 = vadd.f32 %v2687, %v2931
  %v3015 = vadd.f32 %v2688, %v2934
  %v3016 = vadd.f32 %v2689, %v2939
  %v3017 = vadd.f32 %v2690, %v2942
  %v3018 = vadd.f32 %v2691, %v2947
  %v3019 = vadd.f32 %v2692, %v2950
  %v3020 = vadd.f32 %v2693, %v2955
  %v3021 = vadd.f32 %v2694, %v2958
  %v3022 = vadd.f32 %v2695, %v2963
  %v3023 = vadd.f32 %v2696, %v2966
  %v3024 = vadd.f32 %v2697, %v2971
  %v3025 = vadd.f32 %v2698, %v2974
  %v3026 = vadd.f32 %v2699, %v2979
  %v3027 = vadd.f32 %v2700, %v2982
  %v3028 = vadd.f32 %v2701, %v2987
  %v3029 = vadd.f32 %v2702, %v2990
  %v3030 = vadd.f32 %v2703, %v2995
  %v3031 = vadd.f32 %v2704, %v2998
  %v3032 = vadd.f32 %v2705, %v3003
  %3033 = vst [vmem:[%s8] sm:$0xff] %v3008
  %3034 = vst [vmem:[%s8 + $0x8] sm:$0xff] %v3009
  %3035 = vst [vmem:[%s8 + $0x10] sm:$0xff] %v3010
  %3036 = vst [vmem:[%s8 + $0x18] sm:$0xff] %v3011
  %3037 = vst [vmem:[%s8 + $0x20] sm:$0xff] %v3012
  %3038 = vst [vmem:[%s8 + $0x28] sm:$0xff] %v3013
  %3039 = vst [vmem:[%s8 + $0x30] sm:$0xff] %v3014
  %3040 = vst [vmem:[%s8 + $0x38] sm:$0xff] %v3015
  %3041 = vst [vmem:[%s8 + $0x40] sm:$0xff] %v3016
  %3042 = vst [vmem:[%s8 + $0x48] sm:$0xff] %v3017
  %3043 = vst [vmem:[%s8 + $0x50] sm:$0xff] %v3018
  %3044 = vst [vmem:[%s8 + $0x58] sm:$0xff] %v3019
  %3045 = vst [vmem:[%s8 + $0x60] sm:$0xff] %v3020
  %3046 = vst [vmem:[%s8 + $0x68] sm:$0xff] %v3021
  %3047 = vst [vmem:[%s8 + $0x70] sm:$0xff] %v3022
  %3048 = vst [vmem:[%s8 + $0x78] sm:$0xff] %v3023
  %3049 = vst [vmem:[%s8 + $0x80] sm:$0xff] %v3024
  %3050 = vst [vmem:[%s8 + $0x88] sm:$0xff] %v3025
  %3051 = vst [vmem:[%s8 + $0x90] sm:$0xff] %v3026
  %3052 = vst [vmem:[%s8 + $0x98] sm:$0xff] %v3027
  %3053 = vst [vmem:[%s8 + $0xa0] sm:$0xff] %v3028
  %3054 = vst [vmem:[%s8 + $0xa8] sm:$0xff] %v3029
  %3055 = vst [vmem:[%s8 + $0xb0] sm:$0xff] %v3030
  %3056 = vst [vmem:[%s8 + $0xb8] sm:$0xff] %v3031
  %3057 = vst [vmem:[%s8 + $0xc0] sm:$0xff] %v3032
  // Predicated region
  $region34: #{run.5} parent=0 // pred_check
    _
  $region35: #{run.5} parent=0 // pred_check_branch
    %3059 = sbr.rel (0) target = $region37
  $region36: #{run.5} parent=0 // pred_region
    _
  $region37: #{run.5} parent=0 // pred_fallthru
    _
  // Predicated region
  $region38: #{run.5} parent=0 // pred_check
    _
  $region39: #{run.5} parent=0 // pred_check_branch
    %3061 = sbr.rel (0) target = $region41
  $region40: #{run.5} parent=0 // pred_region
    _
  $region41: #{run.5} parent=0 // pred_fallthru
    _

// kernel: run.4
$region0: #{run.4}
  #allocation0 [shape = 'u32[]', space=smem, size = 0x4, offset = 0x4, fixed_abs, tag = 'smem constant byte address 0x4 - core index']
  #allocation1 [shape = 'u32[144,128]{1,0:T(1,128)}', space=vmem, size = 0x12000, scoped, tag = 'internal scratch']
  %s0 = inlined_call_operand.vmem [shape: f32[806,128], index: 0, kind: input, shape index: {}]
  %s1 = inlined_call_operand.vmem [shape: f32[1,128], index: 1, kind: input, shape index: {}]
  %s2 = inlined_call_operand.vmem [shape: f32[1,128], index: 2, kind: input, shape index: {}]
  %s3 = inlined_call_operand.vmem [shape: bf16[9,128,128], index: 3, kind: input, shape index: {}]
  %s4 = inlined_call_operand.vmem [shape: f32[768,128], index: 4, kind: output, shape index: {}]
  %s5 = sld [smem:[#allocation0]]
  $region49: #{run.4} parent=0
    _
  %s7 = ssub.s32 1, %s5
  %s8 = scalar_select 0, %s7, %s5
  loop: start=0, step=1, limit=5
  $region2: #{run.4} parent=0 // loop_pre_header
    _
  $region3: #{run.4} parent=0 // loop_header
    %s10 = sphi 0, %s14
    %p11 = scmp.ge.s32.totalorder %s10, 5
    %s18 = sphi 0, %s18
    %s20 = sphi 0, %s18
    %s21 = sphi 0, %s20
    %s35 = sphi 0, %s21
    %s39 = sphi 0, %s39
    %s41 = sphi 0, %s39
    %s42 = sphi 0, %s41
    %s56 = sphi 0, %s42
    %s60 = sphi 0, %s60
    %s62 = sphi 0, %s60
    %s63 = sphi 0, %s62
    %s77 = sphi 0, %s63
    %s81 = sphi 0, %s81
    %s83 = sphi 0, %s81
    %s84 = sphi 0, %s83
    %s98 = sphi 0, %s84
    %s104 = sphi 0, %s106
    %s107 = sphi 0, %s104
    %s108 = sphi 0, %s107
    %s124 = sphi 0, %s108
  $region4: #{run.4} parent=0 // loop_header_branch
    %13 = sbr.rel (%p11) target = $region8
  $region5: #{run.4} parent=0 // loop_body
    %s15 = ssub.s32 %s10, 1
    %s16 = ssub.s32 %s10, 2
    %s17 = sadd.s32 %s10, 1
    %s19 = sadd.s32 %s18, 1
    %p22 = scmp.eq.s32.totalorder %s10, 2
    %p23 = scmp.ne.s32.totalorder %s18, %s20
    %p24 = scmp.eq.s32.totalorder %s10, 0
    %p25 = por %p23, %p24
    %p26 = scmp.ne.s32.totalorder %s18, %s20
    %p27 = scmp.eq.s32.totalorder %s15, 2
    %p28 = por %p26, %p27
    %p29 = scmp.ne.s32.totalorder %s20, %s21
    %p30 = scmp.eq.s32.totalorder %s15, 0
    %p31 = por %p29, %p30
    %p32 = scmp.ne.s32.totalorder %s20, %s21
    %p33 = scmp.eq.s32.totalorder %s16, 2
    %p34 = por %p32, %p33
    %p36 = scmp.ne.s32.totalorder %s21, %s35
    %p37 = scmp.eq.s32.totalorder %s16, 0
    %p38 = por %p36, %p37
    %s40 = sadd.s32 %s39, 1
    %p43 = scmp.eq.s32.totalorder %s10, 2
    %p44 = scmp.ne.s32.totalorder %s39, %s41
    %p45 = scmp.eq.s32.totalorder %s10, 0
    %p46 = por %p44, %p45
    %p47 = scmp.ne.s32.totalorder %s39, %s41
    %p48 = scmp.eq.s32.totalorder %s15, 2
    %p49 = por %p47, %p48
    %p50 = scmp.ne.s32.totalorder %s41, %s42
    %p51 = scmp.eq.s32.totalorder %s15, 0
    %p52 = por %p50, %p51
    %p53 = scmp.ne.s32.totalorder %s41, %s42
    %p54 = scmp.eq.s32.totalorder %s16, 2
    %p55 = por %p53, %p54
    %p57 = scmp.ne.s32.totalorder %s42, %s56
    %p58 = scmp.eq.s32.totalorder %s16, 0
    %p59 = por %p57, %p58
    %s61 = sadd.s32 %s60, 1
    %p64 = scmp.eq.s32.totalorder %s10, 2
    %p65 = scmp.ne.s32.totalorder %s60, %s62
    %p66 = scmp.eq.s32.totalorder %s10, 0
    %p67 = por %p65, %p66
    %p68 = scmp.ne.s32.totalorder %s60, %s62
    %p69 = scmp.eq.s32.totalorder %s15, 2
    %p70 = por %p68, %p69
    %p71 = scmp.ne.s32.totalorder %s62, %s63
    %p72 = scmp.eq.s32.totalorder %s15, 0
    %p73 = por %p71, %p72
    %p74 = scmp.ne.s32.totalorder %s62, %s63
    %p75 = scmp.eq.s32.totalorder %s16, 2
    %p76 = por %p74, %p75
    %p78 = scmp.ne.s32.totalorder %s63, %s77
    %p79 = scmp.eq.s32.totalorder %s16, 0
    %p80 = por %p78, %p79
    %s82 = sadd.s32 %s81, 1
    %p85 = scmp.eq.s32.totalorder %s10, 2
    %p86 = scmp.ne.s32.totalorder %s81, %s83
    %p87 = scmp.eq.s32.totalorder %s10, 0
    %p88 = por %p86, %p87
    %p89 = scmp.ne.s32.totalorder %s81, %s83
    %p90 = scmp.eq.s32.totalorder %s15, 2
    %p91 = por %p89, %p90
    %p92 = scmp.ne.s32.totalorder %s83, %s84
    %p93 = scmp.eq.s32.totalorder %s15, 0
    %p94 = por %p92, %p93
    %p95 = scmp.ne.s32.totalorder %s83, %s84
    %p96 = scmp.eq.s32.totalorder %s16, 2
    %p97 = por %p95, %p96
    %p99 = scmp.ne.s32.totalorder %s84, %s98
    %p100 = scmp.eq.s32.totalorder %s16, 0
    %p101 = por %p99, %p100
    %s102 = ssub.s32 %s10, %s17
    %p103 = scmp.eq.s32.totalorder %s102, 0
    %s105 = sadd.s32 %s104, 1
    %s106 = scalar_select %p103, %s104, %s105
    %p109 = pneg %p103
    %p110 = scmp.eq.s32.totalorder %s10, 2
    %p111 = por %p109, %p110
    %p112 = scmp.ne.s32.totalorder %s104, %s107
    %p113 = scmp.eq.s32.totalorder %s10, 0
    %p114 = por %p112, %p113
    %p115 = scmp.ne.s32.totalorder %s104, %s107
    %p116 = scmp.eq.s32.totalorder %s15, 2
    %p117 = por %p115, %p116
    %p118 = scmp.ne.s32.totalorder %s107, %s108
    %p119 = scmp.eq.s32.totalorder %s15, 0
    %p120 = por %p118, %p119
    %p121 = scmp.ne.s32.totalorder %s107, %s108
    %p122 = scmp.eq.s32.totalorder %s16, 2
    %p123 = por %p121, %p122
    %p125 = scmp.ne.s32.totalorder %s108, %s124
    %p126 = scmp.eq.s32.totalorder %s16, 0
    %p127 = por %p125, %p126
    %p128 = scmp.le.s32.totalorder 1, %s10
    %p129 = scmp.lt.s32.totalorder %s10, 4
    %p130 = pnand %p128, %p129
    %p131 = pneg %p130
    // Predicated region
    $region9: #{run.4} parent=5 // pred_check
      _
    $region10: #{run.4} parent=5 // pred_check_branch
      %133 = sbr.rel (%p130) target = $region12
    $region11: #{run.4} parent=5 // pred_region
      %s134 = ssub.s32 %s10, 1
      // Predicated region
      $region13: #{run.4} parent=11 // pred_check
        %p135 = pneg %p31
      $region14: #{run.4} parent=11 // pred_check_branch
        %137 = sbr.rel (%p135) target = $region16
      $region15: #{run.4} parent=11 // pred_region
        _
      $region16: #{run.4} parent=11 // pred_fallthru
        _
      // Predicated region
      $region17: #{run.4} parent=11 // pred_check
        %p138 = pneg %p52
      $region18: #{run.4} parent=11 // pred_check_branch
        %140 = sbr.rel (%p138) target = $region20
      $region19: #{run.4} parent=11 // pred_region
        _
      $region20: #{run.4} parent=11 // pred_fallthru
        _
      // Predicated region
      $region21: #{run.4} parent=11 // pred_check
        %p141 = pneg %p73
      $region22: #{run.4} parent=11 // pred_check_branch
        %143 = sbr.rel (%p141) target = $region24
      $region23: #{run.4} parent=11 // pred_region
        _
      $region24: #{run.4} parent=11 // pred_fallthru
        _
      // Predicated region
      $region25: #{run.4} parent=11 // pred_check
        %p144 = pneg %p94
      $region26: #{run.4} parent=11 // pred_check_branch
        %146 = sbr.rel (%p144) target = $region28
      $region27: #{run.4} parent=11 // pred_region
        _
      $region28: #{run.4} parent=11 // pred_fallthru
        _
    $region12: #{run.4} parent=5 // pred_fallthru
      _
    %p147 = scmp.lt.s32.totalorder %s10, 3
    // Predicated region
    $region29: #{run.4} parent=5 // pred_check
      %p148 = pneg %p147
    $region30: #{run.4} parent=5 // pred_check_branch
      %150 = sbr.rel (%p148) target = $region32
    $region31: #{run.4} parent=5 // pred_region
      _
    $region32: #{run.4} parent=5 // pred_fallthru
      _
    %p151 = scmp.le.s32.totalorder 1, %s10
    %p152 = scmp.lt.s32.totalorder %s10, 4
    %p153 = pnand %p151, %p152
    %p154 = pneg %p153
    // Predicated region
    $region33: #{run.4} parent=5 // pred_check
      _
    $region34: #{run.4} parent=5 // pred_check_branch
      %156 = sbr.rel (%p153) target = $region36
    $region35: #{run.4} parent=5 // pred_region
      %s157 = ssub.s32 %s10, 1
      %p158 = pneg %p31
      %p159 = pneg %p28
      %p160 = pneg %p52
      %p161 = pneg %p49
      %p162 = pneg %p73
      %p163 = pneg %p70
      %p164 = pneg %p94
      %p165 = pneg %p91
      %p166 = pneg %p120
      %p167 = pneg %p117
      %s168 = smul.u32 32, %s15
      %p169 = scmp.lt.s32.totalorder %s168, 95
      %s170 = scalar_select %p169, %s168, 95
      %s171 = smul.addr %s170, 8
      %s172 = scalar_lea.vmem %s4, %s171
      %s173 = smul.u32 32, %s15
      %p174 = scmp.lt.s32.totalorder %s173, 95
      %s175 = scalar_select %p174, %s173, 95
      %s176 = smul.addr %s175, 8
      %s177 = scalar_lea.vmem %s4, %s176
      %s178 = smul.u32 32, %s15
      %s180 = smul.u32 %s15, 256
      %s181 = scalar_lea.vmem %s0, %s180
      %v182 = vld [vmem:[%s181] sm:$0xff]
      %v183 = vld [vmem:[%s181 + $0x8] sm:$0xff]
      %v184 = vld [vmem:[%s181 + $0x10] sm:$0xff]
      %v185 = vld [vmem:[%s181 + $0x18] sm:$0xff]
      %v186 = vld [vmem:[%s181 + $0x20] sm:$0xff]
      %v187 = vld [vmem:[%s181 + $0x28] sm:$0xff]
      %v188 = vld [vmem:[%s181 + $0x30] sm:$0xff]
      %v189 = vld [vmem:[%s181 + $0x38] sm:$0xff]
      %v190 = vld [vmem:[%s181 + $0x40] sm:$0xff]
      %v191 = vld [vmem:[%s181 + $0x48] sm:$0xff]
      %v192 = vld [vmem:[%s181 + $0x50] sm:$0xff]
      %v193 = vld [vmem:[%s181 + $0x58] sm:$0xff]
      %v194 = vld [vmem:[%s181 + $0x60] sm:$0xff]
      %v195 = vld [vmem:[%s181 + $0x68] sm:$0xff]
      %v196 = vld [vmem:[%s181 + $0x70] sm:$0xff]
      %v197 = vld [vmem:[%s181 + $0x78] sm:$0xff]
      %v198 = vld [vmem:[%s181 + $0x80] sm:$0xff]
      %v199 = vld [vmem:[%s181 + $0x88] sm:$0xff]
      %v200 = vld [vmem:[%s181 + $0x90] sm:$0xff]
      %v201 = vld [vmem:[%s181 + $0x98] sm:$0xff]
      %v202 = vld [vmem:[%s181 + $0xa0] sm:$0xff]
      %v203 = vld [vmem:[%s181 + $0xa8] sm:$0xff]
      %v204 = vld [vmem:[%s181 + $0xb0] sm:$0xff]
      %v205 = vld [vmem:[%s181 + $0xb8] sm:$0xff]
      %v206 = vld [vmem:[%s181 + $0xc0] sm:$0xff]
      %v207 = vld [vmem:[%s181 + $0xc8] sm:$0xff]
      %v208 = vld [vmem:[%s181 + $0xd0] sm:$0xff]
      %v209 = vld [vmem:[%s181 + $0xd8] sm:$0xff]
      %v210 = vld [vmem:[%s181 + $0xe0] sm:$0xff]
      %v211 = vld [vmem:[%s181 + $0xe8] sm:$0xff]
      %v212 = vld [vmem:[%s181 + $0xf0] sm:$0xff]
      %v213 = vld [vmem:[%s181 + $0xf8] sm:$0xff]
      %v214 = vld [vmem:[%s181 + $0x100] sm:$0xff]
      %v215 = vld [vmem:[%s181 + $0x108] sm:$0xff]
      %v216 = vld [vmem:[%s181 + $0x110] sm:$0xff]
      %v217 = vld [vmem:[%s181 + $0x118] sm:$0xff]
      %v218 = vld [vmem:[%s181 + $0x120] sm:$0x3f]
      %v219 = vld [vmem:[%s1] sm:$0x1]
      %v221 = vlaneseq
      %v222 = vshrl.u32 %v221, 7
      %v223 = vsub.s32 0, %v222
      %v224 = vrot.slane %v219, %v223
      %v226 = vmul.f32 %v182, %v224
      %v227 = vmul.f32 %v183, %v224
      %v228 = vmul.f32 %v184, %v224
      %v229 = vmul.f32 %v185, %v224
      %v230 = vmul.f32 %v186, %v224
      %v231 = vmul.f32 %v187, %v224
      %v232 = vmul.f32 %v188, %v224
      %v233 = vmul.f32 %v189, %v224
      %v234 = vmul.f32 %v190, %v224
      %v235 = vmul.f32 %v191, %v224
      %v236 = vmul.f32 %v192, %v224
      %v237 = vmul.f32 %v193, %v224
      %v238 = vmul.f32 %v194, %v224
      %v239 = vmul.f32 %v195, %v224
      %v240 = vmul.f32 %v196, %v224
      %v241 = vmul.f32 %v197, %v224
      %v242 = vmul.f32 %v198, %v224
      %v243 = vmul.f32 %v199, %v224
      %v244 = vmul.f32 %v200, %v224
      %v245 = vmul.f32 %v201, %v224
      %v246 = vmul.f32 %v202, %v224
      %v247 = vmul.f32 %v203, %v224
      %v248 = vmul.f32 %v204, %v224
      %v249 = vmul.f32 %v205, %v224
      %v250 = vmul.f32 %v206, %v224
      %v251 = vmul.f32 %v207, %v224
      %v252 = vmul.f32 %v208, %v224
      %v253 = vmul.f32 %v209, %v224
      %v254 = vmul.f32 %v210, %v224
      %v255 = vmul.f32 %v211, %v224
      %v256 = vmul.f32 %v212, %v224
      %v257 = vmul.f32 %v213, %v224
      %v258 = vmul.f32 %v214, %v224
      %v259 = vmul.f32 %v215, %v224
      %v260 = vmul.f32 %v216, %v224
      %v261 = vmul.f32 %v217, %v224
      %v262 = vmul.f32 %v218, %v224
      %v263 = vld [vmem:[%s2] sm:$0x1]
      %v265 = vlaneseq
      %v266 = vshrl.u32 %v265, 7
      %v267 = vsub.s32 0, %v266
      %v268 = vrot.slane %v263, %v267
      %v270 = vadd.f32 %v226, %v268
      %v271 = vadd.f32 %v227, %v268
      %v272 = vadd.f32 %v228, %v268
      %v273 = vadd.f32 %v229, %v268
      %v274 = vadd.f32 %v230, %v268
      %v275 = vadd.f32 %v231, %v268
      %v276 = vadd.f32 %v232, %v268
      %v277 = vadd.f32 %v233, %v268
      %v278 = vadd.f32 %v234, %v268
      %v279 = vadd.f32 %v235, %v268
      %v280 = vadd.f32 %v236, %v268
      %v281 = vadd.f32 %v237, %v268
      %v282 = vadd.f32 %v238, %v268
      %v283 = vadd.f32 %v239, %v268
      %v284 = vadd.f32 %v240, %v268
      %v285 = vadd.f32 %v241, %v268
      %v286 = vadd.f32 %v242, %v268
      %v287 = vadd.f32 %v243, %v268
      %v288 = vadd.f32 %v244, %v268
      %v289 = vadd.f32 %v245, %v268
      %v290 = vadd.f32 %v246, %v268
      %v291 = vadd.f32 %v247, %v268
      %v292 = vadd.f32 %v248, %v268
      %v293 = vadd.f32 %v249, %v268
      %v294 = vadd.f32 %v250, %v268
      %v295 = vadd.f32 %v251, %v268
      %v296 = vadd.f32 %v252, %v268
      %v297 = vadd.f32 %v253, %v268
      %v298 = vadd.f32 %v254, %v268
      %v299 = vadd.f32 %v255, %v268
      %v300 = vadd.f32 %v256, %v268
      %v301 = vadd.f32 %v257, %v268
      %v302 = vadd.f32 %v258, %v268
      %v303 = vadd.f32 %v259, %v268
      %v304 = vadd.f32 %v260, %v268
      %v305 = vadd.f32 %v261, %v268
      %v306 = vadd.f32 %v262, %v268
      %v307 = vmax.f32 %v270, 0.0
      %v308 = vmax.f32 %v271, 0.0
      %v309 = vmax.f32 %v272, 0.0
      %v310 = vmax.f32 %v273, 0.0
      %v311 = vmax.f32 %v274, 0.0
      %v312 = vmax.f32 %v275, 0.0
      %v313 = vmax.f32 %v276, 0.0
      %v314 = vmax.f32 %v277, 0.0
      %v315 = vmax.f32 %v278, 0.0
      %v316 = vmax.f32 %v279, 0.0
      %v317 = vmax.f32 %v280, 0.0
      %v318 = vmax.f32 %v281, 0.0
      %v319 = vmax.f32 %v282, 0.0
      %v320 = vmax.f32 %v283, 0.0
      %v321 = vmax.f32 %v284, 0.0
      %v322 = vmax.f32 %v285, 0.0
      %v323 = vmax.f32 %v286, 0.0
      %v324 = vmax.f32 %v287, 0.0
      %v325 = vmax.f32 %v288, 0.0
      %v326 = vmax.f32 %v289, 0.0
      %v327 = vmax.f32 %v290, 0.0
      %v328 = vmax.f32 %v291, 0.0
      %v329 = vmax.f32 %v292, 0.0
      %v330 = vmax.f32 %v293, 0.0
      %v331 = vmax.f32 %v294, 0.0
      %v332 = vmax.f32 %v295, 0.0
      %v333 = vmax.f32 %v296, 0.0
      %v334 = vmax.f32 %v297, 0.0
      %v335 = vmax.f32 %v298, 0.0
      %v336 = vmax.f32 %v299, 0.0
      %v337 = vmax.f32 %v300, 0.0
      %v338 = vmax.f32 %v301, 0.0
      %v339 = vmax.f32 %v302, 0.0
      %v340 = vmax.f32 %v303, 0.0
      %v341 = vmax.f32 %v304, 0.0
      %v342 = vmax.f32 %v305, 0.0
      %v343 = vmax.f32 %v306, 0.0
      %v344 = vpack.c.bf16 %v308, %v307
      %v345 = vpack.c.bf16 %v310, %v309
      %v346 = vpack.c.bf16 %v312, %v311
      %v347 = vpack.c.bf16 %v314, %v313
      %v348 = vpack.c.bf16 %v316, %v315
      %v349 = vpack.c.bf16 %v318, %v317
      %v350 = vpack.c.bf16 %v320, %v319
      %v351 = vpack.c.bf16 %v322, %v321
      %v352 = vpack.c.bf16 %v324, %v323
      %v353 = vpack.c.bf16 %v326, %v325
      %v354 = vpack.c.bf16 %v328, %v327
      %v355 = vpack.c.bf16 %v330, %v329
      %v356 = vpack.c.bf16 %v332, %v331
      %v357 = vpack.c.bf16 %v334, %v333
      %v358 = vpack.c.bf16 %v336, %v335
      %v359 = vpack.c.bf16 %v338, %v337
      %v360 = vld [vmem:[%s3] sm:$0xf]
      %v361 = vld [vmem:[%s3 + $0x4] sm:$0xf]
      %v362 = vld [vmem:[%s3 + $0x8] sm:$0xf]
      %v363 = vld [vmem:[%s3 + $0xc] sm:$0xf]
      %v364 = vld [vmem:[%s3 + $0x10] sm:$0xf]
      %v365 = vld [vmem:[%s3 + $0x14] sm:$0xf]
      %v366 = vld [vmem:[%s3 + $0x18] sm:$0xf]
      %v367 = vld [vmem:[%s3 + $0x1c] sm:$0xf]
      %v368 = vld [vmem:[%s3 + $0x20] sm:$0xf]
      %v369 = vld [vmem:[%s3 + $0x24] sm:$0xf]
      %v370 = vld [vmem:[%s3 + $0x28] sm:$0xf]
      %v371 = vld [vmem:[%s3 + $0x2c] sm:$0xf]
      %v372 = vld [vmem:[%s3 + $0x30] sm:$0xf]
      %v373 = vld [vmem:[%s3 + $0x34] sm:$0xf]
      %v374 = vld [vmem:[%s3 + $0x38] sm:$0xf]
      %v375 = vld [vmem:[%s3 + $0x3c] sm:$0xf]
      %v376 = vpack.c.bf16 %v339, %v339
      %s377 = scalar_lea.vmem %s3, 64
      %v378 = vld [vmem:[%s377] sm:$0xf]
      %v379 = vld [vmem:[%s377 + $0x4] sm:$0xf]
      %v380 = vld [vmem:[%s377 + $0x8] sm:$0xf]
      %v381 = vld [vmem:[%s377 + $0xc] sm:$0xf]
      %v382 = vld [vmem:[%s377 + $0x10] sm:$0xf]
      %v383 = vld [vmem:[%s377 + $0x14] sm:$0xf]
      %v384 = vld [vmem:[%s377 + $0x18] sm:$0xf]
      %v385 = vld [vmem:[%s377 + $0x1c] sm:$0xf]
      %v386 = vld [vmem:[%s377 + $0x20] sm:$0xf]
      %v387 = vld [vmem:[%s377 + $0x24] sm:$0xf]
      %v388 = vld [vmem:[%s377 + $0x28] sm:$0xf]
      %v389 = vld [vmem:[%s377 + $0x2c] sm:$0xf]
      %v390 = vld [vmem:[%s377 + $0x30] sm:$0xf]
      %v391 = vld [vmem:[%s377 + $0x34] sm:$0xf]
      %v392 = vld [vmem:[%s377 + $0x38] sm:$0xf]
      %v393 = vld [vmem:[%s377 + $0x3c] sm:$0xf]
      %vm394 = vsmask.f32 7424
      %v396 = vshrl.u32 %v344, 16
      %v398 = vshll.u32 %v344, 16
      %v400 = vrot.slane %v398, 1
      %v401 = vor.u32 %v396, %v400
      %v403 = vshll.u32 %v345, 16
      %v405 = vrot.slane %v403, 1
      %v406 = vsel %vm394, %v401, %v405
      %v407 = vshrl.u32 %v345, 16
      %v409 = vor.u32 %v407, %v405
      %v411 = vshll.u32 %v346, 16
      %v413 = vrot.slane %v411, 1
      %v414 = vsel %vm394, %v409, %v413
      %v415 = vshrl.u32 %v346, 16
      %v417 = vor.u32 %v415, %v413
      %v419 = vshll.u32 %v347, 16
      %v421 = vrot.slane %v419, 1
      %v422 = vsel %vm394, %v417, %v421
      %v423 = vshrl.u32 %v347, 16
      %v425 = vor.u32 %v423, %v421
      %v427 = vshll.u32 %v348, 16
      %v429 = vrot.slane %v427, 1
      %v430 = vsel %vm394, %v425, %v429
      %v431 = vshrl.u32 %v348, 16
      %v433 = vor.u32 %v431, %v429
      %v435 = vshll.u32 %v349, 16
      %v437 = vrot.slane %v435, 1
      %v438 = vsel %vm394, %v433, %v437
      %v439 = vshrl.u32 %v349, 16
      %v441 = vor.u32 %v439, %v437
      %v443 = vshll.u32 %v350, 16
      %v445 = vrot.slane %v443, 1
      %v446 = vsel %vm394, %v441, %v445
      %v447 = vshrl.u32 %v350, 16
      %v449 = vor.u32 %v447, %v445
      %v451 = vshll.u32 %v351, 16
      %v453 = vrot.slane %v451, 1
      %v454 = vsel %vm394, %v449, %v453
      %v455 = vshrl.u32 %v351, 16
      %v457 = vor.u32 %v455, %v453
      %v459 = vshll.u32 %v352, 16
      %v461 = vrot.slane %v459, 1
      %v462 = vsel %vm394, %v457, %v461
      %v463 = vshrl.u32 %v352, 16
      %v465 = vor.u32 %v463, %v461
      %v467 = vshll.u32 %v353, 16
      %v469 = vrot.slane %v467, 1
      %v470 = vsel %vm394, %v465, %v469
      %v471 = vshrl.u32 %v353, 16
      %v473 = vor.u32 %v471, %v469
      %v475 = vshll.u32 %v354, 16
      %v477 = vrot.slane %v475, 1
      %v478 = vsel %vm394, %v473, %v477
      %v479 = vshrl.u32 %v354, 16
      %v481 = vor.u32 %v479, %v477
      %v483 = vshll.u32 %v355, 16
      %v485 = vrot.slane %v483, 1
      %v486 = vsel %vm394, %v481, %v485
      %v487 = vshrl.u32 %v355, 16
      %v489 = vor.u32 %v487, %v485
      %v491 = vshll.u32 %v356, 16
      %v493 = vrot.slane %v491, 1
      %v494 = vsel %vm394, %v489, %v493
      %v495 = vshrl.u32 %v356, 16
      %v497 = vor.u32 %v495, %v493
      %v499 = vshll.u32 %v357, 16
      %v501 = vrot.slane %v499, 1
      %v502 = vsel %vm394, %v497, %v501
      %v503 = vshrl.u32 %v357, 16
      %v505 = vor.u32 %v503, %v501
      %v507 = vshll.u32 %v358, 16
      %v509 = vrot.slane %v507, 1
      %v510 = vsel %vm394, %v505, %v509
      %v511 = vshrl.u32 %v358, 16
      %v513 = vor.u32 %v511, %v509
      %v515 = vshll.u32 %v359, 16
      %v517 = vrot.slane %v515, 1
      %v518 = vsel %vm394, %v513, %v517
      %v519 = vshrl.u32 %v359, 16
      %v521 = vor.u32 %v519, %v517
      %v523 = vshll.u32 %v376, 16
      %v525 = vrot.slane %v523, 1
      %v526 = vsel %vm394, %v521, %v525
      %v559 = vunpack.c.l.b16 %v378
      %v560 = vunpack.c.l.b16 %v379
      %v561 = vunpack.c.l.b16 %v380
      %v562 = vunpack.c.l.b16 %v381
      %v563 = vunpack.c.l.b16 %v382
      %v564 = vunpack.c.l.b16 %v383
      %v565 = vunpack.c.l.b16 %v384
      %v566 = vunpack.c.l.b16 %v385
      %v567 = vunpack.c.l.b16 %v386
      %v568 = vunpack.c.l.b16 %v387
      %v569 = vunpack.c.l.b16 %v388
      %v570 = vunpack.c.l.b16 %v389
      %v571 = vunpack.c.l.b16 %v390
      %v572 = vunpack.c.l.b16 %v391
      %v573 = vunpack.c.l.b16 %v392
      %v574 = vunpack.c.l.b16 %v393
      %v575 = vpack.c.b16 %v560, %v559
      %v576 = vpack.c.b16 %v562, %v561
      %v577 = vpack.c.b16 %v564, %v563
      %v578 = vpack.c.b16 %v566, %v565
      %v579 = vpack.c.b16 %v568, %v567
      %v580 = vpack.c.b16 %v570, %v569
      %v581 = vpack.c.b16 %v572, %v571
      %v582 = vpack.c.b16 %v574, %v573
      %591 = vmatprep.subr.bf16.mxu0 0
      %592 = vmatpush1.bf16.msra.mxu0 %v575
      %593 = vmatprep.subr.bf16.mxu0 0
      %594 = vmatpush1.bf16.msra.mxu0 %v576
      %595 = vmatprep.subr.bf16.mxu0 0
      %596 = vmatpush1.bf16.msra.mxu0 %v577
      %597 = vmatprep.subr.bf16.mxu0 0
      %598 = vmatpush1.bf16.msra.mxu0 %v578
      %599 = vmatprep.subr.bf16.mxu0 0
      %600 = vmatpush1.bf16.msra.mxu0 %v579
      %601 = vmatprep.subr.bf16.mxu0 0
      %602 = vmatpush1.bf16.msra.mxu0 %v580
      %603 = vmatprep.subr.bf16.mxu0 0
      %604 = vmatpush1.bf16.msra.mxu0 %v581
      %605 = vmatprep.subr.bf16.mxu0 0
      %606 = vmatpush1.bf16.msra.mxu0 %v582
      %607 = vmatprep.subr.bf16.mxu0 0
      %608 = vmatpush1.bf16.msra.mxu0 0
      %609 = vmatprep.subr.bf16.mxu0 0
      %610 = vmatpush1.bf16.msra.mxu0 0
      %611 = vmatprep.subr.bf16.mxu0 0
      %612 = vmatpush1.bf16.msra.mxu0 0
      %613 = vmatprep.subr.bf16.mxu0 0
      %614 = vmatpush1.bf16.msra.mxu0 0
      %615 = vmatprep.subr.bf16.mxu0 0
      %616 = vmatpush1.bf16.msra.mxu0 0
      %617 = vmatprep.subr.bf16.mxu0 0
      %618 = vmatpush1.bf16.msra.mxu0 0
      %619 = vmatprep.subr.bf16.mxu0 0
      %620 = vmatpush1.bf16.msra.mxu0 0
      %621 = vmatprep.subr.bf16.mxu0 0
      %622 = vmatpush1.bf16.msra.mxu0 0
      %623 = vmatprep.mubr.bf16.mxu0 0
      %624 = vmatmul.mubr.bf16.gmra.mrb[0].mxu0 %v406
      %v625 = vpop.f32.mrb[0].mxu0
      %v626 = vadd.f32 0.0, %v625
      %v627 = vpop.f32.mrb[0].mxu0
      %v628 = vpop.f32.mrb[0].mxu0
      %v629 = vadd.f32 0.0, %v628
      %v630 = vpop.f32.mrb[0].mxu0
      %631 = vmatprep.mubr.bf16.mxu0 0
      %632 = vmatmul.mubr.bf16.gmra.mrb[0].mxu0 %v414
      %v633 = vpop.f32.mrb[0].mxu0
      %v634 = vadd.f32 0.0, %v633
      %v635 = vpop.f32.mrb[0].mxu0
      %v636 = vpop.f32.mrb[0].mxu0
      %v637 = vadd.f32 0.0, %v636
      %v638 = vpop.f32.mrb[0].mxu0
      %639 = vmatprep.mubr.bf16.mxu0 0
      %640 = vmatmul.mubr.bf16.gmra.mrb[0].mxu0 %v422
      %v641 = vpop.f32.mrb[0].mxu0
      %v642 = vadd.f32 0.0, %v641
      %v643 = vpop.f32.mrb[0].mxu0
      %v644 = vpop.f32.mrb[0].mxu0
      %v645 = vadd.f32 0.0, %v644
      %v646 = vpop.f32.mrb[0].mxu0
      %647 = vmatprep.mubr.bf16.mxu0 0
      %648 = vmatmul.mubr.bf16.gmra.mrb[0].mxu0 %v430
      %v649 = vpop.f32.mrb[0].mxu0
      %v650 = vadd.f32 0.0, %v649
      %v651 = vpop.f32.mrb[0].mxu0
      %v652 = vpop.f32.mrb[0].mxu0
      %v653 = vadd.f32 0.0, %v652
      %v654 = vpop.f32.mrb[0].mxu0
      %655 = vmatprep.mubr.bf16.mxu0 0
      %656 = vmatmul.mubr.bf16.gmra.mrb[0].mxu0 %v438
      %v657 = vpop.f32.mrb[0].mxu0
      %v658 = vadd.f32 0.0, %v657
      %v659 = vpop.f32.mrb[0].mxu0
      %v660 = vpop.f32.mrb[0].mxu0
      %v661 = vadd.f32 0.0, %v660
      %v662 = vpop.f32.mrb[0].mxu0
      %663 = vmatprep.mubr.bf16.mxu0 0
      %664 = vmatmul.mubr.bf16.gmra.mrb[0].mxu0 %v446
      %v665 = vpop.f32.mrb[0].mxu0
      %v666 = vadd.f32 0.0, %v665
      %v667 = vpop.f32.mrb[0].mxu0
      %v668 = vpop.f32.mrb[0].mxu0
      %v669 = vadd.f32 0.0, %v668
      %v670 = vpop.f32.mrb[0].mxu0
      %671 = vmatprep.mubr.bf16.mxu0 0
      %672 = vmatmul.mubr.bf16.gmra.mrb[0].mxu0 %v454
      %v673 = vpop.f32.mrb[0].mxu0
      %v674 = vadd.f32 0.0, %v673
      %v675 = vpop.f32.mrb[0].mxu0
      %v676 = vpop.f32.mrb[0].mxu0
      %v677 = vadd.f32 0.0, %v676
      %v678 = vpop.f32.mrb[0].mxu0
      %679 = vmatprep.mubr.bf16.mxu0 0
      %680 = vmatmul.mubr.bf16.gmra.mrb[0].mxu0 %v462
      %v681 = vpop.f32.mrb[0].mxu0
      %v682 = vadd.f32 0.0, %v681
      %v683 = vpop.f32.mrb[0].mxu0
      %v684 = vpop.f32.mrb[0].mxu0
      %v685 = vadd.f32 0.0, %v684
      %v686 = vpop.f32.mrb[0].mxu0
      %687 = vmatprep.mubr.bf16.mxu0 0
      %688 = vmatmul.mubr.bf16.gmra.mrb[0].mxu0 %v470
      %v689 = vpop.f32.mrb[0].mxu0
      %v690 = vadd.f32 0.0, %v689
      %v691 = vpop.f32.mrb[0].mxu0
      %v692 = vpop.f32.mrb[0].mxu0
      %v693 = vadd.f32 0.0, %v692
      %v694 = vpop.f32.mrb[0].mxu0
      %695 = vmatprep.mubr.bf16.mxu0 0
      %696 = vmatmul.mubr.bf16.gmra.mrb[0].mxu0 %v478
      %v697 = vpop.f32.mrb[0].mxu0
      %v698 = vadd.f32 0.0, %v697
      %v699 = vpop.f32.mrb[0].mxu0
      %v700 = vpop.f32.mrb[0].mxu0
      %v701 = vadd.f32 0.0, %v700
      %v702 = vpop.f32.mrb[0].mxu0
      %703 = vmatprep.mubr.bf16.mxu0 0
      %704 = vmatmul.mubr.bf16.gmra.mrb[0].mxu0 %v486
      %v705 = vpop.f32.mrb[0].mxu0
      %v706 = vadd.f32 0.0, %v705
      %v707 = vpop.f32.mrb[0].mxu0
      %v708 = vpop.f32.mrb[0].mxu0
      %v709 = vadd.f32 0.0, %v708
      %v710 = vpop.f32.mrb[0].mxu0
      %711 = vmatprep.mubr.bf16.mxu0 0
      %712 = vmatmul.mubr.bf16.gmra.mrb[0].mxu0 %v494
      %v713 = vpop.f32.mrb[0].mxu0
      %v714 = vadd.f32 0.0, %v713
      %v715 = vpop.f32.mrb[0].mxu0
      %v716 = vpop.f32.mrb[0].mxu0
      %v717 = vadd.f32 0.0, %v716
      %v718 = vpop.f32.mrb[0].mxu0
      %719 = vmatprep.mubr.bf16.mxu0 0
      %720 = vmatmul.mubr.bf16.gmra.mrb[0].mxu0 %v502
      %v721 = vpop.f32.mrb[0].mxu0
      %v722 = vadd.f32 0.0, %v721
      %v723 = vpop.f32.mrb[0].mxu0
      %v724 = vpop.f32.mrb[0].mxu0
      %v725 = vadd.f32 0.0, %v724
      %v726 = vpop.f32.mrb[0].mxu0
      %727 = vmatprep.mubr.bf16.mxu0 0
      %728 = vmatmul.mubr.bf16.gmra.mrb[0].mxu0 %v510
      %v729 = vpop.f32.mrb[0].mxu0
      %v730 = vadd.f32 0.0, %v729
      %v731 = vpop.f32.mrb[0].mxu0
      %v732 = vpop.f32.mrb[0].mxu0
      %v733 = vadd.f32 0.0, %v732
      %v734 = vpop.f32.mrb[0].mxu0
      %735 = vmatprep.mubr.bf16.mxu0 0
      %736 = vmatmul.mubr.bf16.gmra.mrb[0].mxu0 %v518
      %v737 = vpop.f32.mrb[0].mxu0
      %v738 = vadd.f32 0.0, %v737
      %v739 = vpop.f32.mrb[0].mxu0
      %v740 = vpop.f32.mrb[0].mxu0
      %v741 = vadd.f32 0.0, %v740
      %v742 = vpop.f32.mrb[0].mxu0
      %743 = vmatprep.mubr.bf16.mxu0 0
      %744 = vmatmul.mubr.bf16.gmra.mrb[0].mxu0 %v526
      %v745 = vpop.f32.mrb[0].mxu0
      %v746 = vadd.f32 0.0, %v745
      %v747 = vpop.f32.mrb[0].mxu0
      %v748 = vpop.f32.mrb[0].mxu0
      %v749 = vadd.f32 0.0, %v748
      %v750 = vpop.f32.mrb[0].mxu0
      %751 = vdwg.mxu0
      %v768 = vunpack.c.l.b16 %v360
      %v769 = vunpack.c.l.b16 %v361
      %v770 = vunpack.c.l.b16 %v362
      %v771 = vunpack.c.l.b16 %v363
      %v772 = vunpack.c.l.b16 %v364
      %v773 = vunpack.c.l.b16 %v365
      %v774 = vunpack.c.l.b16 %v366
      %v775 = vunpack.c.l.b16 %v367
      %v776 = vunpack.c.l.b16 %v368
      %v777 = vunpack.c.l.b16 %v369
      %v778 = vunpack.c.l.b16 %v370
      %v779 = vunpack.c.l.b16 %v371
      %v780 = vunpack.c.l.b16 %v372
      %v781 = vunpack.c.l.b16 %v373
      %v782 = vunpack.c.l.b16 %v374
      %v783 = vunpack.c.l.b16 %v375
      %v784 = vpack.c.b16 %v769, %v768
      %v785 = vpack.c.b16 %v771, %v770
      %v786 = vpack.c.b16 %v773, %v772
      %v787 = vpack.c.b16 %v775, %v774
      %v788 = vpack.c.b16 %v777, %v776
      %v789 = vpack.c.b16 %v779, %v778
      %v790 = vpack.c.b16 %v781, %v780
      %v791 = vpack.c.b16 %v783, %v782
      %800 = vmatprep.subr.bf16.mxu0 0
      %801 = vmatpush1.bf16.msra.mxu0 %v784
      %802 = vmatprep.subr.bf16.mxu0 0
      %803 = vmatpush1.bf16.msra.mxu0 %v785
      %804 = vmatprep.subr.bf16.mxu0 0
      %805 = vmatpush1.bf16.msra.mxu0 %v786
      %806 = vmatprep.subr.bf16.mxu0 0
      %807 = vmatpush1.bf16.msra.mxu0 %v787
      %808 = vmatprep.subr.bf16.mxu0 0
      %809 = vmatpush1.bf16.msra.mxu0 %v788
      %810 = vmatprep.subr.bf16.mxu0 0
      %811 = vmatpush1.bf16.msra.mxu0 %v789
      %812 = vmatprep.subr.bf16.mxu0 0
      %813 = vmatpush1.bf16.msra.mxu0 %v790
      %814 = vmatprep.subr.bf16.mxu0 0
      %815 = vmatpush1.bf16.msra.mxu0 %v791
      %816 = vmatprep.subr.bf16.mxu0 0
      %817 = vmatpush1.bf16.msra.mxu0 0
      %818 = vmatprep.subr.bf16.mxu0 0
      %819 = vmatpush1.bf16.msra.mxu0 0
      %820 = vmatprep.subr.bf16.mxu0 0
      %821 = vmatpush1.bf16.msra.mxu0 0
      %822 = vmatprep.subr.bf16.mxu0 0
      %823 = vmatpush1.bf16.msra.mxu0 0
      %824 = vmatprep.subr.bf16.mxu0 0
      %825 = vmatpush1.bf16.msra.mxu0 0
      %826 = vmatprep.subr.bf16.mxu0 0
      %827 = vmatpush1.bf16.msra.mxu0 0
      %828 = vmatprep.subr.bf16.mxu0 0
      %829 = vmatpush1.bf16.msra.mxu0 0
      %830 = vmatprep.subr.bf16.mxu0 0
      %831 = vmatpush1.bf16.msra.mxu0 0
      %832 = vmatprep.mubr.bf16.mxu0 0
      %833 = vmatmul.mubr.bf16.gmra.mrb[0].mxu0 %v344
      %v834 = vpop.f32.mrb[0].mxu0
      %v835 = vadd.f32 %v626, %v834
      %v836 = vpop.f32.mrb[0].mxu0
      %v837 = vpop.f32.mrb[0].mxu0
      %v838 = vadd.f32 %v629, %v837
      %v839 = vpop.f32.mrb[0].mxu0
      %840 = vmatprep.mubr.bf16.mxu0 0
      %841 = vmatmul.mubr.bf16.gmra.mrb[0].mxu0 %v345
      %v842 = vpop.f32.mrb[0].mxu0
      %v843 = vadd.f32 %v634, %v842
      %v844 = vpop.f32.mrb[0].mxu0
      %v845 = vpop.f32.mrb[0].mxu0
      %v846 = vadd.f32 %v637, %v845
      %v847 = vpop.f32.mrb[0].mxu0
      %848 = vmatprep.mubr.bf16.mxu0 0
      %849 = vmatmul.mubr.bf16.gmra.mrb[0].mxu0 %v346
      %v850 = vpop.f32.mrb[0].mxu0
      %v851 = vadd.f32 %v642, %v850
      %v852 = vpop.f32.mrb[0].mxu0
      %v853 = vpop.f32.mrb[0].mxu0
      %v854 = vadd.f32 %v645, %v853
      %v855 = vpop.f32.mrb[0].mxu0
      %856 = vmatprep.mubr.bf16.mxu0 0
      %857 = vmatmul.mubr.bf16.gmra.mrb[0].mxu0 %v347
      %v858 = vpop.f32.mrb[0].mxu0
      %v859 = vadd.f32 %v650, %v858
      %v860 = vpop.f32.mrb[0].mxu0
      %v861 = vpop.f32.mrb[0].mxu0
      %v862 = vadd.f32 %v653, %v861
      %v863 = vpop.f32.mrb[0].mxu0
      %864 = vmatprep.mubr.bf16.mxu0 0
      %865 = vmatmul.mubr.bf16.gmra.mrb[0].mxu0 %v348
      %v866 = vpop.f32.mrb[0].mxu0
      %v867 = vadd.f32 %v658, %v866
      %v868 = vpop.f32.mrb[0].mxu0
      %v869 = vpop.f32.mrb[0].mxu0
      %v870 = vadd.f32 %v661, %v869
      %v871 = vpop.f32.mrb[0].mxu0
      %872 = vmatprep.mubr.bf16.mxu0 0
      %873 = vmatmul.mubr.bf16.gmra.mrb[0].mxu0 %v349
      %v874 = vpop.f32.mrb[0].mxu0
      %v875 = vadd.f32 %v666, %v874
      %v876 = vpop.f32.mrb[0].mxu0
      %v877 = vpop.f32.mrb[0].mxu0
      %v878 = vadd.f32 %v669, %v877
      %v879 = vpop.f32.mrb[0].mxu0
      %880 = vmatprep.mubr.bf16.mxu0 0
      %881 = vmatmul.mubr.bf16.gmra.mrb[0].mxu0 %v350
      %v882 = vpop.f32.mrb[0].mxu0
      %v883 = vadd.f32 %v674, %v882
      %v884 = vpop.f32.mrb[0].mxu0
      %v885 = vpop.f32.mrb[0].mxu0
      %v886 = vadd.f32 %v677, %v885
      %v887 = vpop.f32.mrb[0].mxu0
      %888 = vmatprep.mubr.bf16.mxu0 0
      %889 = vmatmul.mubr.bf16.gmra.mrb[0].mxu0 %v351
      %v890 = vpop.f32.mrb[0].mxu0
      %v891 = vadd.f32 %v682, %v890
      %v892 = vpop.f32.mrb[0].mxu0
      %v893 = vpop.f32.mrb[0].mxu0
      %v894 = vadd.f32 %v685, %v893
      %v895 = vpop.f32.mrb[0].mxu0
      %896 = vmatprep.mubr.bf16.mxu0 0
      %897 = vmatmul.mubr.bf16.gmra.mrb[0].mxu0 %v352
      %v898 = vpop.f32.mrb[0].mxu0
      %v899 = vadd.f32 %v690, %v898
      %v900 = vpop.f32.mrb[0].mxu0
      %v901 = vpop.f32.mrb[0].mxu0
      %v902 = vadd.f32 %v693, %v901
      %v903 = vpop.f32.mrb[0].mxu0
      %904 = vmatprep.mubr.bf16.mxu0 0
      %905 = vmatmul.mubr.bf16.gmra.mrb[0].mxu0 %v353
      %v906 = vpop.f32.mrb[0].mxu0
      %v907 = vadd.f32 %v698, %v906
      %v908 = vpop.f32.mrb[0].mxu0
      %v909 = vpop.f32.mrb[0].mxu0
      %v910 = vadd.f32 %v701, %v909
      %v911 = vpop.f32.mrb[0].mxu0
      %912 = vmatprep.mubr.bf16.mxu0 0
      %913 = vmatmul.mubr.bf16.gmra.mrb[0].mxu0 %v354
      %v914 = vpop.f32.mrb[0].mxu0
      %v915 = vadd.f32 %v706, %v914
      %v916 = vpop.f32.mrb[0].mxu0
      %v917 = vpop.f32.mrb[0].mxu0
      %v918 = vadd.f32 %v709, %v917
      %v919 = vpop.f32.mrb[0].mxu0
      %920 = vmatprep.mubr.bf16.mxu0 0
      %921 = vmatmul.mubr.bf16.gmra.mrb[0].mxu0 %v355
      %v922 = vpop.f32.mrb[0].mxu0
      %v923 = vadd.f32 %v714, %v922
      %v924 = vpop.f32.mrb[0].mxu0
      %v925 = vpop.f32.mrb[0].mxu0
      %v926 = vadd.f32 %v717, %v925
      %v927 = vpop.f32.mrb[0].mxu0
      %928 = vmatprep.mubr.bf16.mxu0 0
      %929 = vmatmul.mubr.bf16.gmra.mrb[0].mxu0 %v356
      %v930 = vpop.f32.mrb[0].mxu0
      %v931 = vadd.f32 %v722, %v930
      %v932 = vpop.f32.mrb[0].mxu0
      %v933 = vpop.f32.mrb[0].mxu0
      %v934 = vadd.f32 %v725, %v933
      %v935 = vpop.f32.mrb[0].mxu0
      %936 = vmatprep.mubr.bf16.mxu0 0
      %937 = vmatmul.mubr.bf16.gmra.mrb[0].mxu0 %v357
      %v938 = vpop.f32.mrb[0].mxu0
      %v939 = vadd.f32 %v730, %v938
      %v940 = vpop.f32.mrb[0].mxu0
      %v941 = vpop.f32.mrb[0].mxu0
      %v942 = vadd.f32 %v733, %v941
      %v943 = vpop.f32.mrb[0].mxu0
      %944 = vmatprep.mubr.bf16.mxu0 0
      %945 = vmatmul.mubr.bf16.gmra.mrb[0].mxu0 %v358
      %v946 = vpop.f32.mrb[0].mxu0
      %v947 = vadd.f32 %v738, %v946
      %v948 = vpop.f32.mrb[0].mxu0
      %v949 = vpop.f32.mrb[0].mxu0
      %v950 = vadd.f32 %v741, %v949
      %v951 = vpop.f32.mrb[0].mxu0
      %952 = vmatprep.mubr.bf16.mxu0 0
      %953 = vmatmul.mubr.bf16.gmra.mrb[0].mxu0 %v359
      %v954 = vpop.f32.mrb[0].mxu0
      %v955 = vadd.f32 %v746, %v954
      %v956 = vpop.f32.mrb[0].mxu0
      %v957 = vpop.f32.mrb[0].mxu0
      %v958 = vadd.f32 %v749, %v957
      %v959 = vpop.f32.mrb[0].mxu0
      %960 = vdwg.mxu0
      %s961 = scalar_lea.vmem %s3, 128
      %v962 = vld [vmem:[%s961] sm:$0xf]
      %v963 = vld [vmem:[%s961 + $0x4] sm:$0xf]
      %v964 = vld [vmem:[%s961 + $0x8] sm:$0xf]
      %v965 = vld [vmem:[%s961 + $0xc] sm:$0xf]
      %v966 = vld [vmem:[%s961 + $0x10] sm:$0xf]
      %v967 = vld [vmem:[%s961 + $0x14] sm:$0xf]
      %v968 = vld [vmem:[%s961 + $0x18] sm:$0xf]
      %v969 = vld [vmem:[%s961 + $0x1c] sm:$0xf]
      %v970 = vld [vmem:[%s961 + $0x20] sm:$0xf]
      %v971 = vld [vmem:[%s961 + $0x24] sm:$0xf]
      %v972 = vld [vmem:[%s961 + $0x28] sm:$0xf]
      %v973 = vld [vmem:[%s961 + $0x2c] sm:$0xf]
      %v974 = vld [vmem:[%s961 + $0x30] sm:$0xf]
      %v975 = vld [vmem:[%s961 + $0x34] sm:$0xf]
      %v976 = vld [vmem:[%s961 + $0x38] sm:$0xf]
      %v977 = vld [vmem:[%s961 + $0x3c] sm:$0xf]
      %vm995 = vcmask 1046528
      %v996 = vrot.slane %v344, 1
      %v997 = vrot.slane %v345, 1
      %v998 = vsel %vm995, %v996, %v997
      %v999 = vrot.slane %v346, 1
      %v1000 = vsel %vm995, %v997, %v999
      %v1001 = vrot.slane %v347, 1
      %v1002 = vsel %vm995, %v999, %v1001
      %v1003 = vrot.slane %v348, 1
      %v1004 = vsel %vm995, %v1001, %v1003
      %v1005 = vrot.slane %v349, 1
      %v1006 = vsel %vm995, %v1003, %v1005
      %v1007 = vrot.slane %v350, 1
      %v1008 = vsel %vm995, %v1005, %v1007
      %v1009 = vrot.slane %v351, 1
      %v1010 = vsel %vm995, %v1007, %v1009
      %v1011 = vrot.slane %v352, 1
      %v1012 = vsel %vm995, %v1009, %v1011
      %v1013 = vrot.slane %v353, 1
      %v1014 = vsel %vm995, %v1011, %v1013
      %v1015 = vrot.slane %v354, 1
      %v1016 = vsel %vm995, %v1013, %v1015
      %v1017 = vrot.slane %v355, 1
      %v1018 = vsel %vm995, %v1015, %v1017
      %v1019 = vrot.slane %v356, 1
      %v1020 = vsel %vm995, %v1017, %v1019
      %v1021 = vrot.slane %v357, 1
      %v1022 = vsel %vm995, %v1019, %v1021
      %v1023 = vrot.slane %v358, 1
      %v1024 = vsel %vm995, %v1021, %v1023
      %v1025 = vrot.slane %v359, 1
      %v1026 = vsel %vm995, %v1023, %v1025
      %v1027 = vrot.slane %v376, 1
      %v1028 = vsel %vm995, %v1025, %v1027
      %v1061 = vunpack.c.l.b16 %v962
      %v1062 = vunpack.c.l.b16 %v963
      %v1063 = vunpack.c.l.b16 %v964
      %v1064 = vunpack.c.l.b16 %v965
      %v1065 = vunpack.c.l.b16 %v966
      %v1066 = vunpack.c.l.b16 %v967
      %v1067 = vunpack.c.l.b16 %v968
      %v1068 = vunpack.c.l.b16 %v969
      %v1069 = vunpack.c.l.b16 %v970
      %v1070 = vunpack.c.l.b16 %v971
      %v1071 = vunpack.c.l.b16 %v972
      %v1072 = vunpack.c.l.b16 %v973
      %v1073 = vunpack.c.l.b16 %v974
      %v1074 = vunpack.c.l.b16 %v975
      %v1075 = vunpack.c.l.b16 %v976
      %v1076 = vunpack.c.l.b16 %v977
      %v1077 = vpack.c.b16 %v1062, %v1061
      %v1078 = vpack.c.b16 %v1064, %v1063
      %v1079 = vpack.c.b16 %v1066, %v1065
      %v1080 = vpack.c.b16 %v1068, %v1067
      %v1081 = vpack.c.b16 %v1070, %v1069
      %v1082 = vpack.c.b16 %v1072, %v1071
      %v1083 = vpack.c.b16 %v1074, %v1073
      %v1084 = vpack.c.b16 %v1076, %v1075
      %1093 = vmatprep.subr.bf16.mxu0 0
      %1094 = vmatpush1.bf16.msra.mxu0 %v1077
      %1095 = vmatprep.subr.bf16.mxu0 0
      %1096 = vmatpush1.bf16.msra.mxu0 %v1078
      %1097 = vmatprep.subr.bf16.mxu0 0
      %1098 = vmatpush1.bf16.msra.mxu0 %v1079
      %1099 = vmatprep.subr.bf16.mxu0 0
      %1100 = vmatpush1.bf16.msra.mxu0 %v1080
      %1101 = vmatprep.subr.bf16.mxu0 0
      %1102 = vmatpush1.bf16.msra.mxu0 %v1081
      %1103 = vmatprep.subr.bf16.mxu0 0
      %1104 = vmatpush1.bf16.msra.mxu0 %v1082
      %1105 = vmatprep.subr.bf16.mxu0 0
      %1106 = vmatpush1.bf16.msra.mxu0 %v1083
      %1107 = vmatprep.subr.bf16.mxu0 0
      %1108 = vmatpush1.bf16.msra.mxu0 %v1084
      %1109 = vmatprep.subr.bf16.mxu0 0
      %1110 = vmatpush1.bf16.msra.mxu0 0
      %1111 = vmatprep.subr.bf16.mxu0 0
      %1112 = vmatpush1.bf16.msra.mxu0 0
      %1113 = vmatprep.subr.bf16.mxu0 0
      %1114 = vmatpush1.bf16.msra.mxu0 0
      %1115 = vmatprep.subr.bf16.mxu0 0
      %1116 = vmatpush1.bf16.msra.mxu0 0
      %1117 = vmatprep.subr.bf16.mxu0 0
      %1118 = vmatpush1.bf16.msra.mxu0 0
      %1119 = vmatprep.subr.bf16.mxu0 0
      %1120 = vmatpush1.bf16.msra.mxu0 0
      %1121 = vmatprep.subr.bf16.mxu0 0
      %1122 = vmatpush1.bf16.msra.mxu0 0
      %1123 = vmatprep.subr.bf16.mxu0 0
      %1124 = vmatpush1.bf16.msra.mxu0 0
      %1125 = vmatprep.mubr.bf16.mxu0 0
      %1126 = vmatmul.mubr.bf16.gmra.mrb[0].mxu0 %v998
      %v1127 = vpop.f32.mrb[0].mxu0
      %v1128 = vadd.f32 0.0, %v1127
      %v1129 = vpop.f32.mrb[0].mxu0
      %v1130 = vpop.f32.mrb[0].mxu0
      %v1131 = vadd.f32 0.0, %v1130
      %v1132 = vpop.f32.mrb[0].mxu0
      %1133 = vmatprep.mubr.bf16.mxu0 0
      %1134 = vmatmul.mubr.bf16.gmra.mrb[0].mxu0 %v1000
      %v1135 = vpop.f32.mrb[0].mxu0
      %v1136 = vadd.f32 0.0, %v1135
      %v1137 = vpop.f32.mrb[0].mxu0
      %v1138 = vpop.f32.mrb[0].mxu0
      %v1139 = vadd.f32 0.0, %v1138
      %v1140 = vpop.f32.mrb[0].mxu0
      %1141 = vmatprep.mubr.bf16.mxu0 0
      %1142 = vmatmul.mubr.bf16.gmra.mrb[0].mxu0 %v1002
      %v1143 = vpop.f32.mrb[0].mxu0
      %v1144 = vadd.f32 0.0, %v1143
      %v1145 = vpop.f32.mrb[0].mxu0
      %v1146 = vpop.f32.mrb[0].mxu0
      %v1147 = vadd.f32 0.0, %v1146
      %v1148 = vpop.f32.mrb[0].mxu0
      %1149 = vmatprep.mubr.bf16.mxu0 0
      %1150 = vmatmul.mubr.bf16.gmra.mrb[0].mxu0 %v1004
      %v1151 = vpop.f32.mrb[0].mxu0
      %v1152 = vadd.f32 0.0, %v1151
      %v1153 = vpop.f32.mrb[0].mxu0
      %v1154 = vpop.f32.mrb[0].mxu0
      %v1155 = vadd.f32 0.0, %v1154
      %v1156 = vpop.f32.mrb[0].mxu0
      %1157 = vmatprep.mubr.bf16.mxu0 0
      %1158 = vmatmul.mubr.bf16.gmra.mrb[0].mxu0 %v1006
      %v1159 = vpop.f32.mrb[0].mxu0
      %v1160 = vadd.f32 0.0, %v1159
      %v1161 = vpop.f32.mrb[0].mxu0
      %v1162 = vpop.f32.mrb[0].mxu0
      %v1163 = vadd.f32 0.0, %v1162
      %v1164 = vpop.f32.mrb[0].mxu0
      %1165 = vmatprep.mubr.bf16.mxu0 0
      %1166 = vmatmul.mubr.bf16.gmra.mrb[0].mxu0 %v1008
      %v1167 = vpop.f32.mrb[0].mxu0
      %v1168 = vadd.f32 0.0, %v1167
      %v1169 = vpop.f32.mrb[0].mxu0
      %v1170 = vpop.f32.mrb[0].mxu0
      %v1171 = vadd.f32 0.0, %v1170
      %v1172 = vpop.f32.mrb[0].mxu0
      %1173 = vmatprep.mubr.bf16.mxu0 0
      %1174 = vmatmul.mubr.bf16.gmra.mrb[0].mxu0 %v1010
      %v1175 = vpop.f32.mrb[0].mxu0
      %v1176 = vadd.f32 0.0, %v1175
      %v1177 = vpop.f32.mrb[0].mxu0
      %v1178 = vpop.f32.mrb[0].mxu0
      %v1179 = vadd.f32 0.0, %v1178
      %v1180 = vpop.f32.mrb[0].mxu0
      %1181 = vmatprep.mubr.bf16.mxu0 0
      %1182 = vmatmul.mubr.bf16.gmra.mrb[0].mxu0 %v1012
      %v1183 = vpop.f32.mrb[0].mxu0
      %v1184 = vadd.f32 0.0, %v1183
      %v1185 = vpop.f32.mrb[0].mxu0
      %v1186 = vpop.f32.mrb[0].mxu0
      %v1187 = vadd.f32 0.0, %v1186
      %v1188 = vpop.f32.mrb[0].mxu0
      %1189 = vmatprep.mubr.bf16.mxu0 0
      %1190 = vmatmul.mubr.bf16.gmra.mrb[0].mxu0 %v1014
      %v1191 = vpop.f32.mrb[0].mxu0
      %v1192 = vadd.f32 0.0, %v1191
      %v1193 = vpop.f32.mrb[0].mxu0
      %v1194 = vpop.f32.mrb[0].mxu0
      %v1195 = vadd.f32 0.0, %v1194
      %v1196 = vpop.f32.mrb[0].mxu0
      %1197 = vmatprep.mubr.bf16.mxu0 0
      %1198 = vmatmul.mubr.bf16.gmra.mrb[0].mxu0 %v1016
      %v1199 = vpop.f32.mrb[0].mxu0
      %v1200 = vadd.f32 0.0, %v1199
      %v1201 = vpop.f32.mrb[0].mxu0
      %v1202 = vpop.f32.mrb[0].mxu0
      %v1203 = vadd.f32 0.0, %v1202
      %v1204 = vpop.f32.mrb[0].mxu0
      %1205 = vmatprep.mubr.bf16.mxu0 0
      %1206 = vmatmul.mubr.bf16.gmra.mrb[0].mxu0 %v1018
      %v1207 = vpop.f32.mrb[0].mxu0
      %v1208 = vadd.f32 0.0, %v1207
      %v1209 = vpop.f32.mrb[0].mxu0
      %v1210 = vpop.f32.mrb[0].mxu0
      %v1211 = vadd.f32 0.0, %v1210
      %v1212 = vpop.f32.mrb[0].mxu0
      %1213 = vmatprep.mubr.bf16.mxu0 0
      %1214 = vmatmul.mubr.bf16.gmra.mrb[0].mxu0 %v1020
      %v1215 = vpop.f32.mrb[0].mxu0
      %v1216 = vadd.f32 0.0, %v1215
      %v1217 = vpop.f32.mrb[0].mxu0
      %v1218 = vpop.f32.mrb[0].mxu0
      %v1219 = vadd.f32 0.0, %v1218
      %v1220 = vpop.f32.mrb[0].mxu0
      %1221 = vmatprep.mubr.bf16.mxu0 0
      %1222 = vmatmul.mubr.bf16.gmra.mrb[0].mxu0 %v1022
      %v1223 = vpop.f32.mrb[0].mxu0
      %v1224 = vadd.f32 0.0, %v1223
      %v1225 = vpop.f32.mrb[0].mxu0
      %v1226 = vpop.f32.mrb[0].mxu0
      %v1227 = vadd.f32 0.0, %v1226
      %v1228 = vpop.f32.mrb[0].mxu0
      %1229 = vmatprep.mubr.bf16.mxu0 0
      %1230 = vmatmul.mubr.bf16.gmra.mrb[0].mxu0 %v1024
      %v1231 = vpop.f32.mrb[0].mxu0
      %v1232 = vadd.f32 0.0, %v1231
      %v1233 = vpop.f32.mrb[0].mxu0
      %v1234 = vpop.f32.mrb[0].mxu0
      %v1235 = vadd.f32 0.0, %v1234
      %v1236 = vpop.f32.mrb[0].mxu0
      %1237 = vmatprep.mubr.bf16.mxu0 0
      %1238 = vmatmul.mubr.bf16.gmra.mrb[0].mxu0 %v1026
      %v1239 = vpop.f32.mrb[0].mxu0
      %v1240 = vadd.f32 0.0, %v1239
      %v1241 = vpop.f32.mrb[0].mxu0
      %v1242 = vpop.f32.mrb[0].mxu0
      %v1243 = vadd.f32 0.0, %v1242
      %v1244 = vpop.f32.mrb[0].mxu0
      %1245 = vmatprep.mubr.bf16.mxu0 0
      %1246 = vmatmul.mubr.bf16.gmra.mrb[0].mxu0 %v1028
      %v1247 = vpop.f32.mrb[0].mxu0
      %v1248 = vadd.f32 0.0, %v1247
      %v1249 = vpop.f32.mrb[0].mxu0
      %v1250 = vpop.f32.mrb[0].mxu0
      %v1251 = vadd.f32 0.0, %v1250
      %v1252 = vpop.f32.mrb[0].mxu0
      %1253 = vdwg.mxu0
      %v1254 = vadd.f32 %v835, %v1128
      %v1255 = vadd.f32 %v838, %v1131
      %v1256 = vadd.f32 %v843, %v1136
      %v1257 = vadd.f32 %v846, %v1139
      %v1258 = vadd.f32 %v851, %v1144
      %v1259 = vadd.f32 %v854, %v1147
      %v1260 = vadd.f32 %v859, %v1152
      %v1261 = vadd.f32 %v862, %v1155
      %v1262 = vadd.f32 %v867, %v1160
      %v1263 = vadd.f32 %v870, %v1163
      %v1264 = vadd.f32 %v875, %v1168
      %v1265 = vadd.f32 %v878, %v1171
      %v1266 = vadd.f32 %v883, %v1176
      %v1267 = vadd.f32 %v886, %v1179
      %v1268 = vadd.f32 %v891, %v1184
      %v1269 = vadd.f32 %v894, %v1187
      %v1270 = vadd.f32 %v899, %v1192
      %v1271 = vadd.f32 %v902, %v1195
      %v1272 = vadd.f32 %v907, %v1200
      %v1273 = vadd.f32 %v910, %v1203
      %v1274 = vadd.f32 %v915, %v1208
      %v1275 = vadd.f32 %v918, %v1211
      %v1276 = vadd.f32 %v923, %v1216
      %v1277 = vadd.f32 %v926, %v1219
      %v1278 = vadd.f32 %v931, %v1224
      %v1279 = vadd.f32 %v934, %v1227
      %v1280 = vadd.f32 %v939, %v1232
      %v1281 = vadd.f32 %v942, %v1235
      %v1282 = vadd.f32 %v947, %v1240
      %v1283 = vadd.f32 %v950, %v1243
      %v1284 = vadd.f32 %v955, %v1248
      %v1285 = vadd.f32 %v958, %v1251
      %v1286 = vpack.c.bf16 %v340, %v339
      %v1287 = vpack.c.bf16 %v341, %v341
      %s1288 = scalar_lea.vmem %s3, 192
      %v1289 = vld [vmem:[%s1288] sm:$0xf]
      %v1290 = vld [vmem:[%s1288 + $0x4] sm:$0xf]
      %v1291 = vld [vmem:[%s1288 + $0x8] sm:$0xf]
      %v1292 = vld [vmem:[%s1288 + $0xc] sm:$0xf]
      %v1293 = vld [vmem:[%s1288 + $0x10] sm:$0xf]
      %v1294 = vld [vmem:[%s1288 + $0x14] sm:$0xf]
      %v1295 = vld [vmem:[%s1288 + $0x18] sm:$0xf]
      %v1296 = vld [vmem:[%s1288 + $0x1c] sm:$0xf]
      %v1297 = vld [vmem:[%s1288 + $0x20] sm:$0xf]
      %v1298 = vld [vmem:[%s1288 + $0x24] sm:$0xf]
      %v1299 = vld [vmem:[%s1288 + $0x28] sm:$0xf]
      %v1300 = vld [vmem:[%s1288 + $0x2c] sm:$0xf]
      %v1301 = vld [vmem:[%s1288 + $0x30] sm:$0xf]
      %v1302 = vld [vmem:[%s1288 + $0x34] sm:$0xf]
      %v1303 = vld [vmem:[%s1288 + $0x38] sm:$0xf]
      %v1304 = vld [vmem:[%s1288 + $0x3c] sm:$0xf]
      %v1307 = vrot.slane %v1286, 1
      %v1308 = vsel %vm995, %v1025, %v1307
      %v1309 = vrot.slane %v1287, 1
      %v1310 = vsel %vm995, %v1307, %v1309
      %v1329 = vunpack.c.l.b16 %v1289
      %v1330 = vunpack.c.l.b16 %v1290
      %v1331 = vunpack.c.l.b16 %v1291
      %v1332 = vunpack.c.l.b16 %v1292
      %v1333 = vunpack.c.l.b16 %v1293
      %v1334 = vunpack.c.l.b16 %v1294
      %v1335 = vunpack.c.l.b16 %v1295
      %v1336 = vunpack.c.l.b16 %v1296
      %v1337 = vunpack.c.l.b16 %v1297
      %v1338 = vunpack.c.l.b16 %v1298
      %v1339 = vunpack.c.l.b16 %v1299
      %v1340 = vunpack.c.l.b16 %v1300
      %v1341 = vunpack.c.l.b16 %v1301
      %v1342 = vunpack.c.l.b16 %v1302
      %v1343 = vunpack.c.l.b16 %v1303
      %v1344 = vunpack.c.l.b16 %v1304
      %v1345 = vpack.c.b16 %v1330, %v1329
      %v1346 = vpack.c.b16 %v1332, %v1331
      %v1347 = vpack.c.b16 %v1334, %v1333
      %v1348 = vpack.c.b16 %v1336, %v1335
      %v1349 = vpack.c.b16 %v1338, %v1337
      %v1350 = vpack.c.b16 %v1340, %v1339
      %v1351 = vpack.c.b16 %v1342, %v1341
      %v1352 = vpack.c.b16 %v1344, %v1343
      %1361 = vmatprep.subr.bf16.mxu0 0
      %1362 = vmatpush1.bf16.msra.mxu0 %v1345
      %1363 = vmatprep.subr.bf16.mxu0 0
      %1364 = vmatpush1.bf16.msra.mxu0 %v1346
      %1365 = vmatprep.subr.bf16.mxu0 0
      %1366 = vmatpush1.bf16.msra.mxu0 %v1347
      %1367 = vmatprep.subr.bf16.mxu0 0
      %1368 = vmatpush1.bf16.msra.mxu0 %v1348
      %1369 = vmatprep.subr.bf16.mxu0 0
      %1370 = vmatpush1.bf16.msra.mxu0 %v1349
      %1371 = vmatprep.subr.bf16.mxu0 0
      %1372 = vmatpush1.bf16.msra.mxu0 %v1350
      %1373 = vmatprep.subr.bf16.mxu0 0
      %1374 = vmatpush1.bf16.msra.mxu0 %v1351
      %1375 = vmatprep.subr.bf16.mxu0 0
      %1376 = vmatpush1.bf16.msra.mxu0 %v1352
      %1377 = vmatprep.subr.bf16.mxu0 0
      %1378 = vmatpush1.bf16.msra.mxu0 0
      %1379 = vmatprep.subr.bf16.mxu0 0
      %1380 = vmatpush1.bf16.msra.mxu0 0
      %1381 = vmatprep.subr.bf16.mxu0 0
      %1382 = vmatpush1.bf16.msra.mxu0 0
      %1383 = vmatprep.subr.bf16.mxu0 0
      %1384 = vmatpush1.bf16.msra.mxu0 0
      %1385 = vmatprep.subr.bf16.mxu0 0
      %1386 = vmatpush1.bf16.msra.mxu0 0
      %1387 = vmatprep.subr.bf16.mxu0 0
      %1388 = vmatpush1.bf16.msra.mxu0 0
      %1389 = vmatprep.subr.bf16.mxu0 0
      %1390 = vmatpush1.bf16.msra.mxu0 0
      %1391 = vmatprep.subr.bf16.mxu0 0
      %1392 = vmatpush1.bf16.msra.mxu0 0
      %1393 = vmatprep.mubr.bf16.mxu0 0
      %1394 = vmatmul.mubr.bf16.gmra.mrb[0].mxu0 %v1000
      %v1395 = vpop.f32.mrb[0].mxu0
      %v1396 = vadd.f32 0.0, %v1395
      %v1397 = vpop.f32.mrb[0].mxu0
      %v1398 = vpop.f32.mrb[0].mxu0
      %v1399 = vadd.f32 0.0, %v1398
      %v1400 = vpop.f32.mrb[0].mxu0
      %1401 = vmatprep.mubr.bf16.mxu0 0
      %1402 = vmatmul.mubr.bf16.gmra.mrb[0].mxu0 %v1002
      %v1403 = vpop.f32.mrb[0].mxu0
      %v1404 = vadd.f32 0.0, %v1403
      %v1405 = vpop.f32.mrb[0].mxu0
      %v1406 = vpop.f32.mrb[0].mxu0
      %v1407 = vadd.f32 0.0, %v1406
      %v1408 = vpop.f32.mrb[0].mxu0
      %1409 = vmatprep.mubr.bf16.mxu0 0
      %1410 = vmatmul.mubr.bf16.gmra.mrb[0].mxu0 %v1004
      %v1411 = vpop.f32.mrb[0].mxu0
      %v1412 = vadd.f32 0.0, %v1411
      %v1413 = vpop.f32.mrb[0].mxu0
      %v1414 = vpop.f32.mrb[0].mxu0
      %v1415 = vadd.f32 0.0, %v1414
      %v1416 = vpop.f32.mrb[0].mxu0
      %1417 = vmatprep.mubr.bf16.mxu0 0
      %1418 = vmatmul.mubr.bf16.gmra.mrb[0].mxu0 %v1006
      %v1419 = vpop.f32.mrb[0].mxu0
      %v1420 = vadd.f32 0.0, %v1419
      %v1421 = vpop.f32.mrb[0].mxu0
      %v1422 = vpop.f32.mrb[0].mxu0
      %v1423 = vadd.f32 0.0, %v1422
      %v1424 = vpop.f32.mrb[0].mxu0
      %1425 = vmatprep.mubr.bf16.mxu0 0
      %1426 = vmatmul.mubr.bf16.gmra.mrb[0].mxu0 %v1008
      %v1427 = vpop.f32.mrb[0].mxu0
      %v1428 = vadd.f32 0.0, %v1427
      %v1429 = vpop.f32.mrb[0].mxu0
      %v1430 = vpop.f32.mrb[0].mxu0
      %v1431 = vadd.f32 0.0, %v1430
      %v1432 = vpop.f32.mrb[0].mxu0
      %1433 = vmatprep.mubr.bf16.mxu0 0
      %1434 = vmatmul.mubr.bf16.gmra.mrb[0].mxu0 %v1010
      %v1435 = vpop.f32.mrb[0].mxu0
      %v1436 = vadd.f32 0.0, %v1435
      %v1437 = vpop.f32.mrb[0].mxu0
      %v1438 = vpop.f32.mrb[0].mxu0
      %v1439 = vadd.f32 0.0, %v1438
      %v1440 = vpop.f32.mrb[0].mxu0
      %1441 = vmatprep.mubr.bf16.mxu0 0
      %1442 = vmatmul.mubr.bf16.gmra.mrb[0].mxu0 %v1012
      %v1443 = vpop.f32.mrb[0].mxu0
      %v1444 = vadd.f32 0.0, %v1443
      %v1445 = vpop.f32.mrb[0].mxu0
      %v1446 = vpop.f32.mrb[0].mxu0
      %v1447 = vadd.f32 0.0, %v1446
      %v1448 = vpop.f32.mrb[0].mxu0
      %1449 = vmatprep.mubr.bf16.mxu0 0
      %1450 = vmatmul.mubr.bf16.gmra.mrb[0].mxu0 %v1014
      %v1451 = vpop.f32.mrb[0].mxu0
      %v1452 = vadd.f32 0.0, %v1451
      %v1453 = vpop.f32.mrb[0].mxu0
      %v1454 = vpop.f32.mrb[0].mxu0
      %v1455 = vadd.f32 0.0, %v1454
      %v1456 = vpop.f32.mrb[0].mxu0
      %1457 = vmatprep.mubr.bf16.mxu0 0
      %1458 = vmatmul.mubr.bf16.gmra.mrb[0].mxu0 %v1016
      %v1459 = vpop.f32.mrb[0].mxu0
      %v1460 = vadd.f32 0.0, %v1459
      %v1461 = vpop.f32.mrb[0].mxu0
      %v1462 = vpop.f32.mrb[0].mxu0
      %v1463 = vadd.f32 0.0, %v1462
      %v1464 = vpop.f32.mrb[0].mxu0
      %1465 = vmatprep.mubr.bf16.mxu0 0
      %1466 = vmatmul.mubr.bf16.gmra.mrb[0].mxu0 %v1018
      %v1467 = vpop.f32.mrb[0].mxu0
      %v1468 = vadd.f32 0.0, %v1467
      %v1469 = vpop.f32.mrb[0].mxu0
      %v1470 = vpop.f32.mrb[0].mxu0
      %v1471 = vadd.f32 0.0, %v1470
      %v1472 = vpop.f32.mrb[0].mxu0
      %1473 = vmatprep.mubr.bf16.mxu0 0
      %1474 = vmatmul.mubr.bf16.gmra.mrb[0].mxu0 %v1020
      %v1475 = vpop.f32.mrb[0].mxu0
      %v1476 = vadd.f32 0.0, %v1475
      %v1477 = vpop.f32.mrb[0].mxu0
      %v1478 = vpop.f32.mrb[0].mxu0
      %v1479 = vadd.f32 0.0, %v1478
      %v1480 = vpop.f32.mrb[0].mxu0
      %1481 = vmatprep.mubr.bf16.mxu0 0
      %1482 = vmatmul.mubr.bf16.gmra.mrb[0].mxu0 %v1022
      %v1483 = vpop.f32.mrb[0].mxu0
      %v1484 = vadd.f32 0.0, %v1483
      %v1485 = vpop.f32.mrb[0].mxu0
      %v1486 = vpop.f32.mrb[0].mxu0
      %v1487 = vadd.f32 0.0, %v1486
      %v1488 = vpop.f32.mrb[0].mxu0
      %1489 = vmatprep.mubr.bf16.mxu0 0
      %1490 = vmatmul.mubr.bf16.gmra.mrb[0].mxu0 %v1024
      %v1491 = vpop.f32.mrb[0].mxu0
      %v1492 = vadd.f32 0.0, %v1491
      %v1493 = vpop.f32.mrb[0].mxu0
      %v1494 = vpop.f32.mrb[0].mxu0
      %v1495 = vadd.f32 0.0, %v1494
      %v1496 = vpop.f32.mrb[0].mxu0
      %1497 = vmatprep.mubr.bf16.mxu0 0
      %1498 = vmatmul.mubr.bf16.gmra.mrb[0].mxu0 %v1026
      %v1499 = vpop.f32.mrb[0].mxu0
      %v1500 = vadd.f32 0.0, %v1499
      %v1501 = vpop.f32.mrb[0].mxu0
      %v1502 = vpop.f32.mrb[0].mxu0
      %v1503 = vadd.f32 0.0, %v1502
      %v1504 = vpop.f32.mrb[0].mxu0
      %1505 = vmatprep.mubr.bf16.mxu0 0
      %1506 = vmatmul.mubr.bf16.gmra.mrb[0].mxu0 %v1308
      %v1507 = vpop.f32.mrb[0].mxu0
      %v1508 = vadd.f32 0.0, %v1507
      %v1509 = vpop.f32.mrb[0].mxu0
      %v1510 = vpop.f32.mrb[0].mxu0
      %v1511 = vadd.f32 0.0, %v1510
      %v1512 = vpop.f32.mrb[0].mxu0
      %1513 = vmatprep.mubr.bf16.mxu0 0
      %1514 = vmatmul.mubr.bf16.gmra.mrb[0].mxu0 %v1310
      %v1515 = vpop.f32.mrb[0].mxu0
      %v1516 = vadd.f32 0.0, %v1515
      %v1517 = vpop.f32.mrb[0].mxu0
      %v1518 = vpop.f32.mrb[0].mxu0
      %v1519 = vadd.f32 0.0, %v1518
      %v1520 = vpop.f32.mrb[0].mxu0
      %1521 = vdwg.mxu0
      %v1522 = vadd.f32 %v1254, %v1396
      %v1523 = vadd.f32 %v1255, %v1399
      %v1524 = vadd.f32 %v1256, %v1404
      %v1525 = vadd.f32 %v1257, %v1407
      %v1526 = vadd.f32 %v1258, %v1412
      %v1527 = vadd.f32 %v1259, %v1415
      %v1528 = vadd.f32 %v1260, %v1420
      %v1529 = vadd.f32 %v1261, %v1423
      %v1530 = vadd.f32 %v1262, %v1428
      %v1531 = vadd.f32 %v1263, %v1431
      %v1532 = vadd.f32 %v1264, %v1436
      %v1533 = vadd.f32 %v1265, %v1439
      %v1534 = vadd.f32 %v1266, %v1444
      %v1535 = vadd.f32 %v1267, %v1447
      %v1536 = vadd.f32 %v1268, %v1452
      %v1537 = vadd.f32 %v1269, %v1455
      %v1538 = vadd.f32 %v1270, %v1460
      %v1539 = vadd.f32 %v1271, %v1463
      %v1540 = vadd.f32 %v1272, %v1468
      %v1541 = vadd.f32 %v1273, %v1471
      %v1542 = vadd.f32 %v1274, %v1476
      %v1543 = vadd.f32 %v1275, %v1479
      %v1544 = vadd.f32 %v1276, %v1484
      %v1545 = vadd.f32 %v1277, %v1487
      %v1546 = vadd.f32 %v1278, %v1492
      %v1547 = vadd.f32 %v1279, %v1495
      %v1548 = vadd.f32 %v1280, %v1500
      %v1549 = vadd.f32 %v1281, %v1503
      %v1550 = vadd.f32 %v1282, %v1508
      %v1551 = vadd.f32 %v1283, %v1511
      %v1552 = vadd.f32 %v1284, %v1516
      %v1553 = vadd.f32 %v1285, %v1519
      %s1554 = scalar_lea.vmem %s3, 256
      %v1555 = vld [vmem:[%s1554] sm:$0xf]
      %v1556 = vld [vmem:[%s1554 + $0x4] sm:$0xf]
      %v1557 = vld [vmem:[%s1554 + $0x8] sm:$0xf]
      %v1558 = vld [vmem:[%s1554 + $0xc] sm:$0xf]
      %v1559 = vld [vmem:[%s1554 + $0x10] sm:$0xf]
      %v1560 = vld [vmem:[%s1554 + $0x14] sm:$0xf]
      %v1561 = vld [vmem:[%s1554 + $0x18] sm:$0xf]
      %v1562 = vld [vmem:[%s1554 + $0x1c] sm:$0xf]
      %v1563 = vld [vmem:[%s1554 + $0x20] sm:$0xf]
      %v1564 = vld [vmem:[%s1554 + $0x24] sm:$0xf]
      %v1565 = vld [vmem:[%s1554 + $0x28] sm:$0xf]
      %v1566 = vld [vmem:[%s1554 + $0x2c] sm:$0xf]
      %v1567 = vld [vmem:[%s1554 + $0x30] sm:$0xf]
      %v1568 = vld [vmem:[%s1554 + $0x34] sm:$0xf]
      %v1569 = vld [vmem:[%s1554 + $0x38] sm:$0xf]
      %v1570 = vld [vmem:[%s1554 + $0x3c] sm:$0xf]
      %vm1571 = vsmask.f32 6400
      %v1572 = vrot.slane %v407, 1
      %v1573 = vrot.slane %v403, 2
      %v1574 = vor.u32 %v1572, %v1573
      %v1575 = vrot.slane %v415, 1
      %v1576 = vrot.slane %v411, 2
      %v1577 = vor.u32 %v1575, %v1576
      %v1578 = vsel %vm1571, %v1574, %v1577
      %v1579 = vrot.slane %v423, 1
      %v1580 = vrot.slane %v419, 2
      %v1581 = vor.u32 %v1579, %v1580
      %v1582 = vsel %vm1571, %v1577, %v1581
      %v1583 = vrot.slane %v431, 1
      %v1584 = vrot.slane %v427, 2
      %v1585 = vor.u32 %v1583, %v1584
      %v1586 = vsel %vm1571, %v1581, %v1585
      %v1587 = vrot.slane %v439, 1
      %v1588 = vrot.slane %v435, 2
      %v1589 = vor.u32 %v1587, %v1588
      %v1590 = vsel %vm1571, %v1585, %v1589
      %v1591 = vrot.slane %v447, 1
      %v1592 = vrot.slane %v443, 2
      %v1593 = vor.u32 %v1591, %v1592
      %v1594 = vsel %vm1571, %v1589, %v1593
      %v1595 = vrot.slane %v455, 1
      %v1596 = vrot.slane %v451, 2
      %v1597 = vor.u32 %v1595, %v1596
      %v1598 = vsel %vm1571, %v1593, %v1597
      %v1599 = vrot.slane %v463, 1
      %v1600 = vrot.slane %v459, 2
      %v1601 = vor.u32 %v1599, %v1600
      %v1602 = vsel %vm1571, %v1597, %v1601
      %v1603 = vrot.slane %v471, 1
      %v1604 = vrot.slane %v467, 2
      %v1605 = vor.u32 %v1603, %v1604
      %v1606 = vsel %vm1571, %v1601, %v1605
      %v1607 = vrot.slane %v479, 1
      %v1608 = vrot.slane %v475, 2
      %v1609 = vor.u32 %v1607, %v1608
      %v1610 = vsel %vm1571, %v1605, %v1609
      %v1611 = vrot.slane %v487, 1
      %v1612 = vrot.slane %v483, 2
      %v1613 = vor.u32 %v1611, %v1612
      %v1614 = vsel %vm1571, %v1609, %v1613
      %v1615 = vrot.slane %v495, 1
      %v1616 = vrot.slane %v491, 2
      %v1617 = vor.u32 %v1615, %v1616
      %v1618 = vsel %vm1571, %v1613, %v1617
      %v1619 = vrot.slane %v503, 1
      %v1620 = vrot.slane %v499, 2
      %v1621 = vor.u32 %v1619, %v1620
      %v1622 = vsel %vm1571, %v1617, %v1621
      %v1623 = vrot.slane %v511, 1
      %v1624 = vrot.slane %v507, 2
      %v1625 = vor.u32 %v1623, %v1624
      %v1626 = vsel %vm1571, %v1621, %v1625
      %v1627 = vrot.slane %v519, 1
      %v1628 = vrot.slane %v515, 2
      %v1629 = vor.u32 %v1627, %v1628
      %v1630 = vsel %vm1571, %v1625, %v1629
      %v1632 = vshrl.u32 %v1286, 16
      %v1634 = vrot.slane %v1632, 1
      %v1635 = vshll.u32 %v1286, 16
      %v1637 = vrot.slane %v1635, 2
      %v1638 = vor.u32 %v1634, %v1637
      %v1639 = vsel %vm1571, %v1629, %v1638
      %v1641 = vshrl.u32 %v1287, 16
      %v1643 = vrot.slane %v1641, 1
      %v1644 = vshll.u32 %v1287, 16
      %v1646 = vrot.slane %v1644, 2
      %v1647 = vor.u32 %v1643, %v1646
      %v1648 = vsel %vm1571, %v1638, %v1647
      %v1681 = vunpack.c.l.b16 %v1555
      %v1682 = vunpack.c.l.b16 %v1556
      %v1683 = vunpack.c.l.b16 %v1557
      %v1684 = vunpack.c.l.b16 %v1558
      %v1685 = vunpack.c.l.b16 %v1559
      %v1686 = vunpack.c.l.b16 %v1560
      %v1687 = vunpack.c.l.b16 %v1561
      %v1688 = vunpack.c.l.b16 %v1562
      %v1689 = vunpack.c.l.b16 %v1563
      %v1690 = vunpack.c.l.b16 %v1564
      %v1691 = vunpack.c.l.b16 %v1565
      %v1692 = vunpack.c.l.b16 %v1566
      %v1693 = vunpack.c.l.b16 %v1567
      %v1694 = vunpack.c.l.b16 %v1568
      %v1695 = vunpack.c.l.b16 %v1569
      %v1696 = vunpack.c.l.b16 %v1570
      %v1697 = vpack.c.b16 %v1682, %v1681
      %v1698 = vpack.c.b16 %v1684, %v1683
      %v1699 = vpack.c.b16 %v1686, %v1685
      %v1700 = vpack.c.b16 %v1688, %v1687
      %v1701 = vpack.c.b16 %v1690, %v1689
      %v1702 = vpack.c.b16 %v1692, %v1691
      %v1703 = vpack.c.b16 %v1694, %v1693
      %v1704 = vpack.c.b16 %v1696, %v1695
      %1713 = vmatprep.subr.bf16.mxu0 0
      %1714 = vmatpush1.bf16.msra.mxu0 %v1697
      %1715 = vmatprep.subr.bf16.mxu0 0
      %1716 = vmatpush1.bf16.msra.mxu0 %v1698
      %1717 = vmatprep.subr.bf16.mxu0 0
      %1718 = vmatpush1.bf16.msra.mxu0 %v1699
      %1719 = vmatprep.subr.bf16.mxu0 0
      %1720 = vmatpush1.bf16.msra.mxu0 %v1700
      %1721 = vmatprep.subr.bf16.mxu0 0
      %1722 = vmatpush1.bf16.msra.mxu0 %v1701
      %1723 = vmatprep.subr.bf16.mxu0 0
      %1724 = vmatpush1.bf16.msra.mxu0 %v1702
      %1725 = vmatprep.subr.bf16.mxu0 0
      %1726 = vmatpush1.bf16.msra.mxu0 %v1703
      %1727 = vmatprep.subr.bf16.mxu0 0
      %1728 = vmatpush1.bf16.msra.mxu0 %v1704
      %1729 = vmatprep.subr.bf16.mxu0 0
      %1730 = vmatpush1.bf16.msra.mxu0 0
      %1731 = vmatprep.subr.bf16.mxu0 0
      %1732 = vmatpush1.bf16.msra.mxu0 0
      %1733 = vmatprep.subr.bf16.mxu0 0
      %1734 = vmatpush1.bf16.msra.mxu0 0
      %1735 = vmatprep.subr.bf16.mxu0 0
      %1736 = vmatpush1.bf16.msra.mxu0 0
      %1737 = vmatprep.subr.bf16.mxu0 0
      %1738 = vmatpush1.bf16.msra.mxu0 0
      %1739 = vmatprep.subr.bf16.mxu0 0
      %1740 = vmatpush1.bf16.msra.mxu0 0
      %1741 = vmatprep.subr.bf16.mxu0 0
      %1742 = vmatpush1.bf16.msra.mxu0 0
      %1743 = vmatprep.subr.bf16.mxu0 0
      %1744 = vmatpush1.bf16.msra.mxu0 0
      %1745 = vmatprep.mubr.bf16.mxu0 0
      %1746 = vmatmul.mubr.bf16.gmra.mrb[0].mxu0 %v1578
      %v1747 = vpop.f32.mrb[0].mxu0
      %v1748 = vadd.f32 0.0, %v1747
      %v1749 = vpop.f32.mrb[0].mxu0
      %v1750 = vpop.f32.mrb[0].mxu0
      %v1751 = vadd.f32 0.0, %v1750
      %v1752 = vpop.f32.mrb[0].mxu0
      %1753 = vmatprep.mubr.bf16.mxu0 0
      %1754 = vmatmul.mubr.bf16.gmra.mrb[0].mxu0 %v1582
      %v1755 = vpop.f32.mrb[0].mxu0
      %v1756 = vadd.f32 0.0, %v1755
      %v1757 = vpop.f32.mrb[0].mxu0
      %v1758 = vpop.f32.mrb[0].mxu0
      %v1759 = vadd.f32 0.0, %v1758
      %v1760 = vpop.f32.mrb[0].mxu0
      %1761 = vmatprep.mubr.bf16.mxu0 0
      %1762 = vmatmul.mubr.bf16.gmra.mrb[0].mxu0 %v1586
      %v1763 = vpop.f32.mrb[0].mxu0
      %v1764 = vadd.f32 0.0, %v1763
      %v1765 = vpop.f32.mrb[0].mxu0
      %v1766 = vpop.f32.mrb[0].mxu0
      %v1767 = vadd.f32 0.0, %v1766
      %v1768 = vpop.f32.mrb[0].mxu0
      %1769 = vmatprep.mubr.bf16.mxu0 0
      %1770 = vmatmul.mubr.bf16.gmra.mrb[0].mxu0 %v1590
      %v1771 = vpop.f32.mrb[0].mxu0
      %v1772 = vadd.f32 0.0, %v1771
      %v1773 = vpop.f32.mrb[0].mxu0
      %v1774 = vpop.f32.mrb[0].mxu0
      %v1775 = vadd.f32 0.0, %v1774
      %v1776 = vpop.f32.mrb[0].mxu0
      %1777 = vmatprep.mubr.bf16.mxu0 0
      %1778 = vmatmul.mubr.bf16.gmra.mrb[0].mxu0 %v1594
      %v1779 = vpop.f32.mrb[0].mxu0
      %v1780 = vadd.f32 0.0, %v1779
      %v1781 = vpop.f32.mrb[0].mxu0
      %v1782 = vpop.f32.mrb[0].mxu0
      %v1783 = vadd.f32 0.0, %v1782
      %v1784 = vpop.f32.mrb[0].mxu0
      %1785 = vmatprep.mubr.bf16.mxu0 0
      %1786 = vmatmul.mubr.bf16.gmra.mrb[0].mxu0 %v1598
      %v1787 = vpop.f32.mrb[0].mxu0
      %v1788 = vadd.f32 0.0, %v1787
      %v1789 = vpop.f32.mrb[0].mxu0
      %v1790 = vpop.f32.mrb[0].mxu0
      %v1791 = vadd.f32 0.0, %v1790
      %v1792 = vpop.f32.mrb[0].mxu0
      %1793 = vmatprep.mubr.bf16.mxu0 0
      %1794 = vmatmul.mubr.bf16.gmra.mrb[0].mxu0 %v1602
      %v1795 = vpop.f32.mrb[0].mxu0
      %v1796 = vadd.f32 0.0, %v1795
      %v1797 = vpop.f32.mrb[0].mxu0
      %v1798 = vpop.f32.mrb[0].mxu0
      %v1799 = vadd.f32 0.0, %v1798
      %v1800 = vpop.f32.mrb[0].mxu0
      %1801 = vmatprep.mubr.bf16.mxu0 0
      %1802 = vmatmul.mubr.bf16.gmra.mrb[0].mxu0 %v1606
      %v1803 = vpop.f32.mrb[0].mxu0
      %v1804 = vadd.f32 0.0, %v1803
      %v1805 = vpop.f32.mrb[0].mxu0
      %v1806 = vpop.f32.mrb[0].mxu0
      %v1807 = vadd.f32 0.0, %v1806
      %v1808 = vpop.f32.mrb[0].mxu0
      %1809 = vmatprep.mubr.bf16.mxu0 0
      %1810 = vmatmul.mubr.bf16.gmra.mrb[0].mxu0 %v1610
      %v1811 = vpop.f32.mrb[0].mxu0
      %v1812 = vadd.f32 0.0, %v1811
      %v1813 = vpop.f32.mrb[0].mxu0
      %v1814 = vpop.f32.mrb[0].mxu0
      %v1815 = vadd.f32 0.0, %v1814
      %v1816 = vpop.f32.mrb[0].mxu0
      %1817 = vmatprep.mubr.bf16.mxu0 0
      %1818 = vmatmul.mubr.bf16.gmra.mrb[0].mxu0 %v1614
      %v1819 = vpop.f32.mrb[0].mxu0
      %v1820 = vadd.f32 0.0, %v1819
      %v1821 = vpop.f32.mrb[0].mxu0
      %v1822 = vpop.f32.mrb[0].mxu0
      %v1823 = vadd.f32 0.0, %v1822
      %v1824 = vpop.f32.mrb[0].mxu0
      %1825 = vmatprep.mubr.bf16.mxu0 0
      %1826 = vmatmul.mubr.bf16.gmra.mrb[0].mxu0 %v1618
      %v1827 = vpop.f32.mrb[0].mxu0
      %v1828 = vadd.f32 0.0, %v1827
      %v1829 = vpop.f32.mrb[0].mxu0
      %v1830 = vpop.f32.mrb[0].mxu0
      %v1831 = vadd.f32 0.0, %v1830
      %v1832 = vpop.f32.mrb[0].mxu0
      %1833 = vmatprep.mubr.bf16.mxu0 0
      %1834 = vmatmul.mubr.bf16.gmra.mrb[0].mxu0 %v1622
      %v1835 = vpop.f32.mrb[0].mxu0
      %v1836 = vadd.f32 0.0, %v1835
      %v1837 = vpop.f32.mrb[0].mxu0
      %v1838 = vpop.f32.mrb[0].mxu0
      %v1839 = vadd.f32 0.0, %v1838
      %v1840 = vpop.f32.mrb[0].mxu0
      %1841 = vmatprep.mubr.bf16.mxu0 0
      %1842 = vmatmul.mubr.bf16.gmra.mrb[0].mxu0 %v1626
      %v1843 = vpop.f32.mrb[0].mxu0
      %v1844 = vadd.f32 0.0, %v1843
      %v1845 = vpop.f32.mrb[0].mxu0
      %v1846 = vpop.f32.mrb[0].mxu0
      %v1847 = vadd.f32 0.0, %v1846
      %v1848 = vpop.f32.mrb[0].mxu0
      %1849 = vmatprep.mubr.bf16.mxu0 0
      %1850 = vmatmul.mubr.bf16.gmra.mrb[0].mxu0 %v1630
      %v1851 = vpop.f32.mrb[0].mxu0
      %v1852 = vadd.f32 0.0, %v1851
      %v1853 = vpop.f32.mrb[0].mxu0
      %v1854 = vpop.f32.mrb[0].mxu0
      %v1855 = vadd.f32 0.0, %v1854
      %v1856 = vpop.f32.mrb[0].mxu0
      %1857 = vmatprep.mubr.bf16.mxu0 0
      %1858 = vmatmul.mubr.bf16.gmra.mrb[0].mxu0 %v1639
      %v1859 = vpop.f32.mrb[0].mxu0
      %v1860 = vadd.f32 0.0, %v1859
      %v1861 = vpop.f32.mrb[0].mxu0
      %v1862 = vpop.f32.mrb[0].mxu0
      %v1863 = vadd.f32 0.0, %v1862
      %v1864 = vpop.f32.mrb[0].mxu0
      %1865 = vmatprep.mubr.bf16.mxu0 0
      %1866 = vmatmul.mubr.bf16.gmra.mrb[0].mxu0 %v1648
      %v1867 = vpop.f32.mrb[0].mxu0
      %v1868 = vadd.f32 0.0, %v1867
      %v1869 = vpop.f32.mrb[0].mxu0
      %v1870 = vpop.f32.mrb[0].mxu0
      %v1871 = vadd.f32 0.0, %v1870
      %v1872 = vpop.f32.mrb[0].mxu0
      %1873 = vdwg.mxu0
      %v1874 = vadd.f32 %v1522, %v1748
      %v1875 = vadd.f32 %v1523, %v1751
      %v1876 = vadd.f32 %v1524, %v1756
      %v1877 = vadd.f32 %v1525, %v1759
      %v1878 = vadd.f32 %v1526, %v1764
      %v1879 = vadd.f32 %v1527, %v1767
      %v1880 = vadd.f32 %v1528, %v1772
      %v1881 = vadd.f32 %v1529, %v1775
      %v1882 = vadd.f32 %v1530, %v1780
      %v1883 = vadd.f32 %v1531, %v1783
      %v1884 = vadd.f32 %v1532, %v1788
      %v1885 = vadd.f32 %v1533, %v1791
      %v1886 = vadd.f32 %v1534, %v1796
      %v1887 = vadd.f32 %v1535, %v1799
      %v1888 = vadd.f32 %v1536, %v1804
      %v1889 = vadd.f32 %v1537, %v1807
      %v1890 = vadd.f32 %v1538, %v1812
      %v1891 = vadd.f32 %v1539, %v1815
      %v1892 = vadd.f32 %v1540, %v1820
      %v1893 = vadd.f32 %v1541, %v1823
      %v1894 = vadd.f32 %v1542, %v1828
      %v1895 = vadd.f32 %v1543, %v1831
      %v1896 = vadd.f32 %v1544, %v1836
      %v1897 = vadd.f32 %v1545, %v1839
      %v1898 = vadd.f32 %v1546, %v1844
      %v1899 = vadd.f32 %v1547, %v1847
      %v1900 = vadd.f32 %v1548, %v1852
      %v1901 = vadd.f32 %v1549, %v1855
      %v1902 = vadd.f32 %v1550, %v1860
      %v1903 = vadd.f32 %v1551, %v1863
      %v1904 = vadd.f32 %v1552, %v1868
      %v1905 = vadd.f32 %v1553, %v1871
      %s1906 = scalar_lea.vmem %s3, 320
      %v1907 = vld [vmem:[%s1906] sm:$0xf]
      %v1908 = vld [vmem:[%s1906 + $0x4] sm:$0xf]
      %v1909 = vld [vmem:[%s1906 + $0x8] sm:$0xf]
      %v1910 = vld [vmem:[%s1906 + $0xc] sm:$0xf]
      %v1911 = vld [vmem:[%s1906 + $0x10] sm:$0xf]
      %v1912 = vld [vmem:[%s1906 + $0x14] sm:$0xf]
      %v1913 = vld [vmem:[%s1906 + $0x18] sm:$0xf]
      %v1914 = vld [vmem:[%s1906 + $0x1c] sm:$0xf]
      %v1915 = vld [vmem:[%s1906 + $0x20] sm:$0xf]
      %v1916 = vld [vmem:[%s1906 + $0x24] sm:$0xf]
      %v1917 = vld [vmem:[%s1906 + $0x28] sm:$0xf]
      %v1918 = vld [vmem:[%s1906 + $0x2c] sm:$0xf]
      %v1919 = vld [vmem:[%s1906 + $0x30] sm:$0xf]
      %v1920 = vld [vmem:[%s1906 + $0x34] sm:$0xf]
      %v1921 = vld [vmem:[%s1906 + $0x38] sm:$0xf]
      %v1922 = vld [vmem:[%s1906 + $0x3c] sm:$0xf]
      %vm1923 = vcmask 1045504
      %v1924 = vrot.slane %v345, 2
      %v1925 = vrot.slane %v346, 2
      %v1926 = vsel %vm1923, %v1924, %v1925
      %v1927 = vrot.slane %v347, 2
      %v1928 = vsel %vm1923, %v1925, %v1927
      %v1929 = vrot.slane %v348, 2
      %v1930 = vsel %vm1923, %v1927, %v1929
      %v1931 = vrot.slane %v349, 2
      %v1932 = vsel %vm1923, %v1929, %v1931
      %v1933 = vrot.slane %v350, 2
      %v1934 = vsel %vm1923, %v1931, %v1933
      %v1935 = vrot.slane %v351, 2
      %v1936 = vsel %vm1923, %v1933, %v1935
      %v1937 = vrot.slane %v352, 2
      %v1938 = vsel %vm1923, %v1935, %v1937
      %v1939 = vrot.slane %v353, 2
      %v1940 = vsel %vm1923, %v1937, %v1939
      %v1941 = vrot.slane %v354, 2
      %v1942 = vsel %vm1923, %v1939, %v1941
      %v1943 = vrot.slane %v355, 2
      %v1944 = vsel %vm1923, %v1941, %v1943
      %v1945 = vrot.slane %v356, 2
      %v1946 = vsel %vm1923, %v1943, %v1945
      %v1947 = vrot.slane %v357, 2
      %v1948 = vsel %vm1923, %v1945, %v1947
      %v1949 = vrot.slane %v358, 2
      %v1950 = vsel %vm1923, %v1947, %v1949
      %v1951 = vrot.slane %v359, 2
      %v1952 = vsel %vm1923, %v1949, %v1951
      %v1953 = vrot.slane %v1286, 2
      %v1954 = vsel %vm1923, %v1951, %v1953
      %v1955 = vrot.slane %v1287, 2
      %v1956 = vsel %vm1923, %v1953, %v1955
      %v1989 = vunpack.c.l.b16 %v1907
      %v1990 = vunpack.c.l.b16 %v1908
      %v1991 = vunpack.c.l.b16 %v1909
      %v1992 = vunpack.c.l.b16 %v1910
      %v1993 = vunpack.c.l.b16 %v1911
      %v1994 = vunpack.c.l.b16 %v1912
      %v1995 = vunpack.c.l.b16 %v1913
      %v1996 = vunpack.c.l.b16 %v1914
      %v1997 = vunpack.c.l.b16 %v1915
      %v1998 = vunpack.c.l.b16 %v1916
      %v1999 = vunpack.c.l.b16 %v1917
      %v2000 = vunpack.c.l.b16 %v1918
      %v2001 = vunpack.c.l.b16 %v1919
      %v2002 = vunpack.c.l.b16 %v1920
      %v2003 = vunpack.c.l.b16 %v1921
      %v2004 = vunpack.c.l.b16 %v1922
      %v2005 = vpack.c.b16 %v1990, %v1989
      %v2006 = vpack.c.b16 %v1992, %v1991
      %v2007 = vpack.c.b16 %v1994, %v1993
      %v2008 = vpack.c.b16 %v1996, %v1995
      %v2009 = vpack.c.b16 %v1998, %v1997
      %v2010 = vpack.c.b16 %v2000, %v1999
      %v2011 = vpack.c.b16 %v2002, %v2001
      %v2012 = vpack.c.b16 %v2004, %v2003
      %2021 = vmatprep.subr.bf16.mxu0 0
      %2022 = vmatpush1.bf16.msra.mxu0 %v2005
      %2023 = vmatprep.subr.bf16.mxu0 0
      %2024 = vmatpush1.bf16.msra.mxu0 %v2006
      %2025 = vmatprep.subr.bf16.mxu0 0
      %2026 = vmatpush1.bf16.msra.mxu0 %v2007
      %2027 = vmatprep.subr.bf16.mxu0 0
      %2028 = vmatpush1.bf16.msra.mxu0 %v2008
      %2029 = vmatprep.subr.bf16.mxu0 0
      %2030 = vmatpush1.bf16.msra.mxu0 %v2009
      %2031 = vmatprep.subr.bf16.mxu0 0
      %2032 = vmatpush1.bf16.msra.mxu0 %v2010
      %2033 = vmatprep.subr.bf16.mxu0 0
      %2034 = vmatpush1.bf16.msra.mxu0 %v2011
      %2035 = vmatprep.subr.bf16.mxu0 0
      %2036 = vmatpush1.bf16.msra.mxu0 %v2012
      %2037 = vmatprep.subr.bf16.mxu0 0
      %2038 = vmatpush1.bf16.msra.mxu0 0
      %2039 = vmatprep.subr.bf16.mxu0 0
      %2040 = vmatpush1.bf16.msra.mxu0 0
      %2041 = vmatprep.subr.bf16.mxu0 0
      %2042 = vmatpush1.bf16.msra.mxu0 0
      %2043 = vmatprep.subr.bf16.mxu0 0
      %2044 = vmatpush1.bf16.msra.mxu0 0
      %2045 = vmatprep.subr.bf16.mxu0 0
      %2046 = vmatpush1.bf16.msra.mxu0 0
      %2047 = vmatprep.subr.bf16.mxu0 0
      %2048 = vmatpush1.bf16.msra.mxu0 0
      %2049 = vmatprep.subr.bf16.mxu0 0
      %2050 = vmatpush1.bf16.msra.mxu0 0
      %2051 = vmatprep.subr.bf16.mxu0 0
      %2052 = vmatpush1.bf16.msra.mxu0 0
      %2053 = vmatprep.mubr.bf16.mxu0 0
      %2054 = vmatmul.mubr.bf16.gmra.mrb[0].mxu0 %v1926
      %v2055 = vpop.f32.mrb[0].mxu0
      %v2056 = vadd.f32 0.0, %v2055
      %v2057 = vpop.f32.mrb[0].mxu0
      %v2058 = vpop.f32.mrb[0].mxu0
      %v2059 = vadd.f32 0.0, %v2058
      %v2060 = vpop.f32.mrb[0].mxu0
      %2061 = vmatprep.mubr.bf16.mxu0 0
      %2062 = vmatmul.mubr.bf16.gmra.mrb[0].mxu0 %v1928
      %v2063 = vpop.f32.mrb[0].mxu0
      %v2064 = vadd.f32 0.0, %v2063
      %v2065 = vpop.f32.mrb[0].mxu0
      %v2066 = vpop.f32.mrb[0].mxu0
      %v2067 = vadd.f32 0.0, %v2066
      %v2068 = vpop.f32.mrb[0].mxu0
      %2069 = vmatprep.mubr.bf16.mxu0 0
      %2070 = vmatmul.mubr.bf16.gmra.mrb[0].mxu0 %v1930
      %v2071 = vpop.f32.mrb[0].mxu0
      %v2072 = vadd.f32 0.0, %v2071
      %v2073 = vpop.f32.mrb[0].mxu0
      %v2074 = vpop.f32.mrb[0].mxu0
      %v2075 = vadd.f32 0.0, %v2074
      %v2076 = vpop.f32.mrb[0].mxu0
      %2077 = vmatprep.mubr.bf16.mxu0 0
      %2078 = vmatmul.mubr.bf16.gmra.mrb[0].mxu0 %v1932
      %v2079 = vpop.f32.mrb[0].mxu0
      %v2080 = vadd.f32 0.0, %v2079
      %v2081 = vpop.f32.mrb[0].mxu0
      %v2082 = vpop.f32.mrb[0].mxu0
      %v2083 = vadd.f32 0.0, %v2082
      %v2084 = vpop.f32.mrb[0].mxu0
      %2085 = vmatprep.mubr.bf16.mxu0 0
      %2086 = vmatmul.mubr.bf16.gmra.mrb[0].mxu0 %v1934
      %v2087 = vpop.f32.mrb[0].mxu0
      %v2088 = vadd.f32 0.0, %v2087
      %v2089 = vpop.f32.mrb[0].mxu0
      %v2090 = vpop.f32.mrb[0].mxu0
      %v2091 = vadd.f32 0.0, %v2090
      %v2092 = vpop.f32.mrb[0].mxu0
      %2093 = vmatprep.mubr.bf16.mxu0 0
      %2094 = vmatmul.mubr.bf16.gmra.mrb[0].mxu0 %v1936
      %v2095 = vpop.f32.mrb[0].mxu0
      %v2096 = vadd.f32 0.0, %v2095
      %v2097 = vpop.f32.mrb[0].mxu0
      %v2098 = vpop.f32.mrb[0].mxu0
      %v2099 = vadd.f32 0.0, %v2098
      %v2100 = vpop.f32.mrb[0].mxu0
      %2101 = vmatprep.mubr.bf16.mxu0 0
      %2102 = vmatmul.mubr.bf16.gmra.mrb[0].mxu0 %v1938
      %v2103 = vpop.f32.mrb[0].mxu0
      %v2104 = vadd.f32 0.0, %v2103
      %v2105 = vpop.f32.mrb[0].mxu0
      %v2106 = vpop.f32.mrb[0].mxu0
      %v2107 = vadd.f32 0.0, %v2106
      %v2108 = vpop.f32.mrb[0].mxu0
      %2109 = vmatprep.mubr.bf16.mxu0 0
      %2110 = vmatmul.mubr.bf16.gmra.mrb[0].mxu0 %v1940
      %v2111 = vpop.f32.mrb[0].mxu0
      %v2112 = vadd.f32 0.0, %v2111
      %v2113 = vpop.f32.mrb[0].mxu0
      %v2114 = vpop.f32.mrb[0].mxu0
      %v2115 = vadd.f32 0.0, %v2114
      %v2116 = vpop.f32.mrb[0].mxu0
      %2117 = vmatprep.mubr.bf16.mxu0 0
      %2118 = vmatmul.mubr.bf16.gmra.mrb[0].mxu0 %v1942
      %v2119 = vpop.f32.mrb[0].mxu0
      %v2120 = vadd.f32 0.0, %v2119
      %v2121 = vpop.f32.mrb[0].mxu0
      %v2122 = vpop.f32.mrb[0].mxu0
      %v2123 = vadd.f32 0.0, %v2122
      %v2124 = vpop.f32.mrb[0].mxu0
      %2125 = vmatprep.mubr.bf16.mxu0 0
      %2126 = vmatmul.mubr.bf16.gmra.mrb[0].mxu0 %v1944
      %v2127 = vpop.f32.mrb[0].mxu0
      %v2128 = vadd.f32 0.0, %v2127
      %v2129 = vpop.f32.mrb[0].mxu0
      %v2130 = vpop.f32.mrb[0].mxu0
      %v2131 = vadd.f32 0.0, %v2130
      %v2132 = vpop.f32.mrb[0].mxu0
      %2133 = vmatprep.mubr.bf16.mxu0 0
      %2134 = vmatmul.mubr.bf16.gmra.mrb[0].mxu0 %v1946
      %v2135 = vpop.f32.mrb[0].mxu0
      %v2136 = vadd.f32 0.0, %v2135
      %v2137 = vpop.f32.mrb[0].mxu0
      %v2138 = vpop.f32.mrb[0].mxu0
      %v2139 = vadd.f32 0.0, %v2138
      %v2140 = vpop.f32.mrb[0].mxu0
      %2141 = vmatprep.mubr.bf16.mxu0 0
      %2142 = vmatmul.mubr.bf16.gmra.mrb[0].mxu0 %v1948
      %v2143 = vpop.f32.mrb[0].mxu0
      %v2144 = vadd.f32 0.0, %v2143
      %v2145 = vpop.f32.mrb[0].mxu0
      %v2146 = vpop.f32.mrb[0].mxu0
      %v2147 = vadd.f32 0.0, %v2146
      %v2148 = vpop.f32.mrb[0].mxu0
      %2149 = vmatprep.mubr.bf16.mxu0 0
      %2150 = vmatmul.mubr.bf16.gmra.mrb[0].mxu0 %v1950
      %v2151 = vpop.f32.mrb[0].mxu0
      %v2152 = vadd.f32 0.0, %v2151
      %v2153 = vpop.f32.mrb[0].mxu0
      %v2154 = vpop.f32.mrb[0].mxu0
      %v2155 = vadd.f32 0.0, %v2154
      %v2156 = vpop.f32.mrb[0].mxu0
      %2157 = vmatprep.mubr.bf16.mxu0 0
      %2158 = vmatmul.mubr.bf16.gmra.mrb[0].mxu0 %v1952
      %v2159 = vpop.f32.mrb[0].mxu0
      %v2160 = vadd.f32 0.0, %v2159
      %v2161 = vpop.f32.mrb[0].mxu0
      %v2162 = vpop.f32.mrb[0].mxu0
      %v2163 = vadd.f32 0.0, %v2162
      %v2164 = vpop.f32.mrb[0].mxu0
      %2165 = vmatprep.mubr.bf16.mxu0 0
      %2166 = vmatmul.mubr.bf16.gmra.mrb[0].mxu0 %v1954
      %v2167 = vpop.f32.mrb[0].mxu0
      %v2168 = vadd.f32 0.0, %v2167
      %v2169 = vpop.f32.mrb[0].mxu0
      %v2170 = vpop.f32.mrb[0].mxu0
      %v2171 = vadd.f32 0.0, %v2170
      %v2172 = vpop.f32.mrb[0].mxu0
      %2173 = vmatprep.mubr.bf16.mxu0 0
      %2174 = vmatmul.mubr.bf16.gmra.mrb[0].mxu0 %v1956
      %v2175 = vpop.f32.mrb[0].mxu0
      %v2176 = vadd.f32 0.0, %v2175
      %v2177 = vpop.f32.mrb[0].mxu0
      %v2178 = vpop.f32.mrb[0].mxu0
      %v2179 = vadd.f32 0.0, %v2178
      %v2180 = vpop.f32.mrb[0].mxu0
      %2181 = vdwg.mxu0
      %v2182 = vadd.f32 %v1874, %v2056
      %v2183 = vadd.f32 %v1875, %v2059
      %v2184 = vadd.f32 %v1876, %v2064
      %v2185 = vadd.f32 %v1877, %v2067
      %v2186 = vadd.f32 %v1878, %v2072
      %v2187 = vadd.f32 %v1879, %v2075
      %v2188 = vadd.f32 %v1880, %v2080
      %v2189 = vadd.f32 %v1881, %v2083
      %v2190 = vadd.f32 %v1882, %v2088
      %v2191 = vadd.f32 %v1883, %v2091
      %v2192 = vadd.f32 %v1884, %v2096
      %v2193 = vadd.f32 %v1885, %v2099
      %v2194 = vadd.f32 %v1886, %v2104
      %v2195 = vadd.f32 %v1887, %v2107
      %v2196 = vadd.f32 %v1888, %v2112
      %v2197 = vadd.f32 %v1889, %v2115
      %v2198 = vadd.f32 %v1890, %v2120
      %v2199 = vadd.f32 %v1891, %v2123
      %v2200 = vadd.f32 %v1892, %v2128
      %v2201 = vadd.f32 %v1893, %v2131
      %v2202 = vadd.f32 %v1894, %v2136
      %v2203 = vadd.f32 %v1895, %v2139
      %v2204 = vadd.f32 %v1896, %v2144
      %v2205 = vadd.f32 %v1897, %v2147
      %v2206 = vadd.f32 %v1898, %v2152
      %v2207 = vadd.f32 %v1899, %v2155
      %v2208 = vadd.f32 %v1900, %v2160
      %v2209 = vadd.f32 %v1901, %v2163
      %v2210 = vadd.f32 %v1902, %v2168
      %v2211 = vadd.f32 %v1903, %v2171
      %v2212 = vadd.f32 %v1904, %v2176
      %v2213 = vadd.f32 %v1905, %v2179
      %v2214 = vpack.c.bf16 %v342, %v341
      %v2215 = vpack.c.bf16 %v343, %v343
      %s2216 = scalar_lea.vmem %s3, 384
      %v2217 = vld [vmem:[%s2216] sm:$0xf]
      %v2218 = vld [vmem:[%s2216 + $0x4] sm:$0xf]
      %v2219 = vld [vmem:[%s2216 + $0x8] sm:$0xf]
      %v2220 = vld [vmem:[%s2216 + $0xc] sm:$0xf]
      %v2221 = vld [vmem:[%s2216 + $0x10] sm:$0xf]
      %v2222 = vld [vmem:[%s2216 + $0x14] sm:$0xf]
      %v2223 = vld [vmem:[%s2216 + $0x18] sm:$0xf]
      %v2224 = vld [vmem:[%s2216 + $0x1c] sm:$0xf]
      %v2225 = vld [vmem:[%s2216 + $0x20] sm:$0xf]
      %v2226 = vld [vmem:[%s2216 + $0x24] sm:$0xf]
      %v2227 = vld [vmem:[%s2216 + $0x28] sm:$0xf]
      %v2228 = vld [vmem:[%s2216 + $0x2c] sm:$0xf]
      %v2229 = vld [vmem:[%s2216 + $0x30] sm:$0xf]
      %v2230 = vld [vmem:[%s2216 + $0x34] sm:$0xf]
      %v2231 = vld [vmem:[%s2216 + $0x38] sm:$0xf]
      %v2232 = vld [vmem:[%s2216 + $0x3c] sm:$0xf]
      %v2235 = vrot.slane %v2214, 2
      %v2236 = vsel %vm1923, %v1953, %v2235
      %v2237 = vrot.slane %v2215, 2
      %v2238 = vsel %vm1923, %v2235, %v2237
      %v2257 = vunpack.c.l.b16 %v2217
      %v2258 = vunpack.c.l.b16 %v2218
      %v2259 = vunpack.c.l.b16 %v2219
      %v2260 = vunpack.c.l.b16 %v2220
      %v2261 = vunpack.c.l.b16 %v2221
      %v2262 = vunpack.c.l.b16 %v2222
      %v2263 = vunpack.c.l.b16 %v2223
      %v2264 = vunpack.c.l.b16 %v2224
      %v2265 = vunpack.c.l.b16 %v2225
      %v2266 = vunpack.c.l.b16 %v2226
      %v2267 = vunpack.c.l.b16 %v2227
      %v2268 = vunpack.c.l.b16 %v2228
      %v2269 = vunpack.c.l.b16 %v2229
      %v2270 = vunpack.c.l.b16 %v2230
      %v2271 = vunpack.c.l.b16 %v2231
      %v2272 = vunpack.c.l.b16 %v2232
      %v2273 = vpack.c.b16 %v2258, %v2257
      %v2274 = vpack.c.b16 %v2260, %v2259
      %v2275 = vpack.c.b16 %v2262, %v2261
      %v2276 = vpack.c.b16 %v2264, %v2263
      %v2277 = vpack.c.b16 %v2266, %v2265
      %v2278 = vpack.c.b16 %v2268, %v2267
      %v2279 = vpack.c.b16 %v2270, %v2269
      %v2280 = vpack.c.b16 %v2272, %v2271
      %2289 = vmatprep.subr.bf16.mxu0 0
      %2290 = vmatpush1.bf16.msra.mxu0 %v2273
      %2291 = vmatprep.subr.bf16.mxu0 0
      %2292 = vmatpush1.bf16.msra.mxu0 %v2274
      %2293 = vmatprep.subr.bf16.mxu0 0
      %2294 = vmatpush1.bf16.msra.mxu0 %v2275
      %2295 = vmatprep.subr.bf16.mxu0 0
      %2296 = vmatpush1.bf16.msra.mxu0 %v2276
      %2297 = vmatprep.subr.bf16.mxu0 0
      %2298 = vmatpush1.bf16.msra.mxu0 %v2277
      %2299 = vmatprep.subr.bf16.mxu0 0
      %2300 = vmatpush1.bf16.msra.mxu0 %v2278
      %2301 = vmatprep.subr.bf16.mxu0 0
      %2302 = vmatpush1.bf16.msra.mxu0 %v2279
      %2303 = vmatprep.subr.bf16.mxu0 0
      %2304 = vmatpush1.bf16.msra.mxu0 %v2280
      %2305 = vmatprep.subr.bf16.mxu0 0
      %2306 = vmatpush1.bf16.msra.mxu0 0
      %2307 = vmatprep.subr.bf16.mxu0 0
      %2308 = vmatpush1.bf16.msra.mxu0 0
      %2309 = vmatprep.subr.bf16.mxu0 0
      %2310 = vmatpush1.bf16.msra.mxu0 0
      %2311 = vmatprep.subr.bf16.mxu0 0
      %2312 = vmatpush1.bf16.msra.mxu0 0
      %2313 = vmatprep.subr.bf16.mxu0 0
      %2314 = vmatpush1.bf16.msra.mxu0 0
      %2315 = vmatprep.subr.bf16.mxu0 0
      %2316 = vmatpush1.bf16.msra.mxu0 0
      %2317 = vmatprep.subr.bf16.mxu0 0
      %2318 = vmatpush1.bf16.msra.mxu0 0
      %2319 = vmatprep.subr.bf16.mxu0 0
      %2320 = vmatpush1.bf16.msra.mxu0 0
      %2321 = vmatprep.mubr.bf16.mxu0 0
      %2322 = vmatmul.mubr.bf16.gmra.mrb[0].mxu0 %v1928
      %v2323 = vpop.f32.mrb[0].mxu0
      %v2324 = vadd.f32 0.0, %v2323
      %v2325 = vpop.f32.mrb[0].mxu0
      %v2326 = vpop.f32.mrb[0].mxu0
      %v2327 = vadd.f32 0.0, %v2326
      %v2328 = vpop.f32.mrb[0].mxu0
      %2329 = vmatprep.mubr.bf16.mxu0 0
      %2330 = vmatmul.mubr.bf16.gmra.mrb[0].mxu0 %v1930
      %v2331 = vpop.f32.mrb[0].mxu0
      %v2332 = vadd.f32 0.0, %v2331
      %v2333 = vpop.f32.mrb[0].mxu0
      %v2334 = vpop.f32.mrb[0].mxu0
      %v2335 = vadd.f32 0.0, %v2334
      %v2336 = vpop.f32.mrb[0].mxu0
      %2337 = vmatprep.mubr.bf16.mxu0 0
      %2338 = vmatmul.mubr.bf16.gmra.mrb[0].mxu0 %v1932
      %v2339 = vpop.f32.mrb[0].mxu0
      %v2340 = vadd.f32 0.0, %v2339
      %v2341 = vpop.f32.mrb[0].mxu0
      %v2342 = vpop.f32.mrb[0].mxu0
      %v2343 = vadd.f32 0.0, %v2342
      %v2344 = vpop.f32.mrb[0].mxu0
      %2345 = vmatprep.mubr.bf16.mxu0 0
      %2346 = vmatmul.mubr.bf16.gmra.mrb[0].mxu0 %v1934
      %v2347 = vpop.f32.mrb[0].mxu0
      %v2348 = vadd.f32 0.0, %v2347
      %v2349 = vpop.f32.mrb[0].mxu0
      %v2350 = vpop.f32.mrb[0].mxu0
      %v2351 = vadd.f32 0.0, %v2350
      %v2352 = vpop.f32.mrb[0].mxu0
      %2353 = vmatprep.mubr.bf16.mxu0 0
      %2354 = vmatmul.mubr.bf16.gmra.mrb[0].mxu0 %v1936
      %v2355 = vpop.f32.mrb[0].mxu0
      %v2356 = vadd.f32 0.0, %v2355
      %v2357 = vpop.f32.mrb[0].mxu0
      %v2358 = vpop.f32.mrb[0].mxu0
      %v2359 = vadd.f32 0.0, %v2358
      %v2360 = vpop.f32.mrb[0].mxu0
      %2361 = vmatprep.mubr.bf16.mxu0 0
      %2362 = vmatmul.mubr.bf16.gmra.mrb[0].mxu0 %v1938
      %v2363 = vpop.f32.mrb[0].mxu0
      %v2364 = vadd.f32 0.0, %v2363
      %v2365 = vpop.f32.mrb[0].mxu0
      %v2366 = vpop.f32.mrb[0].mxu0
      %v2367 = vadd.f32 0.0, %v2366
      %v2368 = vpop.f32.mrb[0].mxu0
      %2369 = vmatprep.mubr.bf16.mxu0 0
      %2370 = vmatmul.mubr.bf16.gmra.mrb[0].mxu0 %v1940
      %v2371 = vpop.f32.mrb[0].mxu0
      %v2372 = vadd.f32 0.0, %v2371
      %v2373 = vpop.f32.mrb[0].mxu0
      %v2374 = vpop.f32.mrb[0].mxu0
      %v2375 = vadd.f32 0.0, %v2374
      %v2376 = vpop.f32.mrb[0].mxu0
      %2377 = vmatprep.mubr.bf16.mxu0 0
      %2378 = vmatmul.mubr.bf16.gmra.mrb[0].mxu0 %v1942
      %v2379 = vpop.f32.mrb[0].mxu0
      %v2380 = vadd.f32 0.0, %v2379
      %v2381 = vpop.f32.mrb[0].mxu0
      %v2382 = vpop.f32.mrb[0].mxu0
      %v2383 = vadd.f32 0.0, %v2382
      %v2384 = vpop.f32.mrb[0].mxu0
      %2385 = vmatprep.mubr.bf16.mxu0 0
      %2386 = vmatmul.mubr.bf16.gmra.mrb[0].mxu0 %v1944
      %v2387 = vpop.f32.mrb[0].mxu0
      %v2388 = vadd.f32 0.0, %v2387
      %v2389 = vpop.f32.mrb[0].mxu0
      %v2390 = vpop.f32.mrb[0].mxu0
      %v2391 = vadd.f32 0.0, %v2390
      %v2392 = vpop.f32.mrb[0].mxu0
      %2393 = vmatprep.mubr.bf16.mxu0 0
      %2394 = vmatmul.mubr.bf16.gmra.mrb[0].mxu0 %v1946
      %v2395 = vpop.f32.mrb[0].mxu0
      %v2396 = vadd.f32 0.0, %v2395
      %v2397 = vpop.f32.mrb[0].mxu0
      %v2398 = vpop.f32.mrb[0].mxu0
      %v2399 = vadd.f32 0.0, %v2398
      %v2400 = vpop.f32.mrb[0].mxu0
      %2401 = vmatprep.mubr.bf16.mxu0 0
      %2402 = vmatmul.mubr.bf16.gmra.mrb[0].mxu0 %v1948
      %v2403 = vpop.f32.mrb[0].mxu0
      %v2404 = vadd.f32 0.0, %v2403
      %v2405 = vpop.f32.mrb[0].mxu0
      %v2406 = vpop.f32.mrb[0].mxu0
      %v2407 = vadd.f32 0.0, %v2406
      %v2408 = vpop.f32.mrb[0].mxu0
      %2409 = vmatprep.mubr.bf16.mxu0 0
      %2410 = vmatmul.mubr.bf16.gmra.mrb[0].mxu0 %v1950
      %v2411 = vpop.f32.mrb[0].mxu0
      %v2412 = vadd.f32 0.0, %v2411
      %v2413 = vpop.f32.mrb[0].mxu0
      %v2414 = vpop.f32.mrb[0].mxu0
      %v2415 = vadd.f32 0.0, %v2414
      %v2416 = vpop.f32.mrb[0].mxu0
      %2417 = vmatprep.mubr.bf16.mxu0 0
      %2418 = vmatmul.mubr.bf16.gmra.mrb[0].mxu0 %v1952
      %v2419 = vpop.f32.mrb[0].mxu0
      %v2420 = vadd.f32 0.0, %v2419
      %v2421 = vpop.f32.mrb[0].mxu0
      %v2422 = vpop.f32.mrb[0].mxu0
      %v2423 = vadd.f32 0.0, %v2422
      %v2424 = vpop.f32.mrb[0].mxu0
      %2425 = vmatprep.mubr.bf16.mxu0 0
      %2426 = vmatmul.mubr.bf16.gmra.mrb[0].mxu0 %v1954
      %v2427 = vpop.f32.mrb[0].mxu0
      %v2428 = vadd.f32 0.0, %v2427
      %v2429 = vpop.f32.mrb[0].mxu0
      %v2430 = vpop.f32.mrb[0].mxu0
      %v2431 = vadd.f32 0.0, %v2430
      %v2432 = vpop.f32.mrb[0].mxu0
      %2433 = vmatprep.mubr.bf16.mxu0 0
      %2434 = vmatmul.mubr.bf16.gmra.mrb[0].mxu0 %v2236
      %v2435 = vpop.f32.mrb[0].mxu0
      %v2436 = vadd.f32 0.0, %v2435
      %v2437 = vpop.f32.mrb[0].mxu0
      %v2438 = vpop.f32.mrb[0].mxu0
      %v2439 = vadd.f32 0.0, %v2438
      %v2440 = vpop.f32.mrb[0].mxu0
      %2441 = vmatprep.mubr.bf16.mxu0 0
      %2442 = vmatmul.mubr.bf16.gmra.mrb[0].mxu0 %v2238
      %v2443 = vpop.f32.mrb[0].mxu0
      %v2444 = vadd.f32 0.0, %v2443
      %v2445 = vpop.f32.mrb[0].mxu0
      %v2446 = vpop.f32.mrb[0].mxu0
      %v2447 = vadd.f32 0.0, %v2446
      %v2448 = vpop.f32.mrb[0].mxu0
      %2449 = vdwg.mxu0
      %v2450 = vadd.f32 %v2182, %v2324
      %v2451 = vadd.f32 %v2183, %v2327
      %v2452 = vadd.f32 %v2184, %v2332
      %v2453 = vadd.f32 %v2185, %v2335
      %v2454 = vadd.f32 %v2186, %v2340
      %v2455 = vadd.f32 %v2187, %v2343
      %v2456 = vadd.f32 %v2188, %v2348
      %v2457 = vadd.f32 %v2189, %v2351
      %v2458 = vadd.f32 %v2190, %v2356
      %v2459 = vadd.f32 %v2191, %v2359
      %v2460 = vadd.f32 %v2192, %v2364
      %v2461 = vadd.f32 %v2193, %v2367
      %v2462 = vadd.f32 %v2194, %v2372
      %v2463 = vadd.f32 %v2195, %v2375
      %v2464 = vadd.f32 %v2196, %v2380
      %v2465 = vadd.f32 %v2197, %v2383
      %v2466 = vadd.f32 %v2198, %v2388
      %v2467 = vadd.f32 %v2199, %v2391
      %v2468 = vadd.f32 %v2200, %v2396
      %v2469 = vadd.f32 %v2201, %v2399
      %v2470 = vadd.f32 %v2202, %v2404
      %v2471 = vadd.f32 %v2203, %v2407
      %v2472 = vadd.f32 %v2204, %v2412
      %v2473 = vadd.f32 %v2205, %v2415
      %v2474 = vadd.f32 %v2206, %v2420
      %v2475 = vadd.f32 %v2207, %v2423
      %v2476 = vadd.f32 %v2208, %v2428
      %v2477 = vadd.f32 %v2209, %v2431
      %v2478 = vadd.f32 %v2210, %v2436
      %v2479 = vadd.f32 %v2211, %v2439
      %v2480 = vadd.f32 %v2212, %v2444
      %v2481 = vadd.f32 %v2213, %v2447
      %s2482 = scalar_lea.vmem %s3, 448
      %v2483 = vld [vmem:[%s2482] sm:$0xf]
      %v2484 = vld [vmem:[%s2482 + $0x4] sm:$0xf]
      %v2485 = vld [vmem:[%s2482 + $0x8] sm:$0xf]
      %v2486 = vld [vmem:[%s2482 + $0xc] sm:$0xf]
      %v2487 = vld [vmem:[%s2482 + $0x10] sm:$0xf]
      %v2488 = vld [vmem:[%s2482 + $0x14] sm:$0xf]
      %v2489 = vld [vmem:[%s2482 + $0x18] sm:$0xf]
      %v2490 = vld [vmem:[%s2482 + $0x1c] sm:$0xf]
      %v2491 = vld [vmem:[%s2482 + $0x20] sm:$0xf]
      %v2492 = vld [vmem:[%s2482 + $0x24] sm:$0xf]
      %v2493 = vld [vmem:[%s2482 + $0x28] sm:$0xf]
      %v2494 = vld [vmem:[%s2482 + $0x2c] sm:$0xf]
      %v2495 = vld [vmem:[%s2482 + $0x30] sm:$0xf]
      %v2496 = vld [vmem:[%s2482 + $0x34] sm:$0xf]
      %v2497 = vld [vmem:[%s2482 + $0x38] sm:$0xf]
      %v2498 = vld [vmem:[%s2482 + $0x3c] sm:$0xf]
      %vm2499 = vsmask.f32 5376
      %v2500 = vrot.slane %v415, 2
      %v2501 = vrot.slane %v411, 3
      %v2502 = vor.u32 %v2500, %v2501
      %v2503 = vrot.slane %v423, 2
      %v2504 = vrot.slane %v419, 3
      %v2505 = vor.u32 %v2503, %v2504
      %v2506 = vsel %vm2499, %v2502, %v2505
      %v2507 = vrot.slane %v431, 2
      %v2508 = vrot.slane %v427, 3
      %v2509 = vor.u32 %v2507, %v2508
      %v2510 = vsel %vm2499, %v2505, %v2509
      %v2511 = vrot.slane %v439, 2
      %v2512 = vrot.slane %v435, 3
      %v2513 = vor.u32 %v2511, %v2512
      %v2514 = vsel %vm2499, %v2509, %v2513
      %v2515 = vrot.slane %v447, 2
      %v2516 = vrot.slane %v443, 3
      %v2517 = vor.u32 %v2515, %v2516
      %v2518 = vsel %vm2499, %v2513, %v2517
      %v2519 = vrot.slane %v455, 2
      %v2520 = vrot.slane %v451, 3
      %v2521 = vor.u32 %v2519, %v2520
      %v2522 = vsel %vm2499, %v2517, %v2521
      %v2523 = vrot.slane %v463, 2
      %v2524 = vrot.slane %v459, 3
      %v2525 = vor.u32 %v2523, %v2524
      %v2526 = vsel %vm2499, %v2521, %v2525
      %v2527 = vrot.slane %v471, 2
      %v2528 = vrot.slane %v467, 3
      %v2529 = vor.u32 %v2527, %v2528
      %v2530 = vsel %vm2499, %v2525, %v2529
      %v2531 = vrot.slane %v479, 2
      %v2532 = vrot.slane %v475, 3
      %v2533 = vor.u32 %v2531, %v2532
      %v2534 = vsel %vm2499, %v2529, %v2533
      %v2535 = vrot.slane %v487, 2
      %v2536 = vrot.slane %v483, 3
      %v2537 = vor.u32 %v2535, %v2536
      %v2538 = vsel %vm2499, %v2533, %v2537
      %v2539 = vrot.slane %v495, 2
      %v2540 = vrot.slane %v491, 3
      %v2541 = vor.u32 %v2539, %v2540
      %v2542 = vsel %vm2499, %v2537, %v2541
      %v2543 = vrot.slane %v503, 2
      %v2544 = vrot.slane %v499, 3
      %v2545 = vor.u32 %v2543, %v2544
      %v2546 = vsel %vm2499, %v2541, %v2545
      %v2547 = vrot.slane %v511, 2
      %v2548 = vrot.slane %v507, 3
      %v2549 = vor.u32 %v2547, %v2548
      %v2550 = vsel %vm2499, %v2545, %v2549
      %v2551 = vrot.slane %v519, 2
      %v2552 = vrot.slane %v515, 3
      %v2553 = vor.u32 %v2551, %v2552
      %v2554 = vsel %vm2499, %v2549, %v2553
      %v2555 = vrot.slane %v1632, 2
      %v2556 = vrot.slane %v1635, 3
      %v2557 = vor.u32 %v2555, %v2556
      %v2558 = vsel %vm2499, %v2553, %v2557
      %v2560 = vshrl.u32 %v2214, 16
      %v2562 = vrot.slane %v2560, 2
      %v2563 = vshll.u32 %v2214, 16
      %v2565 = vrot.slane %v2563, 3
      %v2566 = vor.u32 %v2562, %v2565
      %v2567 = vsel %vm2499, %v2557, %v2566
      %v2569 = vshrl.u32 %v2215, 16
      %v2571 = vrot.slane %v2569, 2
      %v2572 = vshll.u32 %v2215, 16
      %v2574 = vrot.slane %v2572, 3
      %v2575 = vor.u32 %v2571, %v2574
      %v2576 = vsel %vm2499, %v2566, %v2575
      %v2609 = vunpack.c.l.b16 %v2483
      %v2610 = vunpack.c.l.b16 %v2484
      %v2611 = vunpack.c.l.b16 %v2485
      %v2612 = vunpack.c.l.b16 %v2486
      %v2613 = vunpack.c.l.b16 %v2487
      %v2614 = vunpack.c.l.b16 %v2488
      %v2615 = vunpack.c.l.b16 %v2489
      %v2616 = vunpack.c.l.b16 %v2490
      %v2617 = vunpack.c.l.b16 %v2491
      %v2618 = vunpack.c.l.b16 %v2492
      %v2619 = vunpack.c.l.b16 %v2493
      %v2620 = vunpack.c.l.b16 %v2494
      %v2621 = vunpack.c.l.b16 %v2495
      %v2622 = vunpack.c.l.b16 %v2496
      %v2623 = vunpack.c.l.b16 %v2497
      %v2624 = vunpack.c.l.b16 %v2498
      %v2625 = vpack.c.b16 %v2610, %v2609
      %v2626 = vpack.c.b16 %v2612, %v2611
      %v2627 = vpack.c.b16 %v2614, %v2613
      %v2628 = vpack.c.b16 %v2616, %v2615
      %v2629 = vpack.c.b16 %v2618, %v2617
      %v2630 = vpack.c.b16 %v2620, %v2619
      %v2631 = vpack.c.b16 %v2622, %v2621
      %v2632 = vpack.c.b16 %v2624, %v2623
      %2641 = vmatprep.subr.bf16.mxu0 0
      %2642 = vmatpush1.bf16.msra.mxu0 %v2625
      %2643 = vmatprep.subr.bf16.mxu0 0
      %2644 = vmatpush1.bf16.msra.mxu0 %v2626
      %2645 = vmatprep.subr.bf16.mxu0 0
      %2646 = vmatpush1.bf16.msra.mxu0 %v2627
      %2647 = vmatprep.subr.bf16.mxu0 0
      %2648 = vmatpush1.bf16.msra.mxu0 %v2628
      %2649 = vmatprep.subr.bf16.mxu0 0
      %2650 = vmatpush1.bf16.msra.mxu0 %v2629
      %2651 = vmatprep.subr.bf16.mxu0 0
      %2652 = vmatpush1.bf16.msra.mxu0 %v2630
      %2653 = vmatprep.subr.bf16.mxu0 0
      %2654 = vmatpush1.bf16.msra.mxu0 %v2631
      %2655 = vmatprep.subr.bf16.mxu0 0
      %2656 = vmatpush1.bf16.msra.mxu0 %v2632
      %2657 = vmatprep.subr.bf16.mxu0 0
      %2658 = vmatpush1.bf16.msra.mxu0 0
      %2659 = vmatprep.subr.bf16.mxu0 0
      %2660 = vmatpush1.bf16.msra.mxu0 0
      %2661 = vmatprep.subr.bf16.mxu0 0
      %2662 = vmatpush1.bf16.msra.mxu0 0
      %2663 = vmatprep.subr.bf16.mxu0 0
      %2664 = vmatpush1.bf16.msra.mxu0 0
      %2665 = vmatprep.subr.bf16.mxu0 0
      %2666 = vmatpush1.bf16.msra.mxu0 0
      %2667 = vmatprep.subr.bf16.mxu0 0
      %2668 = vmatpush1.bf16.msra.mxu0 0
      %2669 = vmatprep.subr.bf16.mxu0 0
      %2670 = vmatpush1.bf16.msra.mxu0 0
      %2671 = vmatprep.subr.bf16.mxu0 0
      %2672 = vmatpush1.bf16.msra.mxu0 0
      %2673 = vmatprep.mubr.bf16.mxu0 0
      %2674 = vmatmul.mubr.bf16.gmra.mrb[0].mxu0 %v2506
      %v2675 = vpop.f32.mrb[0].mxu0
      %v2676 = vadd.f32 0.0, %v2675
      %v2677 = vpop.f32.mrb[0].mxu0
      %v2678 = vpop.f32.mrb[0].mxu0
      %v2679 = vadd.f32 0.0, %v2678
      %v2680 = vpop.f32.mrb[0].mxu0
      %2681 = vmatprep.mubr.bf16.mxu0 0
      %2682 = vmatmul.mubr.bf16.gmra.mrb[0].mxu0 %v2510
      %v2683 = vpop.f32.mrb[0].mxu0
      %v2684 = vadd.f32 0.0, %v2683
      %v2685 = vpop.f32.mrb[0].mxu0
      %v2686 = vpop.f32.mrb[0].mxu0
      %v2687 = vadd.f32 0.0, %v2686
      %v2688 = vpop.f32.mrb[0].mxu0
      %2689 = vmatprep.mubr.bf16.mxu0 0
      %2690 = vmatmul.mubr.bf16.gmra.mrb[0].mxu0 %v2514
      %v2691 = vpop.f32.mrb[0].mxu0
      %v2692 = vadd.f32 0.0, %v2691
      %v2693 = vpop.f32.mrb[0].mxu0
      %v2694 = vpop.f32.mrb[0].mxu0
      %v2695 = vadd.f32 0.0, %v2694
      %v2696 = vpop.f32.mrb[0].mxu0
      %2697 = vmatprep.mubr.bf16.mxu0 0
      %2698 = vmatmul.mubr.bf16.gmra.mrb[0].mxu0 %v2518
      %v2699 = vpop.f32.mrb[0].mxu0
      %v2700 = vadd.f32 0.0, %v2699
      %v2701 = vpop.f32.mrb[0].mxu0
      %v2702 = vpop.f32.mrb[0].mxu0
      %v2703 = vadd.f32 0.0, %v2702
      %v2704 = vpop.f32.mrb[0].mxu0
      %2705 = vmatprep.mubr.bf16.mxu0 0
      %2706 = vmatmul.mubr.bf16.gmra.mrb[0].mxu0 %v2522
      %v2707 = vpop.f32.mrb[0].mxu0
      %v2708 = vadd.f32 0.0, %v2707
      %v2709 = vpop.f32.mrb[0].mxu0
      %v2710 = vpop.f32.mrb[0].mxu0
      %v2711 = vadd.f32 0.0, %v2710
      %v2712 = vpop.f32.mrb[0].mxu0
      %2713 = vmatprep.mubr.bf16.mxu0 0
      %2714 = vmatmul.mubr.bf16.gmra.mrb[0].mxu0 %v2526
      %v2715 = vpop.f32.mrb[0].mxu0
      %v2716 = vadd.f32 0.0, %v2715
      %v2717 = vpop.f32.mrb[0].mxu0
      %v2718 = vpop.f32.mrb[0].mxu0
      %v2719 = vadd.f32 0.0, %v2718
      %v2720 = vpop.f32.mrb[0].mxu0
      %2721 = vmatprep.mubr.bf16.mxu0 0
      %2722 = vmatmul.mubr.bf16.gmra.mrb[0].mxu0 %v2530
      %v2723 = vpop.f32.mrb[0].mxu0
      %v2724 = vadd.f32 0.0, %v2723
      %v2725 = vpop.f32.mrb[0].mxu0
      %v2726 = vpop.f32.mrb[0].mxu0
      %v2727 = vadd.f32 0.0, %v2726
      %v2728 = vpop.f32.mrb[0].mxu0
      %2729 = vmatprep.mubr.bf16.mxu0 0
      %2730 = vmatmul.mubr.bf16.gmra.mrb[0].mxu0 %v2534
      %v2731 = vpop.f32.mrb[0].mxu0
      %v2732 = vadd.f32 0.0, %v2731
      %v2733 = vpop.f32.mrb[0].mxu0
      %v2734 = vpop.f32.mrb[0].mxu0
      %v2735 = vadd.f32 0.0, %v2734
      %v2736 = vpop.f32.mrb[0].mxu0
      %2737 = vmatprep.mubr.bf16.mxu0 0
      %2738 = vmatmul.mubr.bf16.gmra.mrb[0].mxu0 %v2538
      %v2739 = vpop.f32.mrb[0].mxu0
      %v2740 = vadd.f32 0.0, %v2739
      %v2741 = vpop.f32.mrb[0].mxu0
      %v2742 = vpop.f32.mrb[0].mxu0
      %v2743 = vadd.f32 0.0, %v2742
      %v2744 = vpop.f32.mrb[0].mxu0
      %2745 = vmatprep.mubr.bf16.mxu0 0
      %2746 = vmatmul.mubr.bf16.gmra.mrb[0].mxu0 %v2542
      %v2747 = vpop.f32.mrb[0].mxu0
      %v2748 = vadd.f32 0.0, %v2747
      %v2749 = vpop.f32.mrb[0].mxu0
      %v2750 = vpop.f32.mrb[0].mxu0
      %v2751 = vadd.f32 0.0, %v2750
      %v2752 = vpop.f32.mrb[0].mxu0
      %2753 = vmatprep.mubr.bf16.mxu0 0
      %2754 = vmatmul.mubr.bf16.gmra.mrb[0].mxu0 %v2546
      %v2755 = vpop.f32.mrb[0].mxu0
      %v2756 = vadd.f32 0.0, %v2755
      %v2757 = vpop.f32.mrb[0].mxu0
      %v2758 = vpop.f32.mrb[0].mxu0
      %v2759 = vadd.f32 0.0, %v2758
      %v2760 = vpop.f32.mrb[0].mxu0
      %2761 = vmatprep.mubr.bf16.mxu0 0
      %2762 = vmatmul.mubr.bf16.gmra.mrb[0].mxu0 %v2550
      %v2763 = vpop.f32.mrb[0].mxu0
      %v2764 = vadd.f32 0.0, %v2763
      %v2765 = vpop.f32.mrb[0].mxu0
      %v2766 = vpop.f32.mrb[0].mxu0
      %v2767 = vadd.f32 0.0, %v2766
      %v2768 = vpop.f32.mrb[0].mxu0
      %2769 = vmatprep.mubr.bf16.mxu0 0
      %2770 = vmatmul.mubr.bf16.gmra.mrb[0].mxu0 %v2554
      %v2771 = vpop.f32.mrb[0].mxu0
      %v2772 = vadd.f32 0.0, %v2771
      %v2773 = vpop.f32.mrb[0].mxu0
      %v2774 = vpop.f32.mrb[0].mxu0
      %v2775 = vadd.f32 0.0, %v2774
      %v2776 = vpop.f32.mrb[0].mxu0
      %2777 = vmatprep.mubr.bf16.mxu0 0
      %2778 = vmatmul.mubr.bf16.gmra.mrb[0].mxu0 %v2558
      %v2779 = vpop.f32.mrb[0].mxu0
      %v2780 = vadd.f32 0.0, %v2779
      %v2781 = vpop.f32.mrb[0].mxu0
      %v2782 = vpop.f32.mrb[0].mxu0
      %v2783 = vadd.f32 0.0, %v2782
      %v2784 = vpop.f32.mrb[0].mxu0
      %2785 = vmatprep.mubr.bf16.mxu0 0
      %2786 = vmatmul.mubr.bf16.gmra.mrb[0].mxu0 %v2567
      %v2787 = vpop.f32.mrb[0].mxu0
      %v2788 = vadd.f32 0.0, %v2787
      %v2789 = vpop.f32.mrb[0].mxu0
      %v2790 = vpop.f32.mrb[0].mxu0
      %v2791 = vadd.f32 0.0, %v2790
      %v2792 = vpop.f32.mrb[0].mxu0
      %2793 = vmatprep.mubr.bf16.mxu0 0
      %2794 = vmatmul.mubr.bf16.gmra.mrb[0].mxu0 %v2576
      %v2795 = vpop.f32.mrb[0].mxu0
      %v2796 = vadd.f32 0.0, %v2795
      %v2797 = vpop.f32.mrb[0].mxu0
      %v2798 = vpop.f32.mrb[0].mxu0
      %v2799 = vadd.f32 0.0, %v2798
      %v2800 = vpop.f32.mrb[0].mxu0
      %2801 = vdwg.mxu0
      %v2802 = vadd.f32 %v2450, %v2676
      %v2803 = vadd.f32 %v2451, %v2679
      %v2804 = vadd.f32 %v2452, %v2684
      %v2805 = vadd.f32 %v2453, %v2687
      %v2806 = vadd.f32 %v2454, %v2692
      %v2807 = vadd.f32 %v2455, %v2695
      %v2808 = vadd.f32 %v2456, %v2700
      %v2809 = vadd.f32 %v2457, %v2703
      %v2810 = vadd.f32 %v2458, %v2708
      %v2811 = vadd.f32 %v2459, %v2711
      %v2812 = vadd.f32 %v2460, %v2716
      %v2813 = vadd.f32 %v2461, %v2719
      %v2814 = vadd.f32 %v2462, %v2724
      %v2815 = vadd.f32 %v2463, %v2727
      %v2816 = vadd.f32 %v2464, %v2732
      %v2817 = vadd.f32 %v2465, %v2735
      %v2818 = vadd.f32 %v2466, %v2740
      %v2819 = vadd.f32 %v2467, %v2743
      %v2820 = vadd.f32 %v2468, %v2748
      %v2821 = vadd.f32 %v2469, %v2751
      %v2822 = vadd.f32 %v2470, %v2756
      %v2823 = vadd.f32 %v2471, %v2759
      %v2824 = vadd.f32 %v2472, %v2764
      %v2825 = vadd.f32 %v2473, %v2767
      %v2826 = vadd.f32 %v2474, %v2772
      %v2827 = vadd.f32 %v2475, %v2775
      %v2828 = vadd.f32 %v2476, %v2780
      %v2829 = vadd.f32 %v2477, %v2783
      %v2830 = vadd.f32 %v2478, %v2788
      %v2831 = vadd.f32 %v2479, %v2791
      %v2832 = vadd.f32 %v2480, %v2796
      %v2833 = vadd.f32 %v2481, %v2799
      %s2834 = scalar_lea.vmem %s3, 512
      %v2835 = vld [vmem:[%s2834] sm:$0xf]
      %v2836 = vld [vmem:[%s2834 + $0x4] sm:$0xf]
      %v2837 = vld [vmem:[%s2834 + $0x8] sm:$0xf]
      %v2838 = vld [vmem:[%s2834 + $0xc] sm:$0xf]
      %v2839 = vld [vmem:[%s2834 + $0x10] sm:$0xf]
      %v2840 = vld [vmem:[%s2834 + $0x14] sm:$0xf]
      %v2841 = vld [vmem:[%s2834 + $0x18] sm:$0xf]
      %v2842 = vld [vmem:[%s2834 + $0x1c] sm:$0xf]
      %v2843 = vld [vmem:[%s2834 + $0x20] sm:$0xf]
      %v2844 = vld [vmem:[%s2834 + $0x24] sm:$0xf]
      %v2845 = vld [vmem:[%s2834 + $0x28] sm:$0xf]
      %v2846 = vld [vmem:[%s2834 + $0x2c] sm:$0xf]
      %v2847 = vld [vmem:[%s2834 + $0x30] sm:$0xf]
      %v2848 = vld [vmem:[%s2834 + $0x34] sm:$0xf]
      %v2849 = vld [vmem:[%s2834 + $0x38] sm:$0xf]
      %v2850 = vld [vmem:[%s2834 + $0x3c] sm:$0xf]
      %vm2851 = vcmask 1044480
      %v2852 = vrot.slane %v346, 3
      %v2853 = vrot.slane %v347, 3
      %v2854 = vsel %vm2851, %v2852, %v2853
      %v2855 = vrot.slane %v348, 3
      %v2856 = vsel %vm2851, %v2853, %v2855
      %v2857 = vrot.slane %v349, 3
      %v2858 = vsel %vm2851, %v2855, %v2857
      %v2859 = vrot.slane %v350, 3
      %v2860 = vsel %vm2851, %v2857, %v2859
      %v2861 = vrot.slane %v351, 3
      %v2862 = vsel %vm2851, %v2859, %v2861
      %v2863 = vrot.slane %v352, 3
      %v2864 = vsel %vm2851, %v2861, %v2863
      %v2865 = vrot.slane %v353, 3
      %v2866 = vsel %vm2851, %v2863, %v2865
      %v2867 = vrot.slane %v354, 3
      %v2868 = vsel %vm2851, %v2865, %v2867
      %v2869 = vrot.slane %v355, 3
      %v2870 = vsel %vm2851, %v2867, %v2869
      %v2871 = vrot.slane %v356, 3
      %v2872 = vsel %vm2851, %v2869, %v2871
      %v2873 = vrot.slane %v357, 3
      %v2874 = vsel %vm2851, %v2871, %v2873
      %v2875 = vrot.slane %v358, 3
      %v2876 = vsel %vm2851, %v2873, %v2875
      %v2877 = vrot.slane %v359, 3
      %v2878 = vsel %vm2851, %v2875, %v2877
      %v2879 = vrot.slane %v1286, 3
      %v2880 = vsel %vm2851, %v2877, %v2879
      %v2881 = vrot.slane %v2214, 3
      %v2882 = vsel %vm2851, %v2879, %v2881
      %v2883 = vrot.slane %v2215, 3
      %v2884 = vsel %vm2851, %v2881, %v2883
      %v2917 = vunpack.c.l.b16 %v2835
      %v2918 = vunpack.c.l.b16 %v2836
      %v2919 = vunpack.c.l.b16 %v2837
      %v2920 = vunpack.c.l.b16 %v2838
      %v2921 = vunpack.c.l.b16 %v2839
      %v2922 = vunpack.c.l.b16 %v2840
      %v2923 = vunpack.c.l.b16 %v2841
      %v2924 = vunpack.c.l.b16 %v2842
      %v2925 = vunpack.c.l.b16 %v2843
      %v2926 = vunpack.c.l.b16 %v2844
      %v2927 = vunpack.c.l.b16 %v2845
      %v2928 = vunpack.c.l.b16 %v2846
      %v2929 = vunpack.c.l.b16 %v2847
      %v2930 = vunpack.c.l.b16 %v2848
      %v2931 = vunpack.c.l.b16 %v2849
      %v2932 = vunpack.c.l.b16 %v2850
      %v2933 = vpack.c.b16 %v2918, %v2917
      %v2934 = vpack.c.b16 %v2920, %v2919
      %v2935 = vpack.c.b16 %v2922, %v2921
      %v2936 = vpack.c.b16 %v2924, %v2923
      %v2937 = vpack.c.b16 %v2926, %v2925
      %v2938 = vpack.c.b16 %v2928, %v2927
      %v2939 = vpack.c.b16 %v2930, %v2929
      %v2940 = vpack.c.b16 %v2932, %v2931
      %2949 = vmatprep.subr.bf16.mxu0 0
      %2950 = vmatpush1.bf16.msra.mxu0 %v2933
      %2951 = vmatprep.subr.bf16.mxu0 0
      %2952 = vmatpush1.bf16.msra.mxu0 %v2934
      %2953 = vmatprep.subr.bf16.mxu0 0
      %2954 = vmatpush1.bf16.msra.mxu0 %v2935
      %2955 = vmatprep.subr.bf16.mxu0 0
      %2956 = vmatpush1.bf16.msra.mxu0 %v2936
      %2957 = vmatprep.subr.bf16.mxu0 0
      %2958 = vmatpush1.bf16.msra.mxu0 %v2937
      %2959 = vmatprep.subr.bf16.mxu0 0
      %2960 = vmatpush1.bf16.msra.mxu0 %v2938
      %2961 = vmatprep.subr.bf16.mxu0 0
      %2962 = vmatpush1.bf16.msra.mxu0 %v2939
      %2963 = vmatprep.subr.bf16.mxu0 0
      %2964 = vmatpush1.bf16.msra.mxu0 %v2940
      %2965 = vmatprep.subr.bf16.mxu0 0
      %2966 = vmatpush1.bf16.msra.mxu0 0
      %2967 = vmatprep.subr.bf16.mxu0 0
      %2968 = vmatpush1.bf16.msra.mxu0 0
      %2969 = vmatprep.subr.bf16.mxu0 0
      %2970 = vmatpush1.bf16.msra.mxu0 0
      %2971 = vmatprep.subr.bf16.mxu0 0
      %2972 = vmatpush1.bf16.msra.mxu0 0
      %2973 = vmatprep.subr.bf16.mxu0 0
      %2974 = vmatpush1.bf16.msra.mxu0 0
      %2975 = vmatprep.subr.bf16.mxu0 0
      %2976 = vmatpush1.bf16.msra.mxu0 0
      %2977 = vmatprep.subr.bf16.mxu0 0
      %2978 = vmatpush1.bf16.msra.mxu0 0
      %2979 = vmatprep.subr.bf16.mxu0 0
      %2980 = vmatpush1.bf16.msra.mxu0 0
      %2981 = vmatprep.mubr.bf16.mxu0 0
      %2982 = vmatmul.mubr.bf16.gmra.mrb[0].mxu0 %v2854
      %v2983 = vpop.f32.mrb[0].mxu0
      %v2984 = vadd.f32 0.0, %v2983
      %v2985 = vpop.f32.mrb[0].mxu0
      %v2986 = vpop.f32.mrb[0].mxu0
      %v2987 = vadd.f32 0.0, %v2986
      %v2988 = vpop.f32.mrb[0].mxu0
      %2989 = vmatprep.mubr.bf16.mxu0 0
      %2990 = vmatmul.mubr.bf16.gmra.mrb[0].mxu0 %v2856
      %v2991 = vpop.f32.mrb[0].mxu0
      %v2992 = vadd.f32 0.0, %v2991
      %v2993 = vpop.f32.mrb[0].mxu0
      %v2994 = vpop.f32.mrb[0].mxu0
      %v2995 = vadd.f32 0.0, %v2994
      %v2996 = vpop.f32.mrb[0].mxu0
      %2997 = vmatprep.mubr.bf16.mxu0 0
      %2998 = vmatmul.mubr.bf16.gmra.mrb[0].mxu0 %v2858
      %v2999 = vpop.f32.mrb[0].mxu0
      %v3000 = vadd.f32 0.0, %v2999
      %v3001 = vpop.f32.mrb[0].mxu0
      %v3002 = vpop.f32.mrb[0].mxu0
      %v3003 = vadd.f32 0.0, %v3002
      %v3004 = vpop.f32.mrb[0].mxu0
      %3005 = vmatprep.mubr.bf16.mxu0 0
      %3006 = vmatmul.mubr.bf16.gmra.mrb[0].mxu0 %v2860
      %v3007 = vpop.f32.mrb[0].mxu0
      %v3008 = vadd.f32 0.0, %v3007
      %v3009 = vpop.f32.mrb[0].mxu0
      %v3010 = vpop.f32.mrb[0].mxu0
      %v3011 = vadd.f32 0.0, %v3010
      %v3012 = vpop.f32.mrb[0].mxu0
      %3013 = vmatprep.mubr.bf16.mxu0 0
      %3014 = vmatmul.mubr.bf16.gmra.mrb[0].mxu0 %v2862
      %v3015 = vpop.f32.mrb[0].mxu0
      %v3016 = vadd.f32 0.0, %v3015
      %v3017 = vpop.f32.mrb[0].mxu0
      %v3018 = vpop.f32.mrb[0].mxu0
      %v3019 = vadd.f32 0.0, %v3018
      %v3020 = vpop.f32.mrb[0].mxu0
      %3021 = vmatprep.mubr.bf16.mxu0 0
      %3022 = vmatmul.mubr.bf16.gmra.mrb[0].mxu0 %v2864
      %v3023 = vpop.f32.mrb[0].mxu0
      %v3024 = vadd.f32 0.0, %v3023
      %v3025 = vpop.f32.mrb[0].mxu0
      %v3026 = vpop.f32.mrb[0].mxu0
      %v3027 = vadd.f32 0.0, %v3026
      %v3028 = vpop.f32.mrb[0].mxu0
      %3029 = vmatprep.mubr.bf16.mxu0 0
      %3030 = vmatmul.mubr.bf16.gmra.mrb[0].mxu0 %v2866
      %v3031 = vpop.f32.mrb[0].mxu0
      %v3032 = vadd.f32 0.0, %v3031
      %v3033 = vpop.f32.mrb[0].mxu0
      %v3034 = vpop.f32.mrb[0].mxu0
      %v3035 = vadd.f32 0.0, %v3034
      %v3036 = vpop.f32.mrb[0].mxu0
      %3037 = vmatprep.mubr.bf16.mxu0 0
      %3038 = vmatmul.mubr.bf16.gmra.mrb[0].mxu0 %v2868
      %v3039 = vpop.f32.mrb[0].mxu0
      %v3040 = vadd.f32 0.0, %v3039
      %v3041 = vpop.f32.mrb[0].mxu0
      %v3042 = vpop.f32.mrb[0].mxu0
      %v3043 = vadd.f32 0.0, %v3042
      %v3044 = vpop.f32.mrb[0].mxu0
      %3045 = vmatprep.mubr.bf16.mxu0 0
      %3046 = vmatmul.mubr.bf16.gmra.mrb[0].mxu0 %v2870
      %v3047 = vpop.f32.mrb[0].mxu0
      %v3048 = vadd.f32 0.0, %v3047
      %v3049 = vpop.f32.mrb[0].mxu0
      %v3050 = vpop.f32.mrb[0].mxu0
      %v3051 = vadd.f32 0.0, %v3050
      %v3052 = vpop.f32.mrb[0].mxu0
      %3053 = vmatprep.mubr.bf16.mxu0 0
      %3054 = vmatmul.mubr.bf16.gmra.mrb[0].mxu0 %v2872
      %v3055 = vpop.f32.mrb[0].mxu0
      %v3056 = vadd.f32 0.0, %v3055
      %v3057 = vpop.f32.mrb[0].mxu0
      %v3058 = vpop.f32.mrb[0].mxu0
      %v3059 = vadd.f32 0.0, %v3058
      %v3060 = vpop.f32.mrb[0].mxu0
      %3061 = vmatprep.mubr.bf16.mxu0 0
      %3062 = vmatmul.mubr.bf16.gmra.mrb[0].mxu0 %v2874
      %v3063 = vpop.f32.mrb[0].mxu0
      %v3064 = vadd.f32 0.0, %v3063
      %v3065 = vpop.f32.mrb[0].mxu0
      %v3066 = vpop.f32.mrb[0].mxu0
      %v3067 = vadd.f32 0.0, %v3066
      %v3068 = vpop.f32.mrb[0].mxu0
      %3069 = vmatprep.mubr.bf16.mxu0 0
      %3070 = vmatmul.mubr.bf16.gmra.mrb[0].mxu0 %v2876
      %v3071 = vpop.f32.mrb[0].mxu0
      %v3072 = vadd.f32 0.0, %v3071
      %v3073 = vpop.f32.mrb[0].mxu0
      %v3074 = vpop.f32.mrb[0].mxu0
      %v3075 = vadd.f32 0.0, %v3074
      %v3076 = vpop.f32.mrb[0].mxu0
      %3077 = vmatprep.mubr.bf16.mxu0 0
      %3078 = vmatmul.mubr.bf16.gmra.mrb[0].mxu0 %v2878
      %v3079 = vpop.f32.mrb[0].mxu0
      %v3080 = vadd.f32 0.0, %v3079
      %v3081 = vpop.f32.mrb[0].mxu0
      %v3082 = vpop.f32.mrb[0].mxu0
      %v3083 = vadd.f32 0.0, %v3082
      %v3084 = vpop.f32.mrb[0].mxu0
      %3085 = vmatprep.mubr.bf16.mxu0 0
      %3086 = vmatmul.mubr.bf16.gmra.mrb[0].mxu0 %v2880
      %v3087 = vpop.f32.mrb[0].mxu0
      %v3088 = vadd.f32 0.0, %v3087
      %v3089 = vpop.f32.mrb[0].mxu0
      %v3090 = vpop.f32.mrb[0].mxu0
      %v3091 = vadd.f32 0.0, %v3090
      %v3092 = vpop.f32.mrb[0].mxu0
      %3093 = vmatprep.mubr.bf16.mxu0 0
      %3094 = vmatmul.mubr.bf16.gmra.mrb[0].mxu0 %v2882
      %v3095 = vpop.f32.mrb[0].mxu0
      %v3096 = vadd.f32 0.0, %v3095
      %v3097 = vpop.f32.mrb[0].mxu0
      %v3098 = vpop.f32.mrb[0].mxu0
      %v3099 = vadd.f32 0.0, %v3098
      %v3100 = vpop.f32.mrb[0].mxu0
      %3101 = vmatprep.mubr.bf16.mxu0 0
      %3102 = vmatmul.mubr.bf16.gmra.mrb[0].mxu0 %v2884
      %v3103 = vpop.f32.mrb[0].mxu0
      %v3104 = vadd.f32 0.0, %v3103
      %v3105 = vpop.f32.mrb[0].mxu0
      %v3106 = vpop.f32.mrb[0].mxu0
      %v3107 = vadd.f32 0.0, %v3106
      %v3108 = vpop.f32.mrb[0].mxu0
      %3109 = vdwg.mxu0
      %v3110 = vadd.f32 %v2802, %v2984
      %v3111 = vadd.f32 %v2803, %v2987
      %v3112 = vadd.f32 %v2804, %v2992
      %v3113 = vadd.f32 %v2805, %v2995
      %v3114 = vadd.f32 %v2806, %v3000
      %v3115 = vadd.f32 %v2807, %v3003
      %v3116 = vadd.f32 %v2808, %v3008
      %v3117 = vadd.f32 %v2809, %v3011
      %v3118 = vadd.f32 %v2810, %v3016
      %v3119 = vadd.f32 %v2811, %v3019
      %v3120 = vadd.f32 %v2812, %v3024
      %v3121 = vadd.f32 %v2813, %v3027
      %v3122 = vadd.f32 %v2814, %v3032
      %v3123 = vadd.f32 %v2815, %v3035
      %v3124 = vadd.f32 %v2816, %v3040
      %v3125 = vadd.f32 %v2817, %v3043
      %v3126 = vadd.f32 %v2818, %v3048
      %v3127 = vadd.f32 %v2819, %v3051
      %v3128 = vadd.f32 %v2820, %v3056
      %v3129 = vadd.f32 %v2821, %v3059
      %v3130 = vadd.f32 %v2822, %v3064
      %v3131 = vadd.f32 %v2823, %v3067
      %v3132 = vadd.f32 %v2824, %v3072
      %v3133 = vadd.f32 %v2825, %v3075
      %v3134 = vadd.f32 %v2826, %v3080
      %v3135 = vadd.f32 %v2827, %v3083
      %v3136 = vadd.f32 %v2828, %v3088
      %v3137 = vadd.f32 %v2829, %v3091
      %v3138 = vadd.f32 %v2830, %v3096
      %v3139 = vadd.f32 %v2831, %v3099
      %v3140 = vadd.f32 %v2832, %v3104
      %v3141 = vadd.f32 %v2833, %v3107
      %3142 = vst [vmem:[%s177] sm:$0xff] %v3110
      %3143 = vst [vmem:[%s177 + $0x8] sm:$0xff] %v3111
      %3144 = vst [vmem:[%s177 + $0x10] sm:$0xff] %v3112
      %3145 = vst [vmem:[%s177 + $0x18] sm:$0xff] %v3113
      %3146 = vst [vmem:[%s177 + $0x20] sm:$0xff] %v3114
      %3147 = vst [vmem:[%s177 + $0x28] sm:$0xff] %v3115
      %3148 = vst [vmem:[%s177 + $0x30] sm:$0xff] %v3116
      %3149 = vst [vmem:[%s177 + $0x38] sm:$0xff] %v3117
      %3150 = vst [vmem:[%s177 + $0x40] sm:$0xff] %v3118
      %3151 = vst [vmem:[%s177 + $0x48] sm:$0xff] %v3119
      %3152 = vst [vmem:[%s177 + $0x50] sm:$0xff] %v3120
      %3153 = vst [vmem:[%s177 + $0x58] sm:$0xff] %v3121
      %3154 = vst [vmem:[%s177 + $0x60] sm:$0xff] %v3122
      %3155 = vst [vmem:[%s177 + $0x68] sm:$0xff] %v3123
      %3156 = vst [vmem:[%s177 + $0x70] sm:$0xff] %v3124
      %3157 = vst [vmem:[%s177 + $0x78] sm:$0xff] %v3125
      %3158 = vst [vmem:[%s177 + $0x80] sm:$0xff] %v3126
      %3159 = vst [vmem:[%s177 + $0x88] sm:$0xff] %v3127
      %3160 = vst [vmem:[%s177 + $0x90] sm:$0xff] %v3128
      %3161 = vst [vmem:[%s177 + $0x98] sm:$0xff] %v3129
      %3162 = vst [vmem:[%s177 + $0xa0] sm:$0xff] %v3130
      %3163 = vst [vmem:[%s177 + $0xa8] sm:$0xff] %v3131
      %3164 = vst [vmem:[%s177 + $0xb0] sm:$0xff] %v3132
      %3165 = vst [vmem:[%s177 + $0xb8] sm:$0xff] %v3133
      %3166 = vst [vmem:[%s177 + $0xc0] sm:$0xff] %v3134
      %3167 = vst [vmem:[%s177 + $0xc8] sm:$0xff] %v3135
      %3168 = vst [vmem:[%s177 + $0xd0] sm:$0xff] %v3136
      %3169 = vst [vmem:[%s177 + $0xd8] sm:$0xff] %v3137
      %3170 = vst [vmem:[%s177 + $0xe0] sm:$0xff] %v3138
      %3171 = vst [vmem:[%s177 + $0xe8] sm:$0xff] %v3139
      %3172 = vst [vmem:[%s177 + $0xf0] sm:$0xff] %v3140
      %3173 = vst [vmem:[%s177 + $0xf8] sm:$0xff] %v3141
      %s3174 = smul.u32 32, %s15
      %p3175 = scmp.lt.s32.totalorder %s3174, 95
      %s3176 = scalar_select %p3175, %s3174, 95
      %s3177 = smul.addr %s3176, 8
      %s3178 = scalar_lea.vmem %s4, %s3177
      // Predicated region
      $region37: #{run.4} parent=35 // pred_check
        %p3179 = pneg %p117
      $region38: #{run.4} parent=35 // pred_check_branch
        %3181 = sbr.rel (%p3179) target = $region40
      $region39: #{run.4} parent=35 // pred_region
        %s3182 = smul.u32 32, %s15
      $region40: #{run.4} parent=35 // pred_fallthru
        _
    $region36: #{run.4} parent=5 // pred_fallthru
      _
    %p3183 = scmp.le.s32.totalorder 2, %s10
    // Predicated region
    $region41: #{run.4} parent=5 // pred_check
      %p3184 = pneg %p3183
    $region42: #{run.4} parent=5 // pred_check_branch
      %3186 = sbr.rel (%p3184) target = $region44
    $region43: #{run.4} parent=5 // pred_region
      %s3187 = ssub.s32 %s10, 2
      // Predicated region
      $region45: #{run.4} parent=43 // pred_check
        %p3188 = pneg %p123
      $region46: #{run.4} parent=43 // pred_check_branch
        %3190 = sbr.rel (%p3188) target = $region48
      $region47: #{run.4} parent=43 // pred_region
        %s3191 = smul.u32 32, %s16
        %p3192 = scmp.lt.s32.totalorder %s3191, 95
        %s3193 = scalar_select %p3192, %s3191, 95
        %s3194 = smul.addr %s3193, 8
        %s3195 = scalar_lea.vmem %s4, %s3194
      $region48: #{run.4} parent=43 // pred_fallthru
        _
    $region44: #{run.4} parent=5 // pred_fallthru
      _
  $region6: #{run.4} parent=0 // loop_footer
    %s14 = sadd.s32 1, %s10
  $region7: #{run.4} parent=0 // loop_footer_branch
    %9 = sbr.rel target = $region3
  $region8: #{run.4} parent=0 // loop_exit
    _

// kernel: run.7
$region0: #{run.7}
  #allocation0 [shape = 'u32[]', space=smem, size = 0x4, offset = 0x4, fixed_abs, tag = 'smem constant byte address 0x4 - core index']
  #allocation1 [shape = 'u32[144,128]{1,0:T(1,128)}', space=vmem, size = 0x12000, scoped, tag = 'internal scratch']
  %s0 = inlined_call_operand.vmem [shape: f32[222,128], index: 0, kind: input, shape index: {}]
  %s1 = inlined_call_operand.vmem [shape: f32[1,128], index: 1, kind: input, shape index: {}]
  %s2 = inlined_call_operand.vmem [shape: f32[1,128], index: 2, kind: input, shape index: {}]
  %s3 = inlined_call_operand.vmem [shape: bf16[9,128,128], index: 3, kind: input, shape index: {}]
  %s4 = inlined_call_operand.vmem [shape: f32[200,128], index: 4, kind: input, shape index: {}]
  %s5 = inlined_call_operand.vmem [shape: f32[200,128], index: 5, kind: output, shape index: {}]
  %s6 = sld [smem:[#allocation0]]
  $region30: #{run.7} parent=0
    _
  %s8 = ssub.s32 1, %s6
  %s9 = scalar_select 0, %s8, %s6
  // Predicated region
  $region2: #{run.7} parent=0 // pred_check
    _
  $region3: #{run.7} parent=0 // pred_check_branch
    %11 = sbr.rel (0) target = $region5
  $region4: #{run.7} parent=0 // pred_region
    _
  $region5: #{run.7} parent=0 // pred_fallthru
    _
  // Predicated region
  $region6: #{run.7} parent=0 // pred_check
    _
  $region7: #{run.7} parent=0 // pred_check_branch
    %13 = sbr.rel (0) target = $region9
  $region8: #{run.7} parent=0 // pred_region
    _
  $region9: #{run.7} parent=0 // pred_fallthru
    _
  // Predicated region
  $region10: #{run.7} parent=0 // pred_check
    _
  $region11: #{run.7} parent=0 // pred_check_branch
    %15 = sbr.rel (0) target = $region13
  $region12: #{run.7} parent=0 // pred_region
    _
  $region13: #{run.7} parent=0 // pred_fallthru
    _
  // Predicated region
  $region14: #{run.7} parent=0 // pred_check
    _
  $region15: #{run.7} parent=0 // pred_check_branch
    %17 = sbr.rel (0) target = $region17
  $region16: #{run.7} parent=0 // pred_region
    _
  $region17: #{run.7} parent=0 // pred_fallthru
    _
  // Predicated region
  $region18: #{run.7} parent=0 // pred_check
    _
  $region19: #{run.7} parent=0 // pred_check_branch
    %19 = sbr.rel (0) target = $region21
  $region20: #{run.7} parent=0 // pred_region
    _
  $region21: #{run.7} parent=0 // pred_fallthru
    _
  %s21 = smul.u32 0, 200
  %s22 = scalar_lea.vmem %s0, %s21
  %v23 = vld [vmem:[%s22] sm:$0xff]
  %v24 = vld [vmem:[%s22 + $0x8] sm:$0xff]
  %v25 = vld [vmem:[%s22 + $0x10] sm:$0xff]
  %v26 = vld [vmem:[%s22 + $0x18] sm:$0xff]
  %v27 = vld [vmem:[%s22 + $0x20] sm:$0xff]
  %v28 = vld [vmem:[%s22 + $0x28] sm:$0xff]
  %v29 = vld [vmem:[%s22 + $0x30] sm:$0xff]
  %v30 = vld [vmem:[%s22 + $0x38] sm:$0xff]
  %v31 = vld [vmem:[%s22 + $0x40] sm:$0xff]
  %v32 = vld [vmem:[%s22 + $0x48] sm:$0xff]
  %v33 = vld [vmem:[%s22 + $0x50] sm:$0xff]
  %v34 = vld [vmem:[%s22 + $0x58] sm:$0xff]
  %v35 = vld [vmem:[%s22 + $0x60] sm:$0xff]
  %v36 = vld [vmem:[%s22 + $0x68] sm:$0xff]
  %v37 = vld [vmem:[%s22 + $0x70] sm:$0xff]
  %v38 = vld [vmem:[%s22 + $0x78] sm:$0xff]
  %v39 = vld [vmem:[%s22 + $0x80] sm:$0xff]
  %v40 = vld [vmem:[%s22 + $0x88] sm:$0xff]
  %v41 = vld [vmem:[%s22 + $0x90] sm:$0xff]
  %v42 = vld [vmem:[%s22 + $0x98] sm:$0xff]
  %v43 = vld [vmem:[%s22 + $0xa0] sm:$0xff]
  %v44 = vld [vmem:[%s22 + $0xa8] sm:$0xff]
  %v45 = vld [vmem:[%s22 + $0xb0] sm:$0xff]
  %v46 = vld [vmem:[%s22 + $0xb8] sm:$0xff]
  %v47 = vld [vmem:[%s22 + $0xc0] sm:$0xff]
  %v48 = vld [vmem:[%s22 + $0xc8] sm:$0xff]
  %v49 = vld [vmem:[%s22 + $0xd0] sm:$0xff]
  %v50 = vld [vmem:[%s22 + $0xd8] sm:$0x3f]
  %v51 = vld [vmem:[%s1] sm:$0x1]
  %v53 = vlaneseq
  %v54 = vshrl.u32 %v53, 7
  %v55 = vsub.s32 0, %v54
  %v56 = vrot.slane %v51, %v55
  %v58 = vmul.f32 %v23, %v56
  %v59 = vmul.f32 %v24, %v56
  %v60 = vmul.f32 %v25, %v56
  %v61 = vmul.f32 %v26, %v56
  %v62 = vmul.f32 %v27, %v56
  %v63 = vmul.f32 %v28, %v56
  %v64 = vmul.f32 %v29, %v56
  %v65 = vmul.f32 %v30, %v56
  %v66 = vmul.f32 %v31, %v56
  %v67 = vmul.f32 %v32, %v56
  %v68 = vmul.f32 %v33, %v56
  %v69 = vmul.f32 %v34, %v56
  %v70 = vmul.f32 %v35, %v56
  %v71 = vmul.f32 %v36, %v56
  %v72 = vmul.f32 %v37, %v56
  %v73 = vmul.f32 %v38, %v56
  %v74 = vmul.f32 %v39, %v56
  %v75 = vmul.f32 %v40, %v56
  %v76 = vmul.f32 %v41, %v56
  %v77 = vmul.f32 %v42, %v56
  %v78 = vmul.f32 %v43, %v56
  %v79 = vmul.f32 %v44, %v56
  %v80 = vmul.f32 %v45, %v56
  %v81 = vmul.f32 %v46, %v56
  %v82 = vmul.f32 %v47, %v56
  %v83 = vmul.f32 %v48, %v56
  %v84 = vmul.f32 %v49, %v56
  %v85 = vmul.f32 %v50, %v56
  %v86 = vld [vmem:[%s2] sm:$0x1]
  %v88 = vlaneseq
  %v89 = vshrl.u32 %v88, 7
  %v90 = vsub.s32 0, %v89
  %v91 = vrot.slane %v86, %v90
  %v93 = vadd.f32 %v58, %v91
  %v94 = vadd.f32 %v59, %v91
  %v95 = vadd.f32 %v60, %v91
  %v96 = vadd.f32 %v61, %v91
  %v97 = vadd.f32 %v62, %v91
  %v98 = vadd.f32 %v63, %v91
  %v99 = vadd.f32 %v64, %v91
  %v100 = vadd.f32 %v65, %v91
  %v101 = vadd.f32 %v66, %v91
  %v102 = vadd.f32 %v67, %v91
  %v103 = vadd.f32 %v68, %v91
  %v104 = vadd.f32 %v69, %v91
  %v105 = vadd.f32 %v70, %v91
  %v106 = vadd.f32 %v71, %v91
  %v107 = vadd.f32 %v72, %v91
  %v108 = vadd.f32 %v73, %v91
  %v109 = vadd.f32 %v74, %v91
  %v110 = vadd.f32 %v75, %v91
  %v111 = vadd.f32 %v76, %v91
  %v112 = vadd.f32 %v77, %v91
  %v113 = vadd.f32 %v78, %v91
  %v114 = vadd.f32 %v79, %v91
  %v115 = vadd.f32 %v80, %v91
  %v116 = vadd.f32 %v81, %v91
  %v117 = vadd.f32 %v82, %v91
  %v118 = vadd.f32 %v83, %v91
  %v119 = vadd.f32 %v84, %v91
  %v120 = vadd.f32 %v85, %v91
  %v121 = vmax.f32 %v93, 0.0
  %v122 = vmax.f32 %v94, 0.0
  %v123 = vmax.f32 %v95, 0.0
  %v124 = vmax.f32 %v96, 0.0
  %v125 = vmax.f32 %v97, 0.0
  %v126 = vmax.f32 %v98, 0.0
  %v127 = vmax.f32 %v99, 0.0
  %v128 = vmax.f32 %v100, 0.0
  %v129 = vmax.f32 %v101, 0.0
  %v130 = vmax.f32 %v102, 0.0
  %v131 = vmax.f32 %v103, 0.0
  %v132 = vmax.f32 %v104, 0.0
  %v133 = vmax.f32 %v105, 0.0
  %v134 = vmax.f32 %v106, 0.0
  %v135 = vmax.f32 %v107, 0.0
  %v136 = vmax.f32 %v108, 0.0
  %v137 = vmax.f32 %v109, 0.0
  %v138 = vmax.f32 %v110, 0.0
  %v139 = vmax.f32 %v111, 0.0
  %v140 = vmax.f32 %v112, 0.0
  %v141 = vmax.f32 %v113, 0.0
  %v142 = vmax.f32 %v114, 0.0
  %v143 = vmax.f32 %v115, 0.0
  %v144 = vmax.f32 %v116, 0.0
  %v145 = vmax.f32 %v117, 0.0
  %v146 = vmax.f32 %v118, 0.0
  %v147 = vmax.f32 %v119, 0.0
  %v148 = vmax.f32 %v120, 0.0
  %v149 = vpack.c.bf16 %v122, %v121
  %v150 = vpack.c.bf16 %v124, %v123
  %v151 = vpack.c.bf16 %v126, %v125
  %v152 = vpack.c.bf16 %v128, %v127
  %v153 = vpack.c.bf16 %v130, %v129
  %v154 = vpack.c.bf16 %v132, %v131
  %v155 = vpack.c.bf16 %v134, %v133
  %v156 = vpack.c.bf16 %v136, %v135
  %v157 = vpack.c.bf16 %v138, %v137
  %v158 = vpack.c.bf16 %v140, %v139
  %v159 = vpack.c.bf16 %v142, %v141
  %v160 = vpack.c.bf16 %v144, %v143
  %v161 = vpack.c.bf16 %v145, %v145
  %v162 = vld [vmem:[%s3] sm:$0xf]
  %v163 = vld [vmem:[%s3 + $0x4] sm:$0xf]
  %v164 = vld [vmem:[%s3 + $0x8] sm:$0xf]
  %v165 = vld [vmem:[%s3 + $0xc] sm:$0xf]
  %v166 = vld [vmem:[%s3 + $0x10] sm:$0xf]
  %v167 = vld [vmem:[%s3 + $0x14] sm:$0xf]
  %v168 = vld [vmem:[%s3 + $0x18] sm:$0xf]
  %v169 = vld [vmem:[%s3 + $0x1c] sm:$0xf]
  %v170 = vld [vmem:[%s3 + $0x20] sm:$0xf]
  %v171 = vld [vmem:[%s3 + $0x24] sm:$0xf]
  %v172 = vld [vmem:[%s3 + $0x28] sm:$0xf]
  %v173 = vld [vmem:[%s3 + $0x2c] sm:$0xf]
  %v174 = vld [vmem:[%s3 + $0x30] sm:$0xf]
  %v175 = vld [vmem:[%s3 + $0x34] sm:$0xf]
  %v176 = vld [vmem:[%s3 + $0x38] sm:$0xf]
  %v177 = vld [vmem:[%s3 + $0x3c] sm:$0xf]
  %v178 = vpack.c.bf16 %v146, %v145
  %s179 = scalar_lea.vmem %s3, 64
  %v180 = vld [vmem:[%s179] sm:$0xf]
  %v181 = vld [vmem:[%s179 + $0x4] sm:$0xf]
  %v182 = vld [vmem:[%s179 + $0x8] sm:$0xf]
  %v183 = vld [vmem:[%s179 + $0xc] sm:$0xf]
  %v184 = vld [vmem:[%s179 + $0x10] sm:$0xf]
  %v185 = vld [vmem:[%s179 + $0x14] sm:$0xf]
  %v186 = vld [vmem:[%s179 + $0x18] sm:$0xf]
  %v187 = vld [vmem:[%s179 + $0x1c] sm:$0xf]
  %v188 = vld [vmem:[%s179 + $0x20] sm:$0xf]
  %v189 = vld [vmem:[%s179 + $0x24] sm:$0xf]
  %v190 = vld [vmem:[%s179 + $0x28] sm:$0xf]
  %v191 = vld [vmem:[%s179 + $0x2c] sm:$0xf]
  %v192 = vld [vmem:[%s179 + $0x30] sm:$0xf]
  %v193 = vld [vmem:[%s179 + $0x34] sm:$0xf]
  %v194 = vld [vmem:[%s179 + $0x38] sm:$0xf]
  %v195 = vld [vmem:[%s179 + $0x3c] sm:$0xf]
  %vm196 = vsmask.f32 7424
  %v198 = vshrl.u32 %v149, 16
  %v200 = vshll.u32 %v149, 16
  %v202 = vrot.slane %v200, 1
  %v203 = vor.u32 %v198, %v202
  %v205 = vshll.u32 %v150, 16
  %v207 = vrot.slane %v205, 1
  %v208 = vsel %vm196, %v203, %v207
  %v209 = vshrl.u32 %v150, 16
  %v211 = vor.u32 %v209, %v207
  %v213 = vshll.u32 %v151, 16
  %v215 = vrot.slane %v213, 1
  %v216 = vsel %vm196, %v211, %v215
  %v217 = vshrl.u32 %v151, 16
  %v219 = vor.u32 %v217, %v215
  %v221 = vshll.u32 %v152, 16
  %v223 = vrot.slane %v221, 1
  %v224 = vsel %vm196, %v219, %v223
  %v225 = vshrl.u32 %v152, 16
  %v227 = vor.u32 %v225, %v223
  %v229 = vshll.u32 %v153, 16
  %v231 = vrot.slane %v229, 1
  %v232 = vsel %vm196, %v227, %v231
  %v233 = vshrl.u32 %v153, 16
  %v235 = vor.u32 %v233, %v231
  %v237 = vshll.u32 %v154, 16
  %v239 = vrot.slane %v237, 1
  %v240 = vsel %vm196, %v235, %v239
  %v241 = vshrl.u32 %v154, 16
  %v243 = vor.u32 %v241, %v239
  %v245 = vshll.u32 %v155, 16
  %v247 = vrot.slane %v245, 1
  %v248 = vsel %vm196, %v243, %v247
  %v249 = vshrl.u32 %v155, 16
  %v251 = vor.u32 %v249, %v247
  %v253 = vshll.u32 %v156, 16
  %v255 = vrot.slane %v253, 1
  %v256 = vsel %vm196, %v251, %v255
  %v257 = vshrl.u32 %v156, 16
  %v259 = vor.u32 %v257, %v255
  %v261 = vshll.u32 %v157, 16
  %v263 = vrot.slane %v261, 1
  %v264 = vsel %vm196, %v259, %v263
  %v265 = vshrl.u32 %v157, 16
  %v267 = vor.u32 %v265, %v263
  %v269 = vshll.u32 %v158, 16
  %v271 = vrot.slane %v269, 1
  %v272 = vsel %vm196, %v267, %v271
  %v273 = vshrl.u32 %v158, 16
  %v275 = vor.u32 %v273, %v271
  %v277 = vshll.u32 %v159, 16
  %v279 = vrot.slane %v277, 1
  %v280 = vsel %vm196, %v275, %v279
  %v281 = vshrl.u32 %v159, 16
  %v283 = vor.u32 %v281, %v279
  %v285 = vshll.u32 %v160, 16
  %v287 = vrot.slane %v285, 1
  %v288 = vsel %vm196, %v283, %v287
  %v289 = vshrl.u32 %v160, 16
  %v291 = vor.u32 %v289, %v287
  %v293 = vshll.u32 %v178, 16
  %v295 = vrot.slane %v293, 1
  %v296 = vsel %vm196, %v291, %v295
  %v297 = vshrl.u32 %v178, 16
  %v299 = vor.u32 %v297, %v295
  %v329 = vunpack.c.l.b16 %v180
  %v330 = vunpack.c.l.b16 %v181
  %v331 = vunpack.c.l.b16 %v182
  %v332 = vunpack.c.l.b16 %v183
  %v333 = vunpack.c.l.b16 %v184
  %v334 = vunpack.c.l.b16 %v185
  %v335 = vunpack.c.l.b16 %v186
  %v336 = vunpack.c.l.b16 %v187
  %v337 = vunpack.c.l.b16 %v188
  %v338 = vunpack.c.l.b16 %v189
  %v339 = vunpack.c.l.b16 %v190
  %v340 = vunpack.c.l.b16 %v191
  %v341 = vunpack.c.l.b16 %v192
  %v342 = vunpack.c.l.b16 %v193
  %v343 = vunpack.c.l.b16 %v194
  %v344 = vunpack.c.l.b16 %v195
  %v345 = vpack.c.b16 %v330, %v329
  %v346 = vpack.c.b16 %v332, %v331
  %v347 = vpack.c.b16 %v334, %v333
  %v348 = vpack.c.b16 %v336, %v335
  %v349 = vpack.c.b16 %v338, %v337
  %v350 = vpack.c.b16 %v340, %v339
  %v351 = vpack.c.b16 %v342, %v341
  %v352 = vpack.c.b16 %v344, %v343
  %361 = vmatprep.subr.bf16.mxu0 0
  %362 = vmatpush1.bf16.msra.mxu0 %v345
  %363 = vmatprep.subr.bf16.mxu0 0
  %364 = vmatpush1.bf16.msra.mxu0 %v346
  %365 = vmatprep.subr.bf16.mxu0 0
  %366 = vmatpush1.bf16.msra.mxu0 %v347
  %367 = vmatprep.subr.bf16.mxu0 0
  %368 = vmatpush1.bf16.msra.mxu0 %v348
  %369 = vmatprep.subr.bf16.mxu0 0
  %370 = vmatpush1.bf16.msra.mxu0 %v349
  %371 = vmatprep.subr.bf16.mxu0 0
  %372 = vmatpush1.bf16.msra.mxu0 %v350
  %373 = vmatprep.subr.bf16.mxu0 0
  %374 = vmatpush1.bf16.msra.mxu0 %v351
  %375 = vmatprep.subr.bf16.mxu0 0
  %376 = vmatpush1.bf16.msra.mxu0 %v352
  %377 = vmatprep.subr.bf16.mxu0 0
  %378 = vmatpush1.bf16.msra.mxu0 0
  %379 = vmatprep.subr.bf16.mxu0 0
  %380 = vmatpush1.bf16.msra.mxu0 0
  %381 = vmatprep.subr.bf16.mxu0 0
  %382 = vmatpush1.bf16.msra.mxu0 0
  %383 = vmatprep.subr.bf16.mxu0 0
  %384 = vmatpush1.bf16.msra.mxu0 0
  %385 = vmatprep.subr.bf16.mxu0 0
  %386 = vmatpush1.bf16.msra.mxu0 0
  %387 = vmatprep.subr.bf16.mxu0 0
  %388 = vmatpush1.bf16.msra.mxu0 0
  %389 = vmatprep.subr.bf16.mxu0 0
  %390 = vmatpush1.bf16.msra.mxu0 0
  %391 = vmatprep.subr.bf16.mxu0 0
  %392 = vmatpush1.bf16.msra.mxu0 0
  %393 = vmatprep.mubr.bf16.mxu0 0
  %394 = vmatmul.mubr.bf16.gmra.mrb[0].mxu0 %v208
  %v395 = vpop.f32.mrb[0].mxu0
  %v396 = vadd.f32 0.0, %v395
  %v397 = vpop.f32.mrb[0].mxu0
  %v398 = vpop.f32.mrb[0].mxu0
  %v399 = vadd.f32 0.0, %v398
  %v400 = vpop.f32.mrb[0].mxu0
  %401 = vmatprep.mubr.bf16.mxu0 0
  %402 = vmatmul.mubr.bf16.gmra.mrb[0].mxu0 %v216
  %v403 = vpop.f32.mrb[0].mxu0
  %v404 = vadd.f32 0.0, %v403
  %v405 = vpop.f32.mrb[0].mxu0
  %v406 = vpop.f32.mrb[0].mxu0
  %v407 = vadd.f32 0.0, %v406
  %v408 = vpop.f32.mrb[0].mxu0
  %409 = vmatprep.mubr.bf16.mxu0 0
  %410 = vmatmul.mubr.bf16.gmra.mrb[0].mxu0 %v224
  %v411 = vpop.f32.mrb[0].mxu0
  %v412 = vadd.f32 0.0, %v411
  %v413 = vpop.f32.mrb[0].mxu0
  %v414 = vpop.f32.mrb[0].mxu0
  %v415 = vadd.f32 0.0, %v414
  %v416 = vpop.f32.mrb[0].mxu0
  %417 = vmatprep.mubr.bf16.mxu0 0
  %418 = vmatmul.mubr.bf16.gmra.mrb[0].mxu0 %v232
  %v419 = vpop.f32.mrb[0].mxu0
  %v420 = vadd.f32 0.0, %v419
  %v421 = vpop.f32.mrb[0].mxu0
  %v422 = vpop.f32.mrb[0].mxu0
  %v423 = vadd.f32 0.0, %v422
  %v424 = vpop.f32.mrb[0].mxu0
  %425 = vmatprep.mubr.bf16.mxu0 0
  %426 = vmatmul.mubr.bf16.gmra.mrb[0].mxu0 %v240
  %v427 = vpop.f32.mrb[0].mxu0
  %v428 = vadd.f32 0.0, %v427
  %v429 = vpop.f32.mrb[0].mxu0
  %v430 = vpop.f32.mrb[0].mxu0
  %v431 = vadd.f32 0.0, %v430
  %v432 = vpop.f32.mrb[0].mxu0
  %433 = vmatprep.mubr.bf16.mxu0 0
  %434 = vmatmul.mubr.bf16.gmra.mrb[0].mxu0 %v248
  %v435 = vpop.f32.mrb[0].mxu0
  %v436 = vadd.f32 0.0, %v435
  %v437 = vpop.f32.mrb[0].mxu0
  %v438 = vpop.f32.mrb[0].mxu0
  %v439 = vadd.f32 0.0, %v438
  %v440 = vpop.f32.mrb[0].mxu0
  %441 = vmatprep.mubr.bf16.mxu0 0
  %442 = vmatmul.mubr.bf16.gmra.mrb[0].mxu0 %v256
  %v443 = vpop.f32.mrb[0].mxu0
  %v444 = vadd.f32 0.0, %v443
  %v445 = vpop.f32.mrb[0].mxu0
  %v446 = vpop.f32.mrb[0].mxu0
  %v447 = vadd.f32 0.0, %v446
  %v448 = vpop.f32.mrb[0].mxu0
  %449 = vmatprep.mubr.bf16.mxu0 0
  %450 = vmatmul.mubr.bf16.gmra.mrb[0].mxu0 %v264
  %v451 = vpop.f32.mrb[0].mxu0
  %v452 = vadd.f32 0.0, %v451
  %v453 = vpop.f32.mrb[0].mxu0
  %v454 = vpop.f32.mrb[0].mxu0
  %v455 = vadd.f32 0.0, %v454
  %v456 = vpop.f32.mrb[0].mxu0
  %457 = vmatprep.mubr.bf16.mxu0 0
  %458 = vmatmul.mubr.bf16.gmra.mrb[0].mxu0 %v272
  %v459 = vpop.f32.mrb[0].mxu0
  %v460 = vadd.f32 0.0, %v459
  %v461 = vpop.f32.mrb[0].mxu0
  %v462 = vpop.f32.mrb[0].mxu0
  %v463 = vadd.f32 0.0, %v462
  %v464 = vpop.f32.mrb[0].mxu0
  %465 = vmatprep.mubr.bf16.mxu0 0
  %466 = vmatmul.mubr.bf16.gmra.mrb[0].mxu0 %v280
  %v467 = vpop.f32.mrb[0].mxu0
  %v468 = vadd.f32 0.0, %v467
  %v469 = vpop.f32.mrb[0].mxu0
  %v470 = vpop.f32.mrb[0].mxu0
  %v471 = vadd.f32 0.0, %v470
  %v472 = vpop.f32.mrb[0].mxu0
  %473 = vmatprep.mubr.bf16.mxu0 0
  %474 = vmatmul.mubr.bf16.gmra.mrb[0].mxu0 %v288
  %v475 = vpop.f32.mrb[0].mxu0
  %v476 = vadd.f32 0.0, %v475
  %v477 = vpop.f32.mrb[0].mxu0
  %v478 = vpop.f32.mrb[0].mxu0
  %v479 = vadd.f32 0.0, %v478
  %v480 = vpop.f32.mrb[0].mxu0
  %481 = vmatprep.mubr.bf16.mxu0 0
  %482 = vmatmul.mubr.bf16.gmra.mrb[0].mxu0 %v296
  %v483 = vpop.f32.mrb[0].mxu0
  %v484 = vadd.f32 0.0, %v483
  %v485 = vpop.f32.mrb[0].mxu0
  %v486 = vpop.f32.mrb[0].mxu0
  %v487 = vadd.f32 0.0, %v486
  %v488 = vpop.f32.mrb[0].mxu0
  %489 = vmatprep.mubr.bf16.mxu0 0
  %490 = vmatmul.mubr.bf16.gmra.mrb[0].mxu0 %v299
  %v491 = vpop.f32.mrb[0].mxu0
  %v492 = vadd.f32 0.0, %v491
  %v493 = vpop.f32.mrb[0].mxu0
  %v494 = vpop.f32.mrb[0].mxu0
  %v495 = vpop.f32.mrb[0].mxu0
  %496 = vdwg.mxu0
  %v513 = vunpack.c.l.b16 %v162
  %v514 = vunpack.c.l.b16 %v163
  %v515 = vunpack.c.l.b16 %v164
  %v516 = vunpack.c.l.b16 %v165
  %v517 = vunpack.c.l.b16 %v166
  %v518 = vunpack.c.l.b16 %v167
  %v519 = vunpack.c.l.b16 %v168
  %v520 = vunpack.c.l.b16 %v169
  %v521 = vunpack.c.l.b16 %v170
  %v522 = vunpack.c.l.b16 %v171
  %v523 = vunpack.c.l.b16 %v172
  %v524 = vunpack.c.l.b16 %v173
  %v525 = vunpack.c.l.b16 %v174
  %v526 = vunpack.c.l.b16 %v175
  %v527 = vunpack.c.l.b16 %v176
  %v528 = vunpack.c.l.b16 %v177
  %v529 = vpack.c.b16 %v514, %v513
  %v530 = vpack.c.b16 %v516, %v515
  %v531 = vpack.c.b16 %v518, %v517
  %v532 = vpack.c.b16 %v520, %v519
  %v533 = vpack.c.b16 %v522, %v521
  %v534 = vpack.c.b16 %v524, %v523
  %v535 = vpack.c.b16 %v526, %v525
  %v536 = vpack.c.b16 %v528, %v527
  %545 = vmatprep.subr.bf16.mxu0 0
  %546 = vmatpush1.bf16.msra.mxu0 %v529
  %547 = vmatprep.subr.bf16.mxu0 0
  %548 = vmatpush1.bf16.msra.mxu0 %v530
  %549 = vmatprep.subr.bf16.mxu0 0
  %550 = vmatpush1.bf16.msra.mxu0 %v531
  %551 = vmatprep.subr.bf16.mxu0 0
  %552 = vmatpush1.bf16.msra.mxu0 %v532
  %553 = vmatprep.subr.bf16.mxu0 0
  %554 = vmatpush1.bf16.msra.mxu0 %v533
  %555 = vmatprep.subr.bf16.mxu0 0
  %556 = vmatpush1.bf16.msra.mxu0 %v534
  %557 = vmatprep.subr.bf16.mxu0 0
  %558 = vmatpush1.bf16.msra.mxu0 %v535
  %559 = vmatprep.subr.bf16.mxu0 0
  %560 = vmatpush1.bf16.msra.mxu0 %v536
  %561 = vmatprep.subr.bf16.mxu0 0
  %562 = vmatpush1.bf16.msra.mxu0 0
  %563 = vmatprep.subr.bf16.mxu0 0
  %564 = vmatpush1.bf16.msra.mxu0 0
  %565 = vmatprep.subr.bf16.mxu0 0
  %566 = vmatpush1.bf16.msra.mxu0 0
  %567 = vmatprep.subr.bf16.mxu0 0
  %568 = vmatpush1.bf16.msra.mxu0 0
  %569 = vmatprep.subr.bf16.mxu0 0
  %570 = vmatpush1.bf16.msra.mxu0 0
  %571 = vmatprep.subr.bf16.mxu0 0
  %572 = vmatpush1.bf16.msra.mxu0 0
  %573 = vmatprep.subr.bf16.mxu0 0
  %574 = vmatpush1.bf16.msra.mxu0 0
  %575 = vmatprep.subr.bf16.mxu0 0
  %576 = vmatpush1.bf16.msra.mxu0 0
  %577 = vmatprep.mubr.bf16.mxu0 0
  %578 = vmatmul.mubr.bf16.gmra.mrb[0].mxu0 %v149
  %v579 = vpop.f32.mrb[0].mxu0
  %v580 = vadd.f32 %v396, %v579
  %v581 = vpop.f32.mrb[0].mxu0
  %v582 = vpop.f32.mrb[0].mxu0
  %v583 = vadd.f32 %v399, %v582
  %v584 = vpop.f32.mrb[0].mxu0
  %585 = vmatprep.mubr.bf16.mxu0 0
  %586 = vmatmul.mubr.bf16.gmra.mrb[0].mxu0 %v150
  %v587 = vpop.f32.mrb[0].mxu0
  %v588 = vadd.f32 %v404, %v587
  %v589 = vpop.f32.mrb[0].mxu0
  %v590 = vpop.f32.mrb[0].mxu0
  %v591 = vadd.f32 %v407, %v590
  %v592 = vpop.f32.mrb[0].mxu0
  %593 = vmatprep.mubr.bf16.mxu0 0
  %594 = vmatmul.mubr.bf16.gmra.mrb[0].mxu0 %v151
  %v595 = vpop.f32.mrb[0].mxu0
  %v596 = vadd.f32 %v412, %v595
  %v597 = vpop.f32.mrb[0].mxu0
  %v598 = vpop.f32.mrb[0].mxu0
  %v599 = vadd.f32 %v415, %v598
  %v600 = vpop.f32.mrb[0].mxu0
  %601 = vmatprep.mubr.bf16.mxu0 0
  %602 = vmatmul.mubr.bf16.gmra.mrb[0].mxu0 %v152
  %v603 = vpop.f32.mrb[0].mxu0
  %v604 = vadd.f32 %v420, %v603
  %v605 = vpop.f32.mrb[0].mxu0
  %v606 = vpop.f32.mrb[0].mxu0
  %v607 = vadd.f32 %v423, %v606
  %v608 = vpop.f32.mrb[0].mxu0
  %609 = vmatprep.mubr.bf16.mxu0 0
  %610 = vmatmul.mubr.bf16.gmra.mrb[0].mxu0 %v153
  %v611 = vpop.f32.mrb[0].mxu0
  %v612 = vadd.f32 %v428, %v611
  %v613 = vpop.f32.mrb[0].mxu0
  %v614 = vpop.f32.mrb[0].mxu0
  %v615 = vadd.f32 %v431, %v614
  %v616 = vpop.f32.mrb[0].mxu0
  %617 = vmatprep.mubr.bf16.mxu0 0
  %618 = vmatmul.mubr.bf16.gmra.mrb[0].mxu0 %v154
  %v619 = vpop.f32.mrb[0].mxu0
  %v620 = vadd.f32 %v436, %v619
  %v621 = vpop.f32.mrb[0].mxu0
  %v622 = vpop.f32.mrb[0].mxu0
  %v623 = vadd.f32 %v439, %v622
  %v624 = vpop.f32.mrb[0].mxu0
  %625 = vmatprep.mubr.bf16.mxu0 0
  %626 = vmatmul.mubr.bf16.gmra.mrb[0].mxu0 %v155
  %v627 = vpop.f32.mrb[0].mxu0
  %v628 = vadd.f32 %v444, %v627
  %v629 = vpop.f32.mrb[0].mxu0
  %v630 = vpop.f32.mrb[0].mxu0
  %v631 = vadd.f32 %v447, %v630
  %v632 = vpop.f32.mrb[0].mxu0
  %633 = vmatprep.mubr.bf16.mxu0 0
  %634 = vmatmul.mubr.bf16.gmra.mrb[0].mxu0 %v156
  %v635 = vpop.f32.mrb[0].mxu0
  %v636 = vadd.f32 %v452, %v635
  %v637 = vpop.f32.mrb[0].mxu0
  %v638 = vpop.f32.mrb[0].mxu0
  %v639 = vadd.f32 %v455, %v638
  %v640 = vpop.f32.mrb[0].mxu0
  %641 = vmatprep.mubr.bf16.mxu0 0
  %642 = vmatmul.mubr.bf16.gmra.mrb[0].mxu0 %v157
  %v643 = vpop.f32.mrb[0].mxu0
  %v644 = vadd.f32 %v460, %v643
  %v645 = vpop.f32.mrb[0].mxu0
  %v646 = vpop.f32.mrb[0].mxu0
  %v647 = vadd.f32 %v463, %v646
  %v648 = vpop.f32.mrb[0].mxu0
  %649 = vmatprep.mubr.bf16.mxu0 0
  %650 = vmatmul.mubr.bf16.gmra.mrb[0].mxu0 %v158
  %v651 = vpop.f32.mrb[0].mxu0
  %v652 = vadd.f32 %v468, %v651
  %v653 = vpop.f32.mrb[0].mxu0
  %v654 = vpop.f32.mrb[0].mxu0
  %v655 = vadd.f32 %v471, %v654
  %v656 = vpop.f32.mrb[0].mxu0
  %657 = vmatprep.mubr.bf16.mxu0 0
  %658 = vmatmul.mubr.bf16.gmra.mrb[0].mxu0 %v159
  %v659 = vpop.f32.mrb[0].mxu0
  %v660 = vadd.f32 %v476, %v659
  %v661 = vpop.f32.mrb[0].mxu0
  %v662 = vpop.f32.mrb[0].mxu0
  %v663 = vadd.f32 %v479, %v662
  %v664 = vpop.f32.mrb[0].mxu0
  %665 = vmatprep.mubr.bf16.mxu0 0
  %666 = vmatmul.mubr.bf16.gmra.mrb[0].mxu0 %v160
  %v667 = vpop.f32.mrb[0].mxu0
  %v668 = vadd.f32 %v484, %v667
  %v669 = vpop.f32.mrb[0].mxu0
  %v670 = vpop.f32.mrb[0].mxu0
  %v671 = vadd.f32 %v487, %v670
  %v672 = vpop.f32.mrb[0].mxu0
  %673 = vmatprep.mubr.bf16.mxu0 0
  %674 = vmatmul.mubr.bf16.gmra.mrb[0].mxu0 %v161
  %v675 = vpop.f32.mrb[0].mxu0
  %v676 = vadd.f32 %v492, %v675
  %v677 = vpop.f32.mrb[0].mxu0
  %v678 = vpop.f32.mrb[0].mxu0
  %v679 = vpop.f32.mrb[0].mxu0
  %680 = vdwg.mxu0
  %s681 = scalar_lea.vmem %s3, 128
  %v682 = vld [vmem:[%s681] sm:$0xf]
  %v683 = vld [vmem:[%s681 + $0x4] sm:$0xf]
  %v684 = vld [vmem:[%s681 + $0x8] sm:$0xf]
  %v685 = vld [vmem:[%s681 + $0xc] sm:$0xf]
  %v686 = vld [vmem:[%s681 + $0x10] sm:$0xf]
  %v687 = vld [vmem:[%s681 + $0x14] sm:$0xf]
  %v688 = vld [vmem:[%s681 + $0x18] sm:$0xf]
  %v689 = vld [vmem:[%s681 + $0x1c] sm:$0xf]
  %v690 = vld [vmem:[%s681 + $0x20] sm:$0xf]
  %v691 = vld [vmem:[%s681 + $0x24] sm:$0xf]
  %v692 = vld [vmem:[%s681 + $0x28] sm:$0xf]
  %v693 = vld [vmem:[%s681 + $0x2c] sm:$0xf]
  %v694 = vld [vmem:[%s681 + $0x30] sm:$0xf]
  %v695 = vld [vmem:[%s681 + $0x34] sm:$0xf]
  %v696 = vld [vmem:[%s681 + $0x38] sm:$0xf]
  %v697 = vld [vmem:[%s681 + $0x3c] sm:$0xf]
  %vm711 = vcmask 1046528
  %v712 = vrot.slane %v149, 1
  %v713 = vrot.slane %v150, 1
  %v714 = vsel %vm711, %v712, %v713
  %v715 = vrot.slane %v151, 1
  %v716 = vsel %vm711, %v713, %v715
  %v717 = vrot.slane %v152, 1
  %v718 = vsel %vm711, %v715, %v717
  %v719 = vrot.slane %v153, 1
  %v720 = vsel %vm711, %v717, %v719
  %v721 = vrot.slane %v154, 1
  %v722 = vsel %vm711, %v719, %v721
  %v723 = vrot.slane %v155, 1
  %v724 = vsel %vm711, %v721, %v723
  %v725 = vrot.slane %v156, 1
  %v726 = vsel %vm711, %v723, %v725
  %v727 = vrot.slane %v157, 1
  %v728 = vsel %vm711, %v725, %v727
  %v729 = vrot.slane %v158, 1
  %v730 = vsel %vm711, %v727, %v729
  %v731 = vrot.slane %v159, 1
  %v732 = vsel %vm711, %v729, %v731
  %v733 = vrot.slane %v160, 1
  %v734 = vsel %vm711, %v731, %v733
  %v735 = vrot.slane %v178, 1
  %v736 = vsel %vm711, %v733, %v735
  %v766 = vunpack.c.l.b16 %v682
  %v767 = vunpack.c.l.b16 %v683
  %v768 = vunpack.c.l.b16 %v684
  %v769 = vunpack.c.l.b16 %v685
  %v770 = vunpack.c.l.b16 %v686
  %v771 = vunpack.c.l.b16 %v687
  %v772 = vunpack.c.l.b16 %v688
  %v773 = vunpack.c.l.b16 %v689
  %v774 = vunpack.c.l.b16 %v690
  %v775 = vunpack.c.l.b16 %v691
  %v776 = vunpack.c.l.b16 %v692
  %v777 = vunpack.c.l.b16 %v693
  %v778 = vunpack.c.l.b16 %v694
  %v779 = vunpack.c.l.b16 %v695
  %v780 = vunpack.c.l.b16 %v696
  %v781 = vunpack.c.l.b16 %v697
  %v782 = vpack.c.b16 %v767, %v766
  %v783 = vpack.c.b16 %v769, %v768
  %v784 = vpack.c.b16 %v771, %v770
  %v785 = vpack.c.b16 %v773, %v772
  %v786 = vpack.c.b16 %v775, %v774
  %v787 = vpack.c.b16 %v777, %v776
  %v788 = vpack.c.b16 %v779, %v778
  %v789 = vpack.c.b16 %v781, %v780
  %798 = vmatprep.subr.bf16.mxu0 0
  %799 = vmatpush1.bf16.msra.mxu0 %v782
  %800 = vmatprep.subr.bf16.mxu0 0
  %801 = vmatpush1.bf16.msra.mxu0 %v783
  %802 = vmatprep.subr.bf16.mxu0 0
  %803 = vmatpush1.bf16.msra.mxu0 %v784
  %804 = vmatprep.subr.bf16.mxu0 0
  %805 = vmatpush1.bf16.msra.mxu0 %v785
  %806 = vmatprep.subr.bf16.mxu0 0
  %807 = vmatpush1.bf16.msra.mxu0 %v786
  %808 = vmatprep.subr.bf16.mxu0 0
  %809 = vmatpush1.bf16.msra.mxu0 %v787
  %810 = vmatprep.subr.bf16.mxu0 0
  %811 = vmatpush1.bf16.msra.mxu0 %v788
  %812 = vmatprep.subr.bf16.mxu0 0
  %813 = vmatpush1.bf16.msra.mxu0 %v789
  %814 = vmatprep.subr.bf16.mxu0 0
  %815 = vmatpush1.bf16.msra.mxu0 0
  %816 = vmatprep.subr.bf16.mxu0 0
  %817 = vmatpush1.bf16.msra.mxu0 0
  %818 = vmatprep.subr.bf16.mxu0 0
  %819 = vmatpush1.bf16.msra.mxu0 0
  %820 = vmatprep.subr.bf16.mxu0 0
  %821 = vmatpush1.bf16.msra.mxu0 0
  %822 = vmatprep.subr.bf16.mxu0 0
  %823 = vmatpush1.bf16.msra.mxu0 0
  %824 = vmatprep.subr.bf16.mxu0 0
  %825 = vmatpush1.bf16.msra.mxu0 0
  %826 = vmatprep.subr.bf16.mxu0 0
  %827 = vmatpush1.bf16.msra.mxu0 0
  %828 = vmatprep.subr.bf16.mxu0 0
  %829 = vmatpush1.bf16.msra.mxu0 0
  %830 = vmatprep.mubr.bf16.mxu0 0
  %831 = vmatmul.mubr.bf16.gmra.mrb[0].mxu0 %v714
  %v832 = vpop.f32.mrb[0].mxu0
  %v833 = vadd.f32 0.0, %v832
  %v834 = vpop.f32.mrb[0].mxu0
  %v835 = vpop.f32.mrb[0].mxu0
  %v836 = vadd.f32 0.0, %v835
  %v837 = vpop.f32.mrb[0].mxu0
  %838 = vmatprep.mubr.bf16.mxu0 0
  %839 = vmatmul.mubr.bf16.gmra.mrb[0].mxu0 %v716
  %v840 = vpop.f32.mrb[0].mxu0
  %v841 = vadd.f32 0.0, %v840
  %v842 = vpop.f32.mrb[0].mxu0
  %v843 = vpop.f32.mrb[0].mxu0
  %v844 = vadd.f32 0.0, %v843
  %v845 = vpop.f32.mrb[0].mxu0
  %846 = vmatprep.mubr.bf16.mxu0 0
  %847 = vmatmul.mubr.bf16.gmra.mrb[0].mxu0 %v718
  %v848 = vpop.f32.mrb[0].mxu0
  %v849 = vadd.f32 0.0, %v848
  %v850 = vpop.f32.mrb[0].mxu0
  %v851 = vpop.f32.mrb[0].mxu0
  %v852 = vadd.f32 0.0, %v851
  %v853 = vpop.f32.mrb[0].mxu0
  %854 = vmatprep.mubr.bf16.mxu0 0
  %855 = vmatmul.mubr.bf16.gmra.mrb[0].mxu0 %v720
  %v856 = vpop.f32.mrb[0].mxu0
  %v857 = vadd.f32 0.0, %v856
  %v858 = vpop.f32.mrb[0].mxu0
  %v859 = vpop.f32.mrb[0].mxu0
  %v860 = vadd.f32 0.0, %v859
  %v861 = vpop.f32.mrb[0].mxu0
  %862 = vmatprep.mubr.bf16.mxu0 0
  %863 = vmatmul.mubr.bf16.gmra.mrb[0].mxu0 %v722
  %v864 = vpop.f32.mrb[0].mxu0
  %v865 = vadd.f32 0.0, %v864
  %v866 = vpop.f32.mrb[0].mxu0
  %v867 = vpop.f32.mrb[0].mxu0
  %v868 = vadd.f32 0.0, %v867
  %v869 = vpop.f32.mrb[0].mxu0
  %870 = vmatprep.mubr.bf16.mxu0 0
  %871 = vmatmul.mubr.bf16.gmra.mrb[0].mxu0 %v724
  %v872 = vpop.f32.mrb[0].mxu0
  %v873 = vadd.f32 0.0, %v872
  %v874 = vpop.f32.mrb[0].mxu0
  %v875 = vpop.f32.mrb[0].mxu0
  %v876 = vadd.f32 0.0, %v875
  %v877 = vpop.f32.mrb[0].mxu0
  %878 = vmatprep.mubr.bf16.mxu0 0
  %879 = vmatmul.mubr.bf16.gmra.mrb[0].mxu0 %v726
  %v880 = vpop.f32.mrb[0].mxu0
  %v881 = vadd.f32 0.0, %v880
  %v882 = vpop.f32.mrb[0].mxu0
  %v883 = vpop.f32.mrb[0].mxu0
  %v884 = vadd.f32 0.0, %v883
  %v885 = vpop.f32.mrb[0].mxu0
  %886 = vmatprep.mubr.bf16.mxu0 0
  %887 = vmatmul.mubr.bf16.gmra.mrb[0].mxu0 %v728
  %v888 = vpop.f32.mrb[0].mxu0
  %v889 = vadd.f32 0.0, %v888
  %v890 = vpop.f32.mrb[0].mxu0
  %v891 = vpop.f32.mrb[0].mxu0
  %v892 = vadd.f32 0.0, %v891
  %v893 = vpop.f32.mrb[0].mxu0
  %894 = vmatprep.mubr.bf16.mxu0 0
  %895 = vmatmul.mubr.bf16.gmra.mrb[0].mxu0 %v730
  %v896 = vpop.f32.mrb[0].mxu0
  %v897 = vadd.f32 0.0, %v896
  %v898 = vpop.f32.mrb[0].mxu0
  %v899 = vpop.f32.mrb[0].mxu0
  %v900 = vadd.f32 0.0, %v899
  %v901 = vpop.f32.mrb[0].mxu0
  %902 = vmatprep.mubr.bf16.mxu0 0
  %903 = vmatmul.mubr.bf16.gmra.mrb[0].mxu0 %v732
  %v904 = vpop.f32.mrb[0].mxu0
  %v905 = vadd.f32 0.0, %v904
  %v906 = vpop.f32.mrb[0].mxu0
  %v907 = vpop.f32.mrb[0].mxu0
  %v908 = vadd.f32 0.0, %v907
  %v909 = vpop.f32.mrb[0].mxu0
  %910 = vmatprep.mubr.bf16.mxu0 0
  %911 = vmatmul.mubr.bf16.gmra.mrb[0].mxu0 %v734
  %v912 = vpop.f32.mrb[0].mxu0
  %v913 = vadd.f32 0.0, %v912
  %v914 = vpop.f32.mrb[0].mxu0
  %v915 = vpop.f32.mrb[0].mxu0
  %v916 = vadd.f32 0.0, %v915
  %v917 = vpop.f32.mrb[0].mxu0
  %918 = vmatprep.mubr.bf16.mxu0 0
  %919 = vmatmul.mubr.bf16.gmra.mrb[0].mxu0 %v736
  %v920 = vpop.f32.mrb[0].mxu0
  %v921 = vadd.f32 0.0, %v920
  %v922 = vpop.f32.mrb[0].mxu0
  %v923 = vpop.f32.mrb[0].mxu0
  %v924 = vadd.f32 0.0, %v923
  %v925 = vpop.f32.mrb[0].mxu0
  %926 = vmatprep.mubr.bf16.mxu0 0
  %927 = vmatmul.mubr.bf16.gmra.mrb[0].mxu0 %v735
  %v928 = vpop.f32.mrb[0].mxu0
  %v929 = vadd.f32 0.0, %v928
  %v930 = vpop.f32.mrb[0].mxu0
  %v931 = vpop.f32.mrb[0].mxu0
  %v932 = vpop.f32.mrb[0].mxu0
  %933 = vdwg.mxu0
  %v934 = vadd.f32 %v580, %v833
  %v935 = vadd.f32 %v583, %v836
  %v936 = vadd.f32 %v588, %v841
  %v937 = vadd.f32 %v591, %v844
  %v938 = vadd.f32 %v596, %v849
  %v939 = vadd.f32 %v599, %v852
  %v940 = vadd.f32 %v604, %v857
  %v941 = vadd.f32 %v607, %v860
  %v942 = vadd.f32 %v612, %v865
  %v943 = vadd.f32 %v615, %v868
  %v944 = vadd.f32 %v620, %v873
  %v945 = vadd.f32 %v623, %v876
  %v946 = vadd.f32 %v628, %v881
  %v947 = vadd.f32 %v631, %v884
  %v948 = vadd.f32 %v636, %v889
  %v949 = vadd.f32 %v639, %v892
  %v950 = vadd.f32 %v644, %v897
  %v951 = vadd.f32 %v647, %v900
  %v952 = vadd.f32 %v652, %v905
  %v953 = vadd.f32 %v655, %v908
  %v954 = vadd.f32 %v660, %v913
  %v955 = vadd.f32 %v663, %v916
  %v956 = vadd.f32 %v668, %v921
  %v957 = vadd.f32 %v671, %v924
  %v958 = vadd.f32 %v676, %v929
  %v959 = vpack.c.bf16 %v123, %v122
  %v960 = vpack.c.bf16 %v125, %v124
  %v961 = vpack.c.bf16 %v127, %v126
  %v962 = vpack.c.bf16 %v129, %v128
  %v963 = vpack.c.bf16 %v131, %v130
  %v964 = vpack.c.bf16 %v133, %v132
  %v965 = vpack.c.bf16 %v135, %v134
  %v966 = vpack.c.bf16 %v137, %v136
  %v967 = vpack.c.bf16 %v139, %v138
  %v968 = vpack.c.bf16 %v141, %v140
  %v969 = vpack.c.bf16 %v143, %v142
  %v970 = vpack.c.bf16 %v145, %v144
  %v971 = vpack.c.bf16 %v147, %v146
  %s972 = scalar_lea.vmem %s3, 192
  %v973 = vld [vmem:[%s972] sm:$0xf]
  %v974 = vld [vmem:[%s972 + $0x4] sm:$0xf]
  %v975 = vld [vmem:[%s972 + $0x8] sm:$0xf]
  %v976 = vld [vmem:[%s972 + $0xc] sm:$0xf]
  %v977 = vld [vmem:[%s972 + $0x10] sm:$0xf]
  %v978 = vld [vmem:[%s972 + $0x14] sm:$0xf]
  %v979 = vld [vmem:[%s972 + $0x18] sm:$0xf]
  %v980 = vld [vmem:[%s972 + $0x1c] sm:$0xf]
  %v981 = vld [vmem:[%s972 + $0x20] sm:$0xf]
  %v982 = vld [vmem:[%s972 + $0x24] sm:$0xf]
  %v983 = vld [vmem:[%s972 + $0x28] sm:$0xf]
  %v984 = vld [vmem:[%s972 + $0x2c] sm:$0xf]
  %v985 = vld [vmem:[%s972 + $0x30] sm:$0xf]
  %v986 = vld [vmem:[%s972 + $0x34] sm:$0xf]
  %v987 = vld [vmem:[%s972 + $0x38] sm:$0xf]
  %v988 = vld [vmem:[%s972 + $0x3c] sm:$0xf]
  %v1002 = vrot.slane %v959, 1
  %v1003 = vrot.slane %v960, 1
  %v1004 = vsel %vm711, %v1002, %v1003
  %v1005 = vrot.slane %v961, 1
  %v1006 = vsel %vm711, %v1003, %v1005
  %v1007 = vrot.slane %v962, 1
  %v1008 = vsel %vm711, %v1005, %v1007
  %v1009 = vrot.slane %v963, 1
  %v1010 = vsel %vm711, %v1007, %v1009
  %v1011 = vrot.slane %v964, 1
  %v1012 = vsel %vm711, %v1009, %v1011
  %v1013 = vrot.slane %v965, 1
  %v1014 = vsel %vm711, %v1011, %v1013
  %v1015 = vrot.slane %v966, 1
  %v1016 = vsel %vm711, %v1013, %v1015
  %v1017 = vrot.slane %v967, 1
  %v1018 = vsel %vm711, %v1015, %v1017
  %v1019 = vrot.slane %v968, 1
  %v1020 = vsel %vm711, %v1017, %v1019
  %v1021 = vrot.slane %v969, 1
  %v1022 = vsel %vm711, %v1019, %v1021
  %v1023 = vrot.slane %v970, 1
  %v1024 = vsel %vm711, %v1021, %v1023
  %v1025 = vrot.slane %v971, 1
  %v1026 = vsel %vm711, %v1023, %v1025
  %v1056 = vunpack.c.l.b16 %v973
  %v1057 = vunpack.c.l.b16 %v974
  %v1058 = vunpack.c.l.b16 %v975
  %v1059 = vunpack.c.l.b16 %v976
  %v1060 = vunpack.c.l.b16 %v977
  %v1061 = vunpack.c.l.b16 %v978
  %v1062 = vunpack.c.l.b16 %v979
  %v1063 = vunpack.c.l.b16 %v980
  %v1064 = vunpack.c.l.b16 %v981
  %v1065 = vunpack.c.l.b16 %v982
  %v1066 = vunpack.c.l.b16 %v983
  %v1067 = vunpack.c.l.b16 %v984
  %v1068 = vunpack.c.l.b16 %v985
  %v1069 = vunpack.c.l.b16 %v986
  %v1070 = vunpack.c.l.b16 %v987
  %v1071 = vunpack.c.l.b16 %v988
  %v1072 = vpack.c.b16 %v1057, %v1056
  %v1073 = vpack.c.b16 %v1059, %v1058
  %v1074 = vpack.c.b16 %v1061, %v1060
  %v1075 = vpack.c.b16 %v1063, %v1062
  %v1076 = vpack.c.b16 %v1065, %v1064
  %v1077 = vpack.c.b16 %v1067, %v1066
  %v1078 = vpack.c.b16 %v1069, %v1068
  %v1079 = vpack.c.b16 %v1071, %v1070
  %1088 = vmatprep.subr.bf16.mxu0 0
  %1089 = vmatpush1.bf16.msra.mxu0 %v1072
  %1090 = vmatprep.subr.bf16.mxu0 0
  %1091 = vmatpush1.bf16.msra.mxu0 %v1073
  %1092 = vmatprep.subr.bf16.mxu0 0
  %1093 = vmatpush1.bf16.msra.mxu0 %v1074
  %1094 = vmatprep.subr.bf16.mxu0 0
  %1095 = vmatpush1.bf16.msra.mxu0 %v1075
  %1096 = vmatprep.subr.bf16.mxu0 0
  %1097 = vmatpush1.bf16.msra.mxu0 %v1076
  %1098 = vmatprep.subr.bf16.mxu0 0
  %1099 = vmatpush1.bf16.msra.mxu0 %v1077
  %1100 = vmatprep.subr.bf16.mxu0 0
  %1101 = vmatpush1.bf16.msra.mxu0 %v1078
  %1102 = vmatprep.subr.bf16.mxu0 0
  %1103 = vmatpush1.bf16.msra.mxu0 %v1079
  %1104 = vmatprep.subr.bf16.mxu0 0
  %1105 = vmatpush1.bf16.msra.mxu0 0
  %1106 = vmatprep.subr.bf16.mxu0 0
  %1107 = vmatpush1.bf16.msra.mxu0 0
  %1108 = vmatprep.subr.bf16.mxu0 0
  %1109 = vmatpush1.bf16.msra.mxu0 0
  %1110 = vmatprep.subr.bf16.mxu0 0
  %1111 = vmatpush1.bf16.msra.mxu0 0
  %1112 = vmatprep.subr.bf16.mxu0 0
  %1113 = vmatpush1.bf16.msra.mxu0 0
  %1114 = vmatprep.subr.bf16.mxu0 0
  %1115 = vmatpush1.bf16.msra.mxu0 0
  %1116 = vmatprep.subr.bf16.mxu0 0
  %1117 = vmatpush1.bf16.msra.mxu0 0
  %1118 = vmatprep.subr.bf16.mxu0 0
  %1119 = vmatpush1.bf16.msra.mxu0 0
  %1120 = vmatprep.mubr.bf16.mxu0 0
  %1121 = vmatmul.mubr.bf16.gmra.mrb[0].mxu0 %v1004
  %v1122 = vpop.f32.mrb[0].mxu0
  %v1123 = vadd.f32 0.0, %v1122
  %v1124 = vpop.f32.mrb[0].mxu0
  %v1125 = vpop.f32.mrb[0].mxu0
  %v1126 = vadd.f32 0.0, %v1125
  %v1127 = vpop.f32.mrb[0].mxu0
  %1128 = vmatprep.mubr.bf16.mxu0 0
  %1129 = vmatmul.mubr.bf16.gmra.mrb[0].mxu0 %v1006
  %v1130 = vpop.f32.mrb[0].mxu0
  %v1131 = vadd.f32 0.0, %v1130
  %v1132 = vpop.f32.mrb[0].mxu0
  %v1133 = vpop.f32.mrb[0].mxu0
  %v1134 = vadd.f32 0.0, %v1133
  %v1135 = vpop.f32.mrb[0].mxu0
  %1136 = vmatprep.mubr.bf16.mxu0 0
  %1137 = vmatmul.mubr.bf16.gmra.mrb[0].mxu0 %v1008
  %v1138 = vpop.f32.mrb[0].mxu0
  %v1139 = vadd.f32 0.0, %v1138
  %v1140 = vpop.f32.mrb[0].mxu0
  %v1141 = vpop.f32.mrb[0].mxu0
  %v1142 = vadd.f32 0.0, %v1141
  %v1143 = vpop.f32.mrb[0].mxu0
  %1144 = vmatprep.mubr.bf16.mxu0 0
  %1145 = vmatmul.mubr.bf16.gmra.mrb[0].mxu0 %v1010
  %v1146 = vpop.f32.mrb[0].mxu0
  %v1147 = vadd.f32 0.0, %v1146
  %v1148 = vpop.f32.mrb[0].mxu0
  %v1149 = vpop.f32.mrb[0].mxu0
  %v1150 = vadd.f32 0.0, %v1149
  %v1151 = vpop.f32.mrb[0].mxu0
  %1152 = vmatprep.mubr.bf16.mxu0 0
  %1153 = vmatmul.mubr.bf16.gmra.mrb[0].mxu0 %v1012
  %v1154 = vpop.f32.mrb[0].mxu0
  %v1155 = vadd.f32 0.0, %v1154
  %v1156 = vpop.f32.mrb[0].mxu0
  %v1157 = vpop.f32.mrb[0].mxu0
  %v1158 = vadd.f32 0.0, %v1157
  %v1159 = vpop.f32.mrb[0].mxu0
  %1160 = vmatprep.mubr.bf16.mxu0 0
  %1161 = vmatmul.mubr.bf16.gmra.mrb[0].mxu0 %v1014
  %v1162 = vpop.f32.mrb[0].mxu0
  %v1163 = vadd.f32 0.0, %v1162
  %v1164 = vpop.f32.mrb[0].mxu0
  %v1165 = vpop.f32.mrb[0].mxu0
  %v1166 = vadd.f32 0.0, %v1165
  %v1167 = vpop.f32.mrb[0].mxu0
  %1168 = vmatprep.mubr.bf16.mxu0 0
  %1169 = vmatmul.mubr.bf16.gmra.mrb[0].mxu0 %v1016
  %v1170 = vpop.f32.mrb[0].mxu0
  %v1171 = vadd.f32 0.0, %v1170
  %v1172 = vpop.f32.mrb[0].mxu0
  %v1173 = vpop.f32.mrb[0].mxu0
  %v1174 = vadd.f32 0.0, %v1173
  %v1175 = vpop.f32.mrb[0].mxu0
  %1176 = vmatprep.mubr.bf16.mxu0 0
  %1177 = vmatmul.mubr.bf16.gmra.mrb[0].mxu0 %v1018
  %v1178 = vpop.f32.mrb[0].mxu0
  %v1179 = vadd.f32 0.0, %v1178
  %v1180 = vpop.f32.mrb[0].mxu0
  %v1181 = vpop.f32.mrb[0].mxu0
  %v1182 = vadd.f32 0.0, %v1181
  %v1183 = vpop.f32.mrb[0].mxu0
  %1184 = vmatprep.mubr.bf16.mxu0 0
  %1185 = vmatmul.mubr.bf16.gmra.mrb[0].mxu0 %v1020
  %v1186 = vpop.f32.mrb[0].mxu0
  %v1187 = vadd.f32 0.0, %v1186
  %v1188 = vpop.f32.mrb[0].mxu0
  %v1189 = vpop.f32.mrb[0].mxu0
  %v1190 = vadd.f32 0.0, %v1189
  %v1191 = vpop.f32.mrb[0].mxu0
  %1192 = vmatprep.mubr.bf16.mxu0 0
  %1193 = vmatmul.mubr.bf16.gmra.mrb[0].mxu0 %v1022
  %v1194 = vpop.f32.mrb[0].mxu0
  %v1195 = vadd.f32 0.0, %v1194
  %v1196 = vpop.f32.mrb[0].mxu0
  %v1197 = vpop.f32.mrb[0].mxu0
  %v1198 = vadd.f32 0.0, %v1197
  %v1199 = vpop.f32.mrb[0].mxu0
  %1200 = vmatprep.mubr.bf16.mxu0 0
  %1201 = vmatmul.mubr.bf16.gmra.mrb[0].mxu0 %v1024
  %v1202 = vpop.f32.mrb[0].mxu0
  %v1203 = vadd.f32 0.0, %v1202
  %v1204 = vpop.f32.mrb[0].mxu0
  %v1205 = vpop.f32.mrb[0].mxu0
  %v1206 = vadd.f32 0.0, %v1205
  %v1207 = vpop.f32.mrb[0].mxu0
  %1208 = vmatprep.mubr.bf16.mxu0 0
  %1209 = vmatmul.mubr.bf16.gmra.mrb[0].mxu0 %v1026
  %v1210 = vpop.f32.mrb[0].mxu0
  %v1211 = vadd.f32 0.0, %v1210
  %v1212 = vpop.f32.mrb[0].mxu0
  %v1213 = vpop.f32.mrb[0].mxu0
  %v1214 = vadd.f32 0.0, %v1213
  %v1215 = vpop.f32.mrb[0].mxu0
  %1216 = vmatprep.mubr.bf16.mxu0 0
  %1217 = vmatmul.mubr.bf16.gmra.mrb[0].mxu0 %v1025
  %v1218 = vpop.f32.mrb[0].mxu0
  %v1219 = vadd.f32 0.0, %v1218
  %v1220 = vpop.f32.mrb[0].mxu0
  %v1221 = vpop.f32.mrb[0].mxu0
  %v1222 = vpop.f32.mrb[0].mxu0
  %1223 = vdwg.mxu0
  %v1224 = vadd.f32 %v934, %v1123
  %v1225 = vadd.f32 %v935, %v1126
  %v1226 = vadd.f32 %v936, %v1131
  %v1227 = vadd.f32 %v937, %v1134
  %v1228 = vadd.f32 %v938, %v1139
  %v1229 = vadd.f32 %v939, %v1142
  %v1230 = vadd.f32 %v940, %v1147
  %v1231 = vadd.f32 %v941, %v1150
  %v1232 = vadd.f32 %v942, %v1155
  %v1233 = vadd.f32 %v943, %v1158
  %v1234 = vadd.f32 %v944, %v1163
  %v1235 = vadd.f32 %v945, %v1166
  %v1236 = vadd.f32 %v946, %v1171
  %v1237 = vadd.f32 %v947, %v1174
  %v1238 = vadd.f32 %v948, %v1179
  %v1239 = vadd.f32 %v949, %v1182
  %v1240 = vadd.f32 %v950, %v1187
  %v1241 = vadd.f32 %v951, %v1190
  %v1242 = vadd.f32 %v952, %v1195
  %v1243 = vadd.f32 %v953, %v1198
  %v1244 = vadd.f32 %v954, %v1203
  %v1245 = vadd.f32 %v955, %v1206
  %v1246 = vadd.f32 %v956, %v1211
  %v1247 = vadd.f32 %v957, %v1214
  %v1248 = vadd.f32 %v958, %v1219
  %s1249 = scalar_lea.vmem %s3, 256
  %v1250 = vld [vmem:[%s1249] sm:$0xf]
  %v1251 = vld [vmem:[%s1249 + $0x4] sm:$0xf]
  %v1252 = vld [vmem:[%s1249 + $0x8] sm:$0xf]
  %v1253 = vld [vmem:[%s1249 + $0xc] sm:$0xf]
  %v1254 = vld [vmem:[%s1249 + $0x10] sm:$0xf]
  %v1255 = vld [vmem:[%s1249 + $0x14] sm:$0xf]
  %v1256 = vld [vmem:[%s1249 + $0x18] sm:$0xf]
  %v1257 = vld [vmem:[%s1249 + $0x1c] sm:$0xf]
  %v1258 = vld [vmem:[%s1249 + $0x20] sm:$0xf]
  %v1259 = vld [vmem:[%s1249 + $0x24] sm:$0xf]
  %v1260 = vld [vmem:[%s1249 + $0x28] sm:$0xf]
  %v1261 = vld [vmem:[%s1249 + $0x2c] sm:$0xf]
  %v1262 = vld [vmem:[%s1249 + $0x30] sm:$0xf]
  %v1263 = vld [vmem:[%s1249 + $0x34] sm:$0xf]
  %v1264 = vld [vmem:[%s1249 + $0x38] sm:$0xf]
  %v1265 = vld [vmem:[%s1249 + $0x3c] sm:$0xf]
  %vm1266 = vsmask.f32 6400
  %v1268 = vshrl.u32 %v959, 16
  %v1270 = vrot.slane %v1268, 1
  %v1271 = vshll.u32 %v959, 16
  %v1273 = vrot.slane %v1271, 2
  %v1274 = vor.u32 %v1270, %v1273
  %v1276 = vshrl.u32 %v960, 16
  %v1278 = vrot.slane %v1276, 1
  %v1279 = vshll.u32 %v960, 16
  %v1281 = vrot.slane %v1279, 2
  %v1282 = vor.u32 %v1278, %v1281
  %v1283 = vsel %vm1266, %v1274, %v1282
  %v1285 = vshrl.u32 %v961, 16
  %v1287 = vrot.slane %v1285, 1
  %v1288 = vshll.u32 %v961, 16
  %v1290 = vrot.slane %v1288, 2
  %v1291 = vor.u32 %v1287, %v1290
  %v1292 = vsel %vm1266, %v1282, %v1291
  %v1294 = vshrl.u32 %v962, 16
  %v1296 = vrot.slane %v1294, 1
  %v1297 = vshll.u32 %v962, 16
  %v1299 = vrot.slane %v1297, 2
  %v1300 = vor.u32 %v1296, %v1299
  %v1301 = vsel %vm1266, %v1291, %v1300
  %v1303 = vshrl.u32 %v963, 16
  %v1305 = vrot.slane %v1303, 1
  %v1306 = vshll.u32 %v963, 16
  %v1308 = vrot.slane %v1306, 2
  %v1309 = vor.u32 %v1305, %v1308
  %v1310 = vsel %vm1266, %v1300, %v1309
  %v1312 = vshrl.u32 %v964, 16
  %v1314 = vrot.slane %v1312, 1
  %v1315 = vshll.u32 %v964, 16
  %v1317 = vrot.slane %v1315, 2
  %v1318 = vor.u32 %v1314, %v1317
  %v1319 = vsel %vm1266, %v1309, %v1318
  %v1321 = vshrl.u32 %v965, 16
  %v1323 = vrot.slane %v1321, 1
  %v1324 = vshll.u32 %v965, 16
  %v1326 = vrot.slane %v1324, 2
  %v1327 = vor.u32 %v1323, %v1326
  %v1328 = vsel %vm1266, %v1318, %v1327
  %v1330 = vshrl.u32 %v966, 16
  %v1332 = vrot.slane %v1330, 1
  %v1333 = vshll.u32 %v966, 16
  %v1335 = vrot.slane %v1333, 2
  %v1336 = vor.u32 %v1332, %v1335
  %v1337 = vsel %vm1266, %v1327, %v1336
  %v1339 = vshrl.u32 %v967, 16
  %v1341 = vrot.slane %v1339, 1
  %v1342 = vshll.u32 %v967, 16
  %v1344 = vrot.slane %v1342, 2
  %v1345 = vor.u32 %v1341, %v1344
  %v1346 = vsel %vm1266, %v1336, %v1345
  %v1348 = vshrl.u32 %v968, 16
  %v1350 = vrot.slane %v1348, 1
  %v1351 = vshll.u32 %v968, 16
  %v1353 = vrot.slane %v1351, 2
  %v1354 = vor.u32 %v1350, %v1353
  %v1355 = vsel %vm1266, %v1345, %v1354
  %v1357 = vshrl.u32 %v969, 16
  %v1359 = vrot.slane %v1357, 1
  %v1360 = vshll.u32 %v969, 16
  %v1362 = vrot.slane %v1360, 2
  %v1363 = vor.u32 %v1359, %v1362
  %v1364 = vsel %vm1266, %v1354, %v1363
  %v1366 = vshrl.u32 %v970, 16
  %v1368 = vrot.slane %v1366, 1
  %v1369 = vshll.u32 %v970, 16
  %v1371 = vrot.slane %v1369, 2
  %v1372 = vor.u32 %v1368, %v1371
  %v1373 = vsel %vm1266, %v1363, %v1372
  %v1375 = vshrl.u32 %v971, 16
  %v1377 = vrot.slane %v1375, 1
  %v1378 = vshll.u32 %v971, 16
  %v1380 = vrot.slane %v1378, 2
  %v1381 = vor.u32 %v1377, %v1380
  %v1382 = vsel %vm1266, %v1372, %v1381
  %v1412 = vunpack.c.l.b16 %v1250
  %v1413 = vunpack.c.l.b16 %v1251
  %v1414 = vunpack.c.l.b16 %v1252
  %v1415 = vunpack.c.l.b16 %v1253
  %v1416 = vunpack.c.l.b16 %v1254
  %v1417 = vunpack.c.l.b16 %v1255
  %v1418 = vunpack.c.l.b16 %v1256
  %v1419 = vunpack.c.l.b16 %v1257
  %v1420 = vunpack.c.l.b16 %v1258
  %v1421 = vunpack.c.l.b16 %v1259
  %v1422 = vunpack.c.l.b16 %v1260
  %v1423 = vunpack.c.l.b16 %v1261
  %v1424 = vunpack.c.l.b16 %v1262
  %v1425 = vunpack.c.l.b16 %v1263
  %v1426 = vunpack.c.l.b16 %v1264
  %v1427 = vunpack.c.l.b16 %v1265
  %v1428 = vpack.c.b16 %v1413, %v1412
  %v1429 = vpack.c.b16 %v1415, %v1414
  %v1430 = vpack.c.b16 %v1417, %v1416
  %v1431 = vpack.c.b16 %v1419, %v1418
  %v1432 = vpack.c.b16 %v1421, %v1420
  %v1433 = vpack.c.b16 %v1423, %v1422
  %v1434 = vpack.c.b16 %v1425, %v1424
  %v1435 = vpack.c.b16 %v1427, %v1426
  %1444 = vmatprep.subr.bf16.mxu0 0
  %1445 = vmatpush1.bf16.msra.mxu0 %v1428
  %1446 = vmatprep.subr.bf16.mxu0 0
  %1447 = vmatpush1.bf16.msra.mxu0 %v1429
  %1448 = vmatprep.subr.bf16.mxu0 0
  %1449 = vmatpush1.bf16.msra.mxu0 %v1430
  %1450 = vmatprep.subr.bf16.mxu0 0
  %1451 = vmatpush1.bf16.msra.mxu0 %v1431
  %1452 = vmatprep.subr.bf16.mxu0 0
  %1453 = vmatpush1.bf16.msra.mxu0 %v1432
  %1454 = vmatprep.subr.bf16.mxu0 0
  %1455 = vmatpush1.bf16.msra.mxu0 %v1433
  %1456 = vmatprep.subr.bf16.mxu0 0
  %1457 = vmatpush1.bf16.msra.mxu0 %v1434
  %1458 = vmatprep.subr.bf16.mxu0 0
  %1459 = vmatpush1.bf16.msra.mxu0 %v1435
  %1460 = vmatprep.subr.bf16.mxu0 0
  %1461 = vmatpush1.bf16.msra.mxu0 0
  %1462 = vmatprep.subr.bf16.mxu0 0
  %1463 = vmatpush1.bf16.msra.mxu0 0
  %1464 = vmatprep.subr.bf16.mxu0 0
  %1465 = vmatpush1.bf16.msra.mxu0 0
  %1466 = vmatprep.subr.bf16.mxu0 0
  %1467 = vmatpush1.bf16.msra.mxu0 0
  %1468 = vmatprep.subr.bf16.mxu0 0
  %1469 = vmatpush1.bf16.msra.mxu0 0
  %1470 = vmatprep.subr.bf16.mxu0 0
  %1471 = vmatpush1.bf16.msra.mxu0 0
  %1472 = vmatprep.subr.bf16.mxu0 0
  %1473 = vmatpush1.bf16.msra.mxu0 0
  %1474 = vmatprep.subr.bf16.mxu0 0
  %1475 = vmatpush1.bf16.msra.mxu0 0
  %1476 = vmatprep.mubr.bf16.mxu0 0
  %1477 = vmatmul.mubr.bf16.gmra.mrb[0].mxu0 %v1283
  %v1478 = vpop.f32.mrb[0].mxu0
  %v1479 = vadd.f32 0.0, %v1478
  %v1480 = vpop.f32.mrb[0].mxu0
  %v1481 = vpop.f32.mrb[0].mxu0
  %v1482 = vadd.f32 0.0, %v1481
  %v1483 = vpop.f32.mrb[0].mxu0
  %1484 = vmatprep.mubr.bf16.mxu0 0
  %1485 = vmatmul.mubr.bf16.gmra.mrb[0].mxu0 %v1292
  %v1486 = vpop.f32.mrb[0].mxu0
  %v1487 = vadd.f32 0.0, %v1486
  %v1488 = vpop.f32.mrb[0].mxu0
  %v1489 = vpop.f32.mrb[0].mxu0
  %v1490 = vadd.f32 0.0, %v1489
  %v1491 = vpop.f32.mrb[0].mxu0
  %1492 = vmatprep.mubr.bf16.mxu0 0
  %1493 = vmatmul.mubr.bf16.gmra.mrb[0].mxu0 %v1301
  %v1494 = vpop.f32.mrb[0].mxu0
  %v1495 = vadd.f32 0.0, %v1494
  %v1496 = vpop.f32.mrb[0].mxu0
  %v1497 = vpop.f32.mrb[0].mxu0
  %v1498 = vadd.f32 0.0, %v1497
  %v1499 = vpop.f32.mrb[0].mxu0
  %1500 = vmatprep.mubr.bf16.mxu0 0
  %1501 = vmatmul.mubr.bf16.gmra.mrb[0].mxu0 %v1310
  %v1502 = vpop.f32.mrb[0].mxu0
  %v1503 = vadd.f32 0.0, %v1502
  %v1504 = vpop.f32.mrb[0].mxu0
  %v1505 = vpop.f32.mrb[0].mxu0
  %v1506 = vadd.f32 0.0, %v1505
  %v1507 = vpop.f32.mrb[0].mxu0
  %1508 = vmatprep.mubr.bf16.mxu0 0
  %1509 = vmatmul.mubr.bf16.gmra.mrb[0].mxu0 %v1319
  %v1510 = vpop.f32.mrb[0].mxu0
  %v1511 = vadd.f32 0.0, %v1510
  %v1512 = vpop.f32.mrb[0].mxu0
  %v1513 = vpop.f32.mrb[0].mxu0
  %v1514 = vadd.f32 0.0, %v1513
  %v1515 = vpop.f32.mrb[0].mxu0
  %1516 = vmatprep.mubr.bf16.mxu0 0
  %1517 = vmatmul.mubr.bf16.gmra.mrb[0].mxu0 %v1328
  %v1518 = vpop.f32.mrb[0].mxu0
  %v1519 = vadd.f32 0.0, %v1518
  %v1520 = vpop.f32.mrb[0].mxu0
  %v1521 = vpop.f32.mrb[0].mxu0
  %v1522 = vadd.f32 0.0, %v1521
  %v1523 = vpop.f32.mrb[0].mxu0
  %1524 = vmatprep.mubr.bf16.mxu0 0
  %1525 = vmatmul.mubr.bf16.gmra.mrb[0].mxu0 %v1337
  %v1526 = vpop.f32.mrb[0].mxu0
  %v1527 = vadd.f32 0.0, %v1526
  %v1528 = vpop.f32.mrb[0].mxu0
  %v1529 = vpop.f32.mrb[0].mxu0
  %v1530 = vadd.f32 0.0, %v1529
  %v1531 = vpop.f32.mrb[0].mxu0
  %1532 = vmatprep.mubr.bf16.mxu0 0
  %1533 = vmatmul.mubr.bf16.gmra.mrb[0].mxu0 %v1346
  %v1534 = vpop.f32.mrb[0].mxu0
  %v1535 = vadd.f32 0.0, %v1534
  %v1536 = vpop.f32.mrb[0].mxu0
  %v1537 = vpop.f32.mrb[0].mxu0
  %v1538 = vadd.f32 0.0, %v1537
  %v1539 = vpop.f32.mrb[0].mxu0
  %1540 = vmatprep.mubr.bf16.mxu0 0
  %1541 = vmatmul.mubr.bf16.gmra.mrb[0].mxu0 %v1355
  %v1542 = vpop.f32.mrb[0].mxu0
  %v1543 = vadd.f32 0.0, %v1542
  %v1544 = vpop.f32.mrb[0].mxu0
  %v1545 = vpop.f32.mrb[0].mxu0
  %v1546 = vadd.f32 0.0, %v1545
  %v1547 = vpop.f32.mrb[0].mxu0
  %1548 = vmatprep.mubr.bf16.mxu0 0
  %1549 = vmatmul.mubr.bf16.gmra.mrb[0].mxu0 %v1364
  %v1550 = vpop.f32.mrb[0].mxu0
  %v1551 = vadd.f32 0.0, %v1550
  %v1552 = vpop.f32.mrb[0].mxu0
  %v1553 = vpop.f32.mrb[0].mxu0
  %v1554 = vadd.f32 0.0, %v1553
  %v1555 = vpop.f32.mrb[0].mxu0
  %1556 = vmatprep.mubr.bf16.mxu0 0
  %1557 = vmatmul.mubr.bf16.gmra.mrb[0].mxu0 %v1373
  %v1558 = vpop.f32.mrb[0].mxu0
  %v1559 = vadd.f32 0.0, %v1558
  %v1560 = vpop.f32.mrb[0].mxu0
  %v1561 = vpop.f32.mrb[0].mxu0
  %v1562 = vadd.f32 0.0, %v1561
  %v1563 = vpop.f32.mrb[0].mxu0
  %1564 = vmatprep.mubr.bf16.mxu0 0
  %1565 = vmatmul.mubr.bf16.gmra.mrb[0].mxu0 %v1382
  %v1566 = vpop.f32.mrb[0].mxu0
  %v1567 = vadd.f32 0.0, %v1566
  %v1568 = vpop.f32.mrb[0].mxu0
  %v1569 = vpop.f32.mrb[0].mxu0
  %v1570 = vadd.f32 0.0, %v1569
  %v1571 = vpop.f32.mrb[0].mxu0
  %1572 = vmatprep.mubr.bf16.mxu0 0
  %1573 = vmatmul.mubr.bf16.gmra.mrb[0].mxu0 %v1381
  %v1574 = vpop.f32.mrb[0].mxu0
  %v1575 = vadd.f32 0.0, %v1574
  %v1576 = vpop.f32.mrb[0].mxu0
  %v1577 = vpop.f32.mrb[0].mxu0
  %v1578 = vpop.f32.mrb[0].mxu0
  %1579 = vdwg.mxu0
  %v1580 = vadd.f32 %v1224, %v1479
  %v1581 = vadd.f32 %v1225, %v1482
  %v1582 = vadd.f32 %v1226, %v1487
  %v1583 = vadd.f32 %v1227, %v1490
  %v1584 = vadd.f32 %v1228, %v1495
  %v1585 = vadd.f32 %v1229, %v1498
  %v1586 = vadd.f32 %v1230, %v1503
  %v1587 = vadd.f32 %v1231, %v1506
  %v1588 = vadd.f32 %v1232, %v1511
  %v1589 = vadd.f32 %v1233, %v1514
  %v1590 = vadd.f32 %v1234, %v1519
  %v1591 = vadd.f32 %v1235, %v1522
  %v1592 = vadd.f32 %v1236, %v1527
  %v1593 = vadd.f32 %v1237, %v1530
  %v1594 = vadd.f32 %v1238, %v1535
  %v1595 = vadd.f32 %v1239, %v1538
  %v1596 = vadd.f32 %v1240, %v1543
  %v1597 = vadd.f32 %v1241, %v1546
  %v1598 = vadd.f32 %v1242, %v1551
  %v1599 = vadd.f32 %v1243, %v1554
  %v1600 = vadd.f32 %v1244, %v1559
  %v1601 = vadd.f32 %v1245, %v1562
  %v1602 = vadd.f32 %v1246, %v1567
  %v1603 = vadd.f32 %v1247, %v1570
  %v1604 = vadd.f32 %v1248, %v1575
  %s1605 = scalar_lea.vmem %s3, 320
  %v1606 = vld [vmem:[%s1605] sm:$0xf]
  %v1607 = vld [vmem:[%s1605 + $0x4] sm:$0xf]
  %v1608 = vld [vmem:[%s1605 + $0x8] sm:$0xf]
  %v1609 = vld [vmem:[%s1605 + $0xc] sm:$0xf]
  %v1610 = vld [vmem:[%s1605 + $0x10] sm:$0xf]
  %v1611 = vld [vmem:[%s1605 + $0x14] sm:$0xf]
  %v1612 = vld [vmem:[%s1605 + $0x18] sm:$0xf]
  %v1613 = vld [vmem:[%s1605 + $0x1c] sm:$0xf]
  %v1614 = vld [vmem:[%s1605 + $0x20] sm:$0xf]
  %v1615 = vld [vmem:[%s1605 + $0x24] sm:$0xf]
  %v1616 = vld [vmem:[%s1605 + $0x28] sm:$0xf]
  %v1617 = vld [vmem:[%s1605 + $0x2c] sm:$0xf]
  %v1618 = vld [vmem:[%s1605 + $0x30] sm:$0xf]
  %v1619 = vld [vmem:[%s1605 + $0x34] sm:$0xf]
  %v1620 = vld [vmem:[%s1605 + $0x38] sm:$0xf]
  %v1621 = vld [vmem:[%s1605 + $0x3c] sm:$0xf]
  %vm1622 = vcmask 1045504
  %v1623 = vrot.slane %v959, 2
  %v1624 = vrot.slane %v960, 2
  %v1625 = vsel %vm1622, %v1623, %v1624
  %v1626 = vrot.slane %v961, 2
  %v1627 = vsel %vm1622, %v1624, %v1626
  %v1628 = vrot.slane %v962, 2
  %v1629 = vsel %vm1622, %v1626, %v1628
  %v1630 = vrot.slane %v963, 2
  %v1631 = vsel %vm1622, %v1628, %v1630
  %v1632 = vrot.slane %v964, 2
  %v1633 = vsel %vm1622, %v1630, %v1632
  %v1634 = vrot.slane %v965, 2
  %v1635 = vsel %vm1622, %v1632, %v1634
  %v1636 = vrot.slane %v966, 2
  %v1637 = vsel %vm1622, %v1634, %v1636
  %v1638 = vrot.slane %v967, 2
  %v1639 = vsel %vm1622, %v1636, %v1638
  %v1640 = vrot.slane %v968, 2
  %v1641 = vsel %vm1622, %v1638, %v1640
  %v1642 = vrot.slane %v969, 2
  %v1643 = vsel %vm1622, %v1640, %v1642
  %v1644 = vrot.slane %v970, 2
  %v1645 = vsel %vm1622, %v1642, %v1644
  %v1646 = vrot.slane %v971, 2
  %v1647 = vsel %vm1622, %v1644, %v1646
  %v1677 = vunpack.c.l.b16 %v1606
  %v1678 = vunpack.c.l.b16 %v1607
  %v1679 = vunpack.c.l.b16 %v1608
  %v1680 = vunpack.c.l.b16 %v1609
  %v1681 = vunpack.c.l.b16 %v1610
  %v1682 = vunpack.c.l.b16 %v1611
  %v1683 = vunpack.c.l.b16 %v1612
  %v1684 = vunpack.c.l.b16 %v1613
  %v1685 = vunpack.c.l.b16 %v1614
  %v1686 = vunpack.c.l.b16 %v1615
  %v1687 = vunpack.c.l.b16 %v1616
  %v1688 = vunpack.c.l.b16 %v1617
  %v1689 = vunpack.c.l.b16 %v1618
  %v1690 = vunpack.c.l.b16 %v1619
  %v1691 = vunpack.c.l.b16 %v1620
  %v1692 = vunpack.c.l.b16 %v1621
  %v1693 = vpack.c.b16 %v1678, %v1677
  %v1694 = vpack.c.b16 %v1680, %v1679
  %v1695 = vpack.c.b16 %v1682, %v1681
  %v1696 = vpack.c.b16 %v1684, %v1683
  %v1697 = vpack.c.b16 %v1686, %v1685
  %v1698 = vpack.c.b16 %v1688, %v1687
  %v1699 = vpack.c.b16 %v1690, %v1689
  %v1700 = vpack.c.b16 %v1692, %v1691
  %1709 = vmatprep.subr.bf16.mxu0 0
  %1710 = vmatpush1.bf16.msra.mxu0 %v1693
  %1711 = vmatprep.subr.bf16.mxu0 0
  %1712 = vmatpush1.bf16.msra.mxu0 %v1694
  %1713 = vmatprep.subr.bf16.mxu0 0
  %1714 = vmatpush1.bf16.msra.mxu0 %v1695
  %1715 = vmatprep.subr.bf16.mxu0 0
  %1716 = vmatpush1.bf16.msra.mxu0 %v1696
  %1717 = vmatprep.subr.bf16.mxu0 0
  %1718 = vmatpush1.bf16.msra.mxu0 %v1697
  %1719 = vmatprep.subr.bf16.mxu0 0
  %1720 = vmatpush1.bf16.msra.mxu0 %v1698
  %1721 = vmatprep.subr.bf16.mxu0 0
  %1722 = vmatpush1.bf16.msra.mxu0 %v1699
  %1723 = vmatprep.subr.bf16.mxu0 0
  %1724 = vmatpush1.bf16.msra.mxu0 %v1700
  %1725 = vmatprep.subr.bf16.mxu0 0
  %1726 = vmatpush1.bf16.msra.mxu0 0
  %1727 = vmatprep.subr.bf16.mxu0 0
  %1728 = vmatpush1.bf16.msra.mxu0 0
  %1729 = vmatprep.subr.bf16.mxu0 0
  %1730 = vmatpush1.bf16.msra.mxu0 0
  %1731 = vmatprep.subr.bf16.mxu0 0
  %1732 = vmatpush1.bf16.msra.mxu0 0
  %1733 = vmatprep.subr.bf16.mxu0 0
  %1734 = vmatpush1.bf16.msra.mxu0 0
  %1735 = vmatprep.subr.bf16.mxu0 0
  %1736 = vmatpush1.bf16.msra.mxu0 0
  %1737 = vmatprep.subr.bf16.mxu0 0
  %1738 = vmatpush1.bf16.msra.mxu0 0
  %1739 = vmatprep.subr.bf16.mxu0 0
  %1740 = vmatpush1.bf16.msra.mxu0 0
  %1741 = vmatprep.mubr.bf16.mxu0 0
  %1742 = vmatmul.mubr.bf16.gmra.mrb[0].mxu0 %v1625
  %v1743 = vpop.f32.mrb[0].mxu0
  %v1744 = vadd.f32 0.0, %v1743
  %v1745 = vpop.f32.mrb[0].mxu0
  %v1746 = vpop.f32.mrb[0].mxu0
  %v1747 = vadd.f32 0.0, %v1746
  %v1748 = vpop.f32.mrb[0].mxu0
  %1749 = vmatprep.mubr.bf16.mxu0 0
  %1750 = vmatmul.mubr.bf16.gmra.mrb[0].mxu0 %v1627
  %v1751 = vpop.f32.mrb[0].mxu0
  %v1752 = vadd.f32 0.0, %v1751
  %v1753 = vpop.f32.mrb[0].mxu0
  %v1754 = vpop.f32.mrb[0].mxu0
  %v1755 = vadd.f32 0.0, %v1754
  %v1756 = vpop.f32.mrb[0].mxu0
  %1757 = vmatprep.mubr.bf16.mxu0 0
  %1758 = vmatmul.mubr.bf16.gmra.mrb[0].mxu0 %v1629
  %v1759 = vpop.f32.mrb[0].mxu0
  %v1760 = vadd.f32 0.0, %v1759
  %v1761 = vpop.f32.mrb[0].mxu0
  %v1762 = vpop.f32.mrb[0].mxu0
  %v1763 = vadd.f32 0.0, %v1762
  %v1764 = vpop.f32.mrb[0].mxu0
  %1765 = vmatprep.mubr.bf16.mxu0 0
  %1766 = vmatmul.mubr.bf16.gmra.mrb[0].mxu0 %v1631
  %v1767 = vpop.f32.mrb[0].mxu0
  %v1768 = vadd.f32 0.0, %v1767
  %v1769 = vpop.f32.mrb[0].mxu0
  %v1770 = vpop.f32.mrb[0].mxu0
  %v1771 = vadd.f32 0.0, %v1770
  %v1772 = vpop.f32.mrb[0].mxu0
  %1773 = vmatprep.mubr.bf16.mxu0 0
  %1774 = vmatmul.mubr.bf16.gmra.mrb[0].mxu0 %v1633
  %v1775 = vpop.f32.mrb[0].mxu0
  %v1776 = vadd.f32 0.0, %v1775
  %v1777 = vpop.f32.mrb[0].mxu0
  %v1778 = vpop.f32.mrb[0].mxu0
  %v1779 = vadd.f32 0.0, %v1778
  %v1780 = vpop.f32.mrb[0].mxu0
  %1781 = vmatprep.mubr.bf16.mxu0 0
  %1782 = vmatmul.mubr.bf16.gmra.mrb[0].mxu0 %v1635
  %v1783 = vpop.f32.mrb[0].mxu0
  %v1784 = vadd.f32 0.0, %v1783
  %v1785 = vpop.f32.mrb[0].mxu0
  %v1786 = vpop.f32.mrb[0].mxu0
  %v1787 = vadd.f32 0.0, %v1786
  %v1788 = vpop.f32.mrb[0].mxu0
  %1789 = vmatprep.mubr.bf16.mxu0 0
  %1790 = vmatmul.mubr.bf16.gmra.mrb[0].mxu0 %v1637
  %v1791 = vpop.f32.mrb[0].mxu0
  %v1792 = vadd.f32 0.0, %v1791
  %v1793 = vpop.f32.mrb[0].mxu0
  %v1794 = vpop.f32.mrb[0].mxu0
  %v1795 = vadd.f32 0.0, %v1794
  %v1796 = vpop.f32.mrb[0].mxu0
  %1797 = vmatprep.mubr.bf16.mxu0 0
  %1798 = vmatmul.mubr.bf16.gmra.mrb[0].mxu0 %v1639
  %v1799 = vpop.f32.mrb[0].mxu0
  %v1800 = vadd.f32 0.0, %v1799
  %v1801 = vpop.f32.mrb[0].mxu0
  %v1802 = vpop.f32.mrb[0].mxu0
  %v1803 = vadd.f32 0.0, %v1802
  %v1804 = vpop.f32.mrb[0].mxu0
  %1805 = vmatprep.mubr.bf16.mxu0 0
  %1806 = vmatmul.mubr.bf16.gmra.mrb[0].mxu0 %v1641
  %v1807 = vpop.f32.mrb[0].mxu0
  %v1808 = vadd.f32 0.0, %v1807
  %v1809 = vpop.f32.mrb[0].mxu0
  %v1810 = vpop.f32.mrb[0].mxu0
  %v1811 = vadd.f32 0.0, %v1810
  %v1812 = vpop.f32.mrb[0].mxu0
  %1813 = vmatprep.mubr.bf16.mxu0 0
  %1814 = vmatmul.mubr.bf16.gmra.mrb[0].mxu0 %v1643
  %v1815 = vpop.f32.mrb[0].mxu0
  %v1816 = vadd.f32 0.0, %v1815
  %v1817 = vpop.f32.mrb[0].mxu0
  %v1818 = vpop.f32.mrb[0].mxu0
  %v1819 = vadd.f32 0.0, %v1818
  %v1820 = vpop.f32.mrb[0].mxu0
  %1821 = vmatprep.mubr.bf16.mxu0 0
  %1822 = vmatmul.mubr.bf16.gmra.mrb[0].mxu0 %v1645
  %v1823 = vpop.f32.mrb[0].mxu0
  %v1824 = vadd.f32 0.0, %v1823
  %v1825 = vpop.f32.mrb[0].mxu0
  %v1826 = vpop.f32.mrb[0].mxu0
  %v1827 = vadd.f32 0.0, %v1826
  %v1828 = vpop.f32.mrb[0].mxu0
  %1829 = vmatprep.mubr.bf16.mxu0 0
  %1830 = vmatmul.mubr.bf16.gmra.mrb[0].mxu0 %v1647
  %v1831 = vpop.f32.mrb[0].mxu0
  %v1832 = vadd.f32 0.0, %v1831
  %v1833 = vpop.f32.mrb[0].mxu0
  %v1834 = vpop.f32.mrb[0].mxu0
  %v1835 = vadd.f32 0.0, %v1834
  %v1836 = vpop.f32.mrb[0].mxu0
  %1837 = vmatprep.mubr.bf16.mxu0 0
  %1838 = vmatmul.mubr.bf16.gmra.mrb[0].mxu0 %v1646
  %v1839 = vpop.f32.mrb[0].mxu0
  %v1840 = vadd.f32 0.0, %v1839
  %v1841 = vpop.f32.mrb[0].mxu0
  %v1842 = vpop.f32.mrb[0].mxu0
  %v1843 = vpop.f32.mrb[0].mxu0
  %1844 = vdwg.mxu0
  %v1845 = vadd.f32 %v1580, %v1744
  %v1846 = vadd.f32 %v1581, %v1747
  %v1847 = vadd.f32 %v1582, %v1752
  %v1848 = vadd.f32 %v1583, %v1755
  %v1849 = vadd.f32 %v1584, %v1760
  %v1850 = vadd.f32 %v1585, %v1763
  %v1851 = vadd.f32 %v1586, %v1768
  %v1852 = vadd.f32 %v1587, %v1771
  %v1853 = vadd.f32 %v1588, %v1776
  %v1854 = vadd.f32 %v1589, %v1779
  %v1855 = vadd.f32 %v1590, %v1784
  %v1856 = vadd.f32 %v1591, %v1787
  %v1857 = vadd.f32 %v1592, %v1792
  %v1858 = vadd.f32 %v1593, %v1795
  %v1859 = vadd.f32 %v1594, %v1800
  %v1860 = vadd.f32 %v1595, %v1803
  %v1861 = vadd.f32 %v1596, %v1808
  %v1862 = vadd.f32 %v1597, %v1811
  %v1863 = vadd.f32 %v1598, %v1816
  %v1864 = vadd.f32 %v1599, %v1819
  %v1865 = vadd.f32 %v1600, %v1824
  %v1866 = vadd.f32 %v1601, %v1827
  %v1867 = vadd.f32 %v1602, %v1832
  %v1868 = vadd.f32 %v1603, %v1835
  %v1869 = vadd.f32 %v1604, %v1840
  %v1870 = vpack.c.bf16 %v148, %v147
  %s1871 = scalar_lea.vmem %s3, 384
  %v1872 = vld [vmem:[%s1871] sm:$0xf]
  %v1873 = vld [vmem:[%s1871 + $0x4] sm:$0xf]
  %v1874 = vld [vmem:[%s1871 + $0x8] sm:$0xf]
  %v1875 = vld [vmem:[%s1871 + $0xc] sm:$0xf]
  %v1876 = vld [vmem:[%s1871 + $0x10] sm:$0xf]
  %v1877 = vld [vmem:[%s1871 + $0x14] sm:$0xf]
  %v1878 = vld [vmem:[%s1871 + $0x18] sm:$0xf]
  %v1879 = vld [vmem:[%s1871 + $0x1c] sm:$0xf]
  %v1880 = vld [vmem:[%s1871 + $0x20] sm:$0xf]
  %v1881 = vld [vmem:[%s1871 + $0x24] sm:$0xf]
  %v1882 = vld [vmem:[%s1871 + $0x28] sm:$0xf]
  %v1883 = vld [vmem:[%s1871 + $0x2c] sm:$0xf]
  %v1884 = vld [vmem:[%s1871 + $0x30] sm:$0xf]
  %v1885 = vld [vmem:[%s1871 + $0x34] sm:$0xf]
  %v1886 = vld [vmem:[%s1871 + $0x38] sm:$0xf]
  %v1887 = vld [vmem:[%s1871 + $0x3c] sm:$0xf]
  %v1889 = vrot.slane %v150, 2
  %v1890 = vrot.slane %v151, 2
  %v1891 = vsel %vm1622, %v1889, %v1890
  %v1892 = vrot.slane %v152, 2
  %v1893 = vsel %vm1622, %v1890, %v1892
  %v1894 = vrot.slane %v153, 2
  %v1895 = vsel %vm1622, %v1892, %v1894
  %v1896 = vrot.slane %v154, 2
  %v1897 = vsel %vm1622, %v1894, %v1896
  %v1898 = vrot.slane %v155, 2
  %v1899 = vsel %vm1622, %v1896, %v1898
  %v1900 = vrot.slane %v156, 2
  %v1901 = vsel %vm1622, %v1898, %v1900
  %v1902 = vrot.slane %v157, 2
  %v1903 = vsel %vm1622, %v1900, %v1902
  %v1904 = vrot.slane %v158, 2
  %v1905 = vsel %vm1622, %v1902, %v1904
  %v1906 = vrot.slane %v159, 2
  %v1907 = vsel %vm1622, %v1904, %v1906
  %v1908 = vrot.slane %v160, 2
  %v1909 = vsel %vm1622, %v1906, %v1908
  %v1910 = vrot.slane %v178, 2
  %v1911 = vsel %vm1622, %v1908, %v1910
  %v1912 = vrot.slane %v1870, 2
  %v1913 = vsel %vm1622, %v1910, %v1912
  %v1943 = vunpack.c.l.b16 %v1872
  %v1944 = vunpack.c.l.b16 %v1873
  %v1945 = vunpack.c.l.b16 %v1874
  %v1946 = vunpack.c.l.b16 %v1875
  %v1947 = vunpack.c.l.b16 %v1876
  %v1948 = vunpack.c.l.b16 %v1877
  %v1949 = vunpack.c.l.b16 %v1878
  %v1950 = vunpack.c.l.b16 %v1879
  %v1951 = vunpack.c.l.b16 %v1880
  %v1952 = vunpack.c.l.b16 %v1881
  %v1953 = vunpack.c.l.b16 %v1882
  %v1954 = vunpack.c.l.b16 %v1883
  %v1955 = vunpack.c.l.b16 %v1884
  %v1956 = vunpack.c.l.b16 %v1885
  %v1957 = vunpack.c.l.b16 %v1886
  %v1958 = vunpack.c.l.b16 %v1887
  %v1959 = vpack.c.b16 %v1944, %v1943
  %v1960 = vpack.c.b16 %v1946, %v1945
  %v1961 = vpack.c.b16 %v1948, %v1947
  %v1962 = vpack.c.b16 %v1950, %v1949
  %v1963 = vpack.c.b16 %v1952, %v1951
  %v1964 = vpack.c.b16 %v1954, %v1953
  %v1965 = vpack.c.b16 %v1956, %v1955
  %v1966 = vpack.c.b16 %v1958, %v1957
  %1975 = vmatprep.subr.bf16.mxu0 0
  %1976 = vmatpush1.bf16.msra.mxu0 %v1959
  %1977 = vmatprep.subr.bf16.mxu0 0
  %1978 = vmatpush1.bf16.msra.mxu0 %v1960
  %1979 = vmatprep.subr.bf16.mxu0 0
  %1980 = vmatpush1.bf16.msra.mxu0 %v1961
  %1981 = vmatprep.subr.bf16.mxu0 0
  %1982 = vmatpush1.bf16.msra.mxu0 %v1962
  %1983 = vmatprep.subr.bf16.mxu0 0
  %1984 = vmatpush1.bf16.msra.mxu0 %v1963
  %1985 = vmatprep.subr.bf16.mxu0 0
  %1986 = vmatpush1.bf16.msra.mxu0 %v1964
  %1987 = vmatprep.subr.bf16.mxu0 0
  %1988 = vmatpush1.bf16.msra.mxu0 %v1965
  %1989 = vmatprep.subr.bf16.mxu0 0
  %1990 = vmatpush1.bf16.msra.mxu0 %v1966
  %1991 = vmatprep.subr.bf16.mxu0 0
  %1992 = vmatpush1.bf16.msra.mxu0 0
  %1993 = vmatprep.subr.bf16.mxu0 0
  %1994 = vmatpush1.bf16.msra.mxu0 0
  %1995 = vmatprep.subr.bf16.mxu0 0
  %1996 = vmatpush1.bf16.msra.mxu0 0
  %1997 = vmatprep.subr.bf16.mxu0 0
  %1998 = vmatpush1.bf16.msra.mxu0 0
  %1999 = vmatprep.subr.bf16.mxu0 0
  %2000 = vmatpush1.bf16.msra.mxu0 0
  %2001 = vmatprep.subr.bf16.mxu0 0
  %2002 = vmatpush1.bf16.msra.mxu0 0
  %2003 = vmatprep.subr.bf16.mxu0 0
  %2004 = vmatpush1.bf16.msra.mxu0 0
  %2005 = vmatprep.subr.bf16.mxu0 0
  %2006 = vmatpush1.bf16.msra.mxu0 0
  %2007 = vmatprep.mubr.bf16.mxu0 0
  %2008 = vmatmul.mubr.bf16.gmra.mrb[0].mxu0 %v1891
  %v2009 = vpop.f32.mrb[0].mxu0
  %v2010 = vadd.f32 0.0, %v2009
  %v2011 = vpop.f32.mrb[0].mxu0
  %v2012 = vpop.f32.mrb[0].mxu0
  %v2013 = vadd.f32 0.0, %v2012
  %v2014 = vpop.f32.mrb[0].mxu0
  %2015 = vmatprep.mubr.bf16.mxu0 0
  %2016 = vmatmul.mubr.bf16.gmra.mrb[0].mxu0 %v1893
  %v2017 = vpop.f32.mrb[0].mxu0
  %v2018 = vadd.f32 0.0, %v2017
  %v2019 = vpop.f32.mrb[0].mxu0
  %v2020 = vpop.f32.mrb[0].mxu0
  %v2021 = vadd.f32 0.0, %v2020
  %v2022 = vpop.f32.mrb[0].mxu0
  %2023 = vmatprep.mubr.bf16.mxu0 0
  %2024 = vmatmul.mubr.bf16.gmra.mrb[0].mxu0 %v1895
  %v2025 = vpop.f32.mrb[0].mxu0
  %v2026 = vadd.f32 0.0, %v2025
  %v2027 = vpop.f32.mrb[0].mxu0
  %v2028 = vpop.f32.mrb[0].mxu0
  %v2029 = vadd.f32 0.0, %v2028
  %v2030 = vpop.f32.mrb[0].mxu0
  %2031 = vmatprep.mubr.bf16.mxu0 0
  %2032 = vmatmul.mubr.bf16.gmra.mrb[0].mxu0 %v1897
  %v2033 = vpop.f32.mrb[0].mxu0
  %v2034 = vadd.f32 0.0, %v2033
  %v2035 = vpop.f32.mrb[0].mxu0
  %v2036 = vpop.f32.mrb[0].mxu0
  %v2037 = vadd.f32 0.0, %v2036
  %v2038 = vpop.f32.mrb[0].mxu0
  %2039 = vmatprep.mubr.bf16.mxu0 0
  %2040 = vmatmul.mubr.bf16.gmra.mrb[0].mxu0 %v1899
  %v2041 = vpop.f32.mrb[0].mxu0
  %v2042 = vadd.f32 0.0, %v2041
  %v2043 = vpop.f32.mrb[0].mxu0
  %v2044 = vpop.f32.mrb[0].mxu0
  %v2045 = vadd.f32 0.0, %v2044
  %v2046 = vpop.f32.mrb[0].mxu0
  %2047 = vmatprep.mubr.bf16.mxu0 0
  %2048 = vmatmul.mubr.bf16.gmra.mrb[0].mxu0 %v1901
  %v2049 = vpop.f32.mrb[0].mxu0
  %v2050 = vadd.f32 0.0, %v2049
  %v2051 = vpop.f32.mrb[0].mxu0
  %v2052 = vpop.f32.mrb[0].mxu0
  %v2053 = vadd.f32 0.0, %v2052
  %v2054 = vpop.f32.mrb[0].mxu0
  %2055 = vmatprep.mubr.bf16.mxu0 0
  %2056 = vmatmul.mubr.bf16.gmra.mrb[0].mxu0 %v1903
  %v2057 = vpop.f32.mrb[0].mxu0
  %v2058 = vadd.f32 0.0, %v2057
  %v2059 = vpop.f32.mrb[0].mxu0
  %v2060 = vpop.f32.mrb[0].mxu0
  %v2061 = vadd.f32 0.0, %v2060
  %v2062 = vpop.f32.mrb[0].mxu0
  %2063 = vmatprep.mubr.bf16.mxu0 0
  %2064 = vmatmul.mubr.bf16.gmra.mrb[0].mxu0 %v1905
  %v2065 = vpop.f32.mrb[0].mxu0
  %v2066 = vadd.f32 0.0, %v2065
  %v2067 = vpop.f32.mrb[0].mxu0
  %v2068 = vpop.f32.mrb[0].mxu0
  %v2069 = vadd.f32 0.0, %v2068
  %v2070 = vpop.f32.mrb[0].mxu0
  %2071 = vmatprep.mubr.bf16.mxu0 0
  %2072 = vmatmul.mubr.bf16.gmra.mrb[0].mxu0 %v1907
  %v2073 = vpop.f32.mrb[0].mxu0
  %v2074 = vadd.f32 0.0, %v2073
  %v2075 = vpop.f32.mrb[0].mxu0
  %v2076 = vpop.f32.mrb[0].mxu0
  %v2077 = vadd.f32 0.0, %v2076
  %v2078 = vpop.f32.mrb[0].mxu0
  %2079 = vmatprep.mubr.bf16.mxu0 0
  %2080 = vmatmul.mubr.bf16.gmra.mrb[0].mxu0 %v1909
  %v2081 = vpop.f32.mrb[0].mxu0
  %v2082 = vadd.f32 0.0, %v2081
  %v2083 = vpop.f32.mrb[0].mxu0
  %v2084 = vpop.f32.mrb[0].mxu0
  %v2085 = vadd.f32 0.0, %v2084
  %v2086 = vpop.f32.mrb[0].mxu0
  %2087 = vmatprep.mubr.bf16.mxu0 0
  %2088 = vmatmul.mubr.bf16.gmra.mrb[0].mxu0 %v1911
  %v2089 = vpop.f32.mrb[0].mxu0
  %v2090 = vadd.f32 0.0, %v2089
  %v2091 = vpop.f32.mrb[0].mxu0
  %v2092 = vpop.f32.mrb[0].mxu0
  %v2093 = vadd.f32 0.0, %v2092
  %v2094 = vpop.f32.mrb[0].mxu0
  %2095 = vmatprep.mubr.bf16.mxu0 0
  %2096 = vmatmul.mubr.bf16.gmra.mrb[0].mxu0 %v1913
  %v2097 = vpop.f32.mrb[0].mxu0
  %v2098 = vadd.f32 0.0, %v2097
  %v2099 = vpop.f32.mrb[0].mxu0
  %v2100 = vpop.f32.mrb[0].mxu0
  %v2101 = vadd.f32 0.0, %v2100
  %v2102 = vpop.f32.mrb[0].mxu0
  %2103 = vmatprep.mubr.bf16.mxu0 0
  %2104 = vmatmul.mubr.bf16.gmra.mrb[0].mxu0 %v1912
  %v2105 = vpop.f32.mrb[0].mxu0
  %v2106 = vadd.f32 0.0, %v2105
  %v2107 = vpop.f32.mrb[0].mxu0
  %v2108 = vpop.f32.mrb[0].mxu0
  %v2109 = vpop.f32.mrb[0].mxu0
  %2110 = vdwg.mxu0
  %v2111 = vadd.f32 %v1845, %v2010
  %v2112 = vadd.f32 %v1846, %v2013
  %v2113 = vadd.f32 %v1847, %v2018
  %v2114 = vadd.f32 %v1848, %v2021
  %v2115 = vadd.f32 %v1849, %v2026
  %v2116 = vadd.f32 %v1850, %v2029
  %v2117 = vadd.f32 %v1851, %v2034
  %v2118 = vadd.f32 %v1852, %v2037
  %v2119 = vadd.f32 %v1853, %v2042
  %v2120 = vadd.f32 %v1854, %v2045
  %v2121 = vadd.f32 %v1855, %v2050
  %v2122 = vadd.f32 %v1856, %v2053
  %v2123 = vadd.f32 %v1857, %v2058
  %v2124 = vadd.f32 %v1858, %v2061
  %v2125 = vadd.f32 %v1859, %v2066
  %v2126 = vadd.f32 %v1860, %v2069
  %v2127 = vadd.f32 %v1861, %v2074
  %v2128 = vadd.f32 %v1862, %v2077
  %v2129 = vadd.f32 %v1863, %v2082
  %v2130 = vadd.f32 %v1864, %v2085
  %v2131 = vadd.f32 %v1865, %v2090
  %v2132 = vadd.f32 %v1866, %v2093
  %v2133 = vadd.f32 %v1867, %v2098
  %v2134 = vadd.f32 %v1868, %v2101
  %v2135 = vadd.f32 %v1869, %v2106
  %s2136 = scalar_lea.vmem %s3, 448
  %v2137 = vld [vmem:[%s2136] sm:$0xf]
  %v2138 = vld [vmem:[%s2136 + $0x4] sm:$0xf]
  %v2139 = vld [vmem:[%s2136 + $0x8] sm:$0xf]
  %v2140 = vld [vmem:[%s2136 + $0xc] sm:$0xf]
  %v2141 = vld [vmem:[%s2136 + $0x10] sm:$0xf]
  %v2142 = vld [vmem:[%s2136 + $0x14] sm:$0xf]
  %v2143 = vld [vmem:[%s2136 + $0x18] sm:$0xf]
  %v2144 = vld [vmem:[%s2136 + $0x1c] sm:$0xf]
  %v2145 = vld [vmem:[%s2136 + $0x20] sm:$0xf]
  %v2146 = vld [vmem:[%s2136 + $0x24] sm:$0xf]
  %v2147 = vld [vmem:[%s2136 + $0x28] sm:$0xf]
  %v2148 = vld [vmem:[%s2136 + $0x2c] sm:$0xf]
  %v2149 = vld [vmem:[%s2136 + $0x30] sm:$0xf]
  %v2150 = vld [vmem:[%s2136 + $0x34] sm:$0xf]
  %v2151 = vld [vmem:[%s2136 + $0x38] sm:$0xf]
  %v2152 = vld [vmem:[%s2136 + $0x3c] sm:$0xf]
  %vm2153 = vsmask.f32 5376
  %v2154 = vrot.slane %v209, 2
  %v2155 = vrot.slane %v205, 3
  %v2156 = vor.u32 %v2154, %v2155
  %v2157 = vrot.slane %v217, 2
  %v2158 = vrot.slane %v213, 3
  %v2159 = vor.u32 %v2157, %v2158
  %v2160 = vsel %vm2153, %v2156, %v2159
  %v2161 = vrot.slane %v225, 2
  %v2162 = vrot.slane %v221, 3
  %v2163 = vor.u32 %v2161, %v2162
  %v2164 = vsel %vm2153, %v2159, %v2163
  %v2165 = vrot.slane %v233, 2
  %v2166 = vrot.slane %v229, 3
  %v2167 = vor.u32 %v2165, %v2166
  %v2168 = vsel %vm2153, %v2163, %v2167
  %v2169 = vrot.slane %v241, 2
  %v2170 = vrot.slane %v237, 3
  %v2171 = vor.u32 %v2169, %v2170
  %v2172 = vsel %vm2153, %v2167, %v2171
  %v2173 = vrot.slane %v249, 2
  %v2174 = vrot.slane %v245, 3
  %v2175 = vor.u32 %v2173, %v2174
  %v2176 = vsel %vm2153, %v2171, %v2175
  %v2177 = vrot.slane %v257, 2
  %v2178 = vrot.slane %v253, 3
  %v2179 = vor.u32 %v2177, %v2178
  %v2180 = vsel %vm2153, %v2175, %v2179
  %v2181 = vrot.slane %v265, 2
  %v2182 = vrot.slane %v261, 3
  %v2183 = vor.u32 %v2181, %v2182
  %v2184 = vsel %vm2153, %v2179, %v2183
  %v2185 = vrot.slane %v273, 2
  %v2186 = vrot.slane %v269, 3
  %v2187 = vor.u32 %v2185, %v2186
  %v2188 = vsel %vm2153, %v2183, %v2187
  %v2189 = vrot.slane %v281, 2
  %v2190 = vrot.slane %v277, 3
  %v2191 = vor.u32 %v2189, %v2190
  %v2192 = vsel %vm2153, %v2187, %v2191
  %v2193 = vrot.slane %v289, 2
  %v2194 = vrot.slane %v285, 3
  %v2195 = vor.u32 %v2193, %v2194
  %v2196 = vsel %vm2153, %v2191, %v2195
  %v2197 = vrot.slane %v297, 2
  %v2198 = vrot.slane %v293, 3
  %v2199 = vor.u32 %v2197, %v2198
  %v2200 = vsel %vm2153, %v2195, %v2199
  %v2202 = vshrl.u32 %v1870, 16
  %v2204 = vrot.slane %v2202, 2
  %v2205 = vshll.u32 %v1870, 16
  %v2207 = vrot.slane %v2205, 3
  %v2208 = vor.u32 %v2204, %v2207
  %v2209 = vsel %vm2153, %v2199, %v2208
  %v2239 = vunpack.c.l.b16 %v2137
  %v2240 = vunpack.c.l.b16 %v2138
  %v2241 = vunpack.c.l.b16 %v2139
  %v2242 = vunpack.c.l.b16 %v2140
  %v2243 = vunpack.c.l.b16 %v2141
  %v2244 = vunpack.c.l.b16 %v2142
  %v2245 = vunpack.c.l.b16 %v2143
  %v2246 = vunpack.c.l.b16 %v2144
  %v2247 = vunpack.c.l.b16 %v2145
  %v2248 = vunpack.c.l.b16 %v2146
  %v2249 = vunpack.c.l.b16 %v2147
  %v2250 = vunpack.c.l.b16 %v2148
  %v2251 = vunpack.c.l.b16 %v2149
  %v2252 = vunpack.c.l.b16 %v2150
  %v2253 = vunpack.c.l.b16 %v2151
  %v2254 = vunpack.c.l.b16 %v2152
  %v2255 = vpack.c.b16 %v2240, %v2239
  %v2256 = vpack.c.b16 %v2242, %v2241
  %v2257 = vpack.c.b16 %v2244, %v2243
  %v2258 = vpack.c.b16 %v2246, %v2245
  %v2259 = vpack.c.b16 %v2248, %v2247
  %v2260 = vpack.c.b16 %v2250, %v2249
  %v2261 = vpack.c.b16 %v2252, %v2251
  %v2262 = vpack.c.b16 %v2254, %v2253
  %2271 = vmatprep.subr.bf16.mxu0 0
  %2272 = vmatpush1.bf16.msra.mxu0 %v2255
  %2273 = vmatprep.subr.bf16.mxu0 0
  %2274 = vmatpush1.bf16.msra.mxu0 %v2256
  %2275 = vmatprep.subr.bf16.mxu0 0
  %2276 = vmatpush1.bf16.msra.mxu0 %v2257
  %2277 = vmatprep.subr.bf16.mxu0 0
  %2278 = vmatpush1.bf16.msra.mxu0 %v2258
  %2279 = vmatprep.subr.bf16.mxu0 0
  %2280 = vmatpush1.bf16.msra.mxu0 %v2259
  %2281 = vmatprep.subr.bf16.mxu0 0
  %2282 = vmatpush1.bf16.msra.mxu0 %v2260
  %2283 = vmatprep.subr.bf16.mxu0 0
  %2284 = vmatpush1.bf16.msra.mxu0 %v2261
  %2285 = vmatprep.subr.bf16.mxu0 0
  %2286 = vmatpush1.bf16.msra.mxu0 %v2262
  %2287 = vmatprep.subr.bf16.mxu0 0
  %2288 = vmatpush1.bf16.msra.mxu0 0
  %2289 = vmatprep.subr.bf16.mxu0 0
  %2290 = vmatpush1.bf16.msra.mxu0 0
  %2291 = vmatprep.subr.bf16.mxu0 0
  %2292 = vmatpush1.bf16.msra.mxu0 0
  %2293 = vmatprep.subr.bf16.mxu0 0
  %2294 = vmatpush1.bf16.msra.mxu0 0
  %2295 = vmatprep.subr.bf16.mxu0 0
  %2296 = vmatpush1.bf16.msra.mxu0 0
  %2297 = vmatprep.subr.bf16.mxu0 0
  %2298 = vmatpush1.bf16.msra.mxu0 0
  %2299 = vmatprep.subr.bf16.mxu0 0
  %2300 = vmatpush1.bf16.msra.mxu0 0
  %2301 = vmatprep.subr.bf16.mxu0 0
  %2302 = vmatpush1.bf16.msra.mxu0 0
  %2303 = vmatprep.mubr.bf16.mxu0 0
  %2304 = vmatmul.mubr.bf16.gmra.mrb[0].mxu0 %v2160
  %v2305 = vpop.f32.mrb[0].mxu0
  %v2306 = vadd.f32 0.0, %v2305
  %v2307 = vpop.f32.mrb[0].mxu0
  %v2308 = vpop.f32.mrb[0].mxu0
  %v2309 = vadd.f32 0.0, %v2308
  %v2310 = vpop.f32.mrb[0].mxu0
  %2311 = vmatprep.mubr.bf16.mxu0 0
  %2312 = vmatmul.mubr.bf16.gmra.mrb[0].mxu0 %v2164
  %v2313 = vpop.f32.mrb[0].mxu0
  %v2314 = vadd.f32 0.0, %v2313
  %v2315 = vpop.f32.mrb[0].mxu0
  %v2316 = vpop.f32.mrb[0].mxu0
  %v2317 = vadd.f32 0.0, %v2316
  %v2318 = vpop.f32.mrb[0].mxu0
  %2319 = vmatprep.mubr.bf16.mxu0 0
  %2320 = vmatmul.mubr.bf16.gmra.mrb[0].mxu0 %v2168
  %v2321 = vpop.f32.mrb[0].mxu0
  %v2322 = vadd.f32 0.0, %v2321
  %v2323 = vpop.f32.mrb[0].mxu0
  %v2324 = vpop.f32.mrb[0].mxu0
  %v2325 = vadd.f32 0.0, %v2324
  %v2326 = vpop.f32.mrb[0].mxu0
  %2327 = vmatprep.mubr.bf16.mxu0 0
  %2328 = vmatmul.mubr.bf16.gmra.mrb[0].mxu0 %v2172
  %v2329 = vpop.f32.mrb[0].mxu0
  %v2330 = vadd.f32 0.0, %v2329
  %v2331 = vpop.f32.mrb[0].mxu0
  %v2332 = vpop.f32.mrb[0].mxu0
  %v2333 = vadd.f32 0.0, %v2332
  %v2334 = vpop.f32.mrb[0].mxu0
  %2335 = vmatprep.mubr.bf16.mxu0 0
  %2336 = vmatmul.mubr.bf16.gmra.mrb[0].mxu0 %v2176
  %v2337 = vpop.f32.mrb[0].mxu0
  %v2338 = vadd.f32 0.0, %v2337
  %v2339 = vpop.f32.mrb[0].mxu0
  %v2340 = vpop.f32.mrb[0].mxu0
  %v2341 = vadd.f32 0.0, %v2340
  %v2342 = vpop.f32.mrb[0].mxu0
  %2343 = vmatprep.mubr.bf16.mxu0 0
  %2344 = vmatmul.mubr.bf16.gmra.mrb[0].mxu0 %v2180
  %v2345 = vpop.f32.mrb[0].mxu0
  %v2346 = vadd.f32 0.0, %v2345
  %v2347 = vpop.f32.mrb[0].mxu0
  %v2348 = vpop.f32.mrb[0].mxu0
  %v2349 = vadd.f32 0.0, %v2348
  %v2350 = vpop.f32.mrb[0].mxu0
  %2351 = vmatprep.mubr.bf16.mxu0 0
  %2352 = vmatmul.mubr.bf16.gmra.mrb[0].mxu0 %v2184
  %v2353 = vpop.f32.mrb[0].mxu0
  %v2354 = vadd.f32 0.0, %v2353
  %v2355 = vpop.f32.mrb[0].mxu0
  %v2356 = vpop.f32.mrb[0].mxu0
  %v2357 = vadd.f32 0.0, %v2356
  %v2358 = vpop.f32.mrb[0].mxu0
  %2359 = vmatprep.mubr.bf16.mxu0 0
  %2360 = vmatmul.mubr.bf16.gmra.mrb[0].mxu0 %v2188
  %v2361 = vpop.f32.mrb[0].mxu0
  %v2362 = vadd.f32 0.0, %v2361
  %v2363 = vpop.f32.mrb[0].mxu0
  %v2364 = vpop.f32.mrb[0].mxu0
  %v2365 = vadd.f32 0.0, %v2364
  %v2366 = vpop.f32.mrb[0].mxu0
  %2367 = vmatprep.mubr.bf16.mxu0 0
  %2368 = vmatmul.mubr.bf16.gmra.mrb[0].mxu0 %v2192
  %v2369 = vpop.f32.mrb[0].mxu0
  %v2370 = vadd.f32 0.0, %v2369
  %v2371 = vpop.f32.mrb[0].mxu0
  %v2372 = vpop.f32.mrb[0].mxu0
  %v2373 = vadd.f32 0.0, %v2372
  %v2374 = vpop.f32.mrb[0].mxu0
  %2375 = vmatprep.mubr.bf16.mxu0 0
  %2376 = vmatmul.mubr.bf16.gmra.mrb[0].mxu0 %v2196
  %v2377 = vpop.f32.mrb[0].mxu0
  %v2378 = vadd.f32 0.0, %v2377
  %v2379 = vpop.f32.mrb[0].mxu0
  %v2380 = vpop.f32.mrb[0].mxu0
  %v2381 = vadd.f32 0.0, %v2380
  %v2382 = vpop.f32.mrb[0].mxu0
  %2383 = vmatprep.mubr.bf16.mxu0 0
  %2384 = vmatmul.mubr.bf16.gmra.mrb[0].mxu0 %v2200
  %v2385 = vpop.f32.mrb[0].mxu0
  %v2386 = vadd.f32 0.0, %v2385
  %v2387 = vpop.f32.mrb[0].mxu0
  %v2388 = vpop.f32.mrb[0].mxu0
  %v2389 = vadd.f32 0.0, %v2388
  %v2390 = vpop.f32.mrb[0].mxu0
  %2391 = vmatprep.mubr.bf16.mxu0 0
  %2392 = vmatmul.mubr.bf16.gmra.mrb[0].mxu0 %v2209
  %v2393 = vpop.f32.mrb[0].mxu0
  %v2394 = vadd.f32 0.0, %v2393
  %v2395 = vpop.f32.mrb[0].mxu0
  %v2396 = vpop.f32.mrb[0].mxu0
  %v2397 = vadd.f32 0.0, %v2396
  %v2398 = vpop.f32.mrb[0].mxu0
  %2399 = vmatprep.mubr.bf16.mxu0 0
  %2400 = vmatmul.mubr.bf16.gmra.mrb[0].mxu0 %v2208
  %v2401 = vpop.f32.mrb[0].mxu0
  %v2402 = vadd.f32 0.0, %v2401
  %v2403 = vpop.f32.mrb[0].mxu0
  %v2404 = vpop.f32.mrb[0].mxu0
  %v2405 = vpop.f32.mrb[0].mxu0
  %2406 = vdwg.mxu0
  %v2407 = vadd.f32 %v2111, %v2306
  %v2408 = vadd.f32 %v2112, %v2309
  %v2409 = vadd.f32 %v2113, %v2314
  %v2410 = vadd.f32 %v2114, %v2317
  %v2411 = vadd.f32 %v2115, %v2322
  %v2412 = vadd.f32 %v2116, %v2325
  %v2413 = vadd.f32 %v2117, %v2330
  %v2414 = vadd.f32 %v2118, %v2333
  %v2415 = vadd.f32 %v2119, %v2338
  %v2416 = vadd.f32 %v2120, %v2341
  %v2417 = vadd.f32 %v2121, %v2346
  %v2418 = vadd.f32 %v2122, %v2349
  %v2419 = vadd.f32 %v2123, %v2354
  %v2420 = vadd.f32 %v2124, %v2357
  %v2421 = vadd.f32 %v2125, %v2362
  %v2422 = vadd.f32 %v2126, %v2365
  %v2423 = vadd.f32 %v2127, %v2370
  %v2424 = vadd.f32 %v2128, %v2373
  %v2425 = vadd.f32 %v2129, %v2378
  %v2426 = vadd.f32 %v2130, %v2381
  %v2427 = vadd.f32 %v2131, %v2386
  %v2428 = vadd.f32 %v2132, %v2389
  %v2429 = vadd.f32 %v2133, %v2394
  %v2430 = vadd.f32 %v2134, %v2397
  %v2431 = vadd.f32 %v2135, %v2402
  %s2432 = scalar_lea.vmem %s3, 512
  %v2433 = vld [vmem:[%s2432] sm:$0xf]
  %v2434 = vld [vmem:[%s2432 + $0x4] sm:$0xf]
  %v2435 = vld [vmem:[%s2432 + $0x8] sm:$0xf]
  %v2436 = vld [vmem:[%s2432 + $0xc] sm:$0xf]
  %v2437 = vld [vmem:[%s2432 + $0x10] sm:$0xf]
  %v2438 = vld [vmem:[%s2432 + $0x14] sm:$0xf]
  %v2439 = vld [vmem:[%s2432 + $0x18] sm:$0xf]
  %v2440 = vld [vmem:[%s2432 + $0x1c] sm:$0xf]
  %v2441 = vld [vmem:[%s2432 + $0x20] sm:$0xf]
  %v2442 = vld [vmem:[%s2432 + $0x24] sm:$0xf]
  %v2443 = vld [vmem:[%s2432 + $0x28] sm:$0xf]
  %v2444 = vld [vmem:[%s2432 + $0x2c] sm:$0xf]
  %v2445 = vld [vmem:[%s2432 + $0x30] sm:$0xf]
  %v2446 = vld [vmem:[%s2432 + $0x34] sm:$0xf]
  %v2447 = vld [vmem:[%s2432 + $0x38] sm:$0xf]
  %v2448 = vld [vmem:[%s2432 + $0x3c] sm:$0xf]
  %vm2449 = vcmask 1044480
  %v2450 = vrot.slane %v150, 3
  %v2451 = vrot.slane %v151, 3
  %v2452 = vsel %vm2449, %v2450, %v2451
  %v2453 = vrot.slane %v152, 3
  %v2454 = vsel %vm2449, %v2451, %v2453
  %v2455 = vrot.slane %v153, 3
  %v2456 = vsel %vm2449, %v2453, %v2455
  %v2457 = vrot.slane %v154, 3
  %v2458 = vsel %vm2449, %v2455, %v2457
  %v2459 = vrot.slane %v155, 3
  %v2460 = vsel %vm2449, %v2457, %v2459
  %v2461 = vrot.slane %v156, 3
  %v2462 = vsel %vm2449, %v2459, %v2461
  %v2463 = vrot.slane %v157, 3
  %v2464 = vsel %vm2449, %v2461, %v2463
  %v2465 = vrot.slane %v158, 3
  %v2466 = vsel %vm2449, %v2463, %v2465
  %v2467 = vrot.slane %v159, 3
  %v2468 = vsel %vm2449, %v2465, %v2467
  %v2469 = vrot.slane %v160, 3
  %v2470 = vsel %vm2449, %v2467, %v2469
  %v2471 = vrot.slane %v178, 3
  %v2472 = vsel %vm2449, %v2469, %v2471
  %v2473 = vrot.slane %v1870, 3
  %v2474 = vsel %vm2449, %v2471, %v2473
  %v2504 = vunpack.c.l.b16 %v2433
  %v2505 = vunpack.c.l.b16 %v2434
  %v2506 = vunpack.c.l.b16 %v2435
  %v2507 = vunpack.c.l.b16 %v2436
  %v2508 = vunpack.c.l.b16 %v2437
  %v2509 = vunpack.c.l.b16 %v2438
  %v2510 = vunpack.c.l.b16 %v2439
  %v2511 = vunpack.c.l.b16 %v2440
  %v2512 = vunpack.c.l.b16 %v2441
  %v2513 = vunpack.c.l.b16 %v2442
  %v2514 = vunpack.c.l.b16 %v2443
  %v2515 = vunpack.c.l.b16 %v2444
  %v2516 = vunpack.c.l.b16 %v2445
  %v2517 = vunpack.c.l.b16 %v2446
  %v2518 = vunpack.c.l.b16 %v2447
  %v2519 = vunpack.c.l.b16 %v2448
  %v2520 = vpack.c.b16 %v2505, %v2504
  %v2521 = vpack.c.b16 %v2507, %v2506
  %v2522 = vpack.c.b16 %v2509, %v2508
  %v2523 = vpack.c.b16 %v2511, %v2510
  %v2524 = vpack.c.b16 %v2513, %v2512
  %v2525 = vpack.c.b16 %v2515, %v2514
  %v2526 = vpack.c.b16 %v2517, %v2516
  %v2527 = vpack.c.b16 %v2519, %v2518
  %2536 = vmatprep.subr.bf16.mxu0 0
  %2537 = vmatpush1.bf16.msra.mxu0 %v2520
  %2538 = vmatprep.subr.bf16.mxu0 0
  %2539 = vmatpush1.bf16.msra.mxu0 %v2521
  %2540 = vmatprep.subr.bf16.mxu0 0
  %2541 = vmatpush1.bf16.msra.mxu0 %v2522
  %2542 = vmatprep.subr.bf16.mxu0 0
  %2543 = vmatpush1.bf16.msra.mxu0 %v2523
  %2544 = vmatprep.subr.bf16.mxu0 0
  %2545 = vmatpush1.bf16.msra.mxu0 %v2524
  %2546 = vmatprep.subr.bf16.mxu0 0
  %2547 = vmatpush1.bf16.msra.mxu0 %v2525
  %2548 = vmatprep.subr.bf16.mxu0 0
  %2549 = vmatpush1.bf16.msra.mxu0 %v2526
  %2550 = vmatprep.subr.bf16.mxu0 0
  %2551 = vmatpush1.bf16.msra.mxu0 %v2527
  %2552 = vmatprep.subr.bf16.mxu0 0
  %2553 = vmatpush1.bf16.msra.mxu0 0
  %2554 = vmatprep.subr.bf16.mxu0 0
  %2555 = vmatpush1.bf16.msra.mxu0 0
  %2556 = vmatprep.subr.bf16.mxu0 0
  %2557 = vmatpush1.bf16.msra.mxu0 0
  %2558 = vmatprep.subr.bf16.mxu0 0
  %2559 = vmatpush1.bf16.msra.mxu0 0
  %2560 = vmatprep.subr.bf16.mxu0 0
  %2561 = vmatpush1.bf16.msra.mxu0 0
  %2562 = vmatprep.subr.bf16.mxu0 0
  %2563 = vmatpush1.bf16.msra.mxu0 0
  %2564 = vmatprep.subr.bf16.mxu0 0
  %2565 = vmatpush1.bf16.msra.mxu0 0
  %2566 = vmatprep.subr.bf16.mxu0 0
  %2567 = vmatpush1.bf16.msra.mxu0 0
  %2568 = vmatprep.mubr.bf16.mxu0 0
  %2569 = vmatmul.mubr.bf16.gmra.mrb[0].mxu0 %v2452
  %v2570 = vpop.f32.mrb[0].mxu0
  %v2571 = vadd.f32 0.0, %v2570
  %v2572 = vpop.f32.mrb[0].mxu0
  %v2573 = vpop.f32.mrb[0].mxu0
  %v2574 = vadd.f32 0.0, %v2573
  %v2575 = vpop.f32.mrb[0].mxu0
  %2576 = vmatprep.mubr.bf16.mxu0 0
  %2577 = vmatmul.mubr.bf16.gmra.mrb[0].mxu0 %v2454
  %v2578 = vpop.f32.mrb[0].mxu0
  %v2579 = vadd.f32 0.0, %v2578
  %v2580 = vpop.f32.mrb[0].mxu0
  %v2581 = vpop.f32.mrb[0].mxu0
  %v2582 = vadd.f32 0.0, %v2581
  %v2583 = vpop.f32.mrb[0].mxu0
  %2584 = vmatprep.mubr.bf16.mxu0 0
  %2585 = vmatmul.mubr.bf16.gmra.mrb[0].mxu0 %v2456
  %v2586 = vpop.f32.mrb[0].mxu0
  %v2587 = vadd.f32 0.0, %v2586
  %v2588 = vpop.f32.mrb[0].mxu0
  %v2589 = vpop.f32.mrb[0].mxu0
  %v2590 = vadd.f32 0.0, %v2589
  %v2591 = vpop.f32.mrb[0].mxu0
  %2592 = vmatprep.mubr.bf16.mxu0 0
  %2593 = vmatmul.mubr.bf16.gmra.mrb[0].mxu0 %v2458
  %v2594 = vpop.f32.mrb[0].mxu0
  %v2595 = vadd.f32 0.0, %v2594
  %v2596 = vpop.f32.mrb[0].mxu0
  %v2597 = vpop.f32.mrb[0].mxu0
  %v2598 = vadd.f32 0.0, %v2597
  %v2599 = vpop.f32.mrb[0].mxu0
  %2600 = vmatprep.mubr.bf16.mxu0 0
  %2601 = vmatmul.mubr.bf16.gmra.mrb[0].mxu0 %v2460
  %v2602 = vpop.f32.mrb[0].mxu0
  %v2603 = vadd.f32 0.0, %v2602
  %v2604 = vpop.f32.mrb[0].mxu0
  %v2605 = vpop.f32.mrb[0].mxu0
  %v2606 = vadd.f32 0.0, %v2605
  %v2607 = vpop.f32.mrb[0].mxu0
  %2608 = vmatprep.mubr.bf16.mxu0 0
  %2609 = vmatmul.mubr.bf16.gmra.mrb[0].mxu0 %v2462
  %v2610 = vpop.f32.mrb[0].mxu0
  %v2611 = vadd.f32 0.0, %v2610
  %v2612 = vpop.f32.mrb[0].mxu0
  %v2613 = vpop.f32.mrb[0].mxu0
  %v2614 = vadd.f32 0.0, %v2613
  %v2615 = vpop.f32.mrb[0].mxu0
  %2616 = vmatprep.mubr.bf16.mxu0 0
  %2617 = vmatmul.mubr.bf16.gmra.mrb[0].mxu0 %v2464
  %v2618 = vpop.f32.mrb[0].mxu0
  %v2619 = vadd.f32 0.0, %v2618
  %v2620 = vpop.f32.mrb[0].mxu0
  %v2621 = vpop.f32.mrb[0].mxu0
  %v2622 = vadd.f32 0.0, %v2621
  %v2623 = vpop.f32.mrb[0].mxu0
  %2624 = vmatprep.mubr.bf16.mxu0 0
  %2625 = vmatmul.mubr.bf16.gmra.mrb[0].mxu0 %v2466
  %v2626 = vpop.f32.mrb[0].mxu0
  %v2627 = vadd.f32 0.0, %v2626
  %v2628 = vpop.f32.mrb[0].mxu0
  %v2629 = vpop.f32.mrb[0].mxu0
  %v2630 = vadd.f32 0.0, %v2629
  %v2631 = vpop.f32.mrb[0].mxu0
  %2632 = vmatprep.mubr.bf16.mxu0 0
  %2633 = vmatmul.mubr.bf16.gmra.mrb[0].mxu0 %v2468
  %v2634 = vpop.f32.mrb[0].mxu0
  %v2635 = vadd.f32 0.0, %v2634
  %v2636 = vpop.f32.mrb[0].mxu0
  %v2637 = vpop.f32.mrb[0].mxu0
  %v2638 = vadd.f32 0.0, %v2637
  %v2639 = vpop.f32.mrb[0].mxu0
  %2640 = vmatprep.mubr.bf16.mxu0 0
  %2641 = vmatmul.mubr.bf16.gmra.mrb[0].mxu0 %v2470
  %v2642 = vpop.f32.mrb[0].mxu0
  %v2643 = vadd.f32 0.0, %v2642
  %v2644 = vpop.f32.mrb[0].mxu0
  %v2645 = vpop.f32.mrb[0].mxu0
  %v2646 = vadd.f32 0.0, %v2645
  %v2647 = vpop.f32.mrb[0].mxu0
  %2648 = vmatprep.mubr.bf16.mxu0 0
  %2649 = vmatmul.mubr.bf16.gmra.mrb[0].mxu0 %v2472
  %v2650 = vpop.f32.mrb[0].mxu0
  %v2651 = vadd.f32 0.0, %v2650
  %v2652 = vpop.f32.mrb[0].mxu0
  %v2653 = vpop.f32.mrb[0].mxu0
  %v2654 = vadd.f32 0.0, %v2653
  %v2655 = vpop.f32.mrb[0].mxu0
  %2656 = vmatprep.mubr.bf16.mxu0 0
  %2657 = vmatmul.mubr.bf16.gmra.mrb[0].mxu0 %v2474
  %v2658 = vpop.f32.mrb[0].mxu0
  %v2659 = vadd.f32 0.0, %v2658
  %v2660 = vpop.f32.mrb[0].mxu0
  %v2661 = vpop.f32.mrb[0].mxu0
  %v2662 = vadd.f32 0.0, %v2661
  %v2663 = vpop.f32.mrb[0].mxu0
  %2664 = vmatprep.mubr.bf16.mxu0 0
  %2665 = vmatmul.mubr.bf16.gmra.mrb[0].mxu0 %v2473
  %v2666 = vpop.f32.mrb[0].mxu0
  %v2667 = vadd.f32 0.0, %v2666
  %v2668 = vpop.f32.mrb[0].mxu0
  %v2669 = vpop.f32.mrb[0].mxu0
  %v2670 = vpop.f32.mrb[0].mxu0
  %2671 = vdwg.mxu0
  %v2672 = vadd.f32 %v2407, %v2571
  %v2673 = vadd.f32 %v2408, %v2574
  %v2674 = vadd.f32 %v2409, %v2579
  %v2675 = vadd.f32 %v2410, %v2582
  %v2676 = vadd.f32 %v2411, %v2587
  %v2677 = vadd.f32 %v2412, %v2590
  %v2678 = vadd.f32 %v2413, %v2595
  %v2679 = vadd.f32 %v2414, %v2598
  %v2680 = vadd.f32 %v2415, %v2603
  %v2681 = vadd.f32 %v2416, %v2606
  %v2682 = vadd.f32 %v2417, %v2611
  %v2683 = vadd.f32 %v2418, %v2614
  %v2684 = vadd.f32 %v2419, %v2619
  %v2685 = vadd.f32 %v2420, %v2622
  %v2686 = vadd.f32 %v2421, %v2627
  %v2687 = vadd.f32 %v2422, %v2630
  %v2688 = vadd.f32 %v2423, %v2635
  %v2689 = vadd.f32 %v2424, %v2638
  %v2690 = vadd.f32 %v2425, %v2643
  %v2691 = vadd.f32 %v2426, %v2646
  %v2692 = vadd.f32 %v2427, %v2651
  %v2693 = vadd.f32 %v2428, %v2654
  %v2694 = vadd.f32 %v2429, %v2659
  %v2695 = vadd.f32 %v2430, %v2662
  %v2696 = vadd.f32 %v2431, %v2667
  %v2697 = vld [vmem:[%s4] sm:$0xff]
  %v2698 = vld [vmem:[%s4 + $0x8] sm:$0xff]
  %v2699 = vld [vmem:[%s4 + $0x10] sm:$0xff]
  %v2700 = vld [vmem:[%s4 + $0x18] sm:$0xff]
  %v2701 = vld [vmem:[%s4 + $0x20] sm:$0xff]
  %v2702 = vld [vmem:[%s4 + $0x28] sm:$0xff]
  %v2703 = vld [vmem:[%s4 + $0x30] sm:$0xff]
  %v2704 = vld [vmem:[%s4 + $0x38] sm:$0xff]
  %v2705 = vld [vmem:[%s4 + $0x40] sm:$0xff]
  %v2706 = vld [vmem:[%s4 + $0x48] sm:$0xff]
  %v2707 = vld [vmem:[%s4 + $0x50] sm:$0xff]
  %v2708 = vld [vmem:[%s4 + $0x58] sm:$0xff]
  %v2709 = vld [vmem:[%s4 + $0x60] sm:$0xff]
  %v2710 = vld [vmem:[%s4 + $0x68] sm:$0xff]
  %v2711 = vld [vmem:[%s4 + $0x70] sm:$0xff]
  %v2712 = vld [vmem:[%s4 + $0x78] sm:$0xff]
  %v2713 = vld [vmem:[%s4 + $0x80] sm:$0xff]
  %v2714 = vld [vmem:[%s4 + $0x88] sm:$0xff]
  %v2715 = vld [vmem:[%s4 + $0x90] sm:$0xff]
  %v2716 = vld [vmem:[%s4 + $0x98] sm:$0xff]
  %v2717 = vld [vmem:[%s4 + $0xa0] sm:$0xff]
  %v2718 = vld [vmem:[%s4 + $0xa8] sm:$0xff]
  %v2719 = vld [vmem:[%s4 + $0xb0] sm:$0xff]
  %v2720 = vld [vmem:[%s4 + $0xb8] sm:$0xff]
  %v2721 = vld [vmem:[%s4 + $0xc0] sm:$0xff]
  %v2722 = vadd.f32 %v2672, %v2697
  %v2723 = vadd.f32 %v2673, %v2698
  %v2724 = vadd.f32 %v2674, %v2699
  %v2725 = vadd.f32 %v2675, %v2700
  %v2726 = vadd.f32 %v2676, %v2701
  %v2727 = vadd.f32 %v2677, %v2702
  %v2728 = vadd.f32 %v2678, %v2703
  %v2729 = vadd.f32 %v2679, %v2704
  %v2730 = vadd.f32 %v2680, %v2705
  %v2731 = vadd.f32 %v2681, %v2706
  %v2732 = vadd.f32 %v2682, %v2707
  %v2733 = vadd.f32 %v2683, %v2708
  %v2734 = vadd.f32 %v2684, %v2709
  %v2735 = vadd.f32 %v2685, %v2710
  %v2736 = vadd.f32 %v2686, %v2711
  %v2737 = vadd.f32 %v2687, %v2712
  %v2738 = vadd.f32 %v2688, %v2713
  %v2739 = vadd.f32 %v2689, %v2714
  %v2740 = vadd.f32 %v2690, %v2715
  %v2741 = vadd.f32 %v2691, %v2716
  %v2742 = vadd.f32 %v2692, %v2717
  %v2743 = vadd.f32 %v2693, %v2718
  %v2744 = vadd.f32 %v2694, %v2719
  %v2745 = vadd.f32 %v2695, %v2720
  %v2746 = vadd.f32 %v2696, %v2721
  %2747 = vst [vmem:[%s5] sm:$0xff] %v2722
  %2748 = vst [vmem:[%s5 + $0x8] sm:$0xff] %v2723
  %2749 = vst [vmem:[%s5 + $0x10] sm:$0xff] %v2724
  %2750 = vst [vmem:[%s5 + $0x18] sm:$0xff] %v2725
  %2751 = vst [vmem:[%s5 + $0x20] sm:$0xff] %v2726
  %2752 = vst [vmem:[%s5 + $0x28] sm:$0xff] %v2727
  %2753 = vst [vmem:[%s5 + $0x30] sm:$0xff] %v2728
  %2754 = vst [vmem:[%s5 + $0x38] sm:$0xff] %v2729
  %2755 = vst [vmem:[%s5 + $0x40] sm:$0xff] %v2730
  %2756 = vst [vmem:[%s5 + $0x48] sm:$0xff] %v2731
  %2757 = vst [vmem:[%s5 + $0x50] sm:$0xff] %v2732
  %2758 = vst [vmem:[%s5 + $0x58] sm:$0xff] %v2733
  %2759 = vst [vmem:[%s5 + $0x60] sm:$0xff] %v2734
  %2760 = vst [vmem:[%s5 + $0x68] sm:$0xff] %v2735
  %2761 = vst [vmem:[%s5 + $0x70] sm:$0xff] %v2736
  %2762 = vst [vmem:[%s5 + $0x78] sm:$0xff] %v2737
  %2763 = vst [vmem:[%s5 + $0x80] sm:$0xff] %v2738
  %2764 = vst [vmem:[%s5 + $0x88] sm:$0xff] %v2739
  %2765 = vst [vmem:[%s5 + $0x90] sm:$0xff] %v2740
  %2766 = vst [vmem:[%s5 + $0x98] sm:$0xff] %v2741
  %2767 = vst [vmem:[%s5 + $0xa0] sm:$0xff] %v2742
  %2768 = vst [vmem:[%s5 + $0xa8] sm:$0xff] %v2743
  %2769 = vst [vmem:[%s5 + $0xb0] sm:$0xff] %v2744
  %2770 = vst [vmem:[%s5 + $0xb8] sm:$0xff] %v2745
  %2771 = vst [vmem:[%s5 + $0xc0] sm:$0xff] %v2746
  // Predicated region
  $region22: #{run.7} parent=0 // pred_check
    _
  $region23: #{run.7} parent=0 // pred_check_branch
    %2773 = sbr.rel (0) target = $region25
  $region24: #{run.7} parent=0 // pred_region
    _
  $region25: #{run.7} parent=0 // pred_fallthru
    _
  // Predicated region
  $region26: #{run.7} parent=0 // pred_check
    _
  $region27: #{run.7} parent=0 // pred_check_branch
    %2775 = sbr.rel (0) target = $region29
  $region28: #{run.7} parent=0 // pred_region
    _
  $region29: #{run.7} parent=0 // pred_fallthru
    _

// kernel: run.6
$region0: #{run.6}
  #allocation0 [shape = 'u32[]', space=smem, size = 0x4, offset = 0x4, fixed_abs, tag = 'smem constant byte address 0x4 - core index']
  #allocation1 [shape = 'u32[144,128]{1,0:T(1,128)}', space=vmem, size = 0x12000, scoped, tag = 'internal scratch']
  %s0 = inlined_call_operand.vmem [shape: f32[222,128], index: 0, kind: input, shape index: {}]
  %s1 = inlined_call_operand.vmem [shape: f32[1,128], index: 1, kind: input, shape index: {}]
  %s2 = inlined_call_operand.vmem [shape: f32[1,128], index: 2, kind: input, shape index: {}]
  %s3 = inlined_call_operand.vmem [shape: bf16[9,128,128], index: 3, kind: input, shape index: {}]
  %s4 = inlined_call_operand.vmem [shape: f32[200,128], index: 4, kind: output, shape index: {}]
  %s5 = sld [smem:[#allocation0]]
  $region26: #{run.6} parent=0
    _
  %s7 = ssub.s32 1, %s5
  %s8 = scalar_select 0, %s7, %s5
  // Predicated region
  $region2: #{run.6} parent=0 // pred_check
    _
  $region3: #{run.6} parent=0 // pred_check_branch
    %10 = sbr.rel (0) target = $region5
  $region4: #{run.6} parent=0 // pred_region
    _
  $region5: #{run.6} parent=0 // pred_fallthru
    _
  // Predicated region
  $region6: #{run.6} parent=0 // pred_check
    _
  $region7: #{run.6} parent=0 // pred_check_branch
    %12 = sbr.rel (0) target = $region9
  $region8: #{run.6} parent=0 // pred_region
    _
  $region9: #{run.6} parent=0 // pred_fallthru
    _
  // Predicated region
  $region10: #{run.6} parent=0 // pred_check
    _
  $region11: #{run.6} parent=0 // pred_check_branch
    %14 = sbr.rel (0) target = $region13
  $region12: #{run.6} parent=0 // pred_region
    _
  $region13: #{run.6} parent=0 // pred_fallthru
    _
  // Predicated region
  $region14: #{run.6} parent=0 // pred_check
    _
  $region15: #{run.6} parent=0 // pred_check_branch
    %16 = sbr.rel (0) target = $region17
  $region16: #{run.6} parent=0 // pred_region
    _
  $region17: #{run.6} parent=0 // pred_fallthru
    _
  %s18 = smul.u32 0, 200
  %s19 = scalar_lea.vmem %s0, %s18
  %v20 = vld [vmem:[%s19] sm:$0xff]
  %v21 = vld [vmem:[%s19 + $0x8] sm:$0xff]
  %v22 = vld [vmem:[%s19 + $0x10] sm:$0xff]
  %v23 = vld [vmem:[%s19 + $0x18] sm:$0xff]
  %v24 = vld [vmem:[%s19 + $0x20] sm:$0xff]
  %v25 = vld [vmem:[%s19 + $0x28] sm:$0xff]
  %v26 = vld [vmem:[%s19 + $0x30] sm:$0xff]
  %v27 = vld [vmem:[%s19 + $0x38] sm:$0xff]
  %v28 = vld [vmem:[%s19 + $0x40] sm:$0xff]
  %v29 = vld [vmem:[%s19 + $0x48] sm:$0xff]
  %v30 = vld [vmem:[%s19 + $0x50] sm:$0xff]
  %v31 = vld [vmem:[%s19 + $0x58] sm:$0xff]
  %v32 = vld [vmem:[%s19 + $0x60] sm:$0xff]
  %v33 = vld [vmem:[%s19 + $0x68] sm:$0xff]
  %v34 = vld [vmem:[%s19 + $0x70] sm:$0xff]
  %v35 = vld [vmem:[%s19 + $0x78] sm:$0xff]
  %v36 = vld [vmem:[%s19 + $0x80] sm:$0xff]
  %v37 = vld [vmem:[%s19 + $0x88] sm:$0xff]
  %v38 = vld [vmem:[%s19 + $0x90] sm:$0xff]
  %v39 = vld [vmem:[%s19 + $0x98] sm:$0xff]
  %v40 = vld [vmem:[%s19 + $0xa0] sm:$0xff]
  %v41 = vld [vmem:[%s19 + $0xa8] sm:$0xff]
  %v42 = vld [vmem:[%s19 + $0xb0] sm:$0xff]
  %v43 = vld [vmem:[%s19 + $0xb8] sm:$0xff]
  %v44 = vld [vmem:[%s19 + $0xc0] sm:$0xff]
  %v45 = vld [vmem:[%s19 + $0xc8] sm:$0xff]
  %v46 = vld [vmem:[%s19 + $0xd0] sm:$0xff]
  %v47 = vld [vmem:[%s19 + $0xd8] sm:$0x3f]
  %v48 = vld [vmem:[%s1] sm:$0x1]
  %v50 = vlaneseq
  %v51 = vshrl.u32 %v50, 7
  %v52 = vsub.s32 0, %v51
  %v53 = vrot.slane %v48, %v52
  %v55 = vmul.f32 %v20, %v53
  %v56 = vmul.f32 %v21, %v53
  %v57 = vmul.f32 %v22, %v53
  %v58 = vmul.f32 %v23, %v53
  %v59 = vmul.f32 %v24, %v53
  %v60 = vmul.f32 %v25, %v53
  %v61 = vmul.f32 %v26, %v53
  %v62 = vmul.f32 %v27, %v53
  %v63 = vmul.f32 %v28, %v53
  %v64 = vmul.f32 %v29, %v53
  %v65 = vmul.f32 %v30, %v53
  %v66 = vmul.f32 %v31, %v53
  %v67 = vmul.f32 %v32, %v53
  %v68 = vmul.f32 %v33, %v53
  %v69 = vmul.f32 %v34, %v53
  %v70 = vmul.f32 %v35, %v53
  %v71 = vmul.f32 %v36, %v53
  %v72 = vmul.f32 %v37, %v53
  %v73 = vmul.f32 %v38, %v53
  %v74 = vmul.f32 %v39, %v53
  %v75 = vmul.f32 %v40, %v53
  %v76 = vmul.f32 %v41, %v53
  %v77 = vmul.f32 %v42, %v53
  %v78 = vmul.f32 %v43, %v53
  %v79 = vmul.f32 %v44, %v53
  %v80 = vmul.f32 %v45, %v53
  %v81 = vmul.f32 %v46, %v53
  %v82 = vmul.f32 %v47, %v53
  %v83 = vld [vmem:[%s2] sm:$0x1]
  %v85 = vlaneseq
  %v86 = vshrl.u32 %v85, 7
  %v87 = vsub.s32 0, %v86
  %v88 = vrot.slane %v83, %v87
  %v90 = vadd.f32 %v55, %v88
  %v91 = vadd.f32 %v56, %v88
  %v92 = vadd.f32 %v57, %v88
  %v93 = vadd.f32 %v58, %v88
  %v94 = vadd.f32 %v59, %v88
  %v95 = vadd.f32 %v60, %v88
  %v96 = vadd.f32 %v61, %v88
  %v97 = vadd.f32 %v62, %v88
  %v98 = vadd.f32 %v63, %v88
  %v99 = vadd.f32 %v64, %v88
  %v100 = vadd.f32 %v65, %v88
  %v101 = vadd.f32 %v66, %v88
  %v102 = vadd.f32 %v67, %v88
  %v103 = vadd.f32 %v68, %v88
  %v104 = vadd.f32 %v69, %v88
  %v105 = vadd.f32 %v70, %v88
  %v106 = vadd.f32 %v71, %v88
  %v107 = vadd.f32 %v72, %v88
  %v108 = vadd.f32 %v73, %v88
  %v109 = vadd.f32 %v74, %v88
  %v110 = vadd.f32 %v75, %v88
  %v111 = vadd.f32 %v76, %v88
  %v112 = vadd.f32 %v77, %v88
  %v113 = vadd.f32 %v78, %v88
  %v114 = vadd.f32 %v79, %v88
  %v115 = vadd.f32 %v80, %v88
  %v116 = vadd.f32 %v81, %v88
  %v117 = vadd.f32 %v82, %v88
  %v118 = vmax.f32 %v90, 0.0
  %v119 = vmax.f32 %v91, 0.0
  %v120 = vmax.f32 %v92, 0.0
  %v121 = vmax.f32 %v93, 0.0
  %v122 = vmax.f32 %v94, 0.0
  %v123 = vmax.f32 %v95, 0.0
  %v124 = vmax.f32 %v96, 0.0
  %v125 = vmax.f32 %v97, 0.0
  %v126 = vmax.f32 %v98, 0.0
  %v127 = vmax.f32 %v99, 0.0
  %v128 = vmax.f32 %v100, 0.0
  %v129 = vmax.f32 %v101, 0.0
  %v130 = vmax.f32 %v102, 0.0
  %v131 = vmax.f32 %v103, 0.0
  %v132 = vmax.f32 %v104, 0.0
  %v133 = vmax.f32 %v105, 0.0
  %v134 = vmax.f32 %v106, 0.0
  %v135 = vmax.f32 %v107, 0.0
  %v136 = vmax.f32 %v108, 0.0
  %v137 = vmax.f32 %v109, 0.0
  %v138 = vmax.f32 %v110, 0.0
  %v139 = vmax.f32 %v111, 0.0
  %v140 = vmax.f32 %v112, 0.0
  %v141 = vmax.f32 %v113, 0.0
  %v142 = vmax.f32 %v114, 0.0
  %v143 = vmax.f32 %v115, 0.0
  %v144 = vmax.f32 %v116, 0.0
  %v145 = vmax.f32 %v117, 0.0
  %v146 = vpack.c.bf16 %v119, %v118
  %v147 = vpack.c.bf16 %v121, %v120
  %v148 = vpack.c.bf16 %v123, %v122
  %v149 = vpack.c.bf16 %v125, %v124
  %v150 = vpack.c.bf16 %v127, %v126
  %v151 = vpack.c.bf16 %v129, %v128
  %v152 = vpack.c.bf16 %v131, %v130
  %v153 = vpack.c.bf16 %v133, %v132
  %v154 = vpack.c.bf16 %v135, %v134
  %v155 = vpack.c.bf16 %v137, %v136
  %v156 = vpack.c.bf16 %v139, %v138
  %v157 = vpack.c.bf16 %v141, %v140
  %v158 = vpack.c.bf16 %v142, %v142
  %v159 = vld [vmem:[%s3] sm:$0xf]
  %v160 = vld [vmem:[%s3 + $0x4] sm:$0xf]
  %v161 = vld [vmem:[%s3 + $0x8] sm:$0xf]
  %v162 = vld [vmem:[%s3 + $0xc] sm:$0xf]
  %v163 = vld [vmem:[%s3 + $0x10] sm:$0xf]
  %v164 = vld [vmem:[%s3 + $0x14] sm:$0xf]
  %v165 = vld [vmem:[%s3 + $0x18] sm:$0xf]
  %v166 = vld [vmem:[%s3 + $0x1c] sm:$0xf]
  %v167 = vld [vmem:[%s3 + $0x20] sm:$0xf]
  %v168 = vld [vmem:[%s3 + $0x24] sm:$0xf]
  %v169 = vld [vmem:[%s3 + $0x28] sm:$0xf]
  %v170 = vld [vmem:[%s3 + $0x2c] sm:$0xf]
  %v171 = vld [vmem:[%s3 + $0x30] sm:$0xf]
  %v172 = vld [vmem:[%s3 + $0x34] sm:$0xf]
  %v173 = vld [vmem:[%s3 + $0x38] sm:$0xf]
  %v174 = vld [vmem:[%s3 + $0x3c] sm:$0xf]
  %v175 = vpack.c.bf16 %v143, %v142
  %s176 = scalar_lea.vmem %s3, 64
  %v177 = vld [vmem:[%s176] sm:$0xf]
  %v178 = vld [vmem:[%s176 + $0x4] sm:$0xf]
  %v179 = vld [vmem:[%s176 + $0x8] sm:$0xf]
  %v180 = vld [vmem:[%s176 + $0xc] sm:$0xf]
  %v181 = vld [vmem:[%s176 + $0x10] sm:$0xf]
  %v182 = vld [vmem:[%s176 + $0x14] sm:$0xf]
  %v183 = vld [vmem:[%s176 + $0x18] sm:$0xf]
  %v184 = vld [vmem:[%s176 + $0x1c] sm:$0xf]
  %v185 = vld [vmem:[%s176 + $0x20] sm:$0xf]
  %v186 = vld [vmem:[%s176 + $0x24] sm:$0xf]
  %v187 = vld [vmem:[%s176 + $0x28] sm:$0xf]
  %v188 = vld [vmem:[%s176 + $0x2c] sm:$0xf]
  %v189 = vld [vmem:[%s176 + $0x30] sm:$0xf]
  %v190 = vld [vmem:[%s176 + $0x34] sm:$0xf]
  %v191 = vld [vmem:[%s176 + $0x38] sm:$0xf]
  %v192 = vld [vmem:[%s176 + $0x3c] sm:$0xf]
  %vm193 = vsmask.f32 7424
  %v195 = vshrl.u32 %v146, 16
  %v197 = vshll.u32 %v146, 16
  %v199 = vrot.slane %v197, 1
  %v200 = vor.u32 %v195, %v199
  %v202 = vshll.u32 %v147, 16
  %v204 = vrot.slane %v202, 1
  %v205 = vsel %vm193, %v200, %v204
  %v206 = vshrl.u32 %v147, 16
  %v208 = vor.u32 %v206, %v204
  %v210 = vshll.u32 %v148, 16
  %v212 = vrot.slane %v210, 1
  %v213 = vsel %vm193, %v208, %v212
  %v214 = vshrl.u32 %v148, 16
  %v216 = vor.u32 %v214, %v212
  %v218 = vshll.u32 %v149, 16
  %v220 = vrot.slane %v218, 1
  %v221 = vsel %vm193, %v216, %v220
  %v222 = vshrl.u32 %v149, 16
  %v224 = vor.u32 %v222, %v220
  %v226 = vshll.u32 %v150, 16
  %v228 = vrot.slane %v226, 1
  %v229 = vsel %vm193, %v224, %v228
  %v230 = vshrl.u32 %v150, 16
  %v232 = vor.u32 %v230, %v228
  %v234 = vshll.u32 %v151, 16
  %v236 = vrot.slane %v234, 1
  %v237 = vsel %vm193, %v232, %v236
  %v238 = vshrl.u32 %v151, 16
  %v240 = vor.u32 %v238, %v236
  %v242 = vshll.u32 %v152, 16
  %v244 = vrot.slane %v242, 1
  %v245 = vsel %vm193, %v240, %v244
  %v246 = vshrl.u32 %v152, 16
  %v248 = vor.u32 %v246, %v244
  %v250 = vshll.u32 %v153, 16
  %v252 = vrot.slane %v250, 1
  %v253 = vsel %vm193, %v248, %v252
  %v254 = vshrl.u32 %v153, 16
  %v256 = vor.u32 %v254, %v252
  %v258 = vshll.u32 %v154, 16
  %v260 = vrot.slane %v258, 1
  %v261 = vsel %vm193, %v256, %v260
  %v262 = vshrl.u32 %v154, 16
  %v264 = vor.u32 %v262, %v260
  %v266 = vshll.u32 %v155, 16
  %v268 = vrot.slane %v266, 1
  %v269 = vsel %vm193, %v264, %v268
  %v270 = vshrl.u32 %v155, 16
  %v272 = vor.u32 %v270, %v268
  %v274 = vshll.u32 %v156, 16
  %v276 = vrot.slane %v274, 1
  %v277 = vsel %vm193, %v272, %v276
  %v278 = vshrl.u32 %v156, 16
  %v280 = vor.u32 %v278, %v276
  %v282 = vshll.u32 %v157, 16
  %v284 = vrot.slane %v282, 1
  %v285 = vsel %vm193, %v280, %v284
  %v286 = vshrl.u32 %v157, 16
  %v288 = vor.u32 %v286, %v284
  %v290 = vshll.u32 %v175, 16
  %v292 = vrot.slane %v290, 1
  %v293 = vsel %vm193, %v288, %v292
  %v294 = vshrl.u32 %v175, 16
  %v296 = vor.u32 %v294, %v292
  %v326 = vunpack.c.l.b16 %v177
  %v327 = vunpack.c.l.b16 %v178
  %v328 = vunpack.c.l.b16 %v179
  %v329 = vunpack.c.l.b16 %v180
  %v330 = vunpack.c.l.b16 %v181
  %v331 = vunpack.c.l.b16 %v182
  %v332 = vunpack.c.l.b16 %v183
  %v333 = vunpack.c.l.b16 %v184
  %v334 = vunpack.c.l.b16 %v185
  %v335 = vunpack.c.l.b16 %v186
  %v336 = vunpack.c.l.b16 %v187
  %v337 = vunpack.c.l.b16 %v188
  %v338 = vunpack.c.l.b16 %v189
  %v339 = vunpack.c.l.b16 %v190
  %v340 = vunpack.c.l.b16 %v191
  %v341 = vunpack.c.l.b16 %v192
  %v342 = vpack.c.b16 %v327, %v326
  %v343 = vpack.c.b16 %v329, %v328
  %v344 = vpack.c.b16 %v331, %v330
  %v345 = vpack.c.b16 %v333, %v332
  %v346 = vpack.c.b16 %v335, %v334
  %v347 = vpack.c.b16 %v337, %v336
  %v348 = vpack.c.b16 %v339, %v338
  %v349 = vpack.c.b16 %v341, %v340
  %358 = vmatprep.subr.bf16.mxu0 0
  %359 = vmatpush1.bf16.msra.mxu0 %v342
  %360 = vmatprep.subr.bf16.mxu0 0
  %361 = vmatpush1.bf16.msra.mxu0 %v343
  %362 = vmatprep.subr.bf16.mxu0 0
  %363 = vmatpush1.bf16.msra.mxu0 %v344
  %364 = vmatprep.subr.bf16.mxu0 0
  %365 = vmatpush1.bf16.msra.mxu0 %v345
  %366 = vmatprep.subr.bf16.mxu0 0
  %367 = vmatpush1.bf16.msra.mxu0 %v346
  %368 = vmatprep.subr.bf16.mxu0 0
  %369 = vmatpush1.bf16.msra.mxu0 %v347
  %370 = vmatprep.subr.bf16.mxu0 0
  %371 = vmatpush1.bf16.msra.mxu0 %v348
  %372 = vmatprep.subr.bf16.mxu0 0
  %373 = vmatpush1.bf16.msra.mxu0 %v349
  %374 = vmatprep.subr.bf16.mxu0 0
  %375 = vmatpush1.bf16.msra.mxu0 0
  %376 = vmatprep.subr.bf16.mxu0 0
  %377 = vmatpush1.bf16.msra.mxu0 0
  %378 = vmatprep.subr.bf16.mxu0 0
  %379 = vmatpush1.bf16.msra.mxu0 0
  %380 = vmatprep.subr.bf16.mxu0 0
  %381 = vmatpush1.bf16.msra.mxu0 0
  %382 = vmatprep.subr.bf16.mxu0 0
  %383 = vmatpush1.bf16.msra.mxu0 0
  %384 = vmatprep.subr.bf16.mxu0 0
  %385 = vmatpush1.bf16.msra.mxu0 0
  %386 = vmatprep.subr.bf16.mxu0 0
  %387 = vmatpush1.bf16.msra.mxu0 0
  %388 = vmatprep.subr.bf16.mxu0 0
  %389 = vmatpush1.bf16.msra.mxu0 0
  %390 = vmatprep.mubr.bf16.mxu0 0
  %391 = vmatmul.mubr.bf16.gmra.mrb[0].mxu0 %v205
  %v392 = vpop.f32.mrb[0].mxu0
  %v393 = vadd.f32 0.0, %v392
  %v394 = vpop.f32.mrb[0].mxu0
  %v395 = vpop.f32.mrb[0].mxu0
  %v396 = vadd.f32 0.0, %v395
  %v397 = vpop.f32.mrb[0].mxu0
  %398 = vmatprep.mubr.bf16.mxu0 0
  %399 = vmatmul.mubr.bf16.gmra.mrb[0].mxu0 %v213
  %v400 = vpop.f32.mrb[0].mxu0
  %v401 = vadd.f32 0.0, %v400
  %v402 = vpop.f32.mrb[0].mxu0
  %v403 = vpop.f32.mrb[0].mxu0
  %v404 = vadd.f32 0.0, %v403
  %v405 = vpop.f32.mrb[0].mxu0
  %406 = vmatprep.mubr.bf16.mxu0 0
  %407 = vmatmul.mubr.bf16.gmra.mrb[0].mxu0 %v221
  %v408 = vpop.f32.mrb[0].mxu0
  %v409 = vadd.f32 0.0, %v408
  %v410 = vpop.f32.mrb[0].mxu0
  %v411 = vpop.f32.mrb[0].mxu0
  %v412 = vadd.f32 0.0, %v411
  %v413 = vpop.f32.mrb[0].mxu0
  %414 = vmatprep.mubr.bf16.mxu0 0
  %415 = vmatmul.mubr.bf16.gmra.mrb[0].mxu0 %v229
  %v416 = vpop.f32.mrb[0].mxu0
  %v417 = vadd.f32 0.0, %v416
  %v418 = vpop.f32.mrb[0].mxu0
  %v419 = vpop.f32.mrb[0].mxu0
  %v420 = vadd.f32 0.0, %v419
  %v421 = vpop.f32.mrb[0].mxu0
  %422 = vmatprep.mubr.bf16.mxu0 0
  %423 = vmatmul.mubr.bf16.gmra.mrb[0].mxu0 %v237
  %v424 = vpop.f32.mrb[0].mxu0
  %v425 = vadd.f32 0.0, %v424
  %v426 = vpop.f32.mrb[0].mxu0
  %v427 = vpop.f32.mrb[0].mxu0
  %v428 = vadd.f32 0.0, %v427
  %v429 = vpop.f32.mrb[0].mxu0
  %430 = vmatprep.mubr.bf16.mxu0 0
  %431 = vmatmul.mubr.bf16.gmra.mrb[0].mxu0 %v245
  %v432 = vpop.f32.mrb[0].mxu0
  %v433 = vadd.f32 0.0, %v432
  %v434 = vpop.f32.mrb[0].mxu0
  %v435 = vpop.f32.mrb[0].mxu0
  %v436 = vadd.f32 0.0, %v435
  %v437 = vpop.f32.mrb[0].mxu0
  %438 = vmatprep.mubr.bf16.mxu0 0
  %439 = vmatmul.mubr.bf16.gmra.mrb[0].mxu0 %v253
  %v440 = vpop.f32.mrb[0].mxu0
  %v441 = vadd.f32 0.0, %v440
  %v442 = vpop.f32.mrb[0].mxu0
  %v443 = vpop.f32.mrb[0].mxu0
  %v444 = vadd.f32 0.0, %v443
  %v445 = vpop.f32.mrb[0].mxu0
  %446 = vmatprep.mubr.bf16.mxu0 0
  %447 = vmatmul.mubr.bf16.gmra.mrb[0].mxu0 %v261
  %v448 = vpop.f32.mrb[0].mxu0
  %v449 = vadd.f32 0.0, %v448
  %v450 = vpop.f32.mrb[0].mxu0
  %v451 = vpop.f32.mrb[0].mxu0
  %v452 = vadd.f32 0.0, %v451
  %v453 = vpop.f32.mrb[0].mxu0
  %454 = vmatprep.mubr.bf16.mxu0 0
  %455 = vmatmul.mubr.bf16.gmra.mrb[0].mxu0 %v269
  %v456 = vpop.f32.mrb[0].mxu0
  %v457 = vadd.f32 0.0, %v456
  %v458 = vpop.f32.mrb[0].mxu0
  %v459 = vpop.f32.mrb[0].mxu0
  %v460 = vadd.f32 0.0, %v459
  %v461 = vpop.f32.mrb[0].mxu0
  %462 = vmatprep.mubr.bf16.mxu0 0
  %463 = vmatmul.mubr.bf16.gmra.mrb[0].mxu0 %v277
  %v464 = vpop.f32.mrb[0].mxu0
  %v465 = vadd.f32 0.0, %v464
  %v466 = vpop.f32.mrb[0].mxu0
  %v467 = vpop.f32.mrb[0].mxu0
  %v468 = vadd.f32 0.0, %v467
  %v469 = vpop.f32.mrb[0].mxu0
  %470 = vmatprep.mubr.bf16.mxu0 0
  %471 = vmatmul.mubr.bf16.gmra.mrb[0].mxu0 %v285
  %v472 = vpop.f32.mrb[0].mxu0
  %v473 = vadd.f32 0.0, %v472
  %v474 = vpop.f32.mrb[0].mxu0
  %v475 = vpop.f32.mrb[0].mxu0
  %v476 = vadd.f32 0.0, %v475
  %v477 = vpop.f32.mrb[0].mxu0
  %478 = vmatprep.mubr.bf16.mxu0 0
  %479 = vmatmul.mubr.bf16.gmra.mrb[0].mxu0 %v293
  %v480 = vpop.f32.mrb[0].mxu0
  %v481 = vadd.f32 0.0, %v480
  %v482 = vpop.f32.mrb[0].mxu0
  %v483 = vpop.f32.mrb[0].mxu0
  %v484 = vadd.f32 0.0, %v483
  %v485 = vpop.f32.mrb[0].mxu0
  %486 = vmatprep.mubr.bf16.mxu0 0
  %487 = vmatmul.mubr.bf16.gmra.mrb[0].mxu0 %v296
  %v488 = vpop.f32.mrb[0].mxu0
  %v489 = vadd.f32 0.0, %v488
  %v490 = vpop.f32.mrb[0].mxu0
  %v491 = vpop.f32.mrb[0].mxu0
  %v492 = vpop.f32.mrb[0].mxu0
  %493 = vdwg.mxu0
  %v510 = vunpack.c.l.b16 %v159
  %v511 = vunpack.c.l.b16 %v160
  %v512 = vunpack.c.l.b16 %v161
  %v513 = vunpack.c.l.b16 %v162
  %v514 = vunpack.c.l.b16 %v163
  %v515 = vunpack.c.l.b16 %v164
  %v516 = vunpack.c.l.b16 %v165
  %v517 = vunpack.c.l.b16 %v166
  %v518 = vunpack.c.l.b16 %v167
  %v519 = vunpack.c.l.b16 %v168
  %v520 = vunpack.c.l.b16 %v169
  %v521 = vunpack.c.l.b16 %v170
  %v522 = vunpack.c.l.b16 %v171
  %v523 = vunpack.c.l.b16 %v172
  %v524 = vunpack.c.l.b16 %v173
  %v525 = vunpack.c.l.b16 %v174
  %v526 = vpack.c.b16 %v511, %v510
  %v527 = vpack.c.b16 %v513, %v512
  %v528 = vpack.c.b16 %v515, %v514
  %v529 = vpack.c.b16 %v517, %v516
  %v530 = vpack.c.b16 %v519, %v518
  %v531 = vpack.c.b16 %v521, %v520
  %v532 = vpack.c.b16 %v523, %v522
  %v533 = vpack.c.b16 %v525, %v524
  %542 = vmatprep.subr.bf16.mxu0 0
  %543 = vmatpush1.bf16.msra.mxu0 %v526
  %544 = vmatprep.subr.bf16.mxu0 0
  %545 = vmatpush1.bf16.msra.mxu0 %v527
  %546 = vmatprep.subr.bf16.mxu0 0
  %547 = vmatpush1.bf16.msra.mxu0 %v528
  %548 = vmatprep.subr.bf16.mxu0 0
  %549 = vmatpush1.bf16.msra.mxu0 %v529
  %550 = vmatprep.subr.bf16.mxu0 0
  %551 = vmatpush1.bf16.msra.mxu0 %v530
  %552 = vmatprep.subr.bf16.mxu0 0
  %553 = vmatpush1.bf16.msra.mxu0 %v531
  %554 = vmatprep.subr.bf16.mxu0 0
  %555 = vmatpush1.bf16.msra.mxu0 %v532
  %556 = vmatprep.subr.bf16.mxu0 0
  %557 = vmatpush1.bf16.msra.mxu0 %v533
  %558 = vmatprep.subr.bf16.mxu0 0
  %559 = vmatpush1.bf16.msra.mxu0 0
  %560 = vmatprep.subr.bf16.mxu0 0
  %561 = vmatpush1.bf16.msra.mxu0 0
  %562 = vmatprep.subr.bf16.mxu0 0
  %563 = vmatpush1.bf16.msra.mxu0 0
  %564 = vmatprep.subr.bf16.mxu0 0
  %565 = vmatpush1.bf16.msra.mxu0 0
  %566 = vmatprep.subr.bf16.mxu0 0
  %567 = vmatpush1.bf16.msra.mxu0 0
  %568 = vmatprep.subr.bf16.mxu0 0
  %569 = vmatpush1.bf16.msra.mxu0 0
  %570 = vmatprep.subr.bf16.mxu0 0
  %571 = vmatpush1.bf16.msra.mxu0 0
  %572 = vmatprep.subr.bf16.mxu0 0
  %573 = vmatpush1.bf16.msra.mxu0 0
  %574 = vmatprep.mubr.bf16.mxu0 0
  %575 = vmatmul.mubr.bf16.gmra.mrb[0].mxu0 %v146
  %v576 = vpop.f32.mrb[0].mxu0
  %v577 = vadd.f32 %v393, %v576
  %v578 = vpop.f32.mrb[0].mxu0
  %v579 = vpop.f32.mrb[0].mxu0
  %v580 = vadd.f32 %v396, %v579
  %v581 = vpop.f32.mrb[0].mxu0
  %582 = vmatprep.mubr.bf16.mxu0 0
  %583 = vmatmul.mubr.bf16.gmra.mrb[0].mxu0 %v147
  %v584 = vpop.f32.mrb[0].mxu0
  %v585 = vadd.f32 %v401, %v584
  %v586 = vpop.f32.mrb[0].mxu0
  %v587 = vpop.f32.mrb[0].mxu0
  %v588 = vadd.f32 %v404, %v587
  %v589 = vpop.f32.mrb[0].mxu0
  %590 = vmatprep.mubr.bf16.mxu0 0
  %591 = vmatmul.mubr.bf16.gmra.mrb[0].mxu0 %v148
  %v592 = vpop.f32.mrb[0].mxu0
  %v593 = vadd.f32 %v409, %v592
  %v594 = vpop.f32.mrb[0].mxu0
  %v595 = vpop.f32.mrb[0].mxu0
  %v596 = vadd.f32 %v412, %v595
  %v597 = vpop.f32.mrb[0].mxu0
  %598 = vmatprep.mubr.bf16.mxu0 0
  %599 = vmatmul.mubr.bf16.gmra.mrb[0].mxu0 %v149
  %v600 = vpop.f32.mrb[0].mxu0
  %v601 = vadd.f32 %v417, %v600
  %v602 = vpop.f32.mrb[0].mxu0
  %v603 = vpop.f32.mrb[0].mxu0
  %v604 = vadd.f32 %v420, %v603
  %v605 = vpop.f32.mrb[0].mxu0
  %606 = vmatprep.mubr.bf16.mxu0 0
  %607 = vmatmul.mubr.bf16.gmra.mrb[0].mxu0 %v150
  %v608 = vpop.f32.mrb[0].mxu0
  %v609 = vadd.f32 %v425, %v608
  %v610 = vpop.f32.mrb[0].mxu0
  %v611 = vpop.f32.mrb[0].mxu0
  %v612 = vadd.f32 %v428, %v611
  %v613 = vpop.f32.mrb[0].mxu0
  %614 = vmatprep.mubr.bf16.mxu0 0
  %615 = vmatmul.mubr.bf16.gmra.mrb[0].mxu0 %v151
  %v616 = vpop.f32.mrb[0].mxu0
  %v617 = vadd.f32 %v433, %v616
  %v618 = vpop.f32.mrb[0].mxu0
  %v619 = vpop.f32.mrb[0].mxu0
  %v620 = vadd.f32 %v436, %v619
  %v621 = vpop.f32.mrb[0].mxu0
  %622 = vmatprep.mubr.bf16.mxu0 0
  %623 = vmatmul.mubr.bf16.gmra.mrb[0].mxu0 %v152
  %v624 = vpop.f32.mrb[0].mxu0
  %v625 = vadd.f32 %v441, %v624
  %v626 = vpop.f32.mrb[0].mxu0
  %v627 = vpop.f32.mrb[0].mxu0
  %v628 = vadd.f32 %v444, %v627
  %v629 = vpop.f32.mrb[0].mxu0
  %630 = vmatprep.mubr.bf16.mxu0 0
  %631 = vmatmul.mubr.bf16.gmra.mrb[0].mxu0 %v153
  %v632 = vpop.f32.mrb[0].mxu0
  %v633 = vadd.f32 %v449, %v632
  %v634 = vpop.f32.mrb[0].mxu0
  %v635 = vpop.f32.mrb[0].mxu0
  %v636 = vadd.f32 %v452, %v635
  %v637 = vpop.f32.mrb[0].mxu0
  %638 = vmatprep.mubr.bf16.mxu0 0
  %639 = vmatmul.mubr.bf16.gmra.mrb[0].mxu0 %v154
  %v640 = vpop.f32.mrb[0].mxu0
  %v641 = vadd.f32 %v457, %v640
  %v642 = vpop.f32.mrb[0].mxu0
  %v643 = vpop.f32.mrb[0].mxu0
  %v644 = vadd.f32 %v460, %v643
  %v645 = vpop.f32.mrb[0].mxu0
  %646 = vmatprep.mubr.bf16.mxu0 0
  %647 = vmatmul.mubr.bf16.gmra.mrb[0].mxu0 %v155
  %v648 = vpop.f32.mrb[0].mxu0
  %v649 = vadd.f32 %v465, %v648
  %v650 = vpop.f32.mrb[0].mxu0
  %v651 = vpop.f32.mrb[0].mxu0
  %v652 = vadd.f32 %v468, %v651
  %v653 = vpop.f32.mrb[0].mxu0
  %654 = vmatprep.mubr.bf16.mxu0 0
  %655 = vmatmul.mubr.bf16.gmra.mrb[0].mxu0 %v156
  %v656 = vpop.f32.mrb[0].mxu0
  %v657 = vadd.f32 %v473, %v656
  %v658 = vpop.f32.mrb[0].mxu0
  %v659 = vpop.f32.mrb[0].mxu0
  %v660 = vadd.f32 %v476, %v659
  %v661 = vpop.f32.mrb[0].mxu0
  %662 = vmatprep.mubr.bf16.mxu0 0
  %663 = vmatmul.mubr.bf16.gmra.mrb[0].mxu0 %v157
  %v664 = vpop.f32.mrb[0].mxu0
  %v665 = vadd.f32 %v481, %v664
  %v666 = vpop.f32.mrb[0].mxu0
  %v667 = vpop.f32.mrb[0].mxu0
  %v668 = vadd.f32 %v484, %v667
  %v669 = vpop.f32.mrb[0].mxu0
  %670 = vmatprep.mubr.bf16.mxu0 0
  %671 = vmatmul.mubr.bf16.gmra.mrb[0].mxu0 %v158
  %v672 = vpop.f32.mrb[0].mxu0
  %v673 = vadd.f32 %v489, %v672
  %v674 = vpop.f32.mrb[0].mxu0
  %v675 = vpop.f32.mrb[0].mxu0
  %v676 = vpop.f32.mrb[0].mxu0
  %677 = vdwg.mxu0
  %s678 = scalar_lea.vmem %s3, 128
  %v679 = vld [vmem:[%s678] sm:$0xf]
  %v680 = vld [vmem:[%s678 + $0x4] sm:$0xf]
  %v681 = vld [vmem:[%s678 + $0x8] sm:$0xf]
  %v682 = vld [vmem:[%s678 + $0xc] sm:$0xf]
  %v683 = vld [vmem:[%s678 + $0x10] sm:$0xf]
  %v684 = vld [vmem:[%s678 + $0x14] sm:$0xf]
  %v685 = vld [vmem:[%s678 + $0x18] sm:$0xf]
  %v686 = vld [vmem:[%s678 + $0x1c] sm:$0xf]
  %v687 = vld [vmem:[%s678 + $0x20] sm:$0xf]
  %v688 = vld [vmem:[%s678 + $0x24] sm:$0xf]
  %v689 = vld [vmem:[%s678 + $0x28] sm:$0xf]
  %v690 = vld [vmem:[%s678 + $0x2c] sm:$0xf]
  %v691 = vld [vmem:[%s678 + $0x30] sm:$0xf]
  %v692 = vld [vmem:[%s678 + $0x34] sm:$0xf]
  %v693 = vld [vmem:[%s678 + $0x38] sm:$0xf]
  %v694 = vld [vmem:[%s678 + $0x3c] sm:$0xf]
  %vm708 = vcmask 1046528
  %v709 = vrot.slane %v146, 1
  %v710 = vrot.slane %v147, 1
  %v711 = vsel %vm708, %v709, %v710
  %v712 = vrot.slane %v148, 1
  %v713 = vsel %vm708, %v710, %v712
  %v714 = vrot.slane %v149, 1
  %v715 = vsel %vm708, %v712, %v714
  %v716 = vrot.slane %v150, 1
  %v717 = vsel %vm708, %v714, %v716
  %v718 = vrot.slane %v151, 1
  %v719 = vsel %vm708, %v716, %v718
  %v720 = vrot.slane %v152, 1
  %v721 = vsel %vm708, %v718, %v720
  %v722 = vrot.slane %v153, 1
  %v723 = vsel %vm708, %v720, %v722
  %v724 = vrot.slane %v154, 1
  %v725 = vsel %vm708, %v722, %v724
  %v726 = vrot.slane %v155, 1
  %v727 = vsel %vm708, %v724, %v726
  %v728 = vrot.slane %v156, 1
  %v729 = vsel %vm708, %v726, %v728
  %v730 = vrot.slane %v157, 1
  %v731 = vsel %vm708, %v728, %v730
  %v732 = vrot.slane %v175, 1
  %v733 = vsel %vm708, %v730, %v732
  %v763 = vunpack.c.l.b16 %v679
  %v764 = vunpack.c.l.b16 %v680
  %v765 = vunpack.c.l.b16 %v681
  %v766 = vunpack.c.l.b16 %v682
  %v767 = vunpack.c.l.b16 %v683
  %v768 = vunpack.c.l.b16 %v684
  %v769 = vunpack.c.l.b16 %v685
  %v770 = vunpack.c.l.b16 %v686
  %v771 = vunpack.c.l.b16 %v687
  %v772 = vunpack.c.l.b16 %v688
  %v773 = vunpack.c.l.b16 %v689
  %v774 = vunpack.c.l.b16 %v690
  %v775 = vunpack.c.l.b16 %v691
  %v776 = vunpack.c.l.b16 %v692
  %v777 = vunpack.c.l.b16 %v693
  %v778 = vunpack.c.l.b16 %v694
  %v779 = vpack.c.b16 %v764, %v763
  %v780 = vpack.c.b16 %v766, %v765
  %v781 = vpack.c.b16 %v768, %v767
  %v782 = vpack.c.b16 %v770, %v769
  %v783 = vpack.c.b16 %v772, %v771
  %v784 = vpack.c.b16 %v774, %v773
  %v785 = vpack.c.b16 %v776, %v775
  %v786 = vpack.c.b16 %v778, %v777
  %795 = vmatprep.subr.bf16.mxu0 0
  %796 = vmatpush1.bf16.msra.mxu0 %v779
  %797 = vmatprep.subr.bf16.mxu0 0
  %798 = vmatpush1.bf16.msra.mxu0 %v780
  %799 = vmatprep.subr.bf16.mxu0 0
  %800 = vmatpush1.bf16.msra.mxu0 %v781
  %801 = vmatprep.subr.bf16.mxu0 0
  %802 = vmatpush1.bf16.msra.mxu0 %v782
  %803 = vmatprep.subr.bf16.mxu0 0
  %804 = vmatpush1.bf16.msra.mxu0 %v783
  %805 = vmatprep.subr.bf16.mxu0 0
  %806 = vmatpush1.bf16.msra.mxu0 %v784
  %807 = vmatprep.subr.bf16.mxu0 0
  %808 = vmatpush1.bf16.msra.mxu0 %v785
  %809 = vmatprep.subr.bf16.mxu0 0
  %810 = vmatpush1.bf16.msra.mxu0 %v786
  %811 = vmatprep.subr.bf16.mxu0 0
  %812 = vmatpush1.bf16.msra.mxu0 0
  %813 = vmatprep.subr.bf16.mxu0 0
  %814 = vmatpush1.bf16.msra.mxu0 0
  %815 = vmatprep.subr.bf16.mxu0 0
  %816 = vmatpush1.bf16.msra.mxu0 0
  %817 = vmatprep.subr.bf16.mxu0 0
  %818 = vmatpush1.bf16.msra.mxu0 0
  %819 = vmatprep.subr.bf16.mxu0 0
  %820 = vmatpush1.bf16.msra.mxu0 0
  %821 = vmatprep.subr.bf16.mxu0 0
  %822 = vmatpush1.bf16.msra.mxu0 0
  %823 = vmatprep.subr.bf16.mxu0 0
  %824 = vmatpush1.bf16.msra.mxu0 0
  %825 = vmatprep.subr.bf16.mxu0 0
  %826 = vmatpush1.bf16.msra.mxu0 0
  %827 = vmatprep.mubr.bf16.mxu0 0
  %828 = vmatmul.mubr.bf16.gmra.mrb[0].mxu0 %v711
  %v829 = vpop.f32.mrb[0].mxu0
  %v830 = vadd.f32 0.0, %v829
  %v831 = vpop.f32.mrb[0].mxu0
  %v832 = vpop.f32.mrb[0].mxu0
  %v833 = vadd.f32 0.0, %v832
  %v834 = vpop.f32.mrb[0].mxu0
  %835 = vmatprep.mubr.bf16.mxu0 0
  %836 = vmatmul.mubr.bf16.gmra.mrb[0].mxu0 %v713
  %v837 = vpop.f32.mrb[0].mxu0
  %v838 = vadd.f32 0.0, %v837
  %v839 = vpop.f32.mrb[0].mxu0
  %v840 = vpop.f32.mrb[0].mxu0
  %v841 = vadd.f32 0.0, %v840
  %v842 = vpop.f32.mrb[0].mxu0
  %843 = vmatprep.mubr.bf16.mxu0 0
  %844 = vmatmul.mubr.bf16.gmra.mrb[0].mxu0 %v715
  %v845 = vpop.f32.mrb[0].mxu0
  %v846 = vadd.f32 0.0, %v845
  %v847 = vpop.f32.mrb[0].mxu0
  %v848 = vpop.f32.mrb[0].mxu0
  %v849 = vadd.f32 0.0, %v848
  %v850 = vpop.f32.mrb[0].mxu0
  %851 = vmatprep.mubr.bf16.mxu0 0
  %852 = vmatmul.mubr.bf16.gmra.mrb[0].mxu0 %v717
  %v853 = vpop.f32.mrb[0].mxu0
  %v854 = vadd.f32 0.0, %v853
  %v855 = vpop.f32.mrb[0].mxu0
  %v856 = vpop.f32.mrb[0].mxu0
  %v857 = vadd.f32 0.0, %v856
  %v858 = vpop.f32.mrb[0].mxu0
  %859 = vmatprep.mubr.bf16.mxu0 0
  %860 = vmatmul.mubr.bf16.gmra.mrb[0].mxu0 %v719
  %v861 = vpop.f32.mrb[0].mxu0
  %v862 = vadd.f32 0.0, %v861
  %v863 = vpop.f32.mrb[0].mxu0
  %v864 = vpop.f32.mrb[0].mxu0
  %v865 = vadd.f32 0.0, %v864
  %v866 = vpop.f32.mrb[0].mxu0
  %867 = vmatprep.mubr.bf16.mxu0 0
  %868 = vmatmul.mubr.bf16.gmra.mrb[0].mxu0 %v721
  %v869 = vpop.f32.mrb[0].mxu0
  %v870 = vadd.f32 0.0, %v869
  %v871 = vpop.f32.mrb[0].mxu0
  %v872 = vpop.f32.mrb[0].mxu0
  %v873 = vadd.f32 0.0, %v872
  %v874 = vpop.f32.mrb[0].mxu0
  %875 = vmatprep.mubr.bf16.mxu0 0
  %876 = vmatmul.mubr.bf16.gmra.mrb[0].mxu0 %v723
  %v877 = vpop.f32.mrb[0].mxu0
  %v878 = vadd.f32 0.0, %v877
  %v879 = vpop.f32.mrb[0].mxu0
  %v880 = vpop.f32.mrb[0].mxu0
  %v881 = vadd.f32 0.0, %v880
  %v882 = vpop.f32.mrb[0].mxu0
  %883 = vmatprep.mubr.bf16.mxu0 0
  %884 = vmatmul.mubr.bf16.gmra.mrb[0].mxu0 %v725
  %v885 = vpop.f32.mrb[0].mxu0
  %v886 = vadd.f32 0.0, %v885
  %v887 = vpop.f32.mrb[0].mxu0
  %v888 = vpop.f32.mrb[0].mxu0
  %v889 = vadd.f32 0.0, %v888
  %v890 = vpop.f32.mrb[0].mxu0
  %891 = vmatprep.mubr.bf16.mxu0 0
  %892 = vmatmul.mubr.bf16.gmra.mrb[0].mxu0 %v727
  %v893 = vpop.f32.mrb[0].mxu0
  %v894 = vadd.f32 0.0, %v893
  %v895 = vpop.f32.mrb[0].mxu0
  %v896 = vpop.f32.mrb[0].mxu0
  %v897 = vadd.f32 0.0, %v896
  %v898 = vpop.f32.mrb[0].mxu0
  %899 = vmatprep.mubr.bf16.mxu0 0
  %900 = vmatmul.mubr.bf16.gmra.mrb[0].mxu0 %v729
  %v901 = vpop.f32.mrb[0].mxu0
  %v902 = vadd.f32 0.0, %v901
  %v903 = vpop.f32.mrb[0].mxu0
  %v904 = vpop.f32.mrb[0].mxu0
  %v905 = vadd.f32 0.0, %v904
  %v906 = vpop.f32.mrb[0].mxu0
  %907 = vmatprep.mubr.bf16.mxu0 0
  %908 = vmatmul.mubr.bf16.gmra.mrb[0].mxu0 %v731
  %v909 = vpop.f32.mrb[0].mxu0
  %v910 = vadd.f32 0.0, %v909
  %v911 = vpop.f32.mrb[0].mxu0
  %v912 = vpop.f32.mrb[0].mxu0
  %v913 = vadd.f32 0.0, %v912
  %v914 = vpop.f32.mrb[0].mxu0
  %915 = vmatprep.mubr.bf16.mxu0 0
  %916 = vmatmul.mubr.bf16.gmra.mrb[0].mxu0 %v733
  %v917 = vpop.f32.mrb[0].mxu0
  %v918 = vadd.f32 0.0, %v917
  %v919 = vpop.f32.mrb[0].mxu0
  %v920 = vpop.f32.mrb[0].mxu0
  %v921 = vadd.f32 0.0, %v920
  %v922 = vpop.f32.mrb[0].mxu0
  %923 = vmatprep.mubr.bf16.mxu0 0
  %924 = vmatmul.mubr.bf16.gmra.mrb[0].mxu0 %v732
  %v925 = vpop.f32.mrb[0].mxu0
  %v926 = vadd.f32 0.0, %v925
  %v927 = vpop.f32.mrb[0].mxu0
  %v928 = vpop.f32.mrb[0].mxu0
  %v929 = vpop.f32.mrb[0].mxu0
  %930 = vdwg.mxu0
  %v931 = vadd.f32 %v577, %v830
  %v932 = vadd.f32 %v580, %v833
  %v933 = vadd.f32 %v585, %v838
  %v934 = vadd.f32 %v588, %v841
  %v935 = vadd.f32 %v593, %v846
  %v936 = vadd.f32 %v596, %v849
  %v937 = vadd.f32 %v601, %v854
  %v938 = vadd.f32 %v604, %v857
  %v939 = vadd.f32 %v609, %v862
  %v940 = vadd.f32 %v612, %v865
  %v941 = vadd.f32 %v617, %v870
  %v942 = vadd.f32 %v620, %v873
  %v943 = vadd.f32 %v625, %v878
  %v944 = vadd.f32 %v628, %v881
  %v945 = vadd.f32 %v633, %v886
  %v946 = vadd.f32 %v636, %v889
  %v947 = vadd.f32 %v641, %v894
  %v948 = vadd.f32 %v644, %v897
  %v949 = vadd.f32 %v649, %v902
  %v950 = vadd.f32 %v652, %v905
  %v951 = vadd.f32 %v657, %v910
  %v952 = vadd.f32 %v660, %v913
  %v953 = vadd.f32 %v665, %v918
  %v954 = vadd.f32 %v668, %v921
  %v955 = vadd.f32 %v673, %v926
  %v956 = vpack.c.bf16 %v120, %v119
  %v957 = vpack.c.bf16 %v122, %v121
  %v958 = vpack.c.bf16 %v124, %v123
  %v959 = vpack.c.bf16 %v126, %v125
  %v960 = vpack.c.bf16 %v128, %v127
  %v961 = vpack.c.bf16 %v130, %v129
  %v962 = vpack.c.bf16 %v132, %v131
  %v963 = vpack.c.bf16 %v134, %v133
  %v964 = vpack.c.bf16 %v136, %v135
  %v965 = vpack.c.bf16 %v138, %v137
  %v966 = vpack.c.bf16 %v140, %v139
  %v967 = vpack.c.bf16 %v142, %v141
  %v968 = vpack.c.bf16 %v144, %v143
  %s969 = scalar_lea.vmem %s3, 192
  %v970 = vld [vmem:[%s969] sm:$0xf]
  %v971 = vld [vmem:[%s969 + $0x4] sm:$0xf]
  %v972 = vld [vmem:[%s969 + $0x8] sm:$0xf]
  %v973 = vld [vmem:[%s969 + $0xc] sm:$0xf]
  %v974 = vld [vmem:[%s969 + $0x10] sm:$0xf]
  %v975 = vld [vmem:[%s969 + $0x14] sm:$0xf]
  %v976 = vld [vmem:[%s969 + $0x18] sm:$0xf]
  %v977 = vld [vmem:[%s969 + $0x1c] sm:$0xf]
  %v978 = vld [vmem:[%s969 + $0x20] sm:$0xf]
  %v979 = vld [vmem:[%s969 + $0x24] sm:$0xf]
  %v980 = vld [vmem:[%s969 + $0x28] sm:$0xf]
  %v981 = vld [vmem:[%s969 + $0x2c] sm:$0xf]
  %v982 = vld [vmem:[%s969 + $0x30] sm:$0xf]
  %v983 = vld [vmem:[%s969 + $0x34] sm:$0xf]
  %v984 = vld [vmem:[%s969 + $0x38] sm:$0xf]
  %v985 = vld [vmem:[%s969 + $0x3c] sm:$0xf]
  %v999 = vrot.slane %v956, 1
  %v1000 = vrot.slane %v957, 1
  %v1001 = vsel %vm708, %v999, %v1000
  %v1002 = vrot.slane %v958, 1
  %v1003 = vsel %vm708, %v1000, %v1002
  %v1004 = vrot.slane %v959, 1
  %v1005 = vsel %vm708, %v1002, %v1004
  %v1006 = vrot.slane %v960, 1
  %v1007 = vsel %vm708, %v1004, %v1006
  %v1008 = vrot.slane %v961, 1
  %v1009 = vsel %vm708, %v1006, %v1008
  %v1010 = vrot.slane %v962, 1
  %v1011 = vsel %vm708, %v1008, %v1010
  %v1012 = vrot.slane %v963, 1
  %v1013 = vsel %vm708, %v1010, %v1012
  %v1014 = vrot.slane %v964, 1
  %v1015 = vsel %vm708, %v1012, %v1014
  %v1016 = vrot.slane %v965, 1
  %v1017 = vsel %vm708, %v1014, %v1016
  %v1018 = vrot.slane %v966, 1
  %v1019 = vsel %vm708, %v1016, %v1018
  %v1020 = vrot.slane %v967, 1
  %v1021 = vsel %vm708, %v1018, %v1020
  %v1022 = vrot.slane %v968, 1
  %v1023 = vsel %vm708, %v1020, %v1022
  %v1053 = vunpack.c.l.b16 %v970
  %v1054 = vunpack.c.l.b16 %v971
  %v1055 = vunpack.c.l.b16 %v972
  %v1056 = vunpack.c.l.b16 %v973
  %v1057 = vunpack.c.l.b16 %v974
  %v1058 = vunpack.c.l.b16 %v975
  %v1059 = vunpack.c.l.b16 %v976
  %v1060 = vunpack.c.l.b16 %v977
  %v1061 = vunpack.c.l.b16 %v978
  %v1062 = vunpack.c.l.b16 %v979
  %v1063 = vunpack.c.l.b16 %v980
  %v1064 = vunpack.c.l.b16 %v981
  %v1065 = vunpack.c.l.b16 %v982
  %v1066 = vunpack.c.l.b16 %v983
  %v1067 = vunpack.c.l.b16 %v984
  %v1068 = vunpack.c.l.b16 %v985
  %v1069 = vpack.c.b16 %v1054, %v1053
  %v1070 = vpack.c.b16 %v1056, %v1055
  %v1071 = vpack.c.b16 %v1058, %v1057
  %v1072 = vpack.c.b16 %v1060, %v1059
  %v1073 = vpack.c.b16 %v1062, %v1061
  %v1074 = vpack.c.b16 %v1064, %v1063
  %v1075 = vpack.c.b16 %v1066, %v1065
  %v1076 = vpack.c.b16 %v1068, %v1067
  %1085 = vmatprep.subr.bf16.mxu0 0
  %1086 = vmatpush1.bf16.msra.mxu0 %v1069
  %1087 = vmatprep.subr.bf16.mxu0 0
  %1088 = vmatpush1.bf16.msra.mxu0 %v1070
  %1089 = vmatprep.subr.bf16.mxu0 0
  %1090 = vmatpush1.bf16.msra.mxu0 %v1071
  %1091 = vmatprep.subr.bf16.mxu0 0
  %1092 = vmatpush1.bf16.msra.mxu0 %v1072
  %1093 = vmatprep.subr.bf16.mxu0 0
  %1094 = vmatpush1.bf16.msra.mxu0 %v1073
  %1095 = vmatprep.subr.bf16.mxu0 0
  %1096 = vmatpush1.bf16.msra.mxu0 %v1074
  %1097 = vmatprep.subr.bf16.mxu0 0
  %1098 = vmatpush1.bf16.msra.mxu0 %v1075
  %1099 = vmatprep.subr.bf16.mxu0 0
  %1100 = vmatpush1.bf16.msra.mxu0 %v1076
  %1101 = vmatprep.subr.bf16.mxu0 0
  %1102 = vmatpush1.bf16.msra.mxu0 0
  %1103 = vmatprep.subr.bf16.mxu0 0
  %1104 = vmatpush1.bf16.msra.mxu0 0
  %1105 = vmatprep.subr.bf16.mxu0 0
  %1106 = vmatpush1.bf16.msra.mxu0 0
  %1107 = vmatprep.subr.bf16.mxu0 0
  %1108 = vmatpush1.bf16.msra.mxu0 0
  %1109 = vmatprep.subr.bf16.mxu0 0
  %1110 = vmatpush1.bf16.msra.mxu0 0
  %1111 = vmatprep.subr.bf16.mxu0 0
  %1112 = vmatpush1.bf16.msra.mxu0 0
  %1113 = vmatprep.subr.bf16.mxu0 0
  %1114 = vmatpush1.bf16.msra.mxu0 0
  %1115 = vmatprep.subr.bf16.mxu0 0
  %1116 = vmatpush1.bf16.msra.mxu0 0
  %1117 = vmatprep.mubr.bf16.mxu0 0
  %1118 = vmatmul.mubr.bf16.gmra.mrb[0].mxu0 %v1001
  %v1119 = vpop.f32.mrb[0].mxu0
  %v1120 = vadd.f32 0.0, %v1119
  %v1121 = vpop.f32.mrb[0].mxu0
  %v1122 = vpop.f32.mrb[0].mxu0
  %v1123 = vadd.f32 0.0, %v1122
  %v1124 = vpop.f32.mrb[0].mxu0
  %1125 = vmatprep.mubr.bf16.mxu0 0
  %1126 = vmatmul.mubr.bf16.gmra.mrb[0].mxu0 %v1003
  %v1127 = vpop.f32.mrb[0].mxu0
  %v1128 = vadd.f32 0.0, %v1127
  %v1129 = vpop.f32.mrb[0].mxu0
  %v1130 = vpop.f32.mrb[0].mxu0
  %v1131 = vadd.f32 0.0, %v1130
  %v1132 = vpop.f32.mrb[0].mxu0
  %1133 = vmatprep.mubr.bf16.mxu0 0
  %1134 = vmatmul.mubr.bf16.gmra.mrb[0].mxu0 %v1005
  %v1135 = vpop.f32.mrb[0].mxu0
  %v1136 = vadd.f32 0.0, %v1135
  %v1137 = vpop.f32.mrb[0].mxu0
  %v1138 = vpop.f32.mrb[0].mxu0
  %v1139 = vadd.f32 0.0, %v1138
  %v1140 = vpop.f32.mrb[0].mxu0
  %1141 = vmatprep.mubr.bf16.mxu0 0
  %1142 = vmatmul.mubr.bf16.gmra.mrb[0].mxu0 %v1007
  %v1143 = vpop.f32.mrb[0].mxu0
  %v1144 = vadd.f32 0.0, %v1143
  %v1145 = vpop.f32.mrb[0].mxu0
  %v1146 = vpop.f32.mrb[0].mxu0
  %v1147 = vadd.f32 0.0, %v1146
  %v1148 = vpop.f32.mrb[0].mxu0
  %1149 = vmatprep.mubr.bf16.mxu0 0
  %1150 = vmatmul.mubr.bf16.gmra.mrb[0].mxu0 %v1009
  %v1151 = vpop.f32.mrb[0].mxu0
  %v1152 = vadd.f32 0.0, %v1151
  %v1153 = vpop.f32.mrb[0].mxu0
  %v1154 = vpop.f32.mrb[0].mxu0
  %v1155 = vadd.f32 0.0, %v1154
  %v1156 = vpop.f32.mrb[0].mxu0
  %1157 = vmatprep.mubr.bf16.mxu0 0
  %1158 = vmatmul.mubr.bf16.gmra.mrb[0].mxu0 %v1011
  %v1159 = vpop.f32.mrb[0].mxu0
  %v1160 = vadd.f32 0.0, %v1159
  %v1161 = vpop.f32.mrb[0].mxu0
  %v1162 = vpop.f32.mrb[0].mxu0
  %v1163 = vadd.f32 0.0, %v1162
  %v1164 = vpop.f32.mrb[0].mxu0
  %1165 = vmatprep.mubr.bf16.mxu0 0
  %1166 = vmatmul.mubr.bf16.gmra.mrb[0].mxu0 %v1013
  %v1167 = vpop.f32.mrb[0].mxu0
  %v1168 = vadd.f32 0.0, %v1167
  %v1169 = vpop.f32.mrb[0].mxu0
  %v1170 = vpop.f32.mrb[0].mxu0
  %v1171 = vadd.f32 0.0, %v1170
  %v1172 = vpop.f32.mrb[0].mxu0
  %1173 = vmatprep.mubr.bf16.mxu0 0
  %1174 = vmatmul.mubr.bf16.gmra.mrb[0].mxu0 %v1015
  %v1175 = vpop.f32.mrb[0].mxu0
  %v1176 = vadd.f32 0.0, %v1175
  %v1177 = vpop.f32.mrb[0].mxu0
  %v1178 = vpop.f32.mrb[0].mxu0
  %v1179 = vadd.f32 0.0, %v1178
  %v1180 = vpop.f32.mrb[0].mxu0
  %1181 = vmatprep.mubr.bf16.mxu0 0
  %1182 = vmatmul.mubr.bf16.gmra.mrb[0].mxu0 %v1017
  %v1183 = vpop.f32.mrb[0].mxu0
  %v1184 = vadd.f32 0.0, %v1183
  %v1185 = vpop.f32.mrb[0].mxu0
  %v1186 = vpop.f32.mrb[0].mxu0
  %v1187 = vadd.f32 0.0, %v1186
  %v1188 = vpop.f32.mrb[0].mxu0
  %1189 = vmatprep.mubr.bf16.mxu0 0
  %1190 = vmatmul.mubr.bf16.gmra.mrb[0].mxu0 %v1019
  %v1191 = vpop.f32.mrb[0].mxu0
  %v1192 = vadd.f32 0.0, %v1191
  %v1193 = vpop.f32.mrb[0].mxu0
  %v1194 = vpop.f32.mrb[0].mxu0
  %v1195 = vadd.f32 0.0, %v1194
  %v1196 = vpop.f32.mrb[0].mxu0
  %1197 = vmatprep.mubr.bf16.mxu0 0
  %1198 = vmatmul.mubr.bf16.gmra.mrb[0].mxu0 %v1021
  %v1199 = vpop.f32.mrb[0].mxu0
  %v1200 = vadd.f32 0.0, %v1199
  %v1201 = vpop.f32.mrb[0].mxu0
  %v1202 = vpop.f32.mrb[0].mxu0
  %v1203 = vadd.f32 0.0, %v1202
  %v1204 = vpop.f32.mrb[0].mxu0
  %1205 = vmatprep.mubr.bf16.mxu0 0
  %1206 = vmatmul.mubr.bf16.gmra.mrb[0].mxu0 %v1023
  %v1207 = vpop.f32.mrb[0].mxu0
  %v1208 = vadd.f32 0.0, %v1207
  %v1209 = vpop.f32.mrb[0].mxu0
  %v1210 = vpop.f32.mrb[0].mxu0
  %v1211 = vadd.f32 0.0, %v1210
  %v1212 = vpop.f32.mrb[0].mxu0
  %1213 = vmatprep.mubr.bf16.mxu0 0
  %1214 = vmatmul.mubr.bf16.gmra.mrb[0].mxu0 %v1022
  %v1215 = vpop.f32.mrb[0].mxu0
  %v1216 = vadd.f32 0.0, %v1215
  %v1217 = vpop.f32.mrb[0].mxu0
  %v1218 = vpop.f32.mrb[0].mxu0
  %v1219 = vpop.f32.mrb[0].mxu0
  %1220 = vdwg.mxu0
  %v1221 = vadd.f32 %v931, %v1120
  %v1222 = vadd.f32 %v932, %v1123
  %v1223 = vadd.f32 %v933, %v1128
  %v1224 = vadd.f32 %v934, %v1131
  %v1225 = vadd.f32 %v935, %v1136
  %v1226 = vadd.f32 %v936, %v1139
  %v1227 = vadd.f32 %v937, %v1144
  %v1228 = vadd.f32 %v938, %v1147
  %v1229 = vadd.f32 %v939, %v1152
  %v1230 = vadd.f32 %v940, %v1155
  %v1231 = vadd.f32 %v941, %v1160
  %v1232 = vadd.f32 %v942, %v1163
  %v1233 = vadd.f32 %v943, %v1168
  %v1234 = vadd.f32 %v944, %v1171
  %v1235 = vadd.f32 %v945, %v1176
  %v1236 = vadd.f32 %v946, %v1179
  %v1237 = vadd.f32 %v947, %v1184
  %v1238 = vadd.f32 %v948, %v1187
  %v1239 = vadd.f32 %v949, %v1192
  %v1240 = vadd.f32 %v950, %v1195
  %v1241 = vadd.f32 %v951, %v1200
  %v1242 = vadd.f32 %v952, %v1203
  %v1243 = vadd.f32 %v953, %v1208
  %v1244 = vadd.f32 %v954, %v1211
  %v1245 = vadd.f32 %v955, %v1216
  %s1246 = scalar_lea.vmem %s3, 256
  %v1247 = vld [vmem:[%s1246] sm:$0xf]
  %v1248 = vld [vmem:[%s1246 + $0x4] sm:$0xf]
  %v1249 = vld [vmem:[%s1246 + $0x8] sm:$0xf]
  %v1250 = vld [vmem:[%s1246 + $0xc] sm:$0xf]
  %v1251 = vld [vmem:[%s1246 + $0x10] sm:$0xf]
  %v1252 = vld [vmem:[%s1246 + $0x14] sm:$0xf]
  %v1253 = vld [vmem:[%s1246 + $0x18] sm:$0xf]
  %v1254 = vld [vmem:[%s1246 + $0x1c] sm:$0xf]
  %v1255 = vld [vmem:[%s1246 + $0x20] sm:$0xf]
  %v1256 = vld [vmem:[%s1246 + $0x24] sm:$0xf]
  %v1257 = vld [vmem:[%s1246 + $0x28] sm:$0xf]
  %v1258 = vld [vmem:[%s1246 + $0x2c] sm:$0xf]
  %v1259 = vld [vmem:[%s1246 + $0x30] sm:$0xf]
  %v1260 = vld [vmem:[%s1246 + $0x34] sm:$0xf]
  %v1261 = vld [vmem:[%s1246 + $0x38] sm:$0xf]
  %v1262 = vld [vmem:[%s1246 + $0x3c] sm:$0xf]
  %vm1263 = vsmask.f32 6400
  %v1265 = vshrl.u32 %v956, 16
  %v1267 = vrot.slane %v1265, 1
  %v1268 = vshll.u32 %v956, 16
  %v1270 = vrot.slane %v1268, 2
  %v1271 = vor.u32 %v1267, %v1270
  %v1273 = vshrl.u32 %v957, 16
  %v1275 = vrot.slane %v1273, 1
  %v1276 = vshll.u32 %v957, 16
  %v1278 = vrot.slane %v1276, 2
  %v1279 = vor.u32 %v1275, %v1278
  %v1280 = vsel %vm1263, %v1271, %v1279
  %v1282 = vshrl.u32 %v958, 16
  %v1284 = vrot.slane %v1282, 1
  %v1285 = vshll.u32 %v958, 16
  %v1287 = vrot.slane %v1285, 2
  %v1288 = vor.u32 %v1284, %v1287
  %v1289 = vsel %vm1263, %v1279, %v1288
  %v1291 = vshrl.u32 %v959, 16
  %v1293 = vrot.slane %v1291, 1
  %v1294 = vshll.u32 %v959, 16
  %v1296 = vrot.slane %v1294, 2
  %v1297 = vor.u32 %v1293, %v1296
  %v1298 = vsel %vm1263, %v1288, %v1297
  %v1300 = vshrl.u32 %v960, 16
  %v1302 = vrot.slane %v1300, 1
  %v1303 = vshll.u32 %v960, 16
  %v1305 = vrot.slane %v1303, 2
  %v1306 = vor.u32 %v1302, %v1305
  %v1307 = vsel %vm1263, %v1297, %v1306
  %v1309 = vshrl.u32 %v961, 16
  %v1311 = vrot.slane %v1309, 1
  %v1312 = vshll.u32 %v961, 16
  %v1314 = vrot.slane %v1312, 2
  %v1315 = vor.u32 %v1311, %v1314
  %v1316 = vsel %vm1263, %v1306, %v1315
  %v1318 = vshrl.u32 %v962, 16
  %v1320 = vrot.slane %v1318, 1
  %v1321 = vshll.u32 %v962, 16
  %v1323 = vrot.slane %v1321, 2
  %v1324 = vor.u32 %v1320, %v1323
  %v1325 = vsel %vm1263, %v1315, %v1324
  %v1327 = vshrl.u32 %v963, 16
  %v1329 = vrot.slane %v1327, 1
  %v1330 = vshll.u32 %v963, 16
  %v1332 = vrot.slane %v1330, 2
  %v1333 = vor.u32 %v1329, %v1332
  %v1334 = vsel %vm1263, %v1324, %v1333
  %v1336 = vshrl.u32 %v964, 16
  %v1338 = vrot.slane %v1336, 1
  %v1339 = vshll.u32 %v964, 16
  %v1341 = vrot.slane %v1339, 2
  %v1342 = vor.u32 %v1338, %v1341
  %v1343 = vsel %vm1263, %v1333, %v1342
  %v1345 = vshrl.u32 %v965, 16
  %v1347 = vrot.slane %v1345, 1
  %v1348 = vshll.u32 %v965, 16
  %v1350 = vrot.slane %v1348, 2
  %v1351 = vor.u32 %v1347, %v1350
  %v1352 = vsel %vm1263, %v1342, %v1351
  %v1354 = vshrl.u32 %v966, 16
  %v1356 = vrot.slane %v1354, 1
  %v1357 = vshll.u32 %v966, 16
  %v1359 = vrot.slane %v1357, 2
  %v1360 = vor.u32 %v1356, %v1359
  %v1361 = vsel %vm1263, %v1351, %v1360
  %v1363 = vshrl.u32 %v967, 16
  %v1365 = vrot.slane %v1363, 1
  %v1366 = vshll.u32 %v967, 16
  %v1368 = vrot.slane %v1366, 2
  %v1369 = vor.u32 %v1365, %v1368
  %v1370 = vsel %vm1263, %v1360, %v1369
  %v1372 = vshrl.u32 %v968, 16
  %v1374 = vrot.slane %v1372, 1
  %v1375 = vshll.u32 %v968, 16
  %v1377 = vrot.slane %v1375, 2
  %v1378 = vor.u32 %v1374, %v1377
  %v1379 = vsel %vm1263, %v1369, %v1378
  %v1409 = vunpack.c.l.b16 %v1247
  %v1410 = vunpack.c.l.b16 %v1248
  %v1411 = vunpack.c.l.b16 %v1249
  %v1412 = vunpack.c.l.b16 %v1250
  %v1413 = vunpack.c.l.b16 %v1251
  %v1414 = vunpack.c.l.b16 %v1252
  %v1415 = vunpack.c.l.b16 %v1253
  %v1416 = vunpack.c.l.b16 %v1254
  %v1417 = vunpack.c.l.b16 %v1255
  %v1418 = vunpack.c.l.b16 %v1256
  %v1419 = vunpack.c.l.b16 %v1257
  %v1420 = vunpack.c.l.b16 %v1258
  %v1421 = vunpack.c.l.b16 %v1259
  %v1422 = vunpack.c.l.b16 %v1260
  %v1423 = vunpack.c.l.b16 %v1261
  %v1424 = vunpack.c.l.b16 %v1262
  %v1425 = vpack.c.b16 %v1410, %v1409
  %v1426 = vpack.c.b16 %v1412, %v1411
  %v1427 = vpack.c.b16 %v1414, %v1413
  %v1428 = vpack.c.b16 %v1416, %v1415
  %v1429 = vpack.c.b16 %v1418, %v1417
  %v1430 = vpack.c.b16 %v1420, %v1419
  %v1431 = vpack.c.b16 %v1422, %v1421
  %v1432 = vpack.c.b16 %v1424, %v1423
  %1441 = vmatprep.subr.bf16.mxu0 0
  %1442 = vmatpush1.bf16.msra.mxu0 %v1425
  %1443 = vmatprep.subr.bf16.mxu0 0
  %1444 = vmatpush1.bf16.msra.mxu0 %v1426
  %1445 = vmatprep.subr.bf16.mxu0 0
  %1446 = vmatpush1.bf16.msra.mxu0 %v1427
  %1447 = vmatprep.subr.bf16.mxu0 0
  %1448 = vmatpush1.bf16.msra.mxu0 %v1428
  %1449 = vmatprep.subr.bf16.mxu0 0
  %1450 = vmatpush1.bf16.msra.mxu0 %v1429
  %1451 = vmatprep.subr.bf16.mxu0 0
  %1452 = vmatpush1.bf16.msra.mxu0 %v1430
  %1453 = vmatprep.subr.bf16.mxu0 0
  %1454 = vmatpush1.bf16.msra.mxu0 %v1431
  %1455 = vmatprep.subr.bf16.mxu0 0
  %1456 = vmatpush1.bf16.msra.mxu0 %v1432
  %1457 = vmatprep.subr.bf16.mxu0 0
  %1458 = vmatpush1.bf16.msra.mxu0 0
  %1459 = vmatprep.subr.bf16.mxu0 0
  %1460 = vmatpush1.bf16.msra.mxu0 0
  %1461 = vmatprep.subr.bf16.mxu0 0
  %1462 = vmatpush1.bf16.msra.mxu0 0
  %1463 = vmatprep.subr.bf16.mxu0 0
  %1464 = vmatpush1.bf16.msra.mxu0 0
  %1465 = vmatprep.subr.bf16.mxu0 0
  %1466 = vmatpush1.bf16.msra.mxu0 0
  %1467 = vmatprep.subr.bf16.mxu0 0
  %1468 = vmatpush1.bf16.msra.mxu0 0
  %1469 = vmatprep.subr.bf16.mxu0 0
  %1470 = vmatpush1.bf16.msra.mxu0 0
  %1471 = vmatprep.subr.bf16.mxu0 0
  %1472 = vmatpush1.bf16.msra.mxu0 0
  %1473 = vmatprep.mubr.bf16.mxu0 0
  %1474 = vmatmul.mubr.bf16.gmra.mrb[0].mxu0 %v1280
  %v1475 = vpop.f32.mrb[0].mxu0
  %v1476 = vadd.f32 0.0, %v1475
  %v1477 = vpop.f32.mrb[0].mxu0
  %v1478 = vpop.f32.mrb[0].mxu0
  %v1479 = vadd.f32 0.0, %v1478
  %v1480 = vpop.f32.mrb[0].mxu0
  %1481 = vmatprep.mubr.bf16.mxu0 0
  %1482 = vmatmul.mubr.bf16.gmra.mrb[0].mxu0 %v1289
  %v1483 = vpop.f32.mrb[0].mxu0
  %v1484 = vadd.f32 0.0, %v1483
  %v1485 = vpop.f32.mrb[0].mxu0
  %v1486 = vpop.f32.mrb[0].mxu0
  %v1487 = vadd.f32 0.0, %v1486
  %v1488 = vpop.f32.mrb[0].mxu0
  %1489 = vmatprep.mubr.bf16.mxu0 0
  %1490 = vmatmul.mubr.bf16.gmra.mrb[0].mxu0 %v1298
  %v1491 = vpop.f32.mrb[0].mxu0
  %v1492 = vadd.f32 0.0, %v1491
  %v1493 = vpop.f32.mrb[0].mxu0
  %v1494 = vpop.f32.mrb[0].mxu0
  %v1495 = vadd.f32 0.0, %v1494
  %v1496 = vpop.f32.mrb[0].mxu0
  %1497 = vmatprep.mubr.bf16.mxu0 0
  %1498 = vmatmul.mubr.bf16.gmra.mrb[0].mxu0 %v1307
  %v1499 = vpop.f32.mrb[0].mxu0
  %v1500 = vadd.f32 0.0, %v1499
  %v1501 = vpop.f32.mrb[0].mxu0
  %v1502 = vpop.f32.mrb[0].mxu0
  %v1503 = vadd.f32 0.0, %v1502
  %v1504 = vpop.f32.mrb[0].mxu0
  %1505 = vmatprep.mubr.bf16.mxu0 0
  %1506 = vmatmul.mubr.bf16.gmra.mrb[0].mxu0 %v1316
  %v1507 = vpop.f32.mrb[0].mxu0
  %v1508 = vadd.f32 0.0, %v1507
  %v1509 = vpop.f32.mrb[0].mxu0
  %v1510 = vpop.f32.mrb[0].mxu0
  %v1511 = vadd.f32 0.0, %v1510
  %v1512 = vpop.f32.mrb[0].mxu0
  %1513 = vmatprep.mubr.bf16.mxu0 0
  %1514 = vmatmul.mubr.bf16.gmra.mrb[0].mxu0 %v1325
  %v1515 = vpop.f32.mrb[0].mxu0
  %v1516 = vadd.f32 0.0, %v1515
  %v1517 = vpop.f32.mrb[0].mxu0
  %v1518 = vpop.f32.mrb[0].mxu0
  %v1519 = vadd.f32 0.0, %v1518
  %v1520 = vpop.f32.mrb[0].mxu0
  %1521 = vmatprep.mubr.bf16.mxu0 0
  %1522 = vmatmul.mubr.bf16.gmra.mrb[0].mxu0 %v1334
  %v1523 = vpop.f32.mrb[0].mxu0
  %v1524 = vadd.f32 0.0, %v1523
  %v1525 = vpop.f32.mrb[0].mxu0
  %v1526 = vpop.f32.mrb[0].mxu0
  %v1527 = vadd.f32 0.0, %v1526
  %v1528 = vpop.f32.mrb[0].mxu0
  %1529 = vmatprep.mubr.bf16.mxu0 0
  %1530 = vmatmul.mubr.bf16.gmra.mrb[0].mxu0 %v1343
  %v1531 = vpop.f32.mrb[0].mxu0
  %v1532 = vadd.f32 0.0, %v1531
  %v1533 = vpop.f32.mrb[0].mxu0
  %v1534 = vpop.f32.mrb[0].mxu0
  %v1535 = vadd.f32 0.0, %v1534
  %v1536 = vpop.f32.mrb[0].mxu0
  %1537 = vmatprep.mubr.bf16.mxu0 0
  %1538 = vmatmul.mubr.bf16.gmra.mrb[0].mxu0 %v1352
  %v1539 = vpop.f32.mrb[0].mxu0
  %v1540 = vadd.f32 0.0, %v1539
  %v1541 = vpop.f32.mrb[0].mxu0
  %v1542 = vpop.f32.mrb[0].mxu0
  %v1543 = vadd.f32 0.0, %v1542
  %v1544 = vpop.f32.mrb[0].mxu0
  %1545 = vmatprep.mubr.bf16.mxu0 0
  %1546 = vmatmul.mubr.bf16.gmra.mrb[0].mxu0 %v1361
  %v1547 = vpop.f32.mrb[0].mxu0
  %v1548 = vadd.f32 0.0, %v1547
  %v1549 = vpop.f32.mrb[0].mxu0
  %v1550 = vpop.f32.mrb[0].mxu0
  %v1551 = vadd.f32 0.0, %v1550
  %v1552 = vpop.f32.mrb[0].mxu0
  %1553 = vmatprep.mubr.bf16.mxu0 0
  %1554 = vmatmul.mubr.bf16.gmra.mrb[0].mxu0 %v1370
  %v1555 = vpop.f32.mrb[0].mxu0
  %v1556 = vadd.f32 0.0, %v1555
  %v1557 = vpop.f32.mrb[0].mxu0
  %v1558 = vpop.f32.mrb[0].mxu0
  %v1559 = vadd.f32 0.0, %v1558
  %v1560 = vpop.f32.mrb[0].mxu0
  %1561 = vmatprep.mubr.bf16.mxu0 0
  %1562 = vmatmul.mubr.bf16.gmra.mrb[0].mxu0 %v1379
  %v1563 = vpop.f32.mrb[0].mxu0
  %v1564 = vadd.f32 0.0, %v1563
  %v1565 = vpop.f32.mrb[0].mxu0
  %v1566 = vpop.f32.mrb[0].mxu0
  %v1567 = vadd.f32 0.0, %v1566
  %v1568 = vpop.f32.mrb[0].mxu0
  %1569 = vmatprep.mubr.bf16.mxu0 0
  %1570 = vmatmul.mubr.bf16.gmra.mrb[0].mxu0 %v1378
  %v1571 = vpop.f32.mrb[0].mxu0
  %v1572 = vadd.f32 0.0, %v1571
  %v1573 = vpop.f32.mrb[0].mxu0
  %v1574 = vpop.f32.mrb[0].mxu0
  %v1575 = vpop.f32.mrb[0].mxu0
  %1576 = vdwg.mxu0
  %v1577 = vadd.f32 %v1221, %v1476
  %v1578 = vadd.f32 %v1222, %v1479
  %v1579 = vadd.f32 %v1223, %v1484
  %v1580 = vadd.f32 %v1224, %v1487
  %v1581 = vadd.f32 %v1225, %v1492
  %v1582 = vadd.f32 %v1226, %v1495
  %v1583 = vadd.f32 %v1227, %v1500
  %v1584 = vadd.f32 %v1228, %v1503
  %v1585 = vadd.f32 %v1229, %v1508
  %v1586 = vadd.f32 %v1230, %v1511
  %v1587 = vadd.f32 %v1231, %v1516
  %v1588 = vadd.f32 %v1232, %v1519
  %v1589 = vadd.f32 %v1233, %v1524
  %v1590 = vadd.f32 %v1234, %v1527
  %v1591 = vadd.f32 %v1235, %v1532
  %v1592 = vadd.f32 %v1236, %v1535
  %v1593 = vadd.f32 %v1237, %v1540
  %v1594 = vadd.f32 %v1238, %v1543
  %v1595 = vadd.f32 %v1239, %v1548
  %v1596 = vadd.f32 %v1240, %v1551
  %v1597 = vadd.f32 %v1241, %v1556
  %v1598 = vadd.f32 %v1242, %v1559
  %v1599 = vadd.f32 %v1243, %v1564
  %v1600 = vadd.f32 %v1244, %v1567
  %v1601 = vadd.f32 %v1245, %v1572
  %s1602 = scalar_lea.vmem %s3, 320
  %v1603 = vld [vmem:[%s1602] sm:$0xf]
  %v1604 = vld [vmem:[%s1602 + $0x4] sm:$0xf]
  %v1605 = vld [vmem:[%s1602 + $0x8] sm:$0xf]
  %v1606 = vld [vmem:[%s1602 + $0xc] sm:$0xf]
  %v1607 = vld [vmem:[%s1602 + $0x10] sm:$0xf]
  %v1608 = vld [vmem:[%s1602 + $0x14] sm:$0xf]
  %v1609 = vld [vmem:[%s1602 + $0x18] sm:$0xf]
  %v1610 = vld [vmem:[%s1602 + $0x1c] sm:$0xf]
  %v1611 = vld [vmem:[%s1602 + $0x20] sm:$0xf]
  %v1612 = vld [vmem:[%s1602 + $0x24] sm:$0xf]
  %v1613 = vld [vmem:[%s1602 + $0x28] sm:$0xf]
  %v1614 = vld [vmem:[%s1602 + $0x2c] sm:$0xf]
  %v1615 = vld [vmem:[%s1602 + $0x30] sm:$0xf]
  %v1616 = vld [vmem:[%s1602 + $0x34] sm:$0xf]
  %v1617 = vld [vmem:[%s1602 + $0x38] sm:$0xf]
  %v1618 = vld [vmem:[%s1602 + $0x3c] sm:$0xf]
  %vm1619 = vcmask 1045504
  %v1620 = vrot.slane %v956, 2
  %v1621 = vrot.slane %v957, 2
  %v1622 = vsel %vm1619, %v1620, %v1621
  %v1623 = vrot.slane %v958, 2
  %v1624 = vsel %vm1619, %v1621, %v1623
  %v1625 = vrot.slane %v959, 2
  %v1626 = vsel %vm1619, %v1623, %v1625
  %v1627 = vrot.slane %v960, 2
  %v1628 = vsel %vm1619, %v1625, %v1627
  %v1629 = vrot.slane %v961, 2
  %v1630 = vsel %vm1619, %v1627, %v1629
  %v1631 = vrot.slane %v962, 2
  %v1632 = vsel %vm1619, %v1629, %v1631
  %v1633 = vrot.slane %v963, 2
  %v1634 = vsel %vm1619, %v1631, %v1633
  %v1635 = vrot.slane %v964, 2
  %v1636 = vsel %vm1619, %v1633, %v1635
  %v1637 = vrot.slane %v965, 2
  %v1638 = vsel %vm1619, %v1635, %v1637
  %v1639 = vrot.slane %v966, 2
  %v1640 = vsel %vm1619, %v1637, %v1639
  %v1641 = vrot.slane %v967, 2
  %v1642 = vsel %vm1619, %v1639, %v1641
  %v1643 = vrot.slane %v968, 2
  %v1644 = vsel %vm1619, %v1641, %v1643
  %v1674 = vunpack.c.l.b16 %v1603
  %v1675 = vunpack.c.l.b16 %v1604
  %v1676 = vunpack.c.l.b16 %v1605
  %v1677 = vunpack.c.l.b16 %v1606
  %v1678 = vunpack.c.l.b16 %v1607
  %v1679 = vunpack.c.l.b16 %v1608
  %v1680 = vunpack.c.l.b16 %v1609
  %v1681 = vunpack.c.l.b16 %v1610
  %v1682 = vunpack.c.l.b16 %v1611
  %v1683 = vunpack.c.l.b16 %v1612
  %v1684 = vunpack.c.l.b16 %v1613
  %v1685 = vunpack.c.l.b16 %v1614
  %v1686 = vunpack.c.l.b16 %v1615
  %v1687 = vunpack.c.l.b16 %v1616
  %v1688 = vunpack.c.l.b16 %v1617
  %v1689 = vunpack.c.l.b16 %v1618
  %v1690 = vpack.c.b16 %v1675, %v1674
  %v1691 = vpack.c.b16 %v1677, %v1676
  %v1692 = vpack.c.b16 %v1679, %v1678
  %v1693 = vpack.c.b16 %v1681, %v1680
  %v1694 = vpack.c.b16 %v1683, %v1682
  %v1695 = vpack.c.b16 %v1685, %v1684
  %v1696 = vpack.c.b16 %v1687, %v1686
  %v1697 = vpack.c.b16 %v1689, %v1688
  %1706 = vmatprep.subr.bf16.mxu0 0
  %1707 = vmatpush1.bf16.msra.mxu0 %v1690
  %1708 = vmatprep.subr.bf16.mxu0 0
  %1709 = vmatpush1.bf16.msra.mxu0 %v1691
  %1710 = vmatprep.subr.bf16.mxu0 0
  %1711 = vmatpush1.bf16.msra.mxu0 %v1692
  %1712 = vmatprep.subr.bf16.mxu0 0
  %1713 = vmatpush1.bf16.msra.mxu0 %v1693
  %1714 = vmatprep.subr.bf16.mxu0 0
  %1715 = vmatpush1.bf16.msra.mxu0 %v1694
  %1716 = vmatprep.subr.bf16.mxu0 0
  %1717 = vmatpush1.bf16.msra.mxu0 %v1695
  %1718 = vmatprep.subr.bf16.mxu0 0
  %1719 = vmatpush1.bf16.msra.mxu0 %v1696
  %1720 = vmatprep.subr.bf16.mxu0 0
  %1721 = vmatpush1.bf16.msra.mxu0 %v1697
  %1722 = vmatprep.subr.bf16.mxu0 0
  %1723 = vmatpush1.bf16.msra.mxu0 0
  %1724 = vmatprep.subr.bf16.mxu0 0
  %1725 = vmatpush1.bf16.msra.mxu0 0
  %1726 = vmatprep.subr.bf16.mxu0 0
  %1727 = vmatpush1.bf16.msra.mxu0 0
  %1728 = vmatprep.subr.bf16.mxu0 0
  %1729 = vmatpush1.bf16.msra.mxu0 0
  %1730 = vmatprep.subr.bf16.mxu0 0
  %1731 = vmatpush1.bf16.msra.mxu0 0
  %1732 = vmatprep.subr.bf16.mxu0 0
  %1733 = vmatpush1.bf16.msra.mxu0 0
  %1734 = vmatprep.subr.bf16.mxu0 0
  %1735 = vmatpush1.bf16.msra.mxu0 0
  %1736 = vmatprep.subr.bf16.mxu0 0
  %1737 = vmatpush1.bf16.msra.mxu0 0
  %1738 = vmatprep.mubr.bf16.mxu0 0
  %1739 = vmatmul.mubr.bf16.gmra.mrb[0].mxu0 %v1622
  %v1740 = vpop.f32.mrb[0].mxu0
  %v1741 = vadd.f32 0.0, %v1740
  %v1742 = vpop.f32.mrb[0].mxu0
  %v1743 = vpop.f32.mrb[0].mxu0
  %v1744 = vadd.f32 0.0, %v1743
  %v1745 = vpop.f32.mrb[0].mxu0
  %1746 = vmatprep.mubr.bf16.mxu0 0
  %1747 = vmatmul.mubr.bf16.gmra.mrb[0].mxu0 %v1624
  %v1748 = vpop.f32.mrb[0].mxu0
  %v1749 = vadd.f32 0.0, %v1748
  %v1750 = vpop.f32.mrb[0].mxu0
  %v1751 = vpop.f32.mrb[0].mxu0
  %v1752 = vadd.f32 0.0, %v1751
  %v1753 = vpop.f32.mrb[0].mxu0
  %1754 = vmatprep.mubr.bf16.mxu0 0
  %1755 = vmatmul.mubr.bf16.gmra.mrb[0].mxu0 %v1626
  %v1756 = vpop.f32.mrb[0].mxu0
  %v1757 = vadd.f32 0.0, %v1756
  %v1758 = vpop.f32.mrb[0].mxu0
  %v1759 = vpop.f32.mrb[0].mxu0
  %v1760 = vadd.f32 0.0, %v1759
  %v1761 = vpop.f32.mrb[0].mxu0
  %1762 = vmatprep.mubr.bf16.mxu0 0
  %1763 = vmatmul.mubr.bf16.gmra.mrb[0].mxu0 %v1628
  %v1764 = vpop.f32.mrb[0].mxu0
  %v1765 = vadd.f32 0.0, %v1764
  %v1766 = vpop.f32.mrb[0].mxu0
  %v1767 = vpop.f32.mrb[0].mxu0
  %v1768 = vadd.f32 0.0, %v1767
  %v1769 = vpop.f32.mrb[0].mxu0
  %1770 = vmatprep.mubr.bf16.mxu0 0
  %1771 = vmatmul.mubr.bf16.gmra.mrb[0].mxu0 %v1630
  %v1772 = vpop.f32.mrb[0].mxu0
  %v1773 = vadd.f32 0.0, %v1772
  %v1774 = vpop.f32.mrb[0].mxu0
  %v1775 = vpop.f32.mrb[0].mxu0
  %v1776 = vadd.f32 0.0, %v1775
  %v1777 = vpop.f32.mrb[0].mxu0
  %1778 = vmatprep.mubr.bf16.mxu0 0
  %1779 = vmatmul.mubr.bf16.gmra.mrb[0].mxu0 %v1632
  %v1780 = vpop.f32.mrb[0].mxu0
  %v1781 = vadd.f32 0.0, %v1780
  %v1782 = vpop.f32.mrb[0].mxu0
  %v1783 = vpop.f32.mrb[0].mxu0
  %v1784 = vadd.f32 0.0, %v1783
  %v1785 = vpop.f32.mrb[0].mxu0
  %1786 = vmatprep.mubr.bf16.mxu0 0
  %1787 = vmatmul.mubr.bf16.gmra.mrb[0].mxu0 %v1634
  %v1788 = vpop.f32.mrb[0].mxu0
  %v1789 = vadd.f32 0.0, %v1788
  %v1790 = vpop.f32.mrb[0].mxu0
  %v1791 = vpop.f32.mrb[0].mxu0
  %v1792 = vadd.f32 0.0, %v1791
  %v1793 = vpop.f32.mrb[0].mxu0
  %1794 = vmatprep.mubr.bf16.mxu0 0
  %1795 = vmatmul.mubr.bf16.gmra.mrb[0].mxu0 %v1636
  %v1796 = vpop.f32.mrb[0].mxu0
  %v1797 = vadd.f32 0.0, %v1796
  %v1798 = vpop.f32.mrb[0].mxu0
  %v1799 = vpop.f32.mrb[0].mxu0
  %v1800 = vadd.f32 0.0, %v1799
  %v1801 = vpop.f32.mrb[0].mxu0
  %1802 = vmatprep.mubr.bf16.mxu0 0
  %1803 = vmatmul.mubr.bf16.gmra.mrb[0].mxu0 %v1638
  %v1804 = vpop.f32.mrb[0].mxu0
  %v1805 = vadd.f32 0.0, %v1804
  %v1806 = vpop.f32.mrb[0].mxu0
  %v1807 = vpop.f32.mrb[0].mxu0
  %v1808 = vadd.f32 0.0, %v1807
  %v1809 = vpop.f32.mrb[0].mxu0
  %1810 = vmatprep.mubr.bf16.mxu0 0
  %1811 = vmatmul.mubr.bf16.gmra.mrb[0].mxu0 %v1640
  %v1812 = vpop.f32.mrb[0].mxu0
  %v1813 = vadd.f32 0.0, %v1812
  %v1814 = vpop.f32.mrb[0].mxu0
  %v1815 = vpop.f32.mrb[0].mxu0
  %v1816 = vadd.f32 0.0, %v1815
  %v1817 = vpop.f32.mrb[0].mxu0
  %1818 = vmatprep.mubr.bf16.mxu0 0
  %1819 = vmatmul.mubr.bf16.gmra.mrb[0].mxu0 %v1642
  %v1820 = vpop.f32.mrb[0].mxu0
  %v1821 = vadd.f32 0.0, %v1820
  %v1822 = vpop.f32.mrb[0].mxu0
  %v1823 = vpop.f32.mrb[0].mxu0
  %v1824 = vadd.f32 0.0, %v1823
  %v1825 = vpop.f32.mrb[0].mxu0
  %1826 = vmatprep.mubr.bf16.mxu0 0
  %1827 = vmatmul.mubr.bf16.gmra.mrb[0].mxu0 %v1644
  %v1828 = vpop.f32.mrb[0].mxu0
  %v1829 = vadd.f32 0.0, %v1828
  %v1830 = vpop.f32.mrb[0].mxu0
  %v1831 = vpop.f32.mrb[0].mxu0
  %v1832 = vadd.f32 0.0, %v1831
  %v1833 = vpop.f32.mrb[0].mxu0
  %1834 = vmatprep.mubr.bf16.mxu0 0
  %1835 = vmatmul.mubr.bf16.gmra.mrb[0].mxu0 %v1643
  %v1836 = vpop.f32.mrb[0].mxu0
  %v1837 = vadd.f32 0.0, %v1836
  %v1838 = vpop.f32.mrb[0].mxu0
  %v1839 = vpop.f32.mrb[0].mxu0
  %v1840 = vpop.f32.mrb[0].mxu0
  %1841 = vdwg.mxu0
  %v1842 = vadd.f32 %v1577, %v1741
  %v1843 = vadd.f32 %v1578, %v1744
  %v1844 = vadd.f32 %v1579, %v1749
  %v1845 = vadd.f32 %v1580, %v1752
  %v1846 = vadd.f32 %v1581, %v1757
  %v1847 = vadd.f32 %v1582, %v1760
  %v1848 = vadd.f32 %v1583, %v1765
  %v1849 = vadd.f32 %v1584, %v1768
  %v1850 = vadd.f32 %v1585, %v1773
  %v1851 = vadd.f32 %v1586, %v1776
  %v1852 = vadd.f32 %v1587, %v1781
  %v1853 = vadd.f32 %v1588, %v1784
  %v1854 = vadd.f32 %v1589, %v1789
  %v1855 = vadd.f32 %v1590, %v1792
  %v1856 = vadd.f32 %v1591, %v1797
  %v1857 = vadd.f32 %v1592, %v1800
  %v1858 = vadd.f32 %v1593, %v1805
  %v1859 = vadd.f32 %v1594, %v1808
  %v1860 = vadd.f32 %v1595, %v1813
  %v1861 = vadd.f32 %v1596, %v1816
  %v1862 = vadd.f32 %v1597, %v1821
  %v1863 = vadd.f32 %v1598, %v1824
  %v1864 = vadd.f32 %v1599, %v1829
  %v1865 = vadd.f32 %v1600, %v1832
  %v1866 = vadd.f32 %v1601, %v1837
  %v1867 = vpack.c.bf16 %v145, %v144
  %s1868 = scalar_lea.vmem %s3, 384
  %v1869 = vld [vmem:[%s1868] sm:$0xf]
  %v1870 = vld [vmem:[%s1868 + $0x4] sm:$0xf]
  %v1871 = vld [vmem:[%s1868 + $0x8] sm:$0xf]
  %v1872 = vld [vmem:[%s1868 + $0xc] sm:$0xf]
  %v1873 = vld [vmem:[%s1868 + $0x10] sm:$0xf]
  %v1874 = vld [vmem:[%s1868 + $0x14] sm:$0xf]
  %v1875 = vld [vmem:[%s1868 + $0x18] sm:$0xf]
  %v1876 = vld [vmem:[%s1868 + $0x1c] sm:$0xf]
  %v1877 = vld [vmem:[%s1868 + $0x20] sm:$0xf]
  %v1878 = vld [vmem:[%s1868 + $0x24] sm:$0xf]
  %v1879 = vld [vmem:[%s1868 + $0x28] sm:$0xf]
  %v1880 = vld [vmem:[%s1868 + $0x2c] sm:$0xf]
  %v1881 = vld [vmem:[%s1868 + $0x30] sm:$0xf]
  %v1882 = vld [vmem:[%s1868 + $0x34] sm:$0xf]
  %v1883 = vld [vmem:[%s1868 + $0x38] sm:$0xf]
  %v1884 = vld [vmem:[%s1868 + $0x3c] sm:$0xf]
  %v1886 = vrot.slane %v147, 2
  %v1887 = vrot.slane %v148, 2
  %v1888 = vsel %vm1619, %v1886, %v1887
  %v1889 = vrot.slane %v149, 2
  %v1890 = vsel %vm1619, %v1887, %v1889
  %v1891 = vrot.slane %v150, 2
  %v1892 = vsel %vm1619, %v1889, %v1891
  %v1893 = vrot.slane %v151, 2
  %v1894 = vsel %vm1619, %v1891, %v1893
  %v1895 = vrot.slane %v152, 2
  %v1896 = vsel %vm1619, %v1893, %v1895
  %v1897 = vrot.slane %v153, 2
  %v1898 = vsel %vm1619, %v1895, %v1897
  %v1899 = vrot.slane %v154, 2
  %v1900 = vsel %vm1619, %v1897, %v1899
  %v1901 = vrot.slane %v155, 2
  %v1902 = vsel %vm1619, %v1899, %v1901
  %v1903 = vrot.slane %v156, 2
  %v1904 = vsel %vm1619, %v1901, %v1903
  %v1905 = vrot.slane %v157, 2
  %v1906 = vsel %vm1619, %v1903, %v1905
  %v1907 = vrot.slane %v175, 2
  %v1908 = vsel %vm1619, %v1905, %v1907
  %v1909 = vrot.slane %v1867, 2
  %v1910 = vsel %vm1619, %v1907, %v1909
  %v1940 = vunpack.c.l.b16 %v1869
  %v1941 = vunpack.c.l.b16 %v1870
  %v1942 = vunpack.c.l.b16 %v1871
  %v1943 = vunpack.c.l.b16 %v1872
  %v1944 = vunpack.c.l.b16 %v1873
  %v1945 = vunpack.c.l.b16 %v1874
  %v1946 = vunpack.c.l.b16 %v1875
  %v1947 = vunpack.c.l.b16 %v1876
  %v1948 = vunpack.c.l.b16 %v1877
  %v1949 = vunpack.c.l.b16 %v1878
  %v1950 = vunpack.c.l.b16 %v1879
  %v1951 = vunpack.c.l.b16 %v1880
  %v1952 = vunpack.c.l.b16 %v1881
  %v1953 = vunpack.c.l.b16 %v1882
  %v1954 = vunpack.c.l.b16 %v1883
  %v1955 = vunpack.c.l.b16 %v1884
  %v1956 = vpack.c.b16 %v1941, %v1940
  %v1957 = vpack.c.b16 %v1943, %v1942
  %v1958 = vpack.c.b16 %v1945, %v1944
  %v1959 = vpack.c.b16 %v1947, %v1946
  %v1960 = vpack.c.b16 %v1949, %v1948
  %v1961 = vpack.c.b16 %v1951, %v1950
  %v1962 = vpack.c.b16 %v1953, %v1952
  %v1963 = vpack.c.b16 %v1955, %v1954
  %1972 = vmatprep.subr.bf16.mxu0 0
  %1973 = vmatpush1.bf16.msra.mxu0 %v1956
  %1974 = vmatprep.subr.bf16.mxu0 0
  %1975 = vmatpush1.bf16.msra.mxu0 %v1957
  %1976 = vmatprep.subr.bf16.mxu0 0
  %1977 = vmatpush1.bf16.msra.mxu0 %v1958
  %1978 = vmatprep.subr.bf16.mxu0 0
  %1979 = vmatpush1.bf16.msra.mxu0 %v1959
  %1980 = vmatprep.subr.bf16.mxu0 0
  %1981 = vmatpush1.bf16.msra.mxu0 %v1960
  %1982 = vmatprep.subr.bf16.mxu0 0
  %1983 = vmatpush1.bf16.msra.mxu0 %v1961
  %1984 = vmatprep.subr.bf16.mxu0 0
  %1985 = vmatpush1.bf16.msra.mxu0 %v1962
  %1986 = vmatprep.subr.bf16.mxu0 0
  %1987 = vmatpush1.bf16.msra.mxu0 %v1963
  %1988 = vmatprep.subr.bf16.mxu0 0
  %1989 = vmatpush1.bf16.msra.mxu0 0
  %1990 = vmatprep.subr.bf16.mxu0 0
  %1991 = vmatpush1.bf16.msra.mxu0 0
  %1992 = vmatprep.subr.bf16.mxu0 0
  %1993 = vmatpush1.bf16.msra.mxu0 0
  %1994 = vmatprep.subr.bf16.mxu0 0
  %1995 = vmatpush1.bf16.msra.mxu0 0
  %1996 = vmatprep.subr.bf16.mxu0 0
  %1997 = vmatpush1.bf16.msra.mxu0 0
  %1998 = vmatprep.subr.bf16.mxu0 0
  %1999 = vmatpush1.bf16.msra.mxu0 0
  %2000 = vmatprep.subr.bf16.mxu0 0
  %2001 = vmatpush1.bf16.msra.mxu0 0
  %2002 = vmatprep.subr.bf16.mxu0 0
  %2003 = vmatpush1.bf16.msra.mxu0 0
  %2004 = vmatprep.mubr.bf16.mxu0 0
  %2005 = vmatmul.mubr.bf16.gmra.mrb[0].mxu0 %v1888
  %v2006 = vpop.f32.mrb[0].mxu0
  %v2007 = vadd.f32 0.0, %v2006
  %v2008 = vpop.f32.mrb[0].mxu0
  %v2009 = vpop.f32.mrb[0].mxu0
  %v2010 = vadd.f32 0.0, %v2009
  %v2011 = vpop.f32.mrb[0].mxu0
  %2012 = vmatprep.mubr.bf16.mxu0 0
  %2013 = vmatmul.mubr.bf16.gmra.mrb[0].mxu0 %v1890
  %v2014 = vpop.f32.mrb[0].mxu0
  %v2015 = vadd.f32 0.0, %v2014
  %v2016 = vpop.f32.mrb[0].mxu0
  %v2017 = vpop.f32.mrb[0].mxu0
  %v2018 = vadd.f32 0.0, %v2017
  %v2019 = vpop.f32.mrb[0].mxu0
  %2020 = vmatprep.mubr.bf16.mxu0 0
  %2021 = vmatmul.mubr.bf16.gmra.mrb[0].mxu0 %v1892
  %v2022 = vpop.f32.mrb[0].mxu0
  %v2023 = vadd.f32 0.0, %v2022
  %v2024 = vpop.f32.mrb[0].mxu0
  %v2025 = vpop.f32.mrb[0].mxu0
  %v2026 = vadd.f32 0.0, %v2025
  %v2027 = vpop.f32.mrb[0].mxu0
  %2028 = vmatprep.mubr.bf16.mxu0 0
  %2029 = vmatmul.mubr.bf16.gmra.mrb[0].mxu0 %v1894
  %v2030 = vpop.f32.mrb[0].mxu0
  %v2031 = vadd.f32 0.0, %v2030
  %v2032 = vpop.f32.mrb[0].mxu0
  %v2033 = vpop.f32.mrb[0].mxu0
  %v2034 = vadd.f32 0.0, %v2033
  %v2035 = vpop.f32.mrb[0].mxu0
  %2036 = vmatprep.mubr.bf16.mxu0 0
  %2037 = vmatmul.mubr.bf16.gmra.mrb[0].mxu0 %v1896
  %v2038 = vpop.f32.mrb[0].mxu0
  %v2039 = vadd.f32 0.0, %v2038
  %v2040 = vpop.f32.mrb[0].mxu0
  %v2041 = vpop.f32.mrb[0].mxu0
  %v2042 = vadd.f32 0.0, %v2041
  %v2043 = vpop.f32.mrb[0].mxu0
  %2044 = vmatprep.mubr.bf16.mxu0 0
  %2045 = vmatmul.mubr.bf16.gmra.mrb[0].mxu0 %v1898
  %v2046 = vpop.f32.mrb[0].mxu0
  %v2047 = vadd.f32 0.0, %v2046
  %v2048 = vpop.f32.mrb[0].mxu0
  %v2049 = vpop.f32.mrb[0].mxu0
  %v2050 = vadd.f32 0.0, %v2049
  %v2051 = vpop.f32.mrb[0].mxu0
  %2052 = vmatprep.mubr.bf16.mxu0 0
  %2053 = vmatmul.mubr.bf16.gmra.mrb[0].mxu0 %v1900
  %v2054 = vpop.f32.mrb[0].mxu0
  %v2055 = vadd.f32 0.0, %v2054
  %v2056 = vpop.f32.mrb[0].mxu0
  %v2057 = vpop.f32.mrb[0].mxu0
  %v2058 = vadd.f32 0.0, %v2057
  %v2059 = vpop.f32.mrb[0].mxu0
  %2060 = vmatprep.mubr.bf16.mxu0 0
  %2061 = vmatmul.mubr.bf16.gmra.mrb[0].mxu0 %v1902
  %v2062 = vpop.f32.mrb[0].mxu0
  %v2063 = vadd.f32 0.0, %v2062
  %v2064 = vpop.f32.mrb[0].mxu0
  %v2065 = vpop.f32.mrb[0].mxu0
  %v2066 = vadd.f32 0.0, %v2065
  %v2067 = vpop.f32.mrb[0].mxu0
  %2068 = vmatprep.mubr.bf16.mxu0 0
  %2069 = vmatmul.mubr.bf16.gmra.mrb[0].mxu0 %v1904
  %v2070 = vpop.f32.mrb[0].mxu0
  %v2071 = vadd.f32 0.0, %v2070
  %v2072 = vpop.f32.mrb[0].mxu0
  %v2073 = vpop.f32.mrb[0].mxu0
  %v2074 = vadd.f32 0.0, %v2073
  %v2075 = vpop.f32.mrb[0].mxu0
  %2076 = vmatprep.mubr.bf16.mxu0 0
  %2077 = vmatmul.mubr.bf16.gmra.mrb[0].mxu0 %v1906
  %v2078 = vpop.f32.mrb[0].mxu0
  %v2079 = vadd.f32 0.0, %v2078
  %v2080 = vpop.f32.mrb[0].mxu0
  %v2081 = vpop.f32.mrb[0].mxu0
  %v2082 = vadd.f32 0.0, %v2081
  %v2083 = vpop.f32.mrb[0].mxu0
  %2084 = vmatprep.mubr.bf16.mxu0 0
  %2085 = vmatmul.mubr.bf16.gmra.mrb[0].mxu0 %v1908
  %v2086 = vpop.f32.mrb[0].mxu0
  %v2087 = vadd.f32 0.0, %v2086
  %v2088 = vpop.f32.mrb[0].mxu0
  %v2089 = vpop.f32.mrb[0].mxu0
  %v2090 = vadd.f32 0.0, %v2089
  %v2091 = vpop.f32.mrb[0].mxu0
  %2092 = vmatprep.mubr.bf16.mxu0 0
  %2093 = vmatmul.mubr.bf16.gmra.mrb[0].mxu0 %v1910
  %v2094 = vpop.f32.mrb[0].mxu0
  %v2095 = vadd.f32 0.0, %v2094
  %v2096 = vpop.f32.mrb[0].mxu0
  %v2097 = vpop.f32.mrb[0].mxu0
  %v2098 = vadd.f32 0.0, %v2097
  %v2099 = vpop.f32.mrb[0].mxu0
  %2100 = vmatprep.mubr.bf16.mxu0 0
  %2101 = vmatmul.mubr.bf16.gmra.mrb[0].mxu0 %v1909
  %v2102 = vpop.f32.mrb[0].mxu0
  %v2103 = vadd.f32 0.0, %v2102
  %v2104 = vpop.f32.mrb[0].mxu0
  %v2105 = vpop.f32.mrb[0].mxu0
  %v2106 = vpop.f32.mrb[0].mxu0
  %2107 = vdwg.mxu0
  %v2108 = vadd.f32 %v1842, %v2007
  %v2109 = vadd.f32 %v1843, %v2010
  %v2110 = vadd.f32 %v1844, %v2015
  %v2111 = vadd.f32 %v1845, %v2018
  %v2112 = vadd.f32 %v1846, %v2023
  %v2113 = vadd.f32 %v1847, %v2026
  %v2114 = vadd.f32 %v1848, %v2031
  %v2115 = vadd.f32 %v1849, %v2034
  %v2116 = vadd.f32 %v1850, %v2039
  %v2117 = vadd.f32 %v1851, %v2042
  %v2118 = vadd.f32 %v1852, %v2047
  %v2119 = vadd.f32 %v1853, %v2050
  %v2120 = vadd.f32 %v1854, %v2055
  %v2121 = vadd.f32 %v1855, %v2058
  %v2122 = vadd.f32 %v1856, %v2063
  %v2123 = vadd.f32 %v1857, %v2066
  %v2124 = vadd.f32 %v1858, %v2071
  %v2125 = vadd.f32 %v1859, %v2074
  %v2126 = vadd.f32 %v1860, %v2079
  %v2127 = vadd.f32 %v1861, %v2082
  %v2128 = vadd.f32 %v1862, %v2087
  %v2129 = vadd.f32 %v1863, %v2090
  %v2130 = vadd.f32 %v1864, %v2095
  %v2131 = vadd.f32 %v1865, %v2098
  %v2132 = vadd.f32 %v1866, %v2103
  %s2133 = scalar_lea.vmem %s3, 448
  %v2134 = vld [vmem:[%s2133] sm:$0xf]
  %v2135 = vld [vmem:[%s2133 + $0x4] sm:$0xf]
  %v2136 = vld [vmem:[%s2133 + $0x8] sm:$0xf]
  %v2137 = vld [vmem:[%s2133 + $0xc] sm:$0xf]
  %v2138 = vld [vmem:[%s2133 + $0x10] sm:$0xf]
  %v2139 = vld [vmem:[%s2133 + $0x14] sm:$0xf]
  %v2140 = vld [vmem:[%s2133 + $0x18] sm:$0xf]
  %v2141 = vld [vmem:[%s2133 + $0x1c] sm:$0xf]
  %v2142 = vld [vmem:[%s2133 + $0x20] sm:$0xf]
  %v2143 = vld [vmem:[%s2133 + $0x24] sm:$0xf]
  %v2144 = vld [vmem:[%s2133 + $0x28] sm:$0xf]
  %v2145 = vld [vmem:[%s2133 + $0x2c] sm:$0xf]
  %v2146 = vld [vmem:[%s2133 + $0x30] sm:$0xf]
  %v2147 = vld [vmem:[%s2133 + $0x34] sm:$0xf]
  %v2148 = vld [vmem:[%s2133 + $0x38] sm:$0xf]
  %v2149 = vld [vmem:[%s2133 + $0x3c] sm:$0xf]
  %vm2150 = vsmask.f32 5376
  %v2151 = vrot.slane %v206, 2
  %v2152 = vrot.slane %v202, 3
  %v2153 = vor.u32 %v2151, %v2152
  %v2154 = vrot.slane %v214, 2
  %v2155 = vrot.slane %v210, 3
  %v2156 = vor.u32 %v2154, %v2155
  %v2157 = vsel %vm2150, %v2153, %v2156
  %v2158 = vrot.slane %v222, 2
  %v2159 = vrot.slane %v218, 3
  %v2160 = vor.u32 %v2158, %v2159
  %v2161 = vsel %vm2150, %v2156, %v2160
  %v2162 = vrot.slane %v230, 2
  %v2163 = vrot.slane %v226, 3
  %v2164 = vor.u32 %v2162, %v2163
  %v2165 = vsel %vm2150, %v2160, %v2164
  %v2166 = vrot.slane %v238, 2
  %v2167 = vrot.slane %v234, 3
  %v2168 = vor.u32 %v2166, %v2167
  %v2169 = vsel %vm2150, %v2164, %v2168
  %v2170 = vrot.slane %v246, 2
  %v2171 = vrot.slane %v242, 3
  %v2172 = vor.u32 %v2170, %v2171
  %v2173 = vsel %vm2150, %v2168, %v2172
  %v2174 = vrot.slane %v254, 2
  %v2175 = vrot.slane %v250, 3
  %v2176 = vor.u32 %v2174, %v2175
  %v2177 = vsel %vm2150, %v2172, %v2176
  %v2178 = vrot.slane %v262, 2
  %v2179 = vrot.slane %v258, 3
  %v2180 = vor.u32 %v2178, %v2179
  %v2181 = vsel %vm2150, %v2176, %v2180
  %v2182 = vrot.slane %v270, 2
  %v2183 = vrot.slane %v266, 3
  %v2184 = vor.u32 %v2182, %v2183
  %v2185 = vsel %vm2150, %v2180, %v2184
  %v2186 = vrot.slane %v278, 2
  %v2187 = vrot.slane %v274, 3
  %v2188 = vor.u32 %v2186, %v2187
  %v2189 = vsel %vm2150, %v2184, %v2188
  %v2190 = vrot.slane %v286, 2
  %v2191 = vrot.slane %v282, 3
  %v2192 = vor.u32 %v2190, %v2191
  %v2193 = vsel %vm2150, %v2188, %v2192
  %v2194 = vrot.slane %v294, 2
  %v2195 = vrot.slane %v290, 3
  %v2196 = vor.u32 %v2194, %v2195
  %v2197 = vsel %vm2150, %v2192, %v2196
  %v2199 = vshrl.u32 %v1867, 16
  %v2201 = vrot.slane %v2199, 2
  %v2202 = vshll.u32 %v1867, 16
  %v2204 = vrot.slane %v2202, 3
  %v2205 = vor.u32 %v2201, %v2204
  %v2206 = vsel %vm2150, %v2196, %v2205
  %v2236 = vunpack.c.l.b16 %v2134
  %v2237 = vunpack.c.l.b16 %v2135
  %v2238 = vunpack.c.l.b16 %v2136
  %v2239 = vunpack.c.l.b16 %v2137
  %v2240 = vunpack.c.l.b16 %v2138
  %v2241 = vunpack.c.l.b16 %v2139
  %v2242 = vunpack.c.l.b16 %v2140
  %v2243 = vunpack.c.l.b16 %v2141
  %v2244 = vunpack.c.l.b16 %v2142
  %v2245 = vunpack.c.l.b16 %v2143
  %v2246 = vunpack.c.l.b16 %v2144
  %v2247 = vunpack.c.l.b16 %v2145
  %v2248 = vunpack.c.l.b16 %v2146
  %v2249 = vunpack.c.l.b16 %v2147
  %v2250 = vunpack.c.l.b16 %v2148
  %v2251 = vunpack.c.l.b16 %v2149
  %v2252 = vpack.c.b16 %v2237, %v2236
  %v2253 = vpack.c.b16 %v2239, %v2238
  %v2254 = vpack.c.b16 %v2241, %v2240
  %v2255 = vpack.c.b16 %v2243, %v2242
  %v2256 = vpack.c.b16 %v2245, %v2244
  %v2257 = vpack.c.b16 %v2247, %v2246
  %v2258 = vpack.c.b16 %v2249, %v2248
  %v2259 = vpack.c.b16 %v2251, %v2250
  %2268 = vmatprep.subr.bf16.mxu0 0
  %2269 = vmatpush1.bf16.msra.mxu0 %v2252
  %2270 = vmatprep.subr.bf16.mxu0 0
  %2271 = vmatpush1.bf16.msra.mxu0 %v2253
  %2272 = vmatprep.subr.bf16.mxu0 0
  %2273 = vmatpush1.bf16.msra.mxu0 %v2254
  %2274 = vmatprep.subr.bf16.mxu0 0
  %2275 = vmatpush1.bf16.msra.mxu0 %v2255
  %2276 = vmatprep.subr.bf16.mxu0 0
  %2277 = vmatpush1.bf16.msra.mxu0 %v2256
  %2278 = vmatprep.subr.bf16.mxu0 0
  %2279 = vmatpush1.bf16.msra.mxu0 %v2257
  %2280 = vmatprep.subr.bf16.mxu0 0
  %2281 = vmatpush1.bf16.msra.mxu0 %v2258
  %2282 = vmatprep.subr.bf16.mxu0 0
  %2283 = vmatpush1.bf16.msra.mxu0 %v2259
  %2284 = vmatprep.subr.bf16.mxu0 0
  %2285 = vmatpush1.bf16.msra.mxu0 0
  %2286 = vmatprep.subr.bf16.mxu0 0
  %2287 = vmatpush1.bf16.msra.mxu0 0
  %2288 = vmatprep.subr.bf16.mxu0 0
  %2289 = vmatpush1.bf16.msra.mxu0 0
  %2290 = vmatprep.subr.bf16.mxu0 0
  %2291 = vmatpush1.bf16.msra.mxu0 0
  %2292 = vmatprep.subr.bf16.mxu0 0
  %2293 = vmatpush1.bf16.msra.mxu0 0
  %2294 = vmatprep.subr.bf16.mxu0 0
  %2295 = vmatpush1.bf16.msra.mxu0 0
  %2296 = vmatprep.subr.bf16.mxu0 0
  %2297 = vmatpush1.bf16.msra.mxu0 0
  %2298 = vmatprep.subr.bf16.mxu0 0
  %2299 = vmatpush1.bf16.msra.mxu0 0
  %2300 = vmatprep.mubr.bf16.mxu0 0
  %2301 = vmatmul.mubr.bf16.gmra.mrb[0].mxu0 %v2157
  %v2302 = vpop.f32.mrb[0].mxu0
  %v2303 = vadd.f32 0.0, %v2302
  %v2304 = vpop.f32.mrb[0].mxu0
  %v2305 = vpop.f32.mrb[0].mxu0
  %v2306 = vadd.f32 0.0, %v2305
  %v2307 = vpop.f32.mrb[0].mxu0
  %2308 = vmatprep.mubr.bf16.mxu0 0
  %2309 = vmatmul.mubr.bf16.gmra.mrb[0].mxu0 %v2161
  %v2310 = vpop.f32.mrb[0].mxu0
  %v2311 = vadd.f32 0.0, %v2310
  %v2312 = vpop.f32.mrb[0].mxu0
  %v2313 = vpop.f32.mrb[0].mxu0
  %v2314 = vadd.f32 0.0, %v2313
  %v2315 = vpop.f32.mrb[0].mxu0
  %2316 = vmatprep.mubr.bf16.mxu0 0
  %2317 = vmatmul.mubr.bf16.gmra.mrb[0].mxu0 %v2165
  %v2318 = vpop.f32.mrb[0].mxu0
  %v2319 = vadd.f32 0.0, %v2318
  %v2320 = vpop.f32.mrb[0].mxu0
  %v2321 = vpop.f32.mrb[0].mxu0
  %v2322 = vadd.f32 0.0, %v2321
  %v2323 = vpop.f32.mrb[0].mxu0
  %2324 = vmatprep.mubr.bf16.mxu0 0
  %2325 = vmatmul.mubr.bf16.gmra.mrb[0].mxu0 %v2169
  %v2326 = vpop.f32.mrb[0].mxu0
  %v2327 = vadd.f32 0.0, %v2326
  %v2328 = vpop.f32.mrb[0].mxu0
  %v2329 = vpop.f32.mrb[0].mxu0
  %v2330 = vadd.f32 0.0, %v2329
  %v2331 = vpop.f32.mrb[0].mxu0
  %2332 = vmatprep.mubr.bf16.mxu0 0
  %2333 = vmatmul.mubr.bf16.gmra.mrb[0].mxu0 %v2173
  %v2334 = vpop.f32.mrb[0].mxu0
  %v2335 = vadd.f32 0.0, %v2334
  %v2336 = vpop.f32.mrb[0].mxu0
  %v2337 = vpop.f32.mrb[0].mxu0
  %v2338 = vadd.f32 0.0, %v2337
  %v2339 = vpop.f32.mrb[0].mxu0
  %2340 = vmatprep.mubr.bf16.mxu0 0
  %2341 = vmatmul.mubr.bf16.gmra.mrb[0].mxu0 %v2177
  %v2342 = vpop.f32.mrb[0].mxu0
  %v2343 = vadd.f32 0.0, %v2342
  %v2344 = vpop.f32.mrb[0].mxu0
  %v2345 = vpop.f32.mrb[0].mxu0
  %v2346 = vadd.f32 0.0, %v2345
  %v2347 = vpop.f32.mrb[0].mxu0
  %2348 = vmatprep.mubr.bf16.mxu0 0
  %2349 = vmatmul.mubr.bf16.gmra.mrb[0].mxu0 %v2181
  %v2350 = vpop.f32.mrb[0].mxu0
  %v2351 = vadd.f32 0.0, %v2350
  %v2352 = vpop.f32.mrb[0].mxu0
  %v2353 = vpop.f32.mrb[0].mxu0
  %v2354 = vadd.f32 0.0, %v2353
  %v2355 = vpop.f32.mrb[0].mxu0
  %2356 = vmatprep.mubr.bf16.mxu0 0
  %2357 = vmatmul.mubr.bf16.gmra.mrb[0].mxu0 %v2185
  %v2358 = vpop.f32.mrb[0].mxu0
  %v2359 = vadd.f32 0.0, %v2358
  %v2360 = vpop.f32.mrb[0].mxu0
  %v2361 = vpop.f32.mrb[0].mxu0
  %v2362 = vadd.f32 0.0, %v2361
  %v2363 = vpop.f32.mrb[0].mxu0
  %2364 = vmatprep.mubr.bf16.mxu0 0
  %2365 = vmatmul.mubr.bf16.gmra.mrb[0].mxu0 %v2189
  %v2366 = vpop.f32.mrb[0].mxu0
  %v2367 = vadd.f32 0.0, %v2366
  %v2368 = vpop.f32.mrb[0].mxu0
  %v2369 = vpop.f32.mrb[0].mxu0
  %v2370 = vadd.f32 0.0, %v2369
  %v2371 = vpop.f32.mrb[0].mxu0
  %2372 = vmatprep.mubr.bf16.mxu0 0
  %2373 = vmatmul.mubr.bf16.gmra.mrb[0].mxu0 %v2193
  %v2374 = vpop.f32.mrb[0].mxu0
  %v2375 = vadd.f32 0.0, %v2374
  %v2376 = vpop.f32.mrb[0].mxu0
  %v2377 = vpop.f32.mrb[0].mxu0
  %v2378 = vadd.f32 0.0, %v2377
  %v2379 = vpop.f32.mrb[0].mxu0
  %2380 = vmatprep.mubr.bf16.mxu0 0
  %2381 = vmatmul.mubr.bf16.gmra.mrb[0].mxu0 %v2197
  %v2382 = vpop.f32.mrb[0].mxu0
  %v2383 = vadd.f32 0.0, %v2382
  %v2384 = vpop.f32.mrb[0].mxu0
  %v2385 = vpop.f32.mrb[0].mxu0
  %v2386 = vadd.f32 0.0, %v2385
  %v2387 = vpop.f32.mrb[0].mxu0
  %2388 = vmatprep.mubr.bf16.mxu0 0
  %2389 = vmatmul.mubr.bf16.gmra.mrb[0].mxu0 %v2206
  %v2390 = vpop.f32.mrb[0].mxu0
  %v2391 = vadd.f32 0.0, %v2390
  %v2392 = vpop.f32.mrb[0].mxu0
  %v2393 = vpop.f32.mrb[0].mxu0
  %v2394 = vadd.f32 0.0, %v2393
  %v2395 = vpop.f32.mrb[0].mxu0
  %2396 = vmatprep.mubr.bf16.mxu0 0
  %2397 = vmatmul.mubr.bf16.gmra.mrb[0].mxu0 %v2205
  %v2398 = vpop.f32.mrb[0].mxu0
  %v2399 = vadd.f32 0.0, %v2398
  %v2400 = vpop.f32.mrb[0].mxu0
  %v2401 = vpop.f32.mrb[0].mxu0
  %v2402 = vpop.f32.mrb[0].mxu0
  %2403 = vdwg.mxu0
  %v2404 = vadd.f32 %v2108, %v2303
  %v2405 = vadd.f32 %v2109, %v2306
  %v2406 = vadd.f32 %v2110, %v2311
  %v2407 = vadd.f32 %v2111, %v2314
  %v2408 = vadd.f32 %v2112, %v2319
  %v2409 = vadd.f32 %v2113, %v2322
  %v2410 = vadd.f32 %v2114, %v2327
  %v2411 = vadd.f32 %v2115, %v2330
  %v2412 = vadd.f32 %v2116, %v2335
  %v2413 = vadd.f32 %v2117, %v2338
  %v2414 = vadd.f32 %v2118, %v2343
  %v2415 = vadd.f32 %v2119, %v2346
  %v2416 = vadd.f32 %v2120, %v2351
  %v2417 = vadd.f32 %v2121, %v2354
  %v2418 = vadd.f32 %v2122, %v2359
  %v2419 = vadd.f32 %v2123, %v2362
  %v2420 = vadd.f32 %v2124, %v2367
  %v2421 = vadd.f32 %v2125, %v2370
  %v2422 = vadd.f32 %v2126, %v2375
  %v2423 = vadd.f32 %v2127, %v2378
  %v2424 = vadd.f32 %v2128, %v2383
  %v2425 = vadd.f32 %v2129, %v2386
  %v2426 = vadd.f32 %v2130, %v2391
  %v2427 = vadd.f32 %v2131, %v2394
  %v2428 = vadd.f32 %v2132, %v2399
  %s2429 = scalar_lea.vmem %s3, 512
  %v2430 = vld [vmem:[%s2429] sm:$0xf]
  %v2431 = vld [vmem:[%s2429 + $0x4] sm:$0xf]
  %v2432 = vld [vmem:[%s2429 + $0x8] sm:$0xf]
  %v2433 = vld [vmem:[%s2429 + $0xc] sm:$0xf]
  %v2434 = vld [vmem:[%s2429 + $0x10] sm:$0xf]
  %v2435 = vld [vmem:[%s2429 + $0x14] sm:$0xf]
  %v2436 = vld [vmem:[%s2429 + $0x18] sm:$0xf]
  %v2437 = vld [vmem:[%s2429 + $0x1c] sm:$0xf]
  %v2438 = vld [vmem:[%s2429 + $0x20] sm:$0xf]
  %v2439 = vld [vmem:[%s2429 + $0x24] sm:$0xf]
  %v2440 = vld [vmem:[%s2429 + $0x28] sm:$0xf]
  %v2441 = vld [vmem:[%s2429 + $0x2c] sm:$0xf]
  %v2442 = vld [vmem:[%s2429 + $0x30] sm:$0xf]
  %v2443 = vld [vmem:[%s2429 + $0x34] sm:$0xf]
  %v2444 = vld [vmem:[%s2429 + $0x38] sm:$0xf]
  %v2445 = vld [vmem:[%s2429 + $0x3c] sm:$0xf]
  %vm2446 = vcmask 1044480
  %v2447 = vrot.slane %v147, 3
  %v2448 = vrot.slane %v148, 3
  %v2449 = vsel %vm2446, %v2447, %v2448
  %v2450 = vrot.slane %v149, 3
  %v2451 = vsel %vm2446, %v2448, %v2450
  %v2452 = vrot.slane %v150, 3
  %v2453 = vsel %vm2446, %v2450, %v2452
  %v2454 = vrot.slane %v151, 3
  %v2455 = vsel %vm2446, %v2452, %v2454
  %v2456 = vrot.slane %v152, 3
  %v2457 = vsel %vm2446, %v2454, %v2456
  %v2458 = vrot.slane %v153, 3
  %v2459 = vsel %vm2446, %v2456, %v2458
  %v2460 = vrot.slane %v154, 3
  %v2461 = vsel %vm2446, %v2458, %v2460
  %v2462 = vrot.slane %v155, 3
  %v2463 = vsel %vm2446, %v2460, %v2462
  %v2464 = vrot.slane %v156, 3
  %v2465 = vsel %vm2446, %v2462, %v2464
  %v2466 = vrot.slane %v157, 3
  %v2467 = vsel %vm2446, %v2464, %v2466
  %v2468 = vrot.slane %v175, 3
  %v2469 = vsel %vm2446, %v2466, %v2468
  %v2470 = vrot.slane %v1867, 3
  %v2471 = vsel %vm2446, %v2468, %v2470
  %v2501 = vunpack.c.l.b16 %v2430
  %v2502 = vunpack.c.l.b16 %v2431
  %v2503 = vunpack.c.l.b16 %v2432
  %v2504 = vunpack.c.l.b16 %v2433
  %v2505 = vunpack.c.l.b16 %v2434
  %v2506 = vunpack.c.l.b16 %v2435
  %v2507 = vunpack.c.l.b16 %v2436
  %v2508 = vunpack.c.l.b16 %v2437
  %v2509 = vunpack.c.l.b16 %v2438
  %v2510 = vunpack.c.l.b16 %v2439
  %v2511 = vunpack.c.l.b16 %v2440
  %v2512 = vunpack.c.l.b16 %v2441
  %v2513 = vunpack.c.l.b16 %v2442
  %v2514 = vunpack.c.l.b16 %v2443
  %v2515 = vunpack.c.l.b16 %v2444
  %v2516 = vunpack.c.l.b16 %v2445
  %v2517 = vpack.c.b16 %v2502, %v2501
  %v2518 = vpack.c.b16 %v2504, %v2503
  %v2519 = vpack.c.b16 %v2506, %v2505
  %v2520 = vpack.c.b16 %v2508, %v2507
  %v2521 = vpack.c.b16 %v2510, %v2509
  %v2522 = vpack.c.b16 %v2512, %v2511
  %v2523 = vpack.c.b16 %v2514, %v2513
  %v2524 = vpack.c.b16 %v2516, %v2515
  %2533 = vmatprep.subr.bf16.mxu0 0
  %2534 = vmatpush1.bf16.msra.mxu0 %v2517
  %2535 = vmatprep.subr.bf16.mxu0 0
  %2536 = vmatpush1.bf16.msra.mxu0 %v2518
  %2537 = vmatprep.subr.bf16.mxu0 0
  %2538 = vmatpush1.bf16.msra.mxu0 %v2519
  %2539 = vmatprep.subr.bf16.mxu0 0
  %2540 = vmatpush1.bf16.msra.mxu0 %v2520
  %2541 = vmatprep.subr.bf16.mxu0 0
  %2542 = vmatpush1.bf16.msra.mxu0 %v2521
  %2543 = vmatprep.subr.bf16.mxu0 0
  %2544 = vmatpush1.bf16.msra.mxu0 %v2522
  %2545 = vmatprep.subr.bf16.mxu0 0
  %2546 = vmatpush1.bf16.msra.mxu0 %v2523
  %2547 = vmatprep.subr.bf16.mxu0 0
  %2548 = vmatpush1.bf16.msra.mxu0 %v2524
  %2549 = vmatprep.subr.bf16.mxu0 0
  %2550 = vmatpush1.bf16.msra.mxu0 0
  %2551 = vmatprep.subr.bf16.mxu0 0
  %2552 = vmatpush1.bf16.msra.mxu0 0
  %2553 = vmatprep.subr.bf16.mxu0 0
  %2554 = vmatpush1.bf16.msra.mxu0 0
  %2555 = vmatprep.subr.bf16.mxu0 0
  %2556 = vmatpush1.bf16.msra.mxu0 0
  %2557 = vmatprep.subr.bf16.mxu0 0
  %2558 = vmatpush1.bf16.msra.mxu0 0
  %2559 = vmatprep.subr.bf16.mxu0 0
  %2560 = vmatpush1.bf16.msra.mxu0 0
  %2561 = vmatprep.subr.bf16.mxu0 0
  %2562 = vmatpush1.bf16.msra.mxu0 0
  %2563 = vmatprep.subr.bf16.mxu0 0
  %2564 = vmatpush1.bf16.msra.mxu0 0
  %2565 = vmatprep.mubr.bf16.mxu0 0
  %2566 = vmatmul.mubr.bf16.gmra.mrb[0].mxu0 %v2449
  %v2567 = vpop.f32.mrb[0].mxu0
  %v2568 = vadd.f32 0.0, %v2567
  %v2569 = vpop.f32.mrb[0].mxu0
  %v2570 = vpop.f32.mrb[0].mxu0
  %v2571 = vadd.f32 0.0, %v2570
  %v2572 = vpop.f32.mrb[0].mxu0
  %2573 = vmatprep.mubr.bf16.mxu0 0
  %2574 = vmatmul.mubr.bf16.gmra.mrb[0].mxu0 %v2451
  %v2575 = vpop.f32.mrb[0].mxu0
  %v2576 = vadd.f32 0.0, %v2575
  %v2577 = vpop.f32.mrb[0].mxu0
  %v2578 = vpop.f32.mrb[0].mxu0
  %v2579 = vadd.f32 0.0, %v2578
  %v2580 = vpop.f32.mrb[0].mxu0
  %2581 = vmatprep.mubr.bf16.mxu0 0
  %2582 = vmatmul.mubr.bf16.gmra.mrb[0].mxu0 %v2453
  %v2583 = vpop.f32.mrb[0].mxu0
  %v2584 = vadd.f32 0.0, %v2583
  %v2585 = vpop.f32.mrb[0].mxu0
  %v2586 = vpop.f32.mrb[0].mxu0
  %v2587 = vadd.f32 0.0, %v2586
  %v2588 = vpop.f32.mrb[0].mxu0
  %2589 = vmatprep.mubr.bf16.mxu0 0
  %2590 = vmatmul.mubr.bf16.gmra.mrb[0].mxu0 %v2455
  %v2591 = vpop.f32.mrb[0].mxu0
  %v2592 = vadd.f32 0.0, %v2591
  %v2593 = vpop.f32.mrb[0].mxu0
  %v2594 = vpop.f32.mrb[0].mxu0
  %v2595 = vadd.f32 0.0, %v2594
  %v2596 = vpop.f32.mrb[0].mxu0
  %2597 = vmatprep.mubr.bf16.mxu0 0
  %2598 = vmatmul.mubr.bf16.gmra.mrb[0].mxu0 %v2457
  %v2599 = vpop.f32.mrb[0].mxu0
  %v2600 = vadd.f32 0.0, %v2599
  %v2601 = vpop.f32.mrb[0].mxu0
  %v2602 = vpop.f32.mrb[0].mxu0
  %v2603 = vadd.f32 0.0, %v2602
  %v2604 = vpop.f32.mrb[0].mxu0
  %2605 = vmatprep.mubr.bf16.mxu0 0
  %2606 = vmatmul.mubr.bf16.gmra.mrb[0].mxu0 %v2459
  %v2607 = vpop.f32.mrb[0].mxu0
  %v2608 = vadd.f32 0.0, %v2607
  %v2609 = vpop.f32.mrb[0].mxu0
  %v2610 = vpop.f32.mrb[0].mxu0
  %v2611 = vadd.f32 0.0, %v2610
  %v2612 = vpop.f32.mrb[0].mxu0
  %2613 = vmatprep.mubr.bf16.mxu0 0
  %2614 = vmatmul.mubr.bf16.gmra.mrb[0].mxu0 %v2461
  %v2615 = vpop.f32.mrb[0].mxu0
  %v2616 = vadd.f32 0.0, %v2615
  %v2617 = vpop.f32.mrb[0].mxu0
  %v2618 = vpop.f32.mrb[0].mxu0
  %v2619 = vadd.f32 0.0, %v2618
  %v2620 = vpop.f32.mrb[0].mxu0
  %2621 = vmatprep.mubr.bf16.mxu0 0
  %2622 = vmatmul.mubr.bf16.gmra.mrb[0].mxu0 %v2463
  %v2623 = vpop.f32.mrb[0].mxu0
  %v2624 = vadd.f32 0.0, %v2623
  %v2625 = vpop.f32.mrb[0].mxu0
  %v2626 = vpop.f32.mrb[0].mxu0
  %v2627 = vadd.f32 0.0, %v2626
  %v2628 = vpop.f32.mrb[0].mxu0
  %2629 = vmatprep.mubr.bf16.mxu0 0
  %2630 = vmatmul.mubr.bf16.gmra.mrb[0].mxu0 %v2465
  %v2631 = vpop.f32.mrb[0].mxu0
  %v2632 = vadd.f32 0.0, %v2631
  %v2633 = vpop.f32.mrb[0].mxu0
  %v2634 = vpop.f32.mrb[0].mxu0
  %v2635 = vadd.f32 0.0, %v2634
  %v2636 = vpop.f32.mrb[0].mxu0
  %2637 = vmatprep.mubr.bf16.mxu0 0
  %2638 = vmatmul.mubr.bf16.gmra.mrb[0].mxu0 %v2467
  %v2639 = vpop.f32.mrb[0].mxu0
  %v2640 = vadd.f32 0.0, %v2639
  %v2641 = vpop.f32.mrb[0].mxu0
  %v2642 = vpop.f32.mrb[0].mxu0
  %v2643 = vadd.f32 0.0, %v2642
  %v2644 = vpop.f32.mrb[0].mxu0
  %2645 = vmatprep.mubr.bf16.mxu0 0
  %2646 = vmatmul.mubr.bf16.gmra.mrb[0].mxu0 %v2469
  %v2647 = vpop.f32.mrb[0].mxu0
  %v2648 = vadd.f32 0.0, %v2647
  %v2649 = vpop.f32.mrb[0].mxu0
  %v2650 = vpop.f32.mrb[0].mxu0
  %v2651 = vadd.f32 0.0, %v2650
  %v2652 = vpop.f32.mrb[0].mxu0
  %2653 = vmatprep.mubr.bf16.mxu0 0
  %2654 = vmatmul.mubr.bf16.gmra.mrb[0].mxu0 %v2471
  %v2655 = vpop.f32.mrb[0].mxu0
  %v2656 = vadd.f32 0.0, %v2655
  %v2657 = vpop.f32.mrb[0].mxu0
  %v2658 = vpop.f32.mrb[0].mxu0
  %v2659 = vadd.f32 0.0, %v2658
  %v2660 = vpop.f32.mrb[0].mxu0
  %2661 = vmatprep.mubr.bf16.mxu0 0
  %2662 = vmatmul.mubr.bf16.gmra.mrb[0].mxu0 %v2470
  %v2663 = vpop.f32.mrb[0].mxu0
  %v2664 = vadd.f32 0.0, %v2663
  %v2665 = vpop.f32.mrb[0].mxu0
  %v2666 = vpop.f32.mrb[0].mxu0
  %v2667 = vpop.f32.mrb[0].mxu0
  %2668 = vdwg.mxu0
  %v2669 = vadd.f32 %v2404, %v2568
  %v2670 = vadd.f32 %v2405, %v2571
  %v2671 = vadd.f32 %v2406, %v2576
  %v2672 = vadd.f32 %v2407, %v2579
  %v2673 = vadd.f32 %v2408, %v2584
  %v2674 = vadd.f32 %v2409, %v2587
  %v2675 = vadd.f32 %v2410, %v2592
  %v2676 = vadd.f32 %v2411, %v2595
  %v2677 = vadd.f32 %v2412, %v2600
  %v2678 = vadd.f32 %v2413, %v2603
  %v2679 = vadd.f32 %v2414, %v2608
  %v2680 = vadd.f32 %v2415, %v2611
  %v2681 = vadd.f32 %v2416, %v2616
  %v2682 = vadd.f32 %v2417, %v2619
  %v2683 = vadd.f32 %v2418, %v2624
  %v2684 = vadd.f32 %v2419, %v2627
  %v2685 = vadd.f32 %v2420, %v2632
  %v2686 = vadd.f32 %v2421, %v2635
  %v2687 = vadd.f32 %v2422, %v2640
  %v2688 = vadd.f32 %v2423, %v2643
  %v2689 = vadd.f32 %v2424, %v2648
  %v2690 = vadd.f32 %v2425, %v2651
  %v2691 = vadd.f32 %v2426, %v2656
  %v2692 = vadd.f32 %v2427, %v2659
  %v2693 = vadd.f32 %v2428, %v2664
  %2694 = vst [vmem:[%s4] sm:$0xff] %v2669
  %2695 = vst [vmem:[%s4 + $0x8] sm:$0xff] %v2670
  %2696 = vst [vmem:[%s4 + $0x10] sm:$0xff] %v2671
  %2697 = vst [vmem:[%s4 + $0x18] sm:$0xff] %v2672
  %2698 = vst [vmem:[%s4 + $0x20] sm:$0xff] %v2673
  %2699 = vst [vmem:[%s4 + $0x28] sm:$0xff] %v2674
  %2700 = vst [vmem:[%s4 + $0x30] sm:$0xff] %v2675
  %2701 = vst [vmem:[%s4 + $0x38] sm:$0xff] %v2676
  %2702 = vst [vmem:[%s4 + $0x40] sm:$0xff] %v2677
  %2703 = vst [vmem:[%s4 + $0x48] sm:$0xff] %v2678
  %2704 = vst [vmem:[%s4 + $0x50] sm:$0xff] %v2679
  %2705 = vst [vmem:[%s4 + $0x58] sm:$0xff] %v2680
  %2706 = vst [vmem:[%s4 + $0x60] sm:$0xff] %v2681
  %2707 = vst [vmem:[%s4 + $0x68] sm:$0xff] %v2682
  %2708 = vst [vmem:[%s4 + $0x70] sm:$0xff] %v2683
  %2709 = vst [vmem:[%s4 + $0x78] sm:$0xff] %v2684
  %2710 = vst [vmem:[%s4 + $0x80] sm:$0xff] %v2685
  %2711 = vst [vmem:[%s4 + $0x88] sm:$0xff] %v2686
  %2712 = vst [vmem:[%s4 + $0x90] sm:$0xff] %v2687
  %2713 = vst [vmem:[%s4 + $0x98] sm:$0xff] %v2688
  %2714 = vst [vmem:[%s4 + $0xa0] sm:$0xff] %v2689
  %2715 = vst [vmem:[%s4 + $0xa8] sm:$0xff] %v2690
  %2716 = vst [vmem:[%s4 + $0xb0] sm:$0xff] %v2691
  %2717 = vst [vmem:[%s4 + $0xb8] sm:$0xff] %v2692
  %2718 = vst [vmem:[%s4 + $0xc0] sm:$0xff] %v2693
  // Predicated region
  $region18: #{run.6} parent=0 // pred_check
    _
  $region19: #{run.6} parent=0 // pred_check_branch
    %2720 = sbr.rel (0) target = $region21
  $region20: #{run.6} parent=0 // pred_region
    _
  $region21: #{run.6} parent=0 // pred_fallthru
    _
  // Predicated region
  $region22: #{run.6} parent=0 // pred_check
    _
  $region23: #{run.6} parent=0 // pred_check_branch
    %2722 = sbr.rel (0) target = $region25
  $region24: #{run.6} parent=0 // pred_region
    _
  $region25: #{run.6} parent=0 // pred_fallthru
    _

</llo_original>
